<compile_context>
chip_gen: v5e
topology: v5e:2x2
jax: 0.10.0
libtpu: 0.0.40
codegen_flags: <defaults>
</compile_context>

<pallas_src>
import math

import jax
import jax.numpy as jnp
from jax import lax
from jax.experimental import pallas as pl
from jax.experimental.pallas import tpu as pltpu

# ----------------------------- hyper-parameters -----------------------------
BATCH = 2
IMG_CHANNELS = 3
IMAGE_SIZE = 16
PATCH = 4
NUM_TOKENS = (IMAGE_SIZE // PATCH) ** 2          # 16 tokens -> H_enc = W_enc = 4
PATCH_DIM = IMG_CHANNELS * PATCH * PATCH         # 48
D_MODEL = 32
NUM_ENC_BLOCKS = 2
ENC_HEADS = 2
NUM_SLOTS = 4
SLOT_SIZE = 32
MLP_HIDDEN = 64
NUM_ITERATIONS = 2
NUM_DEC_BLOCKS = 2
NUM_HEADS = 2            # decoder self-attn heads
NUM_CROSS_HEADS = 2      # decoder cross-attn heads (hooked attention)
DROPOUT = 0.0            # inference semantics: dropout is a no-op


# --------------------------- in-kernel helpers --------------------------------
def _layernorm(x, g, b, eps=1e-5):
    """x: (T, D); g, b: (1, D)."""
    mean = jnp.mean(x, axis=-1, keepdims=True)
    var = jnp.mean(jnp.square(x - mean), axis=-1, keepdims=True)
    return (x - mean) * lax.rsqrt(var + eps) * g + b


def _ln(x, ref, l=None):
    """LayerNorm with gamma/beta packed as rows 0/1 of a (2, D) (or (L, 2, D)) ref."""
    if l is None:
        return _layernorm(x, ref[0:1, :], ref[1:2, :])
    return _layernorm(x, ref[l, 0:1, :], ref[l, 1:2, :])


def _self_attention(x, wqkv, bqkv, wo, bo, *, num_heads, mask=None):
    """Fused multi-head self attention.  x: (T, D); wqkv: (D, 3D); wo: (D, D).

    The 1/sqrt(d_head) scale is pre-folded into the Q columns of wqkv (and
    bqkv) at init, so no per-head scaling multiply is emitted here."""
    T, D = x.shape
    dh = D // num_heads
    qkv = jnp.dot(x, wqkv, preferred_element_type=jnp.float32)       # (T, 3D)
    if bqkv is not None:
        qkv = qkv + bqkv
    out = None
    for h in range(num_heads):
        qh = qkv[:, h * dh:(h + 1) * dh]
        kh = qkv[:, D + h * dh:D + (h + 1) * dh]
        vh = qkv[:, 2 * D + h * dh:2 * D + (h + 1) * dh]
        s = lax.dot_general(qh, kh, (((1,), (1,)), ((), ())),
                            preferred_element_type=jnp.float32)      # (T, T)
        if mask is not None:
            s = jnp.where(mask, s, jnp.float32(-1e30))
        m = jnp.max(s, axis=-1, keepdims=True)
        p = jnp.exp(s - m)
        p = p * pl.reciprocal(jnp.sum(p, axis=-1, keepdims=True), approx=True)
        oh = jnp.dot(p, vh, preferred_element_type=jnp.float32)      # (T, dh)
        # fold the output projection into the head loop (no activation concat)
        contrib = jnp.dot(oh, wo[h * dh:(h + 1) * dh, :],
                          preferred_element_type=jnp.float32)        # (T, D)
        out = contrib if out is None else out + contrib
    if bo is not None:
        out = out + bo
    return out


def _cross_attention(xq, xkv, wq, wkv, wo, *, num_heads):
    """Cross attention (queries xq: (T, D), keys/values xkv: (K, D)).

    Attention probabilities are computed in transposed (K, T) layout so the
    hooked attention map can be produced lane-dense without a transpose.
    The 1/sqrt(d_head) scale is pre-folded into wq at init.
    Returns (out (T, D), probs_t summed over heads (K, T))."""
    T, D = xq.shape
    dh = D // num_heads
    q = jnp.dot(xq, wq, preferred_element_type=jnp.float32)          # (T, D)
    kv = jnp.dot(xkv, wkv, preferred_element_type=jnp.float32)       # (K, 2D)
    out = None
    probs_t = None
    for h in range(num_heads):
        qh = q[:, h * dh:(h + 1) * dh]                               # (T, dh)
        kh = kv[:, h * dh:(h + 1) * dh]                              # (K, dh)
        vh = kv[:, D + h * dh:D + (h + 1) * dh]                      # (K, dh)
        s_t = lax.dot_general(kh, qh, (((1,), (1,)), ((), ())),
                              preferred_element_type=jnp.float32)    # (K, T)
        m = jnp.max(s_t, axis=0, keepdims=True)
        e = jnp.exp(s_t - m)
        p_t = e * pl.reciprocal(jnp.sum(e, axis=0, keepdims=True), approx=True)
        oh = lax.dot_general(p_t, vh, (((0,), (0,)), ((), ())),
                             preferred_element_type=jnp.float32)     # (T, dh)
        contrib = jnp.dot(oh, wo[h * dh:(h + 1) * dh, :],
                          preferred_element_type=jnp.float32)        # (T, D)
        out = contrib if out is None else out + contrib
        probs_t = p_t if probs_t is None else probs_t + p_t
    return out, probs_t


# ----------------------------- the fused kernel --------------------------------
def _dino_slot_kernel(
        # batched input
        patches_ref,
        # --- frozen ViT encoder weights ---
        pw_ref, add_ref, e_ln1_ref, e_qkv_w_ref, e_qkv_b_ref, e_wo_ref, e_bo_ref,
        e_ln2_ref, e_fc1_w_ref, e_fc1_b_ref, e_fc2_w_ref, e_fc2_b_ref, e_lnf_ref,
        # --- slot-attention encoder weights ---
        s_mlp_ln_ref, s_mlp_w1_ref, s_mlp_b1_ref, s_mlp_w2_ref, s_mlp_b2_ref,
        s_init_ref, s_in_ln_ref, s_wkv_ref, s_slot_ln_ref, s_wq_ref,
        s_gru_wi_ref, s_gru_wh_ref, s_gru_bi_ref, s_gru_bh_ref,
        s_mlp2_ln_ref, s_w1_ref, s_b1_ref, s_w2_ref, s_b2_ref,
        # --- transformer decoder weights ---
        bos_ref, ipw_ref, ip_ln_ref, spw_ref, sp_ln_ref,
        d_sa_ln_ref, d_sa_qkv_ref, d_sa_wo_ref,
        d_ca_ln_ref, d_ca_wq_ref, d_ca_wkv_ref, d_ca_wo_ref,
        d_ffn_ln_ref, d_ffn_w1_ref, d_ffn_b1_ref, d_ffn_w2_ref, d_ffn_b2_ref,
        d_lnf_ref,
        # --- outputs ---
        out_a_ref, out_b_ref,
        # --- scratch ---
        x17_ref):
    N, D, S, K = NUM_TOKENS, D_MODEL, SLOT_SIZE, NUM_SLOTS

    # ======================== frozen ViT encoder ========================
    pe = jnp.dot(patches_ref[0], pw_ref[...],
                 preferred_element_type=jnp.float32)                 # (N, D)
    # (N+1, D) token sequence (CLS token kept at the LAST row); add_ref already
    # carries pos_embed[1:]+patch_bias for token rows and pos_embed[0]+cls_token
    # for the CLS row.  Both scratch writes are sublane-aligned (offsets 0, 16).
    x17_ref[:N, :] = pe
    x17_ref[N:, :] = jnp.zeros((1, D), jnp.float32)
    x = x17_ref[...] + add_ref[...]                                  # (N+1, D)
    for l in range(NUM_ENC_BLOCKS):
        h = _ln(x, e_ln1_ref, l)
        x = x + _self_attention(h, e_qkv_w_ref[l], e_qkv_b_ref[l],
                                e_wo_ref[l], e_bo_ref[l],
                                num_heads=ENC_HEADS, mask=None)
        h = _ln(x, e_ln2_ref, l)
        h = jnp.dot(h, e_fc1_w_ref[l], preferred_element_type=jnp.float32) + e_fc1_b_ref[l]
        # TODO(synk): PyTorch nn.GELU default is exact erf GELU; tanh approx used
        # for robust Mosaic lowering (encoder is a synthetic frozen stand-in).
        h = jax.nn.gelu(h, approximate=True)
        h = jnp.dot(h, e_fc2_w_ref[l], preferred_element_type=jnp.float32) + e_fc2_b_ref[l]
        x = x + h
    x = _ln(x, e_lnf_ref)                                            # encoder_final_norm=True
    emb = x[:N, :]                                                   # drop CLS; emb_input == emb_target

    # ===================== slot-attention encoder =======================
    h = _ln(emb, s_mlp_ln_ref)
    h = jnp.maximum(jnp.dot(h, s_mlp_w1_ref[...],
                            preferred_element_type=jnp.float32) + s_mlp_b1_ref[...], 0.0)
    inputs = jnp.dot(h, s_mlp_w2_ref[...],
                     preferred_element_type=jnp.float32) + s_mlp_b2_ref[...]
    inp_n = _ln(inputs, s_in_ln_ref)
    # K/V in one lane-dense matmul; slot_size**-0.5 is pre-folded into the K half.
    kv = jnp.dot(inp_n, s_wkv_ref[...], preferred_element_type=jnp.float32)   # (N, 2S)
    k = kv[:, :S]
    v = kv[:, S:]
    slots = s_init_ref[...]                                          # (K, S)
    attn_t = None
    logits_t = None
    for _ in range(NUM_ITERATIONS):                                  # unrolled (2 iters)
        slots_prev = slots
        sn = _ln(slots, s_slot_ln_ref)
        q = jnp.dot(sn, s_wq_ref[...], preferred_element_type=jnp.float32)    # (K, S)
        # logits directly in transposed (slots, tokens) layout
        logits_t = lax.dot_general(q, k, (((1,), (1,)), ((), ())),
                                   preferred_element_type=jnp.float32)        # (K, N)
        m = jnp.max(logits_t, axis=0, keepdims=True)
        e = jnp.exp(logits_t - m)
        attn_t = e * pl.reciprocal(jnp.sum(e, axis=0, keepdims=True), approx=True)
        a = attn_t + 1e-8
        a = a * pl.reciprocal(jnp.sum(a, axis=1, keepdims=True), approx=True)  # mean over tokens
        updates = jnp.dot(a, v, preferred_element_type=jnp.float32)            # (K, S)
        # GRU cell: lane-dense (S, 3S) gate matmuls
        gi = jnp.dot(updates, s_gru_wi_ref[...],
                     preferred_element_type=jnp.float32) + s_gru_bi_ref[...]
        gh = jnp.dot(slots_prev, s_gru_wh_ref[...],
                     preferred_element_type=jnp.float32) + s_gru_bh_ref[...]
        r = jax.nn.sigmoid(gi[:, :S] + gh[:, :S])
        z = jax.nn.sigmoid(gi[:, S:2 * S] + gh[:, S:2 * S])
        ng = jnp.tanh(gi[:, 2 * S:] + r * gh[:, 2 * S:])
        slots = (1.0 - z) * ng + z * slots_prev
        # per-iteration slot MLP with residual
        hs = _ln(slots, s_mlp2_ln_ref)
        hs = jnp.maximum(jnp.dot(hs, s_w1_ref[...],
                                 preferred_element_type=jnp.float32) + s_b1_ref[...], 0.0)
        hs = jnp.dot(hs, s_w2_ref[...], preferred_element_type=jnp.float32) + s_b2_ref[...]
        slots = slots + hs

    # ======================= transformer decoder ========================
    # row/col iotas shared by the shifted-input build and the (hoisted) causal mask
    ri = lax.broadcasted_iota(jnp.int32, (N, N), 0)
    ci = lax.broadcasted_iota(jnp.int32, (N, N), 1)
    causal_mask = ci <= ri
    # shifted decoder input: row 0 = BOS, row i = emb[i-1]; built with a constant
    # shift matrix (tiny MXU op) -> no wrapper concat, no unaligned stores.
    shift = (ci == ri - 1).astype(jnp.float32)                       # shift[i, i-1] = 1
    shifted = jnp.dot(shift, emb, preferred_element_type=jnp.float32)  # row 0 == 0
    first_row = lax.broadcasted_iota(jnp.int32, (N, D), 0) == 0
    dec_in = jnp.where(first_row, jnp.broadcast_to(bos_ref[...], (N, D)), shifted)

    x = jnp.dot(dec_in, ipw_ref[...], preferred_element_type=jnp.float32)
    x = _ln(x, ip_ln_ref)                                            # input_proj
    sl = jnp.dot(slots, spw_ref[...], preferred_element_type=jnp.float32)
    sl = _ln(sl, sp_ln_ref)                                          # slot_proj
    cross_t = None
    for l in range(NUM_DEC_BLOCKS):
        if l == 0:
            # SLATE/SPOT `is_first` block: the residual stream itself is the
            # normalized input (matches the PyTorch reference decoder).
            x = _ln(x, d_sa_ln_ref, l)
            h = x
        else:
            h = _ln(x, d_sa_ln_ref, l)
        x = x + _self_attention(h, d_sa_qkv_ref[l], None, d_sa_wo_ref[l], None,
                                num_heads=NUM_HEADS, mask=causal_mask)
        h = _ln(x, d_ca_ln_ref, l)
        a, probs_t = _cross_attention(h, sl, d_ca_wq_ref[l], d_ca_wkv_ref[l],
                                      d_ca_wo_ref[l], num_heads=NUM_CROSS_HEADS)
        cross_t = probs_t          # only the LAST block's probs feed the hook
        x = x + a
        h = _ln(x, d_ffn_ln_ref, l)
        h = jnp.maximum(jnp.dot(h, d_ffn_w1_ref[l],
                                preferred_element_type=jnp.float32) + d_ffn_b1_ref[l], 0.0)
        h = jnp.dot(h, d_ffn_w2_ref[l], preferred_element_type=jnp.float32) + d_ffn_b2_ref[l]
        x = x + h
    recon = _ln(x, d_lnf_ref)

    # =========================== packed outputs =========================
    # output A (B, N+K, D): rows [0, N) = dec_recon, rows [N, N+K) = slots
    out_a_ref[0, 0:N, :] = recon
    out_a_ref[0, N:N + K, :] = slots

    # hooked attention (pre-dropout == post at p=0): heads already summed,
    # normalize over slots (axis 0 in the transposed (K, T) layout)
    dec_attn_t = cross_t * pl.reciprocal(jnp.sum(cross_t, axis=0, keepdims=True),
                                         approx=True)
    # per-sample sum of squared error for the MSE loss
    diff = emb - recon
    sse = jnp.sum(jnp.sum(diff * diff, axis=1, keepdims=True), axis=0, keepdims=True)

    # output B (B, K, 4N), lane-packed: [slot attn | dec attn | slot logits | SSE].
    # Built with constant placement matrices (tiny MXU ops) so the store is a
    # single full-width write — no unaligned lane-offset stores or lane concats.
    lane = lax.broadcasted_iota(jnp.int32, (N, 4 * N), 1)
    rown = lax.broadcasted_iota(jnp.int32, (N, 4 * N), 0)

    def _place(piece, blk):
        sel = (lane == rown + blk * N).astype(jnp.float32)           # (N, 4N)
        return jnp.dot(piece, sel, preferred_element_type=jnp.float32)

    packed = (_place(attn_t, 0) + _place(dec_attn_t, 1) + _place(logits_t, 2)
              + _place(jnp.broadcast_to(sse, (K, N)), 3))
    out_b_ref[0] = packed


# ------------------------------ pallas wrapper ---------------------------------
def _rep_spec(x):
    """Full-array block replicated across the batch grid (stays VMEM-resident)."""
    zeros = (0,) * x.ndim
    return pl.BlockSpec(x.shape, lambda b, _z=zeros: _z)


def dino_slot_forward(params, image):
    B, C, H, W = image.shape
    p = PATCH
    N, K, D = NUM_TOKENS, NUM_SLOTS, D_MODEL
    # patch extraction (equivalent to stride-p Conv2d), ordering (C, ph, pw)
    x = image.reshape(B, C, H // p, p, W // p, p)
    patches = x.transpose(0, 2, 4, 1, 3, 5).reshape(B, N, PATCH_DIM)

    e, s, d = params["enc"], params["slot"], params["dec"]
    args = (
        patches,
        # encoder
        e["patch_w"], e["add_term"], e["ln1"], e["qkv_w"], e["qkv_b"], e["wo"], e["bo"],
        e["ln2"], e["fc1_w"], e["fc1_b"], e["fc2_w"], e["fc2_b"], e["norm"],
        # slot attention
        s["mlp_ln"], s["mlp_w1"], s["mlp_b1"], s["mlp_w2"], s["mlp_b2"],
        s["slots_init"], s["in_ln"], s["wkv"], s["slot_ln"], s["wq"],
        s["gru_wi"], s["gru_wh"], s["gru_bi"], s["gru_bh"],
        s["mlp2_ln"], s["sw1"], s["sb1"], s["sw2"], s["sb2"],
        # decoder
        params["bos"], params["input_proj_w"], params["ip_ln"],
        params["slot_proj_w"], params["sp_ln"],
        d["sa_ln"], d["sa_qkv"], d["sa_wo"],
        d["ca_ln"], d["ca_wq"], d["ca_wkv"], d["ca_wo"],
        d["ffn_ln"], d["ffn_w1"], d["ffn_b1"], d["ffn_w2"], d["ffn_b2"], d["lnf"],
    )
    in_specs = ([pl.BlockSpec((1, N, PATCH_DIM), lambda b: (b, 0, 0))]
                + [_rep_spec(a) for a in args[1:]])

    out_a, out_b = pl.pallas_call(
        _dino_slot_kernel,
        out_shape=(jax.ShapeDtypeStruct((B, N + K, D), jnp.float32),
                   jax.ShapeDtypeStruct((B, K, 4 * N), jnp.float32)),
        grid=(B,),
        in_specs=in_specs,
        out_specs=(pl.BlockSpec((1, N + K, D), lambda b: (b, 0, 0)),
                   pl.BlockSpec((1, K, 4 * N), lambda b: (b, 0, 0))),
        scratch_shapes=[pltpu.VMEM((N + 1, D), jnp.float32)],
        compiler_params=pltpu.CompilerParams(dimension_semantics=("parallel",)),
    )(*args)

    H_enc = W_enc = int(math.isqrt(N))
    dec_recon = out_a[:, :N, :]                                      # (B, N, D)
    slots = out_a[:, N:, :]                                          # (B, K, S)
    slots_attns = out_b[:, :, 0:N].reshape(B, K, H_enc, W_enc)
    dec_slots_attns = out_b[:, :, N:2 * N].reshape(B, K, H_enc, W_enc)
    attn_logits = jnp.transpose(out_b[:, :, 2 * N:3 * N], (0, 2, 1))  # (B, N, K)
    loss_mse = jnp.sum(out_b[:, 0, 3 * N]) / (B * H_enc * W_enc * D)
    return loss_mse, slots_attns, dec_slots_attns, slots, dec_recon, attn_logits


# ------------------------------- parameters ------------------------------------
def init_params(key):
    ks = iter(jax.random.split(key, 256))

    def w(shape, std=0.02):
        return jax.random.normal(next(ks), shape, jnp.float32) * std

    def zeros(shape):
        return jnp.zeros(shape, jnp.float32)

    def ln_p(dim):
        return jnp.stack([jnp.ones((dim,), jnp.float32), jnp.zeros((dim,), jnp.float32)])

    def ln_stack(n, dim):
        return jnp.tile(ln_p(dim)[None], (n, 1, 1))

    D, S, MH = D_MODEL, SLOT_SIZE, MLP_HIDDEN
    LE, LD = NUM_ENC_BLOCKS, NUM_DEC_BLOCKS

    def fold_q(wqkv, heads):
        # bake 1/sqrt(d_head) into the Q columns of a fused (*, D, 3D) QKV weight
        # (weights are frozen/learned here, so the attention math is unchanged).
        scale = (D // heads) ** -0.5
        col = jnp.concatenate([jnp.full((D,), scale, jnp.float32),
                               jnp.ones((2 * D,), jnp.float32)])
        return wqkv * col

    # ---- frozen synthetic ViT encoder ----
    patch_b = zeros((D,))
    cls_token = w((1, D))
    pos_embed = w((1 + NUM_TOKENS, D))
    # additive term used by the kernel: token rows get pos_embed[1:] + patch bias,
    # the CLS row (kept LAST inside the kernel) gets pos_embed[0] + cls_token.
    add_term = jnp.concatenate([pos_embed[1:] + patch_b[None, :],
                                pos_embed[0:1] + cls_token], axis=0)      # (N+1, D)
    enc = dict(
        patch_w=w((PATCH_DIM, D)),
        add_term=add_term,
        ln1=ln_stack(LE, D),
        qkv_w=fold_q(w((LE, D, 3 * D)), ENC_HEADS),
        qkv_b=fold_q(zeros((LE, 1, 3 * D)), ENC_HEADS),
        wo=w((LE, D, D)), bo=zeros((LE, 1, D)),
        ln2=ln_stack(LE, D),
        fc1_w=w((LE, D, 4 * D)), fc1_b=zeros((LE, 1, 4 * D)),
        fc2_w=w((LE, 4 * D, D)), fc2_b=zeros((LE, 1, D)),
        norm=ln_p(D),
    )

    # ---- slot-attention encoder ----
    kv_scale = jnp.concatenate([jnp.full((S,), S ** -0.5, jnp.float32),
                                jnp.ones((S,), jnp.float32)])
    slot = dict(
        mlp_ln=ln_p(D),
        mlp_w1=w((D, D)), mlp_b1=zeros((1, D)),
        mlp_w2=w((D, D)), mlp_b2=zeros((1, D)),
        # TODO(synk): learned deterministic slot init; SPOT's mu+sigma*noise
        # Gaussian-sampling init_method variant is not replicated.
        slots_init=w((NUM_SLOTS, S)),
        in_ln=ln_p(D),
        wkv=w((D, 2 * S)) * kv_scale,      # slot_size**-0.5 folded into the K half
        slot_ln=ln_p(S),
        wq=w((S, S)),
        gru_wi=w((S, 3 * S)), gru_wh=w((S, 3 * S)),
        gru_bi=zeros((1, 3 * S)), gru_bh=zeros((1, 3 * S)),
        mlp2_ln=ln_p(S),
        sw1=w((S, MH)), sb1=zeros((1, MH)),
        sw2=w((MH, S)), sb2=zeros((1, S)),
    )

    # ---- transformer decoder ----
    ca_scale = (D // NUM_CROSS_HEADS) ** -0.5
    dec = dict(
        sa_ln=ln_stack(LD, D),
        sa_qkv=fold_q(w((LD, D, 3 * D)), NUM_HEADS),
        sa_wo=w((LD, D, D)),
        ca_ln=ln_stack(LD, D),
        ca_wq=w((LD, D, D)) * ca_scale,    # 1/sqrt(d_head) folded into Wq
        ca_wkv=w((LD, D, 2 * D)), ca_wo=w((LD, D, D)),
        ffn_ln=ln_stack(LD, D),
        ffn_w1=w((LD, D, 4 * D)), ffn_b1=zeros((LD, 1, 4 * D)),
        ffn_w2=w((LD, 4 * D, D)), ffn_b2=zeros((LD, 1, D)),
        lnf=ln_p(D),
    )

    return dict(
        enc=enc, slot=slot, dec=dec,
        input_proj_w=w((D, D)), ip_ln=ln_p(D),
        bos=w((1, D)),
        slot_proj_w=w((S, D)), sp_ln=ln_p(D),
    )


# ---------------------------------- main ----------------------------------------
if __name__ == "__main__":
    key = jax.random.PRNGKey(0)
    pkey, xkey = jax.random.split(key)
    params = init_params(pkey)
    image = jax.random.uniform(xkey, (BATCH, IMG_CHANNELS, IMAGE_SIZE, IMAGE_SIZE),
                               dtype=jnp.float32)

    fwd = jax.jit(dino_slot_forward)
    loss_mse, slots_attns, dec_slots_attns, slots, dec_recon, attn_logits = \
        jax.block_until_ready(fwd(params, image))

    H_enc = W_enc = IMAGE_SIZE // PATCH
    assert loss_mse.shape == ()
    assert slots_attns.shape == (BATCH, NUM_SLOTS, H_enc, W_enc)
    assert dec_slots_attns.shape == (BATCH, NUM_SLOTS, H_enc, W_enc)
    assert slots.shape == (BATCH, NUM_SLOTS, SLOT_SIZE)
    assert dec_recon.shape == (BATCH, NUM_TOKENS, D_MODEL)
    assert attn_logits.shape == (BATCH, NUM_TOKENS, NUM_SLOTS)
    assert bool(jnp.isfinite(loss_mse))

    print("KERNEL_OK")
</pallas_src>

<mosaic_0001>
module attributes {stable_mosaic.version = 11 : i64} {
  func.func @_dino_slot_kernel(%arg0: i32, %arg1: memref<1x16x48xf32, #tpu.memory_space<vmem>>, %arg2: memref<48x32xf32, #tpu.memory_space<vmem>>, %arg3: memref<17x32xf32, #tpu.memory_space<vmem>>, %arg4: memref<2x2x32xf32, #tpu.memory_space<vmem>>, %arg5: memref<2x32x96xf32, #tpu.memory_space<vmem>>, %arg6: memref<2x1x96xf32, #tpu.memory_space<vmem>>, %arg7: memref<2x32x32xf32, #tpu.memory_space<vmem>>, %arg8: memref<2x1x32xf32, #tpu.memory_space<vmem>>, %arg9: memref<2x2x32xf32, #tpu.memory_space<vmem>>, %arg10: memref<2x32x128xf32, #tpu.memory_space<vmem>>, %arg11: memref<2x1x128xf32, #tpu.memory_space<vmem>>, %arg12: memref<2x128x32xf32, #tpu.memory_space<vmem>>, %arg13: memref<2x1x32xf32, #tpu.memory_space<vmem>>, %arg14: memref<2x32xf32, #tpu.memory_space<vmem>>, %arg15: memref<2x32xf32, #tpu.memory_space<vmem>>, %arg16: memref<32x32xf32, #tpu.memory_space<vmem>>, %arg17: memref<1x32xf32, #tpu.memory_space<vmem>>, %arg18: memref<32x32xf32, #tpu.memory_space<vmem>>, %arg19: memref<1x32xf32, #tpu.memory_space<vmem>>, %arg20: memref<4x32xf32, #tpu.memory_space<vmem>>, %arg21: memref<2x32xf32, #tpu.memory_space<vmem>>, %arg22: memref<32x64xf32, #tpu.memory_space<vmem>>, %arg23: memref<2x32xf32, #tpu.memory_space<vmem>>, %arg24: memref<32x32xf32, #tpu.memory_space<vmem>>, %arg25: memref<32x96xf32, #tpu.memory_space<vmem>>, %arg26: memref<32x96xf32, #tpu.memory_space<vmem>>, %arg27: memref<1x96xf32, #tpu.memory_space<vmem>>, %arg28: memref<1x96xf32, #tpu.memory_space<vmem>>, %arg29: memref<2x32xf32, #tpu.memory_space<vmem>>, %arg30: memref<32x64xf32, #tpu.memory_space<vmem>>, %arg31: memref<1x64xf32, #tpu.memory_space<vmem>>, %arg32: memref<64x32xf32, #tpu.memory_space<vmem>>, %arg33: memref<1x32xf32, #tpu.memory_space<vmem>>, %arg34: memref<1x32xf32, #tpu.memory_space<vmem>>, %arg35: memref<32x32xf32, #tpu.memory_space<vmem>>, %arg36: memref<2x32xf32, #tpu.memory_space<vmem>>, %arg37: memref<32x32xf32, #tpu.memory_space<vmem>>, %arg38: memref<2x32xf32, #tpu.memory_space<vmem>>, %arg39: memref<2x2x32xf32, #tpu.memory_space<vmem>>, %arg40: memref<2x32x96xf32, #tpu.memory_space<vmem>>, %arg41: memref<2x32x32xf32, #tpu.memory_space<vmem>>, %arg42: memref<2x2x32xf32, #tpu.memory_space<vmem>>, %arg43: memref<2x32x32xf32, #tpu.memory_space<vmem>>, %arg44: memref<2x32x64xf32, #tpu.memory_space<vmem>>, %arg45: memref<2x32x32xf32, #tpu.memory_space<vmem>>, %arg46: memref<2x2x32xf32, #tpu.memory_space<vmem>>, %arg47: memref<2x32x128xf32, #tpu.memory_space<vmem>>, %arg48: memref<2x1x128xf32, #tpu.memory_space<vmem>>, %arg49: memref<2x128x32xf32, #tpu.memory_space<vmem>>, %arg50: memref<2x1x32xf32, #tpu.memory_space<vmem>>, %arg51: memref<2x32xf32, #tpu.memory_space<vmem>>, %arg52: memref<1x20x32xf32, #tpu.memory_space<vmem>>, %arg53: memref<1x4x64xf32, #tpu.memory_space<vmem>>, %arg54: memref<17x32xf32, #tpu.memory_space<vmem>>) attributes {dimension_semantics = [#tpu.dimension_semantics<parallel>], iteration_bounds = array<i64: 2>, scalar_prefetch = 0 : i64, scratch_operands = 1 : i64, tpu.core_type = #tpu.core_type<tc>, window_params = [{transform_indices = @transform_0, window_bounds = array<i64: 1, 16, 48>}, {pipeline_mode = #tpu.pipeline_mode<synchronous>, transform_indices = @transform_1, window_bounds = array<i64: 48, 32>}, {pipeline_mode = #tpu.pipeline_mode<synchronous>, transform_indices = @transform_2, window_bounds = array<i64: 17, 32>}, {pipeline_mode = #tpu.pipeline_mode<synchronous>, transform_indices = @transform_3, window_bounds = array<i64: 2, 2, 32>}, {pipeline_mode = #tpu.pipeline_mode<synchronous>, transform_indices = @transform_4, window_bounds = array<i64: 2, 32, 96>}, {pipeline_mode = #tpu.pipeline_mode<synchronous>, transform_indices = @transform_5, window_bounds = array<i64: 2, 1, 96>}, {pipeline_mode = #tpu.pipeline_mode<synchronous>, transform_indices = @transform_6, window_bounds = array<i64: 2, 32, 32>}, {pipeline_mode = #tpu.pipeline_mode<synchronous>, transform_indices = @transform_7, window_bounds = array<i64: 2, 1, 32>}, {pipeline_mode = #tpu.pipeline_mode<synchronous>, transform_indices = @transform_8, window_bounds = array<i64: 2, 2, 32>}, {pipeline_mode = #tpu.pipeline_mode<synchronous>, transform_indices = @transform_9, window_bounds = array<i64: 2, 32, 128>}, {pipeline_mode = #tpu.pipeline_mode<synchronous>, transform_indices = @transform_10, window_bounds = array<i64: 2, 1, 128>}, {pipeline_mode = #tpu.pipeline_mode<synchronous>, transform_indices = @transform_11, window_bounds = array<i64: 2, 128, 32>}, {pipeline_mode = #tpu.pipeline_mode<synchronous>, transform_indices = @transform_12, window_bounds = array<i64: 2, 1, 32>}, {pipeline_mode = #tpu.pipeline_mode<synchronous>, transform_indices = @transform_13, window_bounds = array<i64: 2, 32>}, {pipeline_mode = #tpu.pipeline_mode<synchronous>, transform_indices = @transform_14, window_bounds = array<i64: 2, 32>}, {pipeline_mode = #tpu.pipeline_mode<synchronous>, transform_indices = @transform_15, window_bounds = array<i64: 32, 32>}, {pipeline_mode = #tpu.pipeline_mode<synchronous>, transform_indices = @transform_16, window_bounds = array<i64: 1, 32>}, {pipeline_mode = #tpu.pipeline_mode<synchronous>, transform_indices = @transform_17, window_bounds = array<i64: 32, 32>}, {pipeline_mode = #tpu.pipeline_mode<synchronous>, transform_indices = @transform_18, window_bounds = array<i64: 1, 32>}, {pipeline_mode = #tpu.pipeline_mode<synchronous>, transform_indices = @transform_19, window_bounds = array<i64: 4, 32>}, {pipeline_mode = #tpu.pipeline_mode<synchronous>, transform_indices = @transform_20, window_bounds = array<i64: 2, 32>}, {pipeline_mode = #tpu.pipeline_mode<synchronous>, transform_indices = @transform_21, window_bounds = array<i64: 32, 64>}, {pipeline_mode = #tpu.pipeline_mode<synchronous>, transform_indices = @transform_22, window_bounds = array<i64: 2, 32>}, {pipeline_mode = #tpu.pipeline_mode<synchronous>, transform_indices = @transform_23, window_bounds = array<i64: 32, 32>}, {pipeline_mode = #tpu.pipeline_mode<synchronous>, transform_indices = @transform_24, window_bounds = array<i64: 32, 96>}, {pipeline_mode = #tpu.pipeline_mode<synchronous>, transform_indices = @transform_25, window_bounds = array<i64: 32, 96>}, {pipeline_mode = #tpu.pipeline_mode<synchronous>, transform_indices = @transform_26, window_bounds = array<i64: 1, 96>}, {pipeline_mode = #tpu.pipeline_mode<synchronous>, transform_indices = @transform_27, window_bounds = array<i64: 1, 96>}, {pipeline_mode = #tpu.pipeline_mode<synchronous>, transform_indices = @transform_28, window_bounds = array<i64: 2, 32>}, {pipeline_mode = #tpu.pipeline_mode<synchronous>, transform_indices = @transform_29, window_bounds = array<i64: 32, 64>}, {pipeline_mode = #tpu.pipeline_mode<synchronous>, transform_indices = @transform_30, window_bounds = array<i64: 1, 64>}, {pipeline_mode = #tpu.pipeline_mode<synchronous>, transform_indices = @transform_31, window_bounds = array<i64: 64, 32>}, {pipeline_mode = #tpu.pipeline_mode<synchronous>, transform_indices = @transform_32, window_bounds = array<i64: 1, 32>}, {pipeline_mode = #tpu.pipeline_mode<synchronous>, transform_indices = @transform_33, window_bounds = array<i64: 1, 32>}, {pipeline_mode = #tpu.pipeline_mode<synchronous>, transform_indices = @transform_34, window_bounds = array<i64: 32, 32>}, {pipeline_mode = #tpu.pipeline_mode<synchronous>, transform_indices = @transform_35, window_bounds = array<i64: 2, 32>}, {pipeline_mode = #tpu.pipeline_mode<synchronous>, transform_indices = @transform_36, window_bounds = array<i64: 32, 32>}, {pipeline_mode = #tpu.pipeline_mode<synchronous>, transform_indices = @transform_37, window_bounds = array<i64: 2, 32>}, {pipeline_mode = #tpu.pipeline_mode<synchronous>, transform_indices = @transform_38, window_bounds = array<i64: 2, 2, 32>}, {pipeline_mode = #tpu.pipeline_mode<synchronous>, transform_indices = @transform_39, window_bounds = array<i64: 2, 32, 96>}, {pipeline_mode = #tpu.pipeline_mode<synchronous>, transform_indices = @transform_40, window_bounds = array<i64: 2, 32, 32>}, {pipeline_mode = #tpu.pipeline_mode<synchronous>, transform_indices = @transform_41, window_bounds = array<i64: 2, 2, 32>}, {pipeline_mode = #tpu.pipeline_mode<synchronous>, transform_indices = @transform_42, window_bounds = array<i64: 2, 32, 32>}, {pipeline_mode = #tpu.pipeline_mode<synchronous>, transform_indices = @transform_43, window_bounds = array<i64: 2, 32, 64>}, {pipeline_mode = #tpu.pipeline_mode<synchronous>, transform_indices = @transform_44, window_bounds = array<i64: 2, 32, 32>}, {pipeline_mode = #tpu.pipeline_mode<synchronous>, transform_indices = @transform_45, window_bounds = array<i64: 2, 2, 32>}, {pipeline_mode = #tpu.pipeline_mode<synchronous>, transform_indices = @transform_46, window_bounds = array<i64: 2, 32, 128>}, {pipeline_mode = #tpu.pipeline_mode<synchronous>, transform_indices = @transform_47, window_bounds = array<i64: 2, 1, 128>}, {pipeline_mode = #tpu.pipeline_mode<synchronous>, transform_indices = @transform_48, window_bounds = array<i64: 2, 128, 32>}, {pipeline_mode = #tpu.pipeline_mode<synchronous>, transform_indices = @transform_49, window_bounds = array<i64: 2, 1, 32>}, {pipeline_mode = #tpu.pipeline_mode<synchronous>, transform_indices = @transform_50, window_bounds = array<i64: 2, 32>}, {transform_indices = @transform_51, window_bounds = array<i64: 1, 20, 32>}, {transform_indices = @transform_52, window_bounds = array<i64: 1, 4, 64>}]} {
    %c0 = arith.constant 0 : index
    %c0_0 = arith.constant 0 : index
    %c0_1 = arith.constant 0 : index
    %0 = vector.load %arg1[%c0, %c0_0, %c0_1] : memref<1x16x48xf32, #tpu.memory_space<vmem>>, vector<1x16x48xf32>
    %1 = vector.shape_cast %0 : vector<1x16x48xf32> to vector<16x48xf32>
    %c0_2 = arith.constant 0 : index
    %c0_3 = arith.constant 0 : index
    %2 = vector.load %arg2[%c0_2, %c0_3] : memref<48x32xf32, #tpu.memory_space<vmem>>, vector<48x32xf32>
    %cst = arith.constant dense<0.000000e+00> : vector<16x32xf32>
    %3 = tpu.matmul %1, %2, %cst {dimension_numbers = #tpu.dot_dimension_numbers<[1], [0], [0], [1], [0, 0, 1, 1], [], []>} : vector<16x48xf32>, vector<48x32xf32>, vector<16x32xf32> -> vector<16x32xf32>
    %c0_4 = arith.constant 0 : index
    %c0_5 = arith.constant 0 : index
    %4 = vector.load %arg54[%c0_4, %c0_5] : memref<17x32xf32, #tpu.memory_space<vmem>>, vector<16x32xf32>
    tpu.vector_store %arg54[%c0_4, %c0_5], %3 {strides = array<i32>} : memref<17x32xf32, #tpu.memory_space<vmem>>, vector<16x32xf32>,
    %cst_6 = arith.constant 0.000000e+00 : f32
    %5 = vector.broadcast %cst_6 : f32 to vector<1x32xf32>
    %c16 = arith.constant 16 : index
    %c0_7 = arith.constant 0 : index
    %6 = vector.load %arg54[%c16, %c0_7] : memref<17x32xf32, #tpu.memory_space<vmem>>, vector<1x32xf32>
    tpu.vector_store %arg54[%c16, %c0_7], %5 {strides = array<i32>} : memref<17x32xf32, #tpu.memory_space<vmem>>, vector<1x32xf32>,
    %c0_8 = arith.constant 0 : index
    %c0_9 = arith.constant 0 : index
    %7 = vector.load %arg54[%c0_8, %c0_9] : memref<17x32xf32, #tpu.memory_space<vmem>>, vector<17x32xf32>
    %c0_10 = arith.constant 0 : index
    %c0_11 = arith.constant 0 : index
    %8 = vector.load %arg3[%c0_10, %c0_11] : memref<17x32xf32, #tpu.memory_space<vmem>>, vector<17x32xf32>
    %9 = arith.addf %7, %8 : vector<17x32xf32>
    %c0_12 = arith.constant 0 : index
    %c0_13 = arith.constant 0 : index
    %c0_14 = arith.constant 0 : index
    %10 = vector.load %arg4[%c0_12, %c0_13, %c0_14] : memref<2x2x32xf32, #tpu.memory_space<vmem>>, vector<1x1x32xf32>
    %11 = vector.shape_cast %10 : vector<1x1x32xf32> to vector<1x32xf32>
    %c0_15 = arith.constant 0 : index
    %c1 = arith.constant 1 : index
    %c0_16 = arith.constant 0 : index
    %12 = vector.load %arg4[%c0_15, %c1, %c0_16] : memref<2x2x32xf32, #tpu.memory_space<vmem>>, vector<1x1x32xf32>
    %13 = vector.shape_cast %12 : vector<1x1x32xf32> to vector<1x32xf32>
    %cst_17 = arith.constant dense<0.000000e+00> : vector<17xf32>
    %14 = vector.multi_reduction <add>, %9, %cst_17 [1] : vector<17x32xf32> to vector<17xf32>
    %15 = vector.shape_cast %14 : vector<17xf32> to vector<17x1xf32>
    %cst_18 = arith.constant 3.200000e+01 : f32
    %16 = vector.broadcast %cst_18 : f32 to vector<17x1xf32>
    %17 = arith.divf %15, %16 : vector<17x1xf32>
    %18 = vector.broadcast %17 : vector<17x1xf32> to vector<17x32xf32>
    %19 = arith.subf %9, %18 : vector<17x32xf32>
    %20 = arith.mulf %19, %19 : vector<17x32xf32>
    %cst_19 = arith.constant dense<0.000000e+00> : vector<17xf32>
    %21 = vector.multi_reduction <add>, %20, %cst_19 [1] : vector<17x32xf32> to vector<17xf32>
    %22 = vector.shape_cast %21 : vector<17xf32> to vector<17x1xf32>
    %cst_20 = arith.constant 3.200000e+01 : f32
    %23 = vector.broadcast %cst_20 : f32 to vector<17x1xf32>
    %24 = arith.divf %22, %23 : vector<17x1xf32>
    %25 = vector.broadcast %17 : vector<17x1xf32> to vector<17x32xf32>
    %26 = arith.subf %9, %25 : vector<17x32xf32>
    %cst_21 = arith.constant 9.99999974E-6 : f32
    %27 = vector.broadcast %cst_21 : f32 to vector<17x1xf32>
    %28 = arith.addf %24, %27 : vector<17x1xf32>
    %29 = math.rsqrt %28 : vector<17x1xf32>
    %30 = vector.broadcast %29 : vector<17x1xf32> to vector<17x32xf32>
    %31 = arith.mulf %26, %30 : vector<17x32xf32>
    %32 = vector.broadcast %11 : vector<1x32xf32> to vector<17x32xf32>
    %33 = arith.mulf %31, %32 : vector<17x32xf32>
    %34 = vector.broadcast %13 : vector<1x32xf32> to vector<17x32xf32>
    %35 = arith.addf %33, %34 : vector<17x32xf32>
    %c0_22 = arith.constant 0 : index
    %c0_23 = arith.constant 0 : index
    %c0_24 = arith.constant 0 : index
    %36 = vector.load %arg5[%c0_22, %c0_23, %c0_24] : memref<2x32x96xf32, #tpu.memory_space<vmem>>, vector<1x32x96xf32>
    %37 = vector.shape_cast %36 : vector<1x32x96xf32> to vector<32x96xf32>
    %c0_25 = arith.constant 0 : index
    %c0_26 = arith.constant 0 : index
    %c0_27 = arith.constant 0 : index
    %38 = vector.load %arg6[%c0_25, %c0_26, %c0_27] : memref<2x1x96xf32, #tpu.memory_space<vmem>>, vector<1x1x96xf32>
    %39 = vector.shape_cast %38 : vector<1x1x96xf32> to vector<1x96xf32>
    %c0_28 = arith.constant 0 : index
    %c0_29 = arith.constant 0 : index
    %c0_30 = arith.constant 0 : index
    %40 = vector.load %arg7[%c0_28, %c0_29, %c0_30] : memref<2x32x32xf32, #tpu.memory_space<vmem>>, vector<1x32x32xf32>
    %41 = vector.shape_cast %40 : vector<1x32x32xf32> to vector<32x32xf32>
    %c0_31 = arith.constant 0 : index
    %c0_32 = arith.constant 0 : index
    %c0_33 = arith.constant 0 : index
    %42 = vector.load %arg8[%c0_31, %c0_32, %c0_33] : memref<2x1x32xf32, #tpu.memory_space<vmem>>, vector<1x1x32xf32>
    %43 = vector.shape_cast %42 : vector<1x1x32xf32> to vector<1x32xf32>
    %cst_34 = arith.constant dense<0.000000e+00> : vector<17x96xf32>
    %44 = tpu.matmul %35, %37, %cst_34 {dimension_numbers = #tpu.dot_dimension_numbers<[1], [0], [0], [1], [0, 0, 1, 1], [], []>} : vector<17x32xf32>, vector<32x96xf32>, vector<17x96xf32> -> vector<17x96xf32>
    %45 = vector.broadcast %39 : vector<1x96xf32> to vector<17x96xf32>
    %46 = arith.addf %44, %45 : vector<17x96xf32>
    %47 = vector.extract_strided_slice %46 {offsets = [0, 0], sizes = [17, 16], strides = [1, 1]} : vector<17x96xf32> to vector<17x16xf32>
    %48 = vector.extract_strided_slice %46 {offsets = [0, 32], sizes = [17, 16], strides = [1, 1]} : vector<17x96xf32> to vector<17x16xf32>
    %49 = vector.extract_strided_slice %46 {offsets = [0, 64], sizes = [17, 16], strides = [1, 1]} : vector<17x96xf32> to vector<17x16xf32>
    %cst_35 = arith.constant dense<0.000000e+00> : vector<17x17xf32>
    %50 = tpu.matmul %47, %48, %cst_35 {dimension_numbers = #tpu.dot_dimension_numbers<[1], [1], [0], [0], [0, 0, 1, 0], [], []>} : vector<17x16xf32>, vector<17x16xf32>, vector<17x17xf32> -> vector<17x17xf32>
    %cst_36 = arith.constant dense<0xFF800000> : vector<17xf32>
    %51 = vector.multi_reduction <maximumf>, %50, %cst_36 [1] : vector<17x17xf32> to vector<17xf32>
    %52 = vector.shape_cast %51 : vector<17xf32> to vector<17x1xf32>
    %53 = vector.broadcast %52 : vector<17x1xf32> to vector<17x17xf32>
    %54 = arith.subf %50, %53 : vector<17x17xf32>
    %55 = math.exp %54 : vector<17x17xf32>
    %cst_37 = arith.constant dense<0.000000e+00> : vector<17xf32>
    %56 = vector.multi_reduction <add>, %55, %cst_37 [1] : vector<17x17xf32> to vector<17xf32>
    %57 = vector.shape_cast %56 : vector<17xf32> to vector<17x1xf32>
    %58 = tpu.reciprocal %57 {approx = true} : vector<17x1xf32> -> vector<17x1xf32>
    %59 = vector.broadcast %58 : vector<17x1xf32> to vector<17x17xf32>
    %60 = arith.mulf %55, %59 : vector<17x17xf32>
    %cst_38 = arith.constant dense<0.000000e+00> : vector<17x16xf32>
    %61 = tpu.matmul %60, %49, %cst_38 {dimension_numbers = #tpu.dot_dimension_numbers<[1], [0], [0], [1], [0, 0, 1, 1], [], []>} : vector<17x17xf32>, vector<17x16xf32>, vector<17x16xf32> -> vector<17x16xf32>
    %62 = vector.extract_strided_slice %41 {offsets = [0, 0], sizes = [16, 32], strides = [1, 1]} : vector<32x32xf32> to vector<16x32xf32>
    %cst_39 = arith.constant dense<0.000000e+00> : vector<17x32xf32>
    %63 = tpu.matmul %61, %62, %cst_39 {dimension_numbers = #tpu.dot_dimension_numbers<[1], [0], [0], [1], [0, 0, 1, 1], [], []>} : vector<17x16xf32>, vector<16x32xf32>, vector<17x32xf32> -> vector<17x32xf32>
    %64 = vector.extract_strided_slice %46 {offsets = [0, 16], sizes = [17, 16], strides = [1, 1]} : vector<17x96xf32> to vector<17x16xf32>
    %65 = vector.extract_strided_slice %46 {offsets = [0, 48], sizes = [17, 16], strides = [1, 1]} : vector<17x96xf32> to vector<17x16xf32>
    %66 = vector.extract_strided_slice %46 {offsets = [0, 80], sizes = [17, 16], strides = [1, 1]} : vector<17x96xf32> to vector<17x16xf32>
    %cst_40 = arith.constant dense<0.000000e+00> : vector<17x17xf32>
    %67 = tpu.matmul %64, %65, %cst_40 {dimension_numbers = #tpu.dot_dimension_numbers<[1], [1], [0], [0], [0, 0, 1, 0], [], []>} : vector<17x16xf32>, vector<17x16xf32>, vector<17x17xf32> -> vector<17x17xf32>
    %cst_41 = arith.constant dense<0xFF800000> : vector<17xf32>
    %68 = vector.multi_reduction <maximumf>, %67, %cst_41 [1] : vector<17x17xf32> to vector<17xf32>
    %69 = vector.shape_cast %68 : vector<17xf32> to vector<17x1xf32>
    %70 = vector.broadcast %69 : vector<17x1xf32> to vector<17x17xf32>
    %71 = arith.subf %67, %70 : vector<17x17xf32>
    %72 = math.exp %71 : vector<17x17xf32>
    %cst_42 = arith.constant dense<0.000000e+00> : vector<17xf32>
    %73 = vector.multi_reduction <add>, %72, %cst_42 [1] : vector<17x17xf32> to vector<17xf32>
    %74 = vector.shape_cast %73 : vector<17xf32> to vector<17x1xf32>
    %75 = tpu.reciprocal %74 {approx = true} : vector<17x1xf32> -> vector<17x1xf32>
    %76 = vector.broadcast %75 : vector<17x1xf32> to vector<17x17xf32>
    %77 = arith.mulf %72, %76 : vector<17x17xf32>
    %cst_43 = arith.constant dense<0.000000e+00> : vector<17x16xf32>
    %78 = tpu.matmul %77, %66, %cst_43 {dimension_numbers = #tpu.dot_dimension_numbers<[1], [0], [0], [1], [0, 0, 1, 1], [], []>} : vector<17x17xf32>, vector<17x16xf32>, vector<17x16xf32> -> vector<17x16xf32>
    %79 = vector.extract_strided_slice %41 {offsets = [16, 0], sizes = [16, 32], strides = [1, 1]} : vector<32x32xf32> to vector<16x32xf32>
    %cst_44 = arith.constant dense<0.000000e+00> : vector<17x32xf32>
    %80 = tpu.matmul %78, %79, %cst_44 {dimension_numbers = #tpu.dot_dimension_numbers<[1], [0], [0], [1], [0, 0, 1, 1], [], []>} : vector<17x16xf32>, vector<16x32xf32>, vector<17x32xf32> -> vector<17x32xf32>
    %81 = arith.addf %63, %80 : vector<17x32xf32>
    %82 = vector.broadcast %43 : vector<1x32xf32> to vector<17x32xf32>
    %83 = arith.addf %81, %82 : vector<17x32xf32>
    %84 = arith.addf %9, %83 : vector<17x32xf32>
    %c0_45 = arith.constant 0 : index
    %c0_46 = arith.constant 0 : index
    %c0_47 = arith.constant 0 : index
    %85 = vector.load %arg9[%c0_45, %c0_46, %c0_47] : memref<2x2x32xf32, #tpu.memory_space<vmem>>, vector<1x1x32xf32>
    %86 = vector.shape_cast %85 : vector<1x1x32xf32> to vector<1x32xf32>
    %c0_48 = arith.constant 0 : index
    %c1_49 = arith.constant 1 : index
    %c0_50 = arith.constant 0 : index
    %87 = vector.load %arg9[%c0_48, %c1_49, %c0_50] : memref<2x2x32xf32, #tpu.memory_space<vmem>>, vector<1x1x32xf32>
    %88 = vector.shape_cast %87 : vector<1x1x32xf32> to vector<1x32xf32>
    %cst_51 = arith.constant dense<0.000000e+00> : vector<17xf32>
    %89 = vector.multi_reduction <add>, %84, %cst_51 [1] : vector<17x32xf32> to vector<17xf32>
    %90 = vector.shape_cast %89 : vector<17xf32> to vector<17x1xf32>
    %cst_52 = arith.constant 3.200000e+01 : f32
    %91 = vector.broadcast %cst_52 : f32 to vector<17x1xf32>
    %92 = arith.divf %90, %91 : vector<17x1xf32>
    %93 = vector.broadcast %92 : vector<17x1xf32> to vector<17x32xf32>
    %94 = arith.subf %84, %93 : vector<17x32xf32>
    %95 = arith.mulf %94, %94 : vector<17x32xf32>
    %cst_53 = arith.constant dense<0.000000e+00> : vector<17xf32>
    %96 = vector.multi_reduction <add>, %95, %cst_53 [1] : vector<17x32xf32> to vector<17xf32>
    %97 = vector.shape_cast %96 : vector<17xf32> to vector<17x1xf32>
    %cst_54 = arith.constant 3.200000e+01 : f32
    %98 = vector.broadcast %cst_54 : f32 to vector<17x1xf32>
    %99 = arith.divf %97, %98 : vector<17x1xf32>
    %100 = vector.broadcast %92 : vector<17x1xf32> to vector<17x32xf32>
    %101 = arith.subf %84, %100 : vector<17x32xf32>
    %cst_55 = arith.constant 9.99999974E-6 : f32
    %102 = vector.broadcast %cst_55 : f32 to vector<17x1xf32>
    %103 = arith.addf %99, %102 : vector<17x1xf32>
    %104 = math.rsqrt %103 : vector<17x1xf32>
    %105 = vector.broadcast %104 : vector<17x1xf32> to vector<17x32xf32>
    %106 = arith.mulf %101, %105 : vector<17x32xf32>
    %107 = vector.broadcast %86 : vector<1x32xf32> to vector<17x32xf32>
    %108 = arith.mulf %106, %107 : vector<17x32xf32>
    %109 = vector.broadcast %88 : vector<1x32xf32> to vector<17x32xf32>
    %110 = arith.addf %108, %109 : vector<17x32xf32>
    %c0_56 = arith.constant 0 : index
    %c0_57 = arith.constant 0 : index
    %c0_58 = arith.constant 0 : index
    %111 = vector.load %arg10[%c0_56, %c0_57, %c0_58] : memref<2x32x128xf32, #tpu.memory_space<vmem>>, vector<1x32x128xf32>
    %112 = vector.shape_cast %111 : vector<1x32x128xf32> to vector<32x128xf32>
    %cst_59 = arith.constant dense<0.000000e+00> : vector<17x128xf32>
    %113 = tpu.matmul %110, %112, %cst_59 {dimension_numbers = #tpu.dot_dimension_numbers<[1], [0], [0], [1], [0, 0, 1, 1], [], []>} : vector<17x32xf32>, vector<32x128xf32>, vector<17x128xf32> -> vector<17x128xf32>
    %c0_60 = arith.constant 0 : index
    %c0_61 = arith.constant 0 : index
    %c0_62 = arith.constant 0 : index
    %114 = vector.load %arg11[%c0_60, %c0_61, %c0_62] : memref<2x1x128xf32, #tpu.memory_space<vmem>>, vector<1x1x128xf32>
    %115 = vector.shape_cast %114 : vector<1x1x128xf32> to vector<1x128xf32>
    %116 = vector.broadcast %115 : vector<1x128xf32> to vector<17x128xf32>
    %117 = arith.addf %113, %116 : vector<17x128xf32>
    %118 = arith.mulf %117, %117 : vector<17x128xf32>
    %119 = arith.mulf %117, %118 : vector<17x128xf32>
    %cst_63 = arith.constant 4.471500e-02 : f32
    %120 = vector.broadcast %cst_63 : f32 to vector<17x128xf32>
    %121 = arith.mulf %120, %119 : vector<17x128xf32>
    %122 = arith.addf %117, %121 : vector<17x128xf32>
    %cst_64 = arith.constant 0.797884583 : f32
    %123 = vector.broadcast %cst_64 : f32 to vector<17x128xf32>
    %124 = arith.mulf %123, %122 : vector<17x128xf32>
    %125 = math.tanh %124 : vector<17x128xf32>
    %cst_65 = arith.constant 1.000000e+00 : f32
    %126 = vector.broadcast %cst_65 : f32 to vector<17x128xf32>
    %127 = arith.addf %126, %125 : vector<17x128xf32>
    %cst_66 = arith.constant 5.000000e-01 : f32
    %128 = vector.broadcast %cst_66 : f32 to vector<17x128xf32>
    %129 = arith.mulf %128, %127 : vector<17x128xf32>
    %130 = arith.mulf %117, %129 : vector<17x128xf32>
    %c0_67 = arith.constant 0 : index
    %c0_68 = arith.constant 0 : index
    %c0_69 = arith.constant 0 : index
    %131 = vector.load %arg12[%c0_67, %c0_68, %c0_69] : memref<2x128x32xf32, #tpu.memory_space<vmem>>, vector<1x128x32xf32>
    %132 = vector.shape_cast %131 : vector<1x128x32xf32> to vector<128x32xf32>
    %cst_70 = arith.constant dense<0.000000e+00> : vector<17x32xf32>
    %133 = tpu.matmul %130, %132, %cst_70 {dimension_numbers = #tpu.dot_dimension_numbers<[1], [0], [0], [1], [0, 0, 1, 1], [], []>} : vector<17x128xf32>, vector<128x32xf32>, vector<17x32xf32> -> vector<17x32xf32>
    %c0_71 = arith.constant 0 : index
    %c0_72 = arith.constant 0 : index
    %c0_73 = arith.constant 0 : index
    %134 = vector.load %arg13[%c0_71, %c0_72, %c0_73] : memref<2x1x32xf32, #tpu.memory_space<vmem>>, vector<1x1x32xf32>
    %135 = vector.shape_cast %134 : vector<1x1x32xf32> to vector<1x32xf32>
    %136 = vector.broadcast %135 : vector<1x32xf32> to vector<17x32xf32>
    %137 = arith.addf %133, %136 : vector<17x32xf32>
    %138 = arith.addf %84, %137 : vector<17x32xf32>
    %c1_74 = arith.constant 1 : index
    %c0_75 = arith.constant 0 : index
    %c0_76 = arith.constant 0 : index
    %139 = vector.load %arg4[%c1_74, %c0_75, %c0_76] : memref<2x2x32xf32, #tpu.memory_space<vmem>>, vector<1x1x32xf32>
    %140 = vector.shape_cast %139 : vector<1x1x32xf32> to vector<1x32xf32>
    %c1_77 = arith.constant 1 : index
    %c1_78 = arith.constant 1 : index
    %c0_79 = arith.constant 0 : index
    %141 = vector.load %arg4[%c1_77, %c1_78, %c0_79] : memref<2x2x32xf32, #tpu.memory_space<vmem>>, vector<1x1x32xf32>
    %142 = vector.shape_cast %141 : vector<1x1x32xf32> to vector<1x32xf32>
    %cst_80 = arith.constant dense<0.000000e+00> : vector<17xf32>
    %143 = vector.multi_reduction <add>, %138, %cst_80 [1] : vector<17x32xf32> to vector<17xf32>
    %144 = vector.shape_cast %143 : vector<17xf32> to vector<17x1xf32>
    %cst_81 = arith.constant 3.200000e+01 : f32
    %145 = vector.broadcast %cst_81 : f32 to vector<17x1xf32>
    %146 = arith.divf %144, %145 : vector<17x1xf32>
    %147 = vector.broadcast %146 : vector<17x1xf32> to vector<17x32xf32>
    %148 = arith.subf %138, %147 : vector<17x32xf32>
    %149 = arith.mulf %148, %148 : vector<17x32xf32>
    %cst_82 = arith.constant dense<0.000000e+00> : vector<17xf32>
    %150 = vector.multi_reduction <add>, %149, %cst_82 [1] : vector<17x32xf32> to vector<17xf32>
    %151 = vector.shape_cast %150 : vector<17xf32> to vector<17x1xf32>
    %cst_83 = arith.constant 3.200000e+01 : f32
    %152 = vector.broadcast %cst_83 : f32 to vector<17x1xf32>
    %153 = arith.divf %151, %152 : vector<17x1xf32>
    %154 = vector.broadcast %146 : vector<17x1xf32> to vector<17x32xf32>
    %155 = arith.subf %138, %154 : vector<17x32xf32>
    %cst_84 = arith.constant 9.99999974E-6 : f32
    %156 = vector.broadcast %cst_84 : f32 to vector<17x1xf32>
    %157 = arith.addf %153, %156 : vector<17x1xf32>
    %158 = math.rsqrt %157 : vector<17x1xf32>
    %159 = vector.broadcast %158 : vector<17x1xf32> to vector<17x32xf32>
    %160 = arith.mulf %155, %159 : vector<17x32xf32>
    %161 = vector.broadcast %140 : vector<1x32xf32> to vector<17x32xf32>
    %162 = arith.mulf %160, %161 : vector<17x32xf32>
    %163 = vector.broadcast %142 : vector<1x32xf32> to vector<17x32xf32>
    %164 = arith.addf %162, %163 : vector<17x32xf32>
    %c1_85 = arith.constant 1 : index
    %c0_86 = arith.constant 0 : index
    %c0_87 = arith.constant 0 : index
    %165 = vector.load %arg5[%c1_85, %c0_86, %c0_87] : memref<2x32x96xf32, #tpu.memory_space<vmem>>, vector<1x32x96xf32>
    %166 = vector.shape_cast %165 : vector<1x32x96xf32> to vector<32x96xf32>
    %c1_88 = arith.constant 1 : index
    %c0_89 = arith.constant 0 : index
    %c0_90 = arith.constant 0 : index
    %167 = vector.load %arg6[%c1_88, %c0_89, %c0_90] : memref<2x1x96xf32, #tpu.memory_space<vmem>>, vector<1x1x96xf32>
    %168 = vector.shape_cast %167 : vector<1x1x96xf32> to vector<1x96xf32>
    %c1_91 = arith.constant 1 : index
    %c0_92 = arith.constant 0 : index
    %c0_93 = arith.constant 0 : index
    %169 = vector.load %arg7[%c1_91, %c0_92, %c0_93] : memref<2x32x32xf32, #tpu.memory_space<vmem>>, vector<1x32x32xf32>
    %170 = vector.shape_cast %169 : vector<1x32x32xf32> to vector<32x32xf32>
    %c1_94 = arith.constant 1 : index
    %c0_95 = arith.constant 0 : index
    %c0_96 = arith.constant 0 : index
    %171 = vector.load %arg8[%c1_94, %c0_95, %c0_96] : memref<2x1x32xf32, #tpu.memory_space<vmem>>, vector<1x1x32xf32>
    %172 = vector.shape_cast %171 : vector<1x1x32xf32> to vector<1x32xf32>
    %cst_97 = arith.constant dense<0.000000e+00> : vector<17x96xf32>
    %173 = tpu.matmul %164, %166, %cst_97 {dimension_numbers = #tpu.dot_dimension_numbers<[1], [0], [0], [1], [0, 0, 1, 1], [], []>} : vector<17x32xf32>, vector<32x96xf32>, vector<17x96xf32> -> vector<17x96xf32>
    %174 = vector.broadcast %168 : vector<1x96xf32> to vector<17x96xf32>
    %175 = arith.addf %173, %174 : vector<17x96xf32>
    %176 = vector.extract_strided_slice %175 {offsets = [0, 0], sizes = [17, 16], strides = [1, 1]} : vector<17x96xf32> to vector<17x16xf32>
    %177 = vector.extract_strided_slice %175 {offsets = [0, 32], sizes = [17, 16], strides = [1, 1]} : vector<17x96xf32> to vector<17x16xf32>
    %178 = vector.extract_strided_slice %175 {offsets = [0, 64], sizes = [17, 16], strides = [1, 1]} : vector<17x96xf32> to vector<17x16xf32>
    %cst_98 = arith.constant dense<0.000000e+00> : vector<17x17xf32>
    %179 = tpu.matmul %176, %177, %cst_98 {dimension_numbers = #tpu.dot_dimension_numbers<[1], [1], [0], [0], [0, 0, 1, 0], [], []>} : vector<17x16xf32>, vector<17x16xf32>, vector<17x17xf32> -> vector<17x17xf32>
    %cst_99 = arith.constant dense<0xFF800000> : vector<17xf32>
    %180 = vector.multi_reduction <maximumf>, %179, %cst_99 [1] : vector<17x17xf32> to vector<17xf32>
    %181 = vector.shape_cast %180 : vector<17xf32> to vector<17x1xf32>
    %182 = vector.broadcast %181 : vector<17x1xf32> to vector<17x17xf32>
    %183 = arith.subf %179, %182 : vector<17x17xf32>
    %184 = math.exp %183 : vector<17x17xf32>
    %cst_100 = arith.constant dense<0.000000e+00> : vector<17xf32>
    %185 = vector.multi_reduction <add>, %184, %cst_100 [1] : vector<17x17xf32> to vector<17xf32>
    %186 = vector.shape_cast %185 : vector<17xf32> to vector<17x1xf32>
    %187 = tpu.reciprocal %186 {approx = true} : vector<17x1xf32> -> vector<17x1xf32>
    %188 = vector.broadcast %187 : vector<17x1xf32> to vector<17x17xf32>
    %189 = arith.mulf %184, %188 : vector<17x17xf32>
    %cst_101 = arith.constant dense<0.000000e+00> : vector<17x16xf32>
    %190 = tpu.matmul %189, %178, %cst_101 {dimension_numbers = #tpu.dot_dimension_numbers<[1], [0], [0], [1], [0, 0, 1, 1], [], []>} : vector<17x17xf32>, vector<17x16xf32>, vector<17x16xf32> -> vector<17x16xf32>
    %191 = vector.extract_strided_slice %170 {offsets = [0, 0], sizes = [16, 32], strides = [1, 1]} : vector<32x32xf32> to vector<16x32xf32>
    %cst_102 = arith.constant dense<0.000000e+00> : vector<17x32xf32>
    %192 = tpu.matmul %190, %191, %cst_102 {dimension_numbers = #tpu.dot_dimension_numbers<[1], [0], [0], [1], [0, 0, 1, 1], [], []>} : vector<17x16xf32>, vector<16x32xf32>, vector<17x32xf32> -> vector<17x32xf32>
    %193 = vector.extract_strided_slice %175 {offsets = [0, 16], sizes = [17, 16], strides = [1, 1]} : vector<17x96xf32> to vector<17x16xf32>
    %194 = vector.extract_strided_slice %175 {offsets = [0, 48], sizes = [17, 16], strides = [1, 1]} : vector<17x96xf32> to vector<17x16xf32>
    %195 = vector.extract_strided_slice %175 {offsets = [0, 80], sizes = [17, 16], strides = [1, 1]} : vector<17x96xf32> to vector<17x16xf32>
    %cst_103 = arith.constant dense<0.000000e+00> : vector<17x17xf32>
    %196 = tpu.matmul %193, %194, %cst_103 {dimension_numbers = #tpu.dot_dimension_numbers<[1], [1], [0], [0], [0, 0, 1, 0], [], []>} : vector<17x16xf32>, vector<17x16xf32>, vector<17x17xf32> -> vector<17x17xf32>
    %cst_104 = arith.constant dense<0xFF800000> : vector<17xf32>
    %197 = vector.multi_reduction <maximumf>, %196, %cst_104 [1] : vector<17x17xf32> to vector<17xf32>
    %198 = vector.shape_cast %197 : vector<17xf32> to vector<17x1xf32>
    %199 = vector.broadcast %198 : vector<17x1xf32> to vector<17x17xf32>
    %200 = arith.subf %196, %199 : vector<17x17xf32>
    %201 = math.exp %200 : vector<17x17xf32>
    %cst_105 = arith.constant dense<0.000000e+00> : vector<17xf32>
    %202 = vector.multi_reduction <add>, %201, %cst_105 [1] : vector<17x17xf32> to vector<17xf32>
    %203 = vector.shape_cast %202 : vector<17xf32> to vector<17x1xf32>
    %204 = tpu.reciprocal %203 {approx = true} : vector<17x1xf32> -> vector<17x1xf32>
    %205 = vector.broadcast %204 : vector<17x1xf32> to vector<17x17xf32>
    %206 = arith.mulf %201, %205 : vector<17x17xf32>
    %cst_106 = arith.constant dense<0.000000e+00> : vector<17x16xf32>
    %207 = tpu.matmul %206, %195, %cst_106 {dimension_numbers = #tpu.dot_dimension_numbers<[1], [0], [0], [1], [0, 0, 1, 1], [], []>} : vector<17x17xf32>, vector<17x16xf32>, vector<17x16xf32> -> vector<17x16xf32>
    %208 = vector.extract_strided_slice %170 {offsets = [16, 0], sizes = [16, 32], strides = [1, 1]} : vector<32x32xf32> to vector<16x32xf32>
    %cst_107 = arith.constant dense<0.000000e+00> : vector<17x32xf32>
    %209 = tpu.matmul %207, %208, %cst_107 {dimension_numbers = #tpu.dot_dimension_numbers<[1], [0], [0], [1], [0, 0, 1, 1], [], []>} : vector<17x16xf32>, vector<16x32xf32>, vector<17x32xf32> -> vector<17x32xf32>
    %210 = arith.addf %192, %209 : vector<17x32xf32>
    %211 = vector.broadcast %172 : vector<1x32xf32> to vector<17x32xf32>
    %212 = arith.addf %210, %211 : vector<17x32xf32>
    %213 = arith.addf %138, %212 : vector<17x32xf32>
    %c1_108 = arith.constant 1 : index
    %c0_109 = arith.constant 0 : index
    %c0_110 = arith.constant 0 : index
    %214 = vector.load %arg9[%c1_108, %c0_109, %c0_110] : memref<2x2x32xf32, #tpu.memory_space<vmem>>, vector<1x1x32xf32>
    %215 = vector.shape_cast %214 : vector<1x1x32xf32> to vector<1x32xf32>
    %c1_111 = arith.constant 1 : index
    %c1_112 = arith.constant 1 : index
    %c0_113 = arith.constant 0 : index
    %216 = vector.load %arg9[%c1_111, %c1_112, %c0_113] : memref<2x2x32xf32, #tpu.memory_space<vmem>>, vector<1x1x32xf32>
    %217 = vector.shape_cast %216 : vector<1x1x32xf32> to vector<1x32xf32>
    %cst_114 = arith.constant dense<0.000000e+00> : vector<17xf32>
    %218 = vector.multi_reduction <add>, %213, %cst_114 [1] : vector<17x32xf32> to vector<17xf32>
    %219 = vector.shape_cast %218 : vector<17xf32> to vector<17x1xf32>
    %cst_115 = arith.constant 3.200000e+01 : f32
    %220 = vector.broadcast %cst_115 : f32 to vector<17x1xf32>
    %221 = arith.divf %219, %220 : vector<17x1xf32>
    %222 = vector.broadcast %221 : vector<17x1xf32> to vector<17x32xf32>
    %223 = arith.subf %213, %222 : vector<17x32xf32>
    %224 = arith.mulf %223, %223 : vector<17x32xf32>
    %cst_116 = arith.constant dense<0.000000e+00> : vector<17xf32>
    %225 = vector.multi_reduction <add>, %224, %cst_116 [1] : vector<17x32xf32> to vector<17xf32>
    %226 = vector.shape_cast %225 : vector<17xf32> to vector<17x1xf32>
    %cst_117 = arith.constant 3.200000e+01 : f32
    %227 = vector.broadcast %cst_117 : f32 to vector<17x1xf32>
    %228 = arith.divf %226, %227 : vector<17x1xf32>
    %229 = vector.broadcast %221 : vector<17x1xf32> to vector<17x32xf32>
    %230 = arith.subf %213, %229 : vector<17x32xf32>
    %cst_118 = arith.constant 9.99999974E-6 : f32
    %231 = vector.broadcast %cst_118 : f32 to vector<17x1xf32>
    %232 = arith.addf %228, %231 : vector<17x1xf32>
    %233 = math.rsqrt %232 : vector<17x1xf32>
    %234 = vector.broadcast %233 : vector<17x1xf32> to vector<17x32xf32>
    %235 = arith.mulf %230, %234 : vector<17x32xf32>
    %236 = vector.broadcast %215 : vector<1x32xf32> to vector<17x32xf32>
    %237 = arith.mulf %235, %236 : vector<17x32xf32>
    %238 = vector.broadcast %217 : vector<1x32xf32> to vector<17x32xf32>
    %239 = arith.addf %237, %238 : vector<17x32xf32>
    %c1_119 = arith.constant 1 : index
    %c0_120 = arith.constant 0 : index
    %c0_121 = arith.constant 0 : index
    %240 = vector.load %arg10[%c1_119, %c0_120, %c0_121] : memref<2x32x128xf32, #tpu.memory_space<vmem>>, vector<1x32x128xf32>
    %241 = vector.shape_cast %240 : vector<1x32x128xf32> to vector<32x128xf32>
    %cst_122 = arith.constant dense<0.000000e+00> : vector<17x128xf32>
    %242 = tpu.matmul %239, %241, %cst_122 {dimension_numbers = #tpu.dot_dimension_numbers<[1], [0], [0], [1], [0, 0, 1, 1], [], []>} : vector<17x32xf32>, vector<32x128xf32>, vector<17x128xf32> -> vector<17x128xf32>
    %c1_123 = arith.constant 1 : index
    %c0_124 = arith.constant 0 : index
    %c0_125 = arith.constant 0 : index
    %243 = vector.load %arg11[%c1_123, %c0_124, %c0_125] : memref<2x1x128xf32, #tpu.memory_space<vmem>>, vector<1x1x128xf32>
    %244 = vector.shape_cast %243 : vector<1x1x128xf32> to vector<1x128xf32>
    %245 = vector.broadcast %244 : vector<1x128xf32> to vector<17x128xf32>
    %246 = arith.addf %242, %245 : vector<17x128xf32>
    %247 = arith.mulf %246, %246 : vector<17x128xf32>
    %248 = arith.mulf %246, %247 : vector<17x128xf32>
    %cst_126 = arith.constant 4.471500e-02 : f32
    %249 = vector.broadcast %cst_126 : f32 to vector<17x128xf32>
    %250 = arith.mulf %249, %248 : vector<17x128xf32>
    %251 = arith.addf %246, %250 : vector<17x128xf32>
    %cst_127 = arith.constant 0.797884583 : f32
    %252 = vector.broadcast %cst_127 : f32 to vector<17x128xf32>
    %253 = arith.mulf %252, %251 : vector<17x128xf32>
    %254 = math.tanh %253 : vector<17x128xf32>
    %cst_128 = arith.constant 1.000000e+00 : f32
    %255 = vector.broadcast %cst_128 : f32 to vector<17x128xf32>
    %256 = arith.addf %255, %254 : vector<17x128xf32>
    %cst_129 = arith.constant 5.000000e-01 : f32
    %257 = vector.broadcast %cst_129 : f32 to vector<17x128xf32>
    %258 = arith.mulf %257, %256 : vector<17x128xf32>
    %259 = arith.mulf %246, %258 : vector<17x128xf32>
    %c1_130 = arith.constant 1 : index
    %c0_131 = arith.constant 0 : index
    %c0_132 = arith.constant 0 : index
    %260 = vector.load %arg12[%c1_130, %c0_131, %c0_132] : memref<2x128x32xf32, #tpu.memory_space<vmem>>, vector<1x128x32xf32>
    %261 = vector.shape_cast %260 : vector<1x128x32xf32> to vector<128x32xf32>
    %cst_133 = arith.constant dense<0.000000e+00> : vector<17x32xf32>
    %262 = tpu.matmul %259, %261, %cst_133 {dimension_numbers = #tpu.dot_dimension_numbers<[1], [0], [0], [1], [0, 0, 1, 1], [], []>} : vector<17x128xf32>, vector<128x32xf32>, vector<17x32xf32> -> vector<17x32xf32>
    %c1_134 = arith.constant 1 : index
    %c0_135 = arith.constant 0 : index
    %c0_136 = arith.constant 0 : index
    %263 = vector.load %arg13[%c1_134, %c0_135, %c0_136] : memref<2x1x32xf32, #tpu.memory_space<vmem>>, vector<1x1x32xf32>
    %264 = vector.shape_cast %263 : vector<1x1x32xf32> to vector<1x32xf32>
    %265 = vector.broadcast %264 : vector<1x32xf32> to vector<17x32xf32>
    %266 = arith.addf %262, %265 : vector<17x32xf32>
    %267 = arith.addf %213, %266 : vector<17x32xf32>
    %c0_137 = arith.constant 0 : index
    %c0_138 = arith.constant 0 : index
    %268 = vector.load %arg14[%c0_137, %c0_138] : memref<2x32xf32, #tpu.memory_space<vmem>>, vector<1x32xf32>
    %c1_139 = arith.constant 1 : index
    %c0_140 = arith.constant 0 : index
    %269 = vector.load %arg14[%c1_139, %c0_140] : memref<2x32xf32, #tpu.memory_space<vmem>>, vector<1x32xf32>
    %cst_141 = arith.constant dense<0.000000e+00> : vector<17xf32>
    %270 = vector.multi_reduction <add>, %267, %cst_141 [1] : vector<17x32xf32> to vector<17xf32>
    %271 = vector.shape_cast %270 : vector<17xf32> to vector<17x1xf32>
    %cst_142 = arith.constant 3.200000e+01 : f32
    %272 = vector.broadcast %cst_142 : f32 to vector<17x1xf32>
    %273 = arith.divf %271, %272 : vector<17x1xf32>
    %274 = vector.broadcast %273 : vector<17x1xf32> to vector<17x32xf32>
    %275 = arith.subf %267, %274 : vector<17x32xf32>
    %276 = arith.mulf %275, %275 : vector<17x32xf32>
    %cst_143 = arith.constant dense<0.000000e+00> : vector<17xf32>
    %277 = vector.multi_reduction <add>, %276, %cst_143 [1] : vector<17x32xf32> to vector<17xf32>
    %278 = vector.shape_cast %277 : vector<17xf32> to vector<17x1xf32>
    %cst_144 = arith.constant 3.200000e+01 : f32
    %279 = vector.broadcast %cst_144 : f32 to vector<17x1xf32>
    %280 = arith.divf %278, %279 : vector<17x1xf32>
    %281 = vector.broadcast %273 : vector<17x1xf32> to vector<17x32xf32>
    %282 = arith.subf %267, %281 : vector<17x32xf32>
    %cst_145 = arith.constant 9.99999974E-6 : f32
    %283 = vector.broadcast %cst_145 : f32 to vector<17x1xf32>
    %284 = arith.addf %280, %283 : vector<17x1xf32>
    %285 = math.rsqrt %284 : vector<17x1xf32>
    %286 = vector.broadcast %285 : vector<17x1xf32> to vector<17x32xf32>
    %287 = arith.mulf %282, %286 : vector<17x32xf32>
    %288 = vector.broadcast %268 : vector<1x32xf32> to vector<17x32xf32>
    %289 = arith.mulf %287, %288 : vector<17x32xf32>
    %290 = vector.broadcast %269 : vector<1x32xf32> to vector<17x32xf32>
    %291 = arith.addf %289, %290 : vector<17x32xf32>
    %292 = vector.extract_strided_slice %291 {offsets = [0, 0], sizes = [16, 32], strides = [1, 1]} : vector<17x32xf32> to vector<16x32xf32>
    %c0_146 = arith.constant 0 : index
    %c0_147 = arith.constant 0 : index
    %293 = vector.load %arg15[%c0_146, %c0_147] : memref<2x32xf32, #tpu.memory_space<vmem>>, vector<1x32xf32>
    %c1_148 = arith.constant 1 : index
    %c0_149 = arith.constant 0 : index
    %294 = vector.load %arg15[%c1_148, %c0_149] : memref<2x32xf32, #tpu.memory_space<vmem>>, vector<1x32xf32>
    %cst_150 = arith.constant dense<0.000000e+00> : vector<16xf32>
    %295 = vector.multi_reduction <add>, %292, %cst_150 [1] : vector<16x32xf32> to vector<16xf32>
    %296 = vector.shape_cast %295 : vector<16xf32> to vector<16x1xf32>
    %cst_151 = arith.constant 3.200000e+01 : f32
    %297 = vector.broadcast %cst_151 : f32 to vector<16x1xf32>
    %298 = arith.divf %296, %297 : vector<16x1xf32>
    %299 = vector.broadcast %298 : vector<16x1xf32> to vector<16x32xf32>
    %300 = arith.subf %292, %299 : vector<16x32xf32>
    %301 = arith.mulf %300, %300 : vector<16x32xf32>
    %cst_152 = arith.constant dense<0.000000e+00> : vector<16xf32>
    %302 = vector.multi_reduction <add>, %301, %cst_152 [1] : vector<16x32xf32> to vector<16xf32>
    %303 = vector.shape_cast %302 : vector<16xf32> to vector<16x1xf32>
    %cst_153 = arith.constant 3.200000e+01 : f32
    %304 = vector.broadcast %cst_153 : f32 to vector<16x1xf32>
    %305 = arith.divf %303, %304 : vector<16x1xf32>
    %306 = vector.broadcast %298 : vector<16x1xf32> to vector<16x32xf32>
    %307 = arith.subf %292, %306 : vector<16x32xf32>
    %cst_154 = arith.constant 9.99999974E-6 : f32
    %308 = vector.broadcast %cst_154 : f32 to vector<16x1xf32>
    %309 = arith.addf %305, %308 : vector<16x1xf32>
    %310 = math.rsqrt %309 : vector<16x1xf32>
    %311 = vector.broadcast %310 : vector<16x1xf32> to vector<16x32xf32>
    %312 = arith.mulf %307, %311 : vector<16x32xf32>
    %313 = vector.broadcast %293 : vector<1x32xf32> to vector<16x32xf32>
    %314 = arith.mulf %312, %313 : vector<16x32xf32>
    %315 = vector.broadcast %294 : vector<1x32xf32> to vector<16x32xf32>
    %316 = arith.addf %314, %315 : vector<16x32xf32>
    %c0_155 = arith.constant 0 : index
    %c0_156 = arith.constant 0 : index
    %317 = vector.load %arg16[%c0_155, %c0_156] : memref<32x32xf32, #tpu.memory_space<vmem>>, vector<32x32xf32>
    %cst_157 = arith.constant dense<0.000000e+00> : vector<16x32xf32>
    %318 = tpu.matmul %316, %317, %cst_157 {dimension_numbers = #tpu.dot_dimension_numbers<[1], [0], [0], [1], [0, 0, 1, 1], [], []>} : vector<16x32xf32>, vector<32x32xf32>, vector<16x32xf32> -> vector<16x32xf32>
    %c0_158 = arith.constant 0 : index
    %c0_159 = arith.constant 0 : index
    %319 = vector.load %arg17[%c0_158, %c0_159] : memref<1x32xf32, #tpu.memory_space<vmem>>, vector<1x32xf32>
    %320 = vector.broadcast %319 : vector<1x32xf32> to vector<16x32xf32>
    %321 = arith.addf %318, %320 : vector<16x32xf32>
    %cst_160 = arith.constant 0.000000e+00 : f32
    %322 = vector.broadcast %cst_160 : f32 to vector<16x32xf32>
    %323 = arith.maximumf %321, %322 : vector<16x32xf32>
    %c0_161 = arith.constant 0 : index
    %c0_162 = arith.constant 0 : index
    %324 = vector.load %arg18[%c0_161, %c0_162] : memref<32x32xf32, #tpu.memory_space<vmem>>, vector<32x32xf32>
    %cst_163 = arith.constant dense<0.000000e+00> : vector<16x32xf32>
    %325 = tpu.matmul %323, %324, %cst_163 {dimension_numbers = #tpu.dot_dimension_numbers<[1], [0], [0], [1], [0, 0, 1, 1], [], []>} : vector<16x32xf32>, vector<32x32xf32>, vector<16x32xf32> -> vector<16x32xf32>
    %c0_164 = arith.constant 0 : index
    %c0_165 = arith.constant 0 : index
    %326 = vector.load %arg19[%c0_164, %c0_165] : memref<1x32xf32, #tpu.memory_space<vmem>>, vector<1x32xf32>
    %327 = vector.broadcast %326 : vector<1x32xf32> to vector<16x32xf32>
    %328 = arith.addf %325, %327 : vector<16x32xf32>
    %c0_166 = arith.constant 0 : index
    %c0_167 = arith.constant 0 : index
    %329 = vector.load %arg21[%c0_166, %c0_167] : memref<2x32xf32, #tpu.memory_space<vmem>>, vector<1x32xf32>
    %c1_168 = arith.constant 1 : index
    %c0_169 = arith.constant 0 : index
    %330 = vector.load %arg21[%c1_168, %c0_169] : memref<2x32xf32, #tpu.memory_space<vmem>>, vector<1x32xf32>
    %cst_170 = arith.constant dense<0.000000e+00> : vector<16xf32>
    %331 = vector.multi_reduction <add>, %328, %cst_170 [1] : vector<16x32xf32> to vector<16xf32>
    %332 = vector.shape_cast %331 : vector<16xf32> to vector<16x1xf32>
    %cst_171 = arith.constant 3.200000e+01 : f32
    %333 = vector.broadcast %cst_171 : f32 to vector<16x1xf32>
    %334 = arith.divf %332, %333 : vector<16x1xf32>
    %335 = vector.broadcast %334 : vector<16x1xf32> to vector<16x32xf32>
    %336 = arith.subf %328, %335 : vector<16x32xf32>
    %337 = arith.mulf %336, %336 : vector<16x32xf32>
    %cst_172 = arith.constant dense<0.000000e+00> : vector<16xf32>
    %338 = vector.multi_reduction <add>, %337, %cst_172 [1] : vector<16x32xf32> to vector<16xf32>
    %339 = vector.shape_cast %338 : vector<16xf32> to vector<16x1xf32>
    %cst_173 = arith.constant 3.200000e+01 : f32
    %340 = vector.broadcast %cst_173 : f32 to vector<16x1xf32>
    %341 = arith.divf %339, %340 : vector<16x1xf32>
    %342 = vector.broadcast %334 : vector<16x1xf32> to vector<16x32xf32>
    %343 = arith.subf %328, %342 : vector<16x32xf32>
    %cst_174 = arith.constant 9.99999974E-6 : f32
    %344 = vector.broadcast %cst_174 : f32 to vector<16x1xf32>
    %345 = arith.addf %341, %344 : vector<16x1xf32>
    %346 = math.rsqrt %345 : vector<16x1xf32>
    %347 = vector.broadcast %346 : vector<16x1xf32> to vector<16x32xf32>
    %348 = arith.mulf %343, %347 : vector<16x32xf32>
    %349 = vector.broadcast %329 : vector<1x32xf32> to vector<16x32xf32>
    %350 = arith.mulf %348, %349 : vector<16x32xf32>
    %351 = vector.broadcast %330 : vector<1x32xf32> to vector<16x32xf32>
    %352 = arith.addf %350, %351 : vector<16x32xf32>
    %c0_175 = arith.constant 0 : index
    %c0_176 = arith.constant 0 : index
    %353 = vector.load %arg22[%c0_175, %c0_176] : memref<32x64xf32, #tpu.memory_space<vmem>>, vector<32x64xf32>
    %cst_177 = arith.constant dense<0.000000e+00> : vector<16x64xf32>
    %354 = tpu.matmul %352, %353, %cst_177 {dimension_numbers = #tpu.dot_dimension_numbers<[1], [0], [0], [1], [0, 0, 1, 1], [], []>} : vector<16x32xf32>, vector<32x64xf32>, vector<16x64xf32> -> vector<16x64xf32>
    %355 = vector.extract_strided_slice %354 {offsets = [0, 0], sizes = [16, 32], strides = [1, 1]} : vector<16x64xf32> to vector<16x32xf32>
    %356 = vector.extract_strided_slice %354 {offsets = [0, 32], sizes = [16, 32], strides = [1, 1]} : vector<16x64xf32> to vector<16x32xf32>
    %c0_178 = arith.constant 0 : index
    %c0_179 = arith.constant 0 : index
    %357 = vector.load %arg20[%c0_178, %c0_179] : memref<4x32xf32, #tpu.memory_space<vmem>>, vector<4x32xf32>
    %c0_180 = arith.constant 0 : index
    %c0_181 = arith.constant 0 : index
    %358 = vector.load %arg23[%c0_180, %c0_181] : memref<2x32xf32, #tpu.memory_space<vmem>>, vector<1x32xf32>
    %c1_182 = arith.constant 1 : index
    %c0_183 = arith.constant 0 : index
    %359 = vector.load %arg23[%c1_182, %c0_183] : memref<2x32xf32, #tpu.memory_space<vmem>>, vector<1x32xf32>
    %cst_184 = arith.constant dense<0.000000e+00> : vector<4xf32>
    %360 = vector.multi_reduction <add>, %357, %cst_184 [1] : vector<4x32xf32> to vector<4xf32>
    %361 = vector.shape_cast %360 : vector<4xf32> to vector<4x1xf32>
    %cst_185 = arith.constant 3.200000e+01 : f32
    %362 = vector.broadcast %cst_185 : f32 to vector<4x1xf32>
    %363 = arith.divf %361, %362 : vector<4x1xf32>
    %364 = vector.broadcast %363 : vector<4x1xf32> to vector<4x32xf32>
    %365 = arith.subf %357, %364 : vector<4x32xf32>
    %366 = arith.mulf %365, %365 : vector<4x32xf32>
    %cst_186 = arith.constant dense<0.000000e+00> : vector<4xf32>
    %367 = vector.multi_reduction <add>, %366, %cst_186 [1] : vector<4x32xf32> to vector<4xf32>
    %368 = vector.shape_cast %367 : vector<4xf32> to vector<4x1xf32>
    %cst_187 = arith.constant 3.200000e+01 : f32
    %369 = vector.broadcast %cst_187 : f32 to vector<4x1xf32>
    %370 = arith.divf %368, %369 : vector<4x1xf32>
    %371 = vector.broadcast %363 : vector<4x1xf32> to vector<4x32xf32>
    %372 = arith.subf %357, %371 : vector<4x32xf32>
    %cst_188 = arith.constant 9.99999974E-6 : f32
    %373 = vector.broadcast %cst_188 : f32 to vector<4x1xf32>
    %374 = arith.addf %370, %373 : vector<4x1xf32>
    %375 = math.rsqrt %374 : vector<4x1xf32>
    %376 = vector.broadcast %375 : vector<4x1xf32> to vector<4x32xf32>
    %377 = arith.mulf %372, %376 : vector<4x32xf32>
    %378 = vector.broadcast %358 : vector<1x32xf32> to vector<4x32xf32>
    %379 = arith.mulf %377, %378 : vector<4x32xf32>
    %380 = vector.broadcast %359 : vector<1x32xf32> to vector<4x32xf32>
    %381 = arith.addf %379, %380 : vector<4x32xf32>
    %c0_189 = arith.constant 0 : index
    %c0_190 = arith.constant 0 : index
    %382 = vector.load %arg24[%c0_189, %c0_190] : memref<32x32xf32, #tpu.memory_space<vmem>>, vector<32x32xf32>
    %cst_191 = arith.constant dense<0.000000e+00> : vector<4x32xf32>
    %383 = tpu.matmul %381, %382, %cst_191 {dimension_numbers = #tpu.dot_dimension_numbers<[1], [0], [0], [1], [0, 0, 1, 1], [], []>} : vector<4x32xf32>, vector<32x32xf32>, vector<4x32xf32> -> vector<4x32xf32>
    %cst_192 = arith.constant dense<0.000000e+00> : vector<4x16xf32>
    %384 = tpu.matmul %383, %355, %cst_192 {dimension_numbers = #tpu.dot_dimension_numbers<[1], [1], [0], [0], [0, 0, 1, 0], [], []>} : vector<4x32xf32>, vector<16x32xf32>, vector<4x16xf32> -> vector<4x16xf32>
    %cst_193 = arith.constant dense<0xFF800000> : vector<16xf32>
    %385 = vector.multi_reduction <maximumf>, %384, %cst_193 [0] : vector<4x16xf32> to vector<16xf32>
    %386 = vector.shape_cast %385 : vector<16xf32> to vector<1x16xf32>
    %387 = vector.broadcast %386 : vector<1x16xf32> to vector<4x16xf32>
    %388 = arith.subf %384, %387 : vector<4x16xf32>
    %389 = math.exp %388 : vector<4x16xf32>
    %cst_194 = arith.constant dense<0.000000e+00> : vector<16xf32>
    %390 = vector.multi_reduction <add>, %389, %cst_194 [0] : vector<4x16xf32> to vector<16xf32>
    %391 = vector.shape_cast %390 : vector<16xf32> to vector<1x16xf32>
    %392 = tpu.reciprocal %391 {approx = true} : vector<1x16xf32> -> vector<1x16xf32>
    %393 = vector.broadcast %392 : vector<1x16xf32> to vector<4x16xf32>
    %394 = arith.mulf %389, %393 : vector<4x16xf32>
    %cst_195 = arith.constant 9.99999993E-9 : f32
    %395 = vector.broadcast %cst_195 : f32 to vector<4x16xf32>
    %396 = arith.addf %394, %395 : vector<4x16xf32>
    %cst_196 = arith.constant dense<0.000000e+00> : vector<4xf32>
    %397 = vector.multi_reduction <add>, %396, %cst_196 [1] : vector<4x16xf32> to vector<4xf32>
    %398 = vector.shape_cast %397 : vector<4xf32> to vector<4x1xf32>
    %399 = tpu.reciprocal %398 {approx = true} : vector<4x1xf32> -> vector<4x1xf32>
    %400 = vector.broadcast %399 : vector<4x1xf32> to vector<4x16xf32>
    %401 = arith.mulf %396, %400 : vector<4x16xf32>
    %cst_197 = arith.constant dense<0.000000e+00> : vector<4x32xf32>
    %402 = tpu.matmul %401, %356, %cst_197 {dimension_numbers = #tpu.dot_dimension_numbers<[1], [0], [0], [1], [0, 0, 1, 1], [], []>} : vector<4x16xf32>, vector<16x32xf32>, vector<4x32xf32> -> vector<4x32xf32>
    %c0_198 = arith.constant 0 : index
    %c0_199 = arith.constant 0 : index
    %403 = vector.load %arg25[%c0_198, %c0_199] : memref<32x96xf32, #tpu.memory_space<vmem>>, vector<32x96xf32>
    %cst_200 = arith.constant dense<0.000000e+00> : vector<4x96xf32>
    %404 = tpu.matmul %402, %403, %cst_200 {dimension_numbers = #tpu.dot_dimension_numbers<[1], [0], [0], [1], [0, 0, 1, 1], [], []>} : vector<4x32xf32>, vector<32x96xf32>, vector<4x96xf32> -> vector<4x96xf32>
    %c0_201 = arith.constant 0 : index
    %c0_202 = arith.constant 0 : index
    %405 = vector.load %arg27[%c0_201, %c0_202] : memref<1x96xf32, #tpu.memory_space<vmem>>, vector<1x96xf32>
    %406 = vector.broadcast %405 : vector<1x96xf32> to vector<4x96xf32>
    %407 = arith.addf %404, %406 : vector<4x96xf32>
    %c0_203 = arith.constant 0 : index
    %c0_204 = arith.constant 0 : index
    %408 = vector.load %arg26[%c0_203, %c0_204] : memref<32x96xf32, #tpu.memory_space<vmem>>, vector<32x96xf32>
    %cst_205 = arith.constant dense<0.000000e+00> : vector<4x96xf32>
    %409 = tpu.matmul %357, %408, %cst_205 {dimension_numbers = #tpu.dot_dimension_numbers<[1], [0], [0], [1], [0, 0, 1, 1], [], []>} : vector<4x32xf32>, vector<32x96xf32>, vector<4x96xf32> -> vector<4x96xf32>
    %c0_206 = arith.constant 0 : index
    %c0_207 = arith.constant 0 : index
    %410 = vector.load %arg28[%c0_206, %c0_207] : memref<1x96xf32, #tpu.memory_space<vmem>>, vector<1x96xf32>
    %411 = vector.broadcast %410 : vector<1x96xf32> to vector<4x96xf32>
    %412 = arith.addf %409, %411 : vector<4x96xf32>
    %413 = vector.extract_strided_slice %407 {offsets = [0, 0], sizes = [4, 32], strides = [1, 1]} : vector<4x96xf32> to vector<4x32xf32>
    %414 = vector.extract_strided_slice %412 {offsets = [0, 0], sizes = [4, 32], strides = [1, 1]} : vector<4x96xf32> to vector<4x32xf32>
    %415 = arith.addf %413, %414 : vector<4x32xf32>
    %416 = arith.negf %415 : vector<4x32xf32>
    %417 = math.exp %416 : vector<4x32xf32>
    %cst_208 = arith.constant 1.000000e+00 : f32
    %418 = vector.broadcast %cst_208 : f32 to vector<4x32xf32>
    %419 = arith.addf %418, %417 : vector<4x32xf32>
    %420 = arith.divf %418, %419 : vector<4x32xf32>
    %421 = vector.extract_strided_slice %407 {offsets = [0, 32], sizes = [4, 32], strides = [1, 1]} : vector<4x96xf32> to vector<4x32xf32>
    %422 = vector.extract_strided_slice %412 {offsets = [0, 32], sizes = [4, 32], strides = [1, 1]} : vector<4x96xf32> to vector<4x32xf32>
    %423 = arith.addf %421, %422 : vector<4x32xf32>
    %424 = arith.negf %423 : vector<4x32xf32>
    %425 = math.exp %424 : vector<4x32xf32>
    %cst_209 = arith.constant 1.000000e+00 : f32
    %426 = vector.broadcast %cst_209 : f32 to vector<4x32xf32>
    %427 = arith.addf %426, %425 : vector<4x32xf32>
    %428 = arith.divf %426, %427 : vector<4x32xf32>
    %429 = vector.extract_strided_slice %407 {offsets = [0, 64], sizes = [4, 32], strides = [1, 1]} : vector<4x96xf32> to vector<4x32xf32>
    %430 = vector.extract_strided_slice %412 {offsets = [0, 64], sizes = [4, 32], strides = [1, 1]} : vector<4x96xf32> to vector<4x32xf32>
    %431 = arith.mulf %420, %430 : vector<4x32xf32>
    %432 = arith.addf %429, %431 : vector<4x32xf32>
    %433 = math.tanh %432 : vector<4x32xf32>
    %cst_210 = arith.constant 1.000000e+00 : f32
    %434 = vector.broadcast %cst_210 : f32 to vector<4x32xf32>
    %435 = arith.subf %434, %428 : vector<4x32xf32>
    %436 = arith.mulf %435, %433 : vector<4x32xf32>
    %437 = arith.mulf %428, %357 : vector<4x32xf32>
    %438 = arith.addf %436, %437 : vector<4x32xf32>
    %c0_211 = arith.constant 0 : index
    %c0_212 = arith.constant 0 : index
    %439 = vector.load %arg29[%c0_211, %c0_212] : memref<2x32xf32, #tpu.memory_space<vmem>>, vector<1x32xf32>
    %c1_213 = arith.constant 1 : index
    %c0_214 = arith.constant 0 : index
    %440 = vector.load %arg29[%c1_213, %c0_214] : memref<2x32xf32, #tpu.memory_space<vmem>>, vector<1x32xf32>
    %cst_215 = arith.constant dense<0.000000e+00> : vector<4xf32>
    %441 = vector.multi_reduction <add>, %438, %cst_215 [1] : vector<4x32xf32> to vector<4xf32>
    %442 = vector.shape_cast %441 : vector<4xf32> to vector<4x1xf32>
    %cst_216 = arith.constant 3.200000e+01 : f32
    %443 = vector.broadcast %cst_216 : f32 to vector<4x1xf32>
    %444 = arith.divf %442, %443 : vector<4x1xf32>
    %445 = vector.broadcast %444 : vector<4x1xf32> to vector<4x32xf32>
    %446 = arith.subf %438, %445 : vector<4x32xf32>
    %447 = arith.mulf %446, %446 : vector<4x32xf32>
    %cst_217 = arith.constant dense<0.000000e+00> : vector<4xf32>
    %448 = vector.multi_reduction <add>, %447, %cst_217 [1] : vector<4x32xf32> to vector<4xf32>
    %449 = vector.shape_cast %448 : vector<4xf32> to vector<4x1xf32>
    %cst_218 = arith.constant 3.200000e+01 : f32
    %450 = vector.broadcast %cst_218 : f32 to vector<4x1xf32>
    %451 = arith.divf %449, %450 : vector<4x1xf32>
    %452 = vector.broadcast %444 : vector<4x1xf32> to vector<4x32xf32>
    %453 = arith.subf %438, %452 : vector<4x32xf32>
    %cst_219 = arith.constant 9.99999974E-6 : f32
    %454 = vector.broadcast %cst_219 : f32 to vector<4x1xf32>
    %455 = arith.addf %451, %454 : vector<4x1xf32>
    %456 = math.rsqrt %455 : vector<4x1xf32>
    %457 = vector.broadcast %456 : vector<4x1xf32> to vector<4x32xf32>
    %458 = arith.mulf %453, %457 : vector<4x32xf32>
    %459 = vector.broadcast %439 : vector<1x32xf32> to vector<4x32xf32>
    %460 = arith.mulf %458, %459 : vector<4x32xf32>
    %461 = vector.broadcast %440 : vector<1x32xf32> to vector<4x32xf32>
    %462 = arith.addf %460, %461 : vector<4x32xf32>
    %c0_220 = arith.constant 0 : index
    %c0_221 = arith.constant 0 : index
    %463 = vector.load %arg30[%c0_220, %c0_221] : memref<32x64xf32, #tpu.memory_space<vmem>>, vector<32x64xf32>
    %cst_222 = arith.constant dense<0.000000e+00> : vector<4x64xf32>
    %464 = tpu.matmul %462, %463, %cst_222 {dimension_numbers = #tpu.dot_dimension_numbers<[1], [0], [0], [1], [0, 0, 1, 1], [], []>} : vector<4x32xf32>, vector<32x64xf32>, vector<4x64xf32> -> vector<4x64xf32>
    %c0_223 = arith.constant 0 : index
    %c0_224 = arith.constant 0 : index
    %465 = vector.load %arg31[%c0_223, %c0_224] : memref<1x64xf32, #tpu.memory_space<vmem>>, vector<1x64xf32>
    %466 = vector.broadcast %465 : vector<1x64xf32> to vector<4x64xf32>
    %467 = arith.addf %464, %466 : vector<4x64xf32>
    %cst_225 = arith.constant 0.000000e+00 : f32
    %468 = vector.broadcast %cst_225 : f32 to vector<4x64xf32>
    %469 = arith.maximumf %467, %468 : vector<4x64xf32>
    %c0_226 = arith.constant 0 : index
    %c0_227 = arith.constant 0 : index
    %470 = vector.load %arg32[%c0_226, %c0_227] : memref<64x32xf32, #tpu.memory_space<vmem>>, vector<64x32xf32>
    %cst_228 = arith.constant dense<0.000000e+00> : vector<4x32xf32>
    %471 = tpu.matmul %469, %470, %cst_228 {dimension_numbers = #tpu.dot_dimension_numbers<[1], [0], [0], [1], [0, 0, 1, 1], [], []>} : vector<4x64xf32>, vector<64x32xf32>, vector<4x32xf32> -> vector<4x32xf32>
    %c0_229 = arith.constant 0 : index
    %c0_230 = arith.constant 0 : index
    %472 = vector.load %arg33[%c0_229, %c0_230] : memref<1x32xf32, #tpu.memory_space<vmem>>, vector<1x32xf32>
    %473 = vector.broadcast %472 : vector<1x32xf32> to vector<4x32xf32>
    %474 = arith.addf %471, %473 : vector<4x32xf32>
    %475 = arith.addf %438, %474 : vector<4x32xf32>
    %c0_231 = arith.constant 0 : index
    %c0_232 = arith.constant 0 : index
    %476 = vector.load %arg23[%c0_231, %c0_232] : memref<2x32xf32, #tpu.memory_space<vmem>>, vector<1x32xf32>
    %c1_233 = arith.constant 1 : index
    %c0_234 = arith.constant 0 : index
    %477 = vector.load %arg23[%c1_233, %c0_234] : memref<2x32xf32, #tpu.memory_space<vmem>>, vector<1x32xf32>
    %cst_235 = arith.constant dense<0.000000e+00> : vector<4xf32>
    %478 = vector.multi_reduction <add>, %475, %cst_235 [1] : vector<4x32xf32> to vector<4xf32>
    %479 = vector.shape_cast %478 : vector<4xf32> to vector<4x1xf32>
    %cst_236 = arith.constant 3.200000e+01 : f32
    %480 = vector.broadcast %cst_236 : f32 to vector<4x1xf32>
    %481 = arith.divf %479, %480 : vector<4x1xf32>
    %482 = vector.broadcast %481 : vector<4x1xf32> to vector<4x32xf32>
    %483 = arith.subf %475, %482 : vector<4x32xf32>
    %484 = arith.mulf %483, %483 : vector<4x32xf32>
    %cst_237 = arith.constant dense<0.000000e+00> : vector<4xf32>
    %485 = vector.multi_reduction <add>, %484, %cst_237 [1] : vector<4x32xf32> to vector<4xf32>
    %486 = vector.shape_cast %485 : vector<4xf32> to vector<4x1xf32>
    %cst_238 = arith.constant 3.200000e+01 : f32
    %487 = vector.broadcast %cst_238 : f32 to vector<4x1xf32>
    %488 = arith.divf %486, %487 : vector<4x1xf32>
    %489 = vector.broadcast %481 : vector<4x1xf32> to vector<4x32xf32>
    %490 = arith.subf %475, %489 : vector<4x32xf32>
    %cst_239 = arith.constant 9.99999974E-6 : f32
    %491 = vector.broadcast %cst_239 : f32 to vector<4x1xf32>
    %492 = arith.addf %488, %491 : vector<4x1xf32>
    %493 = math.rsqrt %492 : vector<4x1xf32>
    %494 = vector.broadcast %493 : vector<4x1xf32> to vector<4x32xf32>
    %495 = arith.mulf %490, %494 : vector<4x32xf32>
    %496 = vector.broadcast %476 : vector<1x32xf32> to vector<4x32xf32>
    %497 = arith.mulf %495, %496 : vector<4x32xf32>
    %498 = vector.broadcast %477 : vector<1x32xf32> to vector<4x32xf32>
    %499 = arith.addf %497, %498 : vector<4x32xf32>
    %c0_240 = arith.constant 0 : index
    %c0_241 = arith.constant 0 : index
    %500 = vector.load %arg24[%c0_240, %c0_241] : memref<32x32xf32, #tpu.memory_space<vmem>>, vector<32x32xf32>
    %cst_242 = arith.constant dense<0.000000e+00> : vector<4x32xf32>
    %501 = tpu.matmul %499, %500, %cst_242 {dimension_numbers = #tpu.dot_dimension_numbers<[1], [0], [0], [1], [0, 0, 1, 1], [], []>} : vector<4x32xf32>, vector<32x32xf32>, vector<4x32xf32> -> vector<4x32xf32>
    %cst_243 = arith.constant dense<0.000000e+00> : vector<4x16xf32>
    %502 = tpu.matmul %501, %355, %cst_243 {dimension_numbers = #tpu.dot_dimension_numbers<[1], [1], [0], [0], [0, 0, 1, 0], [], []>} : vector<4x32xf32>, vector<16x32xf32>, vector<4x16xf32> -> vector<4x16xf32>
    %cst_244 = arith.constant dense<0xFF800000> : vector<16xf32>
    %503 = vector.multi_reduction <maximumf>, %502, %cst_244 [0] : vector<4x16xf32> to vector<16xf32>
    %504 = vector.shape_cast %503 : vector<16xf32> to vector<1x16xf32>
    %505 = vector.broadcast %504 : vector<1x16xf32> to vector<4x16xf32>
    %506 = arith.subf %502, %505 : vector<4x16xf32>
    %507 = math.exp %506 : vector<4x16xf32>
    %cst_245 = arith.constant dense<0.000000e+00> : vector<16xf32>
    %508 = vector.multi_reduction <add>, %507, %cst_245 [0] : vector<4x16xf32> to vector<16xf32>
    %509 = vector.shape_cast %508 : vector<16xf32> to vector<1x16xf32>
    %510 = tpu.reciprocal %509 {approx = true} : vector<1x16xf32> -> vector<1x16xf32>
    %511 = vector.broadcast %510 : vector<1x16xf32> to vector<4x16xf32>
    %512 = arith.mulf %507, %511 : vector<4x16xf32>
    %cst_246 = arith.constant 9.99999993E-9 : f32
    %513 = vector.broadcast %cst_246 : f32 to vector<4x16xf32>
    %514 = arith.addf %512, %513 : vector<4x16xf32>
    %cst_247 = arith.constant dense<0.000000e+00> : vector<4xf32>
    %515 = vector.multi_reduction <add>, %514, %cst_247 [1] : vector<4x16xf32> to vector<4xf32>
    %516 = vector.shape_cast %515 : vector<4xf32> to vector<4x1xf32>
    %517 = tpu.reciprocal %516 {approx = true} : vector<4x1xf32> -> vector<4x1xf32>
    %518 = vector.broadcast %517 : vector<4x1xf32> to vector<4x16xf32>
    %519 = arith.mulf %514, %518 : vector<4x16xf32>
    %cst_248 = arith.constant dense<0.000000e+00> : vector<4x32xf32>
    %520 = tpu.matmul %519, %356, %cst_248 {dimension_numbers = #tpu.dot_dimension_numbers<[1], [0], [0], [1], [0, 0, 1, 1], [], []>} : vector<4x16xf32>, vector<16x32xf32>, vector<4x32xf32> -> vector<4x32xf32>
    %c0_249 = arith.constant 0 : index
    %c0_250 = arith.constant 0 : index
    %521 = vector.load %arg25[%c0_249, %c0_250] : memref<32x96xf32, #tpu.memory_space<vmem>>, vector<32x96xf32>
    %cst_251 = arith.constant dense<0.000000e+00> : vector<4x96xf32>
    %522 = tpu.matmul %520, %521, %cst_251 {dimension_numbers = #tpu.dot_dimension_numbers<[1], [0], [0], [1], [0, 0, 1, 1], [], []>} : vector<4x32xf32>, vector<32x96xf32>, vector<4x96xf32> -> vector<4x96xf32>
    %c0_252 = arith.constant 0 : index
    %c0_253 = arith.constant 0 : index
    %523 = vector.load %arg27[%c0_252, %c0_253] : memref<1x96xf32, #tpu.memory_space<vmem>>, vector<1x96xf32>
    %524 = vector.broadcast %523 : vector<1x96xf32> to vector<4x96xf32>
    %525 = arith.addf %522, %524 : vector<4x96xf32>
    %c0_254 = arith.constant 0 : index
    %c0_255 = arith.constant 0 : index
    %526 = vector.load %arg26[%c0_254, %c0_255] : memref<32x96xf32, #tpu.memory_space<vmem>>, vector<32x96xf32>
    %cst_256 = arith.constant dense<0.000000e+00> : vector<4x96xf32>
    %527 = tpu.matmul %475, %526, %cst_256 {dimension_numbers = #tpu.dot_dimension_numbers<[1], [0], [0], [1], [0, 0, 1, 1], [], []>} : vector<4x32xf32>, vector<32x96xf32>, vector<4x96xf32> -> vector<4x96xf32>
    %c0_257 = arith.constant 0 : index
    %c0_258 = arith.constant 0 : index
    %528 = vector.load %arg28[%c0_257, %c0_258] : memref<1x96xf32, #tpu.memory_space<vmem>>, vector<1x96xf32>
    %529 = vector.broadcast %528 : vector<1x96xf32> to vector<4x96xf32>
    %530 = arith.addf %527, %529 : vector<4x96xf32>
    %531 = vector.extract_strided_slice %525 {offsets = [0, 0], sizes = [4, 32], strides = [1, 1]} : vector<4x96xf32> to vector<4x32xf32>
    %532 = vector.extract_strided_slice %530 {offsets = [0, 0], sizes = [4, 32], strides = [1, 1]} : vector<4x96xf32> to vector<4x32xf32>
    %533 = arith.addf %531, %532 : vector<4x32xf32>
    %534 = arith.negf %533 : vector<4x32xf32>
    %535 = math.exp %534 : vector<4x32xf32>
    %cst_259 = arith.constant 1.000000e+00 : f32
    %536 = vector.broadcast %cst_259 : f32 to vector<4x32xf32>
    %537 = arith.addf %536, %535 : vector<4x32xf32>
    %538 = arith.divf %536, %537 : vector<4x32xf32>
    %539 = vector.extract_strided_slice %525 {offsets = [0, 32], sizes = [4, 32], strides = [1, 1]} : vector<4x96xf32> to vector<4x32xf32>
    %540 = vector.extract_strided_slice %530 {offsets = [0, 32], sizes = [4, 32], strides = [1, 1]} : vector<4x96xf32> to vector<4x32xf32>
    %541 = arith.addf %539, %540 : vector<4x32xf32>
    %542 = arith.negf %541 : vector<4x32xf32>
    %543 = math.exp %542 : vector<4x32xf32>
    %cst_260 = arith.constant 1.000000e+00 : f32
    %544 = vector.broadcast %cst_260 : f32 to vector<4x32xf32>
    %545 = arith.addf %544, %543 : vector<4x32xf32>
    %546 = arith.divf %544, %545 : vector<4x32xf32>
    %547 = vector.extract_strided_slice %525 {offsets = [0, 64], sizes = [4, 32], strides = [1, 1]} : vector<4x96xf32> to vector<4x32xf32>
    %548 = vector.extract_strided_slice %530 {offsets = [0, 64], sizes = [4, 32], strides = [1, 1]} : vector<4x96xf32> to vector<4x32xf32>
    %549 = arith.mulf %538, %548 : vector<4x32xf32>
    %550 = arith.addf %547, %549 : vector<4x32xf32>
    %551 = math.tanh %550 : vector<4x32xf32>
    %cst_261 = arith.constant 1.000000e+00 : f32
    %552 = vector.broadcast %cst_261 : f32 to vector<4x32xf32>
    %553 = arith.subf %552, %546 : vector<4x32xf32>
    %554 = arith.mulf %553, %551 : vector<4x32xf32>
    %555 = arith.mulf %546, %475 : vector<4x32xf32>
    %556 = arith.addf %554, %555 : vector<4x32xf32>
    %c0_262 = arith.constant 0 : index
    %c0_263 = arith.constant 0 : index
    %557 = vector.load %arg29[%c0_262, %c0_263] : memref<2x32xf32, #tpu.memory_space<vmem>>, vector<1x32xf32>
    %c1_264 = arith.constant 1 : index
    %c0_265 = arith.constant 0 : index
    %558 = vector.load %arg29[%c1_264, %c0_265] : memref<2x32xf32, #tpu.memory_space<vmem>>, vector<1x32xf32>
    %cst_266 = arith.constant dense<0.000000e+00> : vector<4xf32>
    %559 = vector.multi_reduction <add>, %556, %cst_266 [1] : vector<4x32xf32> to vector<4xf32>
    %560 = vector.shape_cast %559 : vector<4xf32> to vector<4x1xf32>
    %cst_267 = arith.constant 3.200000e+01 : f32
    %561 = vector.broadcast %cst_267 : f32 to vector<4x1xf32>
    %562 = arith.divf %560, %561 : vector<4x1xf32>
    %563 = vector.broadcast %562 : vector<4x1xf32> to vector<4x32xf32>
    %564 = arith.subf %556, %563 : vector<4x32xf32>
    %565 = arith.mulf %564, %564 : vector<4x32xf32>
    %cst_268 = arith.constant dense<0.000000e+00> : vector<4xf32>
    %566 = vector.multi_reduction <add>, %565, %cst_268 [1] : vector<4x32xf32> to vector<4xf32>
    %567 = vector.shape_cast %566 : vector<4xf32> to vector<4x1xf32>
    %cst_269 = arith.constant 3.200000e+01 : f32
    %568 = vector.broadcast %cst_269 : f32 to vector<4x1xf32>
    %569 = arith.divf %567, %568 : vector<4x1xf32>
    %570 = vector.broadcast %562 : vector<4x1xf32> to vector<4x32xf32>
    %571 = arith.subf %556, %570 : vector<4x32xf32>
    %cst_270 = arith.constant 9.99999974E-6 : f32
    %572 = vector.broadcast %cst_270 : f32 to vector<4x1xf32>
    %573 = arith.addf %569, %572 : vector<4x1xf32>
    %574 = math.rsqrt %573 : vector<4x1xf32>
    %575 = vector.broadcast %574 : vector<4x1xf32> to vector<4x32xf32>
    %576 = arith.mulf %571, %575 : vector<4x32xf32>
    %577 = vector.broadcast %557 : vector<1x32xf32> to vector<4x32xf32>
    %578 = arith.mulf %576, %577 : vector<4x32xf32>
    %579 = vector.broadcast %558 : vector<1x32xf32> to vector<4x32xf32>
    %580 = arith.addf %578, %579 : vector<4x32xf32>
    %c0_271 = arith.constant 0 : index
    %c0_272 = arith.constant 0 : index
    %581 = vector.load %arg30[%c0_271, %c0_272] : memref<32x64xf32, #tpu.memory_space<vmem>>, vector<32x64xf32>
    %cst_273 = arith.constant dense<0.000000e+00> : vector<4x64xf32>
    %582 = tpu.matmul %580, %581, %cst_273 {dimension_numbers = #tpu.dot_dimension_numbers<[1], [0], [0], [1], [0, 0, 1, 1], [], []>} : vector<4x32xf32>, vector<32x64xf32>, vector<4x64xf32> -> vector<4x64xf32>
    %c0_274 = arith.constant 0 : index
    %c0_275 = arith.constant 0 : index
    %583 = vector.load %arg31[%c0_274, %c0_275] : memref<1x64xf32, #tpu.memory_space<vmem>>, vector<1x64xf32>
    %584 = vector.broadcast %583 : vector<1x64xf32> to vector<4x64xf32>
    %585 = arith.addf %582, %584 : vector<4x64xf32>
    %cst_276 = arith.constant 0.000000e+00 : f32
    %586 = vector.broadcast %cst_276 : f32 to vector<4x64xf32>
    %587 = arith.maximumf %585, %586 : vector<4x64xf32>
    %c0_277 = arith.constant 0 : index
    %c0_278 = arith.constant 0 : index
    %588 = vector.load %arg32[%c0_277, %c0_278] : memref<64x32xf32, #tpu.memory_space<vmem>>, vector<64x32xf32>
    %cst_279 = arith.constant dense<0.000000e+00> : vector<4x32xf32>
    %589 = tpu.matmul %587, %588, %cst_279 {dimension_numbers = #tpu.dot_dimension_numbers<[1], [0], [0], [1], [0, 0, 1, 1], [], []>} : vector<4x64xf32>, vector<64x32xf32>, vector<4x32xf32> -> vector<4x32xf32>
    %c0_280 = arith.constant 0 : index
    %c0_281 = arith.constant 0 : index
    %590 = vector.load %arg33[%c0_280, %c0_281] : memref<1x32xf32, #tpu.memory_space<vmem>>, vector<1x32xf32>
    %591 = vector.broadcast %590 : vector<1x32xf32> to vector<4x32xf32>
    %592 = arith.addf %589, %591 : vector<4x32xf32>
    %593 = arith.addf %556, %592 : vector<4x32xf32>
    %594 = tpu.iota {dimensions = array<i32: 0>} : vector<16x16xi32>
    %595 = tpu.iota {dimensions = array<i32: 1>} : vector<16x16xi32>
    %596 = arith.cmpi sle, %595, %594 : vector<16x16xi32>
    %c1_i32 = arith.constant 1 : i32
    %597 = vector.broadcast %c1_i32 : i32 to vector<16x16xi32>
    %598 = arith.subi %594, %597 : vector<16x16xi32>
    %599 = arith.cmpi eq, %595, %598 : vector<16x16xi32>
    %600 = arith.extui %599 : vector<16x16xi1> to vector<16x16xi32>
    %601 = arith.sitofp %600 : vector<16x16xi32> to vector<16x16xf32>
    %cst_282 = arith.constant dense<0.000000e+00> : vector<16x32xf32>
    %602 = tpu.matmul %601, %292, %cst_282 {dimension_numbers = #tpu.dot_dimension_numbers<[1], [0], [0], [1], [0, 0, 1, 1], [], []>} : vector<16x16xf32>, vector<16x32xf32>, vector<16x32xf32> -> vector<16x32xf32>
    %603 = tpu.iota {dimensions = array<i32: 0>} : vector<16x32xi32>
    %c0_i32 = arith.constant 0 : i32
    %604 = vector.broadcast %c0_i32 : i32 to vector<16x32xi32>
    %605 = arith.cmpi eq, %603, %604 : vector<16x32xi32>
    %c0_283 = arith.constant 0 : index
    %c0_284 = arith.constant 0 : index
    %606 = vector.load %arg34[%c0_283, %c0_284] : memref<1x32xf32, #tpu.memory_space<vmem>>, vector<1x32xf32>
    %607 = vector.shape_cast %606 : vector<1x32xf32> to vector<1x32xf32>
    %608 = vector.broadcast %607 : vector<1x32xf32> to vector<16x32xf32>
    %609 = arith.select %605, %608, %602 : vector<16x32xi1>, vector<16x32xf32>
    %c0_285 = arith.constant 0 : index
    %c0_286 = arith.constant 0 : index
    %610 = vector.load %arg35[%c0_285, %c0_286] : memref<32x32xf32, #tpu.memory_space<vmem>>, vector<32x32xf32>
    %cst_287 = arith.constant dense<0.000000e+00> : vector<16x32xf32>
    %611 = tpu.matmul %609, %610, %cst_287 {dimension_numbers = #tpu.dot_dimension_numbers<[1], [0], [0], [1], [0, 0, 1, 1], [], []>} : vector<16x32xf32>, vector<32x32xf32>, vector<16x32xf32> -> vector<16x32xf32>
    %c0_288 = arith.constant 0 : index
    %c0_289 = arith.constant 0 : index
    %612 = vector.load %arg36[%c0_288, %c0_289] : memref<2x32xf32, #tpu.memory_space<vmem>>, vector<1x32xf32>
    %c1_290 = arith.constant 1 : index
    %c0_291 = arith.constant 0 : index
    %613 = vector.load %arg36[%c1_290, %c0_291] : memref<2x32xf32, #tpu.memory_space<vmem>>, vector<1x32xf32>
    %cst_292 = arith.constant dense<0.000000e+00> : vector<16xf32>
    %614 = vector.multi_reduction <add>, %611, %cst_292 [1] : vector<16x32xf32> to vector<16xf32>
    %615 = vector.shape_cast %614 : vector<16xf32> to vector<16x1xf32>
    %cst_293 = arith.constant 3.200000e+01 : f32
    %616 = vector.broadcast %cst_293 : f32 to vector<16x1xf32>
    %617 = arith.divf %615, %616 : vector<16x1xf32>
    %618 = vector.broadcast %617 : vector<16x1xf32> to vector<16x32xf32>
    %619 = arith.subf %611, %618 : vector<16x32xf32>
    %620 = arith.mulf %619, %619 : vector<16x32xf32>
    %cst_294 = arith.constant dense<0.000000e+00> : vector<16xf32>
    %621 = vector.multi_reduction <add>, %620, %cst_294 [1] : vector<16x32xf32> to vector<16xf32>
    %622 = vector.shape_cast %621 : vector<16xf32> to vector<16x1xf32>
    %cst_295 = arith.constant 3.200000e+01 : f32
    %623 = vector.broadcast %cst_295 : f32 to vector<16x1xf32>
    %624 = arith.divf %622, %623 : vector<16x1xf32>
    %625 = vector.broadcast %617 : vector<16x1xf32> to vector<16x32xf32>
    %626 = arith.subf %611, %625 : vector<16x32xf32>
    %cst_296 = arith.constant 9.99999974E-6 : f32
    %627 = vector.broadcast %cst_296 : f32 to vector<16x1xf32>
    %628 = arith.addf %624, %627 : vector<16x1xf32>
    %629 = math.rsqrt %628 : vector<16x1xf32>
    %630 = vector.broadcast %629 : vector<16x1xf32> to vector<16x32xf32>
    %631 = arith.mulf %626, %630 : vector<16x32xf32>
    %632 = vector.broadcast %612 : vector<1x32xf32> to vector<16x32xf32>
    %633 = arith.mulf %631, %632 : vector<16x32xf32>
    %634 = vector.broadcast %613 : vector<1x32xf32> to vector<16x32xf32>
    %635 = arith.addf %633, %634 : vector<16x32xf32>
    %c0_297 = arith.constant 0 : index
    %c0_298 = arith.constant 0 : index
    %636 = vector.load %arg37[%c0_297, %c0_298] : memref<32x32xf32, #tpu.memory_space<vmem>>, vector<32x32xf32>
    %cst_299 = arith.constant dense<0.000000e+00> : vector<4x32xf32>
    %637 = tpu.matmul %593, %636, %cst_299 {dimension_numbers = #tpu.dot_dimension_numbers<[1], [0], [0], [1], [0, 0, 1, 1], [], []>} : vector<4x32xf32>, vector<32x32xf32>, vector<4x32xf32> -> vector<4x32xf32>
    %c0_300 = arith.constant 0 : index
    %c0_301 = arith.constant 0 : index
    %638 = vector.load %arg38[%c0_300, %c0_301] : memref<2x32xf32, #tpu.memory_space<vmem>>, vector<1x32xf32>
    %c1_302 = arith.constant 1 : index
    %c0_303 = arith.constant 0 : index
    %639 = vector.load %arg38[%c1_302, %c0_303] : memref<2x32xf32, #tpu.memory_space<vmem>>, vector<1x32xf32>
    %cst_304 = arith.constant dense<0.000000e+00> : vector<4xf32>
    %640 = vector.multi_reduction <add>, %637, %cst_304 [1] : vector<4x32xf32> to vector<4xf32>
    %641 = vector.shape_cast %640 : vector<4xf32> to vector<4x1xf32>
    %cst_305 = arith.constant 3.200000e+01 : f32
    %642 = vector.broadcast %cst_305 : f32 to vector<4x1xf32>
    %643 = arith.divf %641, %642 : vector<4x1xf32>
    %644 = vector.broadcast %643 : vector<4x1xf32> to vector<4x32xf32>
    %645 = arith.subf %637, %644 : vector<4x32xf32>
    %646 = arith.mulf %645, %645 : vector<4x32xf32>
    %cst_306 = arith.constant dense<0.000000e+00> : vector<4xf32>
    %647 = vector.multi_reduction <add>, %646, %cst_306 [1] : vector<4x32xf32> to vector<4xf32>
    %648 = vector.shape_cast %647 : vector<4xf32> to vector<4x1xf32>
    %cst_307 = arith.constant 3.200000e+01 : f32
    %649 = vector.broadcast %cst_307 : f32 to vector<4x1xf32>
    %650 = arith.divf %648, %649 : vector<4x1xf32>
    %651 = vector.broadcast %643 : vector<4x1xf32> to vector<4x32xf32>
    %652 = arith.subf %637, %651 : vector<4x32xf32>
    %cst_308 = arith.constant 9.99999974E-6 : f32
    %653 = vector.broadcast %cst_308 : f32 to vector<4x1xf32>
    %654 = arith.addf %650, %653 : vector<4x1xf32>
    %655 = math.rsqrt %654 : vector<4x1xf32>
    %656 = vector.broadcast %655 : vector<4x1xf32> to vector<4x32xf32>
    %657 = arith.mulf %652, %656 : vector<4x32xf32>
    %658 = vector.broadcast %638 : vector<1x32xf32> to vector<4x32xf32>
    %659 = arith.mulf %657, %658 : vector<4x32xf32>
    %660 = vector.broadcast %639 : vector<1x32xf32> to vector<4x32xf32>
    %661 = arith.addf %659, %660 : vector<4x32xf32>
    %c0_309 = arith.constant 0 : index
    %c0_310 = arith.constant 0 : index
    %c0_311 = arith.constant 0 : index
    %662 = vector.load %arg39[%c0_309, %c0_310, %c0_311] : memref<2x2x32xf32, #tpu.memory_space<vmem>>, vector<1x1x32xf32>
    %663 = vector.shape_cast %662 : vector<1x1x32xf32> to vector<1x32xf32>
    %c0_312 = arith.constant 0 : index
    %c1_313 = arith.constant 1 : index
    %c0_314 = arith.constant 0 : index
    %664 = vector.load %arg39[%c0_312, %c1_313, %c0_314] : memref<2x2x32xf32, #tpu.memory_space<vmem>>, vector<1x1x32xf32>
    %665 = vector.shape_cast %664 : vector<1x1x32xf32> to vector<1x32xf32>
    %cst_315 = arith.constant dense<0.000000e+00> : vector<16xf32>
    %666 = vector.multi_reduction <add>, %635, %cst_315 [1] : vector<16x32xf32> to vector<16xf32>
    %667 = vector.shape_cast %666 : vector<16xf32> to vector<16x1xf32>
    %cst_316 = arith.constant 3.200000e+01 : f32
    %668 = vector.broadcast %cst_316 : f32 to vector<16x1xf32>
    %669 = arith.divf %667, %668 : vector<16x1xf32>
    %670 = vector.broadcast %669 : vector<16x1xf32> to vector<16x32xf32>
    %671 = arith.subf %635, %670 : vector<16x32xf32>
    %672 = arith.mulf %671, %671 : vector<16x32xf32>
    %cst_317 = arith.constant dense<0.000000e+00> : vector<16xf32>
    %673 = vector.multi_reduction <add>, %672, %cst_317 [1] : vector<16x32xf32> to vector<16xf32>
    %674 = vector.shape_cast %673 : vector<16xf32> to vector<16x1xf32>
    %cst_318 = arith.constant 3.200000e+01 : f32
    %675 = vector.broadcast %cst_318 : f32 to vector<16x1xf32>
    %676 = arith.divf %674, %675 : vector<16x1xf32>
    %677 = vector.broadcast %669 : vector<16x1xf32> to vector<16x32xf32>
    %678 = arith.subf %635, %677 : vector<16x32xf32>
    %cst_319 = arith.constant 9.99999974E-6 : f32
    %679 = vector.broadcast %cst_319 : f32 to vector<16x1xf32>
    %680 = arith.addf %676, %679 : vector<16x1xf32>
    %681 = math.rsqrt %680 : vector<16x1xf32>
    %682 = vector.broadcast %681 : vector<16x1xf32> to vector<16x32xf32>
    %683 = arith.mulf %678, %682 : vector<16x32xf32>
    %684 = vector.broadcast %663 : vector<1x32xf32> to vector<16x32xf32>
    %685 = arith.mulf %683, %684 : vector<16x32xf32>
    %686 = vector.broadcast %665 : vector<1x32xf32> to vector<16x32xf32>
    %687 = arith.addf %685, %686 : vector<16x32xf32>
    %c0_320 = arith.constant 0 : index
    %c0_321 = arith.constant 0 : index
    %c0_322 = arith.constant 0 : index
    %688 = vector.load %arg40[%c0_320, %c0_321, %c0_322] : memref<2x32x96xf32, #tpu.memory_space<vmem>>, vector<1x32x96xf32>
    %689 = vector.shape_cast %688 : vector<1x32x96xf32> to vector<32x96xf32>
    %c0_323 = arith.constant 0 : index
    %c0_324 = arith.constant 0 : index
    %c0_325 = arith.constant 0 : index
    %690 = vector.load %arg41[%c0_323, %c0_324, %c0_325] : memref<2x32x32xf32, #tpu.memory_space<vmem>>, vector<1x32x32xf32>
    %691 = vector.shape_cast %690 : vector<1x32x32xf32> to vector<32x32xf32>
    %cst_326 = arith.constant dense<0.000000e+00> : vector<16x96xf32>
    %692 = tpu.matmul %687, %689, %cst_326 {dimension_numbers = #tpu.dot_dimension_numbers<[1], [0], [0], [1], [0, 0, 1, 1], [], []>} : vector<16x32xf32>, vector<32x96xf32>, vector<16x96xf32> -> vector<16x96xf32>
    %693 = vector.extract_strided_slice %692 {offsets = [0, 0], sizes = [16, 16], strides = [1, 1]} : vector<16x96xf32> to vector<16x16xf32>
    %694 = vector.extract_strided_slice %692 {offsets = [0, 32], sizes = [16, 16], strides = [1, 1]} : vector<16x96xf32> to vector<16x16xf32>
    %695 = vector.extract_strided_slice %692 {offsets = [0, 64], sizes = [16, 16], strides = [1, 1]} : vector<16x96xf32> to vector<16x16xf32>
    %cst_327 = arith.constant dense<0.000000e+00> : vector<16x16xf32>
    %696 = tpu.matmul %693, %694, %cst_327 {dimension_numbers = #tpu.dot_dimension_numbers<[1], [1], [0], [0], [0, 0, 1, 0], [], []>} : vector<16x16xf32>, vector<16x16xf32>, vector<16x16xf32> -> vector<16x16xf32>
    %cst_328 = arith.constant -1.000000e+30 : f32
    %697 = vector.broadcast %cst_328 : f32 to vector<16x16xf32>
    %698 = arith.select %596, %696, %697 : vector<16x16xi1>, vector<16x16xf32>
    %cst_329 = arith.constant dense<0xFF800000> : vector<16xf32>
    %699 = vector.multi_reduction <maximumf>, %698, %cst_329 [1] : vector<16x16xf32> to vector<16xf32>
    %700 = vector.shape_cast %699 : vector<16xf32> to vector<16x1xf32>
    %701 = vector.broadcast %700 : vector<16x1xf32> to vector<16x16xf32>
    %702 = arith.subf %698, %701 : vector<16x16xf32>
    %703 = math.exp %702 : vector<16x16xf32>
    %cst_330 = arith.constant dense<0.000000e+00> : vector<16xf32>
    %704 = vector.multi_reduction <add>, %703, %cst_330 [1] : vector<16x16xf32> to vector<16xf32>
    %705 = vector.shape_cast %704 : vector<16xf32> to vector<16x1xf32>
    %706 = tpu.reciprocal %705 {approx = true} : vector<16x1xf32> -> vector<16x1xf32>
    %707 = vector.broadcast %706 : vector<16x1xf32> to vector<16x16xf32>
    %708 = arith.mulf %703, %707 : vector<16x16xf32>
    %cst_331 = arith.constant dense<0.000000e+00> : vector<16x16xf32>
    %709 = tpu.matmul %708, %695, %cst_331 {dimension_numbers = #tpu.dot_dimension_numbers<[1], [0], [0], [1], [0, 0, 1, 1], [], []>} : vector<16x16xf32>, vector<16x16xf32>, vector<16x16xf32> -> vector<16x16xf32>
    %710 = vector.extract_strided_slice %691 {offsets = [0, 0], sizes = [16, 32], strides = [1, 1]} : vector<32x32xf32> to vector<16x32xf32>
    %cst_332 = arith.constant dense<0.000000e+00> : vector<16x32xf32>
    %711 = tpu.matmul %709, %710, %cst_332 {dimension_numbers = #tpu.dot_dimension_numbers<[1], [0], [0], [1], [0, 0, 1, 1], [], []>} : vector<16x16xf32>, vector<16x32xf32>, vector<16x32xf32> -> vector<16x32xf32>
    %712 = vector.extract_strided_slice %692 {offsets = [0, 16], sizes = [16, 16], strides = [1, 1]} : vector<16x96xf32> to vector<16x16xf32>
    %713 = vector.extract_strided_slice %692 {offsets = [0, 48], sizes = [16, 16], strides = [1, 1]} : vector<16x96xf32> to vector<16x16xf32>
    %714 = vector.extract_strided_slice %692 {offsets = [0, 80], sizes = [16, 16], strides = [1, 1]} : vector<16x96xf32> to vector<16x16xf32>
    %cst_333 = arith.constant dense<0.000000e+00> : vector<16x16xf32>
    %715 = tpu.matmul %712, %713, %cst_333 {dimension_numbers = #tpu.dot_dimension_numbers<[1], [1], [0], [0], [0, 0, 1, 0], [], []>} : vector<16x16xf32>, vector<16x16xf32>, vector<16x16xf32> -> vector<16x16xf32>
    %cst_334 = arith.constant -1.000000e+30 : f32
    %716 = vector.broadcast %cst_334 : f32 to vector<16x16xf32>
    %717 = arith.select %596, %715, %716 : vector<16x16xi1>, vector<16x16xf32>
    %cst_335 = arith.constant dense<0xFF800000> : vector<16xf32>
    %718 = vector.multi_reduction <maximumf>, %717, %cst_335 [1] : vector<16x16xf32> to vector<16xf32>
    %719 = vector.shape_cast %718 : vector<16xf32> to vector<16x1xf32>
    %720 = vector.broadcast %719 : vector<16x1xf32> to vector<16x16xf32>
    %721 = arith.subf %717, %720 : vector<16x16xf32>
    %722 = math.exp %721 : vector<16x16xf32>
    %cst_336 = arith.constant dense<0.000000e+00> : vector<16xf32>
    %723 = vector.multi_reduction <add>, %722, %cst_336 [1] : vector<16x16xf32> to vector<16xf32>
    %724 = vector.shape_cast %723 : vector<16xf32> to vector<16x1xf32>
    %725 = tpu.reciprocal %724 {approx = true} : vector<16x1xf32> -> vector<16x1xf32>
    %726 = vector.broadcast %725 : vector<16x1xf32> to vector<16x16xf32>
    %727 = arith.mulf %722, %726 : vector<16x16xf32>
    %cst_337 = arith.constant dense<0.000000e+00> : vector<16x16xf32>
    %728 = tpu.matmul %727, %714, %cst_337 {dimension_numbers = #tpu.dot_dimension_numbers<[1], [0], [0], [1], [0, 0, 1, 1], [], []>} : vector<16x16xf32>, vector<16x16xf32>, vector<16x16xf32> -> vector<16x16xf32>
    %729 = vector.extract_strided_slice %691 {offsets = [16, 0], sizes = [16, 32], strides = [1, 1]} : vector<32x32xf32> to vector<16x32xf32>
    %cst_338 = arith.constant dense<0.000000e+00> : vector<16x32xf32>
    %730 = tpu.matmul %728, %729, %cst_338 {dimension_numbers = #tpu.dot_dimension_numbers<[1], [0], [0], [1], [0, 0, 1, 1], [], []>} : vector<16x16xf32>, vector<16x32xf32>, vector<16x32xf32> -> vector<16x32xf32>
    %731 = arith.addf %711, %730 : vector<16x32xf32>
    %732 = arith.addf %687, %731 : vector<16x32xf32>
    %c0_339 = arith.constant 0 : index
    %c0_340 = arith.constant 0 : index
    %c0_341 = arith.constant 0 : index
    %733 = vector.load %arg42[%c0_339, %c0_340, %c0_341] : memref<2x2x32xf32, #tpu.memory_space<vmem>>, vector<1x1x32xf32>
    %734 = vector.shape_cast %733 : vector<1x1x32xf32> to vector<1x32xf32>
    %c0_342 = arith.constant 0 : index
    %c1_343 = arith.constant 1 : index
    %c0_344 = arith.constant 0 : index
    %735 = vector.load %arg42[%c0_342, %c1_343, %c0_344] : memref<2x2x32xf32, #tpu.memory_space<vmem>>, vector<1x1x32xf32>
    %736 = vector.shape_cast %735 : vector<1x1x32xf32> to vector<1x32xf32>
    %cst_345 = arith.constant dense<0.000000e+00> : vector<16xf32>
    %737 = vector.multi_reduction <add>, %732, %cst_345 [1] : vector<16x32xf32> to vector<16xf32>
    %738 = vector.shape_cast %737 : vector<16xf32> to vector<16x1xf32>
    %cst_346 = arith.constant 3.200000e+01 : f32
    %739 = vector.broadcast %cst_346 : f32 to vector<16x1xf32>
    %740 = arith.divf %738, %739 : vector<16x1xf32>
    %741 = vector.broadcast %740 : vector<16x1xf32> to vector<16x32xf32>
    %742 = arith.subf %732, %741 : vector<16x32xf32>
    %743 = arith.mulf %742, %742 : vector<16x32xf32>
    %cst_347 = arith.constant dense<0.000000e+00> : vector<16xf32>
    %744 = vector.multi_reduction <add>, %743, %cst_347 [1] : vector<16x32xf32> to vector<16xf32>
    %745 = vector.shape_cast %744 : vector<16xf32> to vector<16x1xf32>
    %cst_348 = arith.constant 3.200000e+01 : f32
    %746 = vector.broadcast %cst_348 : f32 to vector<16x1xf32>
    %747 = arith.divf %745, %746 : vector<16x1xf32>
    %748 = vector.broadcast %740 : vector<16x1xf32> to vector<16x32xf32>
    %749 = arith.subf %732, %748 : vector<16x32xf32>
    %cst_349 = arith.constant 9.99999974E-6 : f32
    %750 = vector.broadcast %cst_349 : f32 to vector<16x1xf32>
    %751 = arith.addf %747, %750 : vector<16x1xf32>
    %752 = math.rsqrt %751 : vector<16x1xf32>
    %753 = vector.broadcast %752 : vector<16x1xf32> to vector<16x32xf32>
    %754 = arith.mulf %749, %753 : vector<16x32xf32>
    %755 = vector.broadcast %734 : vector<1x32xf32> to vector<16x32xf32>
    %756 = arith.mulf %754, %755 : vector<16x32xf32>
    %757 = vector.broadcast %736 : vector<1x32xf32> to vector<16x32xf32>
    %758 = arith.addf %756, %757 : vector<16x32xf32>
    %c0_350 = arith.constant 0 : index
    %c0_351 = arith.constant 0 : index
    %c0_352 = arith.constant 0 : index
    %759 = vector.load %arg43[%c0_350, %c0_351, %c0_352] : memref<2x32x32xf32, #tpu.memory_space<vmem>>, vector<1x32x32xf32>
    %760 = vector.shape_cast %759 : vector<1x32x32xf32> to vector<32x32xf32>
    %c0_353 = arith.constant 0 : index
    %c0_354 = arith.constant 0 : index
    %c0_355 = arith.constant 0 : index
    %761 = vector.load %arg44[%c0_353, %c0_354, %c0_355] : memref<2x32x64xf32, #tpu.memory_space<vmem>>, vector<1x32x64xf32>
    %762 = vector.shape_cast %761 : vector<1x32x64xf32> to vector<32x64xf32>
    %c0_356 = arith.constant 0 : index
    %c0_357 = arith.constant 0 : index
    %c0_358 = arith.constant 0 : index
    %763 = vector.load %arg45[%c0_356, %c0_357, %c0_358] : memref<2x32x32xf32, #tpu.memory_space<vmem>>, vector<1x32x32xf32>
    %764 = vector.shape_cast %763 : vector<1x32x32xf32> to vector<32x32xf32>
    %cst_359 = arith.constant dense<0.000000e+00> : vector<16x32xf32>
    %765 = tpu.matmul %758, %760, %cst_359 {dimension_numbers = #tpu.dot_dimension_numbers<[1], [0], [0], [1], [0, 0, 1, 1], [], []>} : vector<16x32xf32>, vector<32x32xf32>, vector<16x32xf32> -> vector<16x32xf32>
    %cst_360 = arith.constant dense<0.000000e+00> : vector<4x64xf32>
    %766 = tpu.matmul %661, %762, %cst_360 {dimension_numbers = #tpu.dot_dimension_numbers<[1], [0], [0], [1], [0, 0, 1, 1], [], []>} : vector<4x32xf32>, vector<32x64xf32>, vector<4x64xf32> -> vector<4x64xf32>
    %767 = vector.extract_strided_slice %765 {offsets = [0, 0], sizes = [16, 16], strides = [1, 1]} : vector<16x32xf32> to vector<16x16xf32>
    %768 = vector.extract_strided_slice %766 {offsets = [0, 0], sizes = [4, 16], strides = [1, 1]} : vector<4x64xf32> to vector<4x16xf32>
    %769 = vector.extract_strided_slice %766 {offsets = [0, 32], sizes = [4, 16], strides = [1, 1]} : vector<4x64xf32> to vector<4x16xf32>
    %cst_361 = arith.constant dense<0.000000e+00> : vector<4x16xf32>
    %770 = tpu.matmul %768, %767, %cst_361 {dimension_numbers = #tpu.dot_dimension_numbers<[1], [1], [0], [0], [0, 0, 1, 0], [], []>} : vector<4x16xf32>, vector<16x16xf32>, vector<4x16xf32> -> vector<4x16xf32>
    %cst_362 = arith.constant dense<0xFF800000> : vector<16xf32>
    %771 = vector.multi_reduction <maximumf>, %770, %cst_362 [0] : vector<4x16xf32> to vector<16xf32>
    %772 = vector.shape_cast %771 : vector<16xf32> to vector<1x16xf32>
    %773 = vector.broadcast %772 : vector<1x16xf32> to vector<4x16xf32>
    %774 = arith.subf %770, %773 : vector<4x16xf32>
    %775 = math.exp %774 : vector<4x16xf32>
    %cst_363 = arith.constant dense<0.000000e+00> : vector<16xf32>
    %776 = vector.multi_reduction <add>, %775, %cst_363 [0] : vector<4x16xf32> to vector<16xf32>
    %777 = vector.shape_cast %776 : vector<16xf32> to vector<1x16xf32>
    %778 = tpu.reciprocal %777 {approx = true} : vector<1x16xf32> -> vector<1x16xf32>
    %779 = vector.broadcast %778 : vector<1x16xf32> to vector<4x16xf32>
    %780 = arith.mulf %775, %779 : vector<4x16xf32>
    %cst_364 = arith.constant dense<0.000000e+00> : vector<16x16xf32>
    %781 = tpu.matmul %780, %769, %cst_364 {dimension_numbers = #tpu.dot_dimension_numbers<[0], [0], [1], [1], [0, 1, 1, 1], [], []>} : vector<4x16xf32>, vector<4x16xf32>, vector<16x16xf32> -> vector<16x16xf32>
    %782 = vector.extract_strided_slice %764 {offsets = [0, 0], sizes = [16, 32], strides = [1, 1]} : vector<32x32xf32> to vector<16x32xf32>
    %cst_365 = arith.constant dense<0.000000e+00> : vector<16x32xf32>
    %783 = tpu.matmul %781, %782, %cst_365 {dimension_numbers = #tpu.dot_dimension_numbers<[1], [0], [0], [1], [0, 0, 1, 1], [], []>} : vector<16x16xf32>, vector<16x32xf32>, vector<16x32xf32> -> vector<16x32xf32>
    %784 = vector.extract_strided_slice %765 {offsets = [0, 16], sizes = [16, 16], strides = [1, 1]} : vector<16x32xf32> to vector<16x16xf32>
    %785 = vector.extract_strided_slice %766 {offsets = [0, 16], sizes = [4, 16], strides = [1, 1]} : vector<4x64xf32> to vector<4x16xf32>
    %786 = vector.extract_strided_slice %766 {offsets = [0, 48], sizes = [4, 16], strides = [1, 1]} : vector<4x64xf32> to vector<4x16xf32>
    %cst_366 = arith.constant dense<0.000000e+00> : vector<4x16xf32>
    %787 = tpu.matmul %785, %784, %cst_366 {dimension_numbers = #tpu.dot_dimension_numbers<[1], [1], [0], [0], [0, 0, 1, 0], [], []>} : vector<4x16xf32>, vector<16x16xf32>, vector<4x16xf32> -> vector<4x16xf32>
    %cst_367 = arith.constant dense<0xFF800000> : vector<16xf32>
    %788 = vector.multi_reduction <maximumf>, %787, %cst_367 [0] : vector<4x16xf32> to vector<16xf32>
    %789 = vector.shape_cast %788 : vector<16xf32> to vector<1x16xf32>
    %790 = vector.broadcast %789 : vector<1x16xf32> to vector<4x16xf32>
    %791 = arith.subf %787, %790 : vector<4x16xf32>
    %792 = math.exp %791 : vector<4x16xf32>
    %cst_368 = arith.constant dense<0.000000e+00> : vector<16xf32>
    %793 = vector.multi_reduction <add>, %792, %cst_368 [0] : vector<4x16xf32> to vector<16xf32>
    %794 = vector.shape_cast %793 : vector<16xf32> to vector<1x16xf32>
    %795 = tpu.reciprocal %794 {approx = true} : vector<1x16xf32> -> vector<1x16xf32>
    %796 = vector.broadcast %795 : vector<1x16xf32> to vector<4x16xf32>
    %797 = arith.mulf %792, %796 : vector<4x16xf32>
    %cst_369 = arith.constant dense<0.000000e+00> : vector<16x16xf32>
    %798 = tpu.matmul %797, %786, %cst_369 {dimension_numbers = #tpu.dot_dimension_numbers<[0], [0], [1], [1], [0, 1, 1, 1], [], []>} : vector<4x16xf32>, vector<4x16xf32>, vector<16x16xf32> -> vector<16x16xf32>
    %799 = vector.extract_strided_slice %764 {offsets = [16, 0], sizes = [16, 32], strides = [1, 1]} : vector<32x32xf32> to vector<16x32xf32>
    %cst_370 = arith.constant dense<0.000000e+00> : vector<16x32xf32>
    %800 = tpu.matmul %798, %799, %cst_370 {dimension_numbers = #tpu.dot_dimension_numbers<[1], [0], [0], [1], [0, 0, 1, 1], [], []>} : vector<16x16xf32>, vector<16x32xf32>, vector<16x32xf32> -> vector<16x32xf32>
    %801 = arith.addf %783, %800 : vector<16x32xf32>
    %802 = arith.addf %732, %801 : vector<16x32xf32>
    %c0_371 = arith.constant 0 : index
    %c0_372 = arith.constant 0 : index
    %c0_373 = arith.constant 0 : index
    %803 = vector.load %arg46[%c0_371, %c0_372, %c0_373] : memref<2x2x32xf32, #tpu.memory_space<vmem>>, vector<1x1x32xf32>
    %804 = vector.shape_cast %803 : vector<1x1x32xf32> to vector<1x32xf32>
    %c0_374 = arith.constant 0 : index
    %c1_375 = arith.constant 1 : index
    %c0_376 = arith.constant 0 : index
    %805 = vector.load %arg46[%c0_374, %c1_375, %c0_376] : memref<2x2x32xf32, #tpu.memory_space<vmem>>, vector<1x1x32xf32>
    %806 = vector.shape_cast %805 : vector<1x1x32xf32> to vector<1x32xf32>
    %cst_377 = arith.constant dense<0.000000e+00> : vector<16xf32>
    %807 = vector.multi_reduction <add>, %802, %cst_377 [1] : vector<16x32xf32> to vector<16xf32>
    %808 = vector.shape_cast %807 : vector<16xf32> to vector<16x1xf32>
    %cst_378 = arith.constant 3.200000e+01 : f32
    %809 = vector.broadcast %cst_378 : f32 to vector<16x1xf32>
    %810 = arith.divf %808, %809 : vector<16x1xf32>
    %811 = vector.broadcast %810 : vector<16x1xf32> to vector<16x32xf32>
    %812 = arith.subf %802, %811 : vector<16x32xf32>
    %813 = arith.mulf %812, %812 : vector<16x32xf32>
    %cst_379 = arith.constant dense<0.000000e+00> : vector<16xf32>
    %814 = vector.multi_reduction <add>, %813, %cst_379 [1] : vector<16x32xf32> to vector<16xf32>
    %815 = vector.shape_cast %814 : vector<16xf32> to vector<16x1xf32>
    %cst_380 = arith.constant 3.200000e+01 : f32
    %816 = vector.broadcast %cst_380 : f32 to vector<16x1xf32>
    %817 = arith.divf %815, %816 : vector<16x1xf32>
    %818 = vector.broadcast %810 : vector<16x1xf32> to vector<16x32xf32>
    %819 = arith.subf %802, %818 : vector<16x32xf32>
    %cst_381 = arith.constant 9.99999974E-6 : f32
    %820 = vector.broadcast %cst_381 : f32 to vector<16x1xf32>
    %821 = arith.addf %817, %820 : vector<16x1xf32>
    %822 = math.rsqrt %821 : vector<16x1xf32>
    %823 = vector.broadcast %822 : vector<16x1xf32> to vector<16x32xf32>
    %824 = arith.mulf %819, %823 : vector<16x32xf32>
    %825 = vector.broadcast %804 : vector<1x32xf32> to vector<16x32xf32>
    %826 = arith.mulf %824, %825 : vector<16x32xf32>
    %827 = vector.broadcast %806 : vector<1x32xf32> to vector<16x32xf32>
    %828 = arith.addf %826, %827 : vector<16x32xf32>
    %c0_382 = arith.constant 0 : index
    %c0_383 = arith.constant 0 : index
    %c0_384 = arith.constant 0 : index
    %829 = vector.load %arg47[%c0_382, %c0_383, %c0_384] : memref<2x32x128xf32, #tpu.memory_space<vmem>>, vector<1x32x128xf32>
    %830 = vector.shape_cast %829 : vector<1x32x128xf32> to vector<32x128xf32>
    %cst_385 = arith.constant dense<0.000000e+00> : vector<16x128xf32>
    %831 = tpu.matmul %828, %830, %cst_385 {dimension_numbers = #tpu.dot_dimension_numbers<[1], [0], [0], [1], [0, 0, 1, 1], [], []>} : vector<16x32xf32>, vector<32x128xf32>, vector<16x128xf32> -> vector<16x128xf32>
    %c0_386 = arith.constant 0 : index
    %c0_387 = arith.constant 0 : index
    %c0_388 = arith.constant 0 : index
    %832 = vector.load %arg48[%c0_386, %c0_387, %c0_388] : memref<2x1x128xf32, #tpu.memory_space<vmem>>, vector<1x1x128xf32>
    %833 = vector.shape_cast %832 : vector<1x1x128xf32> to vector<1x128xf32>
    %834 = vector.broadcast %833 : vector<1x128xf32> to vector<16x128xf32>
    %835 = arith.addf %831, %834 : vector<16x128xf32>
    %cst_389 = arith.constant 0.000000e+00 : f32
    %836 = vector.broadcast %cst_389 : f32 to vector<16x128xf32>
    %837 = arith.maximumf %835, %836 : vector<16x128xf32>
    %c0_390 = arith.constant 0 : index
    %c0_391 = arith.constant 0 : index
    %c0_392 = arith.constant 0 : index
    %838 = vector.load %arg49[%c0_390, %c0_391, %c0_392] : memref<2x128x32xf32, #tpu.memory_space<vmem>>, vector<1x128x32xf32>
    %839 = vector.shape_cast %838 : vector<1x128x32xf32> to vector<128x32xf32>
    %cst_393 = arith.constant dense<0.000000e+00> : vector<16x32xf32>
    %840 = tpu.matmul %837, %839, %cst_393 {dimension_numbers = #tpu.dot_dimension_numbers<[1], [0], [0], [1], [0, 0, 1, 1], [], []>} : vector<16x128xf32>, vector<128x32xf32>, vector<16x32xf32> -> vector<16x32xf32>
    %c0_394 = arith.constant 0 : index
    %c0_395 = arith.constant 0 : index
    %c0_396 = arith.constant 0 : index
    %841 = vector.load %arg50[%c0_394, %c0_395, %c0_396] : memref<2x1x32xf32, #tpu.memory_space<vmem>>, vector<1x1x32xf32>
    %842 = vector.shape_cast %841 : vector<1x1x32xf32> to vector<1x32xf32>
    %843 = vector.broadcast %842 : vector<1x32xf32> to vector<16x32xf32>
    %844 = arith.addf %840, %843 : vector<16x32xf32>
    %845 = arith.addf %802, %844 : vector<16x32xf32>
    %c1_397 = arith.constant 1 : index
    %c0_398 = arith.constant 0 : index
    %c0_399 = arith.constant 0 : index
    %846 = vector.load %arg39[%c1_397, %c0_398, %c0_399] : memref<2x2x32xf32, #tpu.memory_space<vmem>>, vector<1x1x32xf32>
    %847 = vector.shape_cast %846 : vector<1x1x32xf32> to vector<1x32xf32>
    %c1_400 = arith.constant 1 : index
    %c1_401 = arith.constant 1 : index
    %c0_402 = arith.constant 0 : index
    %848 = vector.load %arg39[%c1_400, %c1_401, %c0_402] : memref<2x2x32xf32, #tpu.memory_space<vmem>>, vector<1x1x32xf32>
    %849 = vector.shape_cast %848 : vector<1x1x32xf32> to vector<1x32xf32>
    %cst_403 = arith.constant dense<0.000000e+00> : vector<16xf32>
    %850 = vector.multi_reduction <add>, %845, %cst_403 [1] : vector<16x32xf32> to vector<16xf32>
    %851 = vector.shape_cast %850 : vector<16xf32> to vector<16x1xf32>
    %cst_404 = arith.constant 3.200000e+01 : f32
    %852 = vector.broadcast %cst_404 : f32 to vector<16x1xf32>
    %853 = arith.divf %851, %852 : vector<16x1xf32>
    %854 = vector.broadcast %853 : vector<16x1xf32> to vector<16x32xf32>
    %855 = arith.subf %845, %854 : vector<16x32xf32>
    %856 = arith.mulf %855, %855 : vector<16x32xf32>
    %cst_405 = arith.constant dense<0.000000e+00> : vector<16xf32>
    %857 = vector.multi_reduction <add>, %856, %cst_405 [1] : vector<16x32xf32> to vector<16xf32>
    %858 = vector.shape_cast %857 : vector<16xf32> to vector<16x1xf32>
    %cst_406 = arith.constant 3.200000e+01 : f32
    %859 = vector.broadcast %cst_406 : f32 to vector<16x1xf32>
    %860 = arith.divf %858, %859 : vector<16x1xf32>
    %861 = vector.broadcast %853 : vector<16x1xf32> to vector<16x32xf32>
    %862 = arith.subf %845, %861 : vector<16x32xf32>
    %cst_407 = arith.constant 9.99999974E-6 : f32
    %863 = vector.broadcast %cst_407 : f32 to vector<16x1xf32>
    %864 = arith.addf %860, %863 : vector<16x1xf32>
    %865 = math.rsqrt %864 : vector<16x1xf32>
    %866 = vector.broadcast %865 : vector<16x1xf32> to vector<16x32xf32>
    %867 = arith.mulf %862, %866 : vector<16x32xf32>
    %868 = vector.broadcast %847 : vector<1x32xf32> to vector<16x32xf32>
    %869 = arith.mulf %867, %868 : vector<16x32xf32>
    %870 = vector.broadcast %849 : vector<1x32xf32> to vector<16x32xf32>
    %871 = arith.addf %869, %870 : vector<16x32xf32>
    %c1_408 = arith.constant 1 : index
    %c0_409 = arith.constant 0 : index
    %c0_410 = arith.constant 0 : index
    %872 = vector.load %arg40[%c1_408, %c0_409, %c0_410] : memref<2x32x96xf32, #tpu.memory_space<vmem>>, vector<1x32x96xf32>
    %873 = vector.shape_cast %872 : vector<1x32x96xf32> to vector<32x96xf32>
    %c1_411 = arith.constant 1 : index
    %c0_412 = arith.constant 0 : index
    %c0_413 = arith.constant 0 : index
    %874 = vector.load %arg41[%c1_411, %c0_412, %c0_413] : memref<2x32x32xf32, #tpu.memory_space<vmem>>, vector<1x32x32xf32>
    %875 = vector.shape_cast %874 : vector<1x32x32xf32> to vector<32x32xf32>
    %cst_414 = arith.constant dense<0.000000e+00> : vector<16x96xf32>
    %876 = tpu.matmul %871, %873, %cst_414 {dimension_numbers = #tpu.dot_dimension_numbers<[1], [0], [0], [1], [0, 0, 1, 1], [], []>} : vector<16x32xf32>, vector<32x96xf32>, vector<16x96xf32> -> vector<16x96xf32>
    %877 = vector.extract_strided_slice %876 {offsets = [0, 0], sizes = [16, 16], strides = [1, 1]} : vector<16x96xf32> to vector<16x16xf32>
    %878 = vector.extract_strided_slice %876 {offsets = [0, 32], sizes = [16, 16], strides = [1, 1]} : vector<16x96xf32> to vector<16x16xf32>
    %879 = vector.extract_strided_slice %876 {offsets = [0, 64], sizes = [16, 16], strides = [1, 1]} : vector<16x96xf32> to vector<16x16xf32>
    %cst_415 = arith.constant dense<0.000000e+00> : vector<16x16xf32>
    %880 = tpu.matmul %877, %878, %cst_415 {dimension_numbers = #tpu.dot_dimension_numbers<[1], [1], [0], [0], [0, 0, 1, 0], [], []>} : vector<16x16xf32>, vector<16x16xf32>, vector<16x16xf32> -> vector<16x16xf32>
    %cst_416 = arith.constant -1.000000e+30 : f32
    %881 = vector.broadcast %cst_416 : f32 to vector<16x16xf32>
    %882 = arith.select %596, %880, %881 : vector<16x16xi1>, vector<16x16xf32>
    %cst_417 = arith.constant dense<0xFF800000> : vector<16xf32>
    %883 = vector.multi_reduction <maximumf>, %882, %cst_417 [1] : vector<16x16xf32> to vector<16xf32>
    %884 = vector.shape_cast %883 : vector<16xf32> to vector<16x1xf32>
    %885 = vector.broadcast %884 : vector<16x1xf32> to vector<16x16xf32>
    %886 = arith.subf %882, %885 : vector<16x16xf32>
    %887 = math.exp %886 : vector<16x16xf32>
    %cst_418 = arith.constant dense<0.000000e+00> : vector<16xf32>
    %888 = vector.multi_reduction <add>, %887, %cst_418 [1] : vector<16x16xf32> to vector<16xf32>
    %889 = vector.shape_cast %888 : vector<16xf32> to vector<16x1xf32>
    %890 = tpu.reciprocal %889 {approx = true} : vector<16x1xf32> -> vector<16x1xf32>
    %891 = vector.broadcast %890 : vector<16x1xf32> to vector<16x16xf32>
    %892 = arith.mulf %887, %891 : vector<16x16xf32>
    %cst_419 = arith.constant dense<0.000000e+00> : vector<16x16xf32>
    %893 = tpu.matmul %892, %879, %cst_419 {dimension_numbers = #tpu.dot_dimension_numbers<[1], [0], [0], [1], [0, 0, 1, 1], [], []>} : vector<16x16xf32>, vector<16x16xf32>, vector<16x16xf32> -> vector<16x16xf32>
    %894 = vector.extract_strided_slice %875 {offsets = [0, 0], sizes = [16, 32], strides = [1, 1]} : vector<32x32xf32> to vector<16x32xf32>
    %cst_420 = arith.constant dense<0.000000e+00> : vector<16x32xf32>
    %895 = tpu.matmul %893, %894, %cst_420 {dimension_numbers = #tpu.dot_dimension_numbers<[1], [0], [0], [1], [0, 0, 1, 1], [], []>} : vector<16x16xf32>, vector<16x32xf32>, vector<16x32xf32> -> vector<16x32xf32>
    %896 = vector.extract_strided_slice %876 {offsets = [0, 16], sizes = [16, 16], strides = [1, 1]} : vector<16x96xf32> to vector<16x16xf32>
    %897 = vector.extract_strided_slice %876 {offsets = [0, 48], sizes = [16, 16], strides = [1, 1]} : vector<16x96xf32> to vector<16x16xf32>
    %898 = vector.extract_strided_slice %876 {offsets = [0, 80], sizes = [16, 16], strides = [1, 1]} : vector<16x96xf32> to vector<16x16xf32>
    %cst_421 = arith.constant dense<0.000000e+00> : vector<16x16xf32>
    %899 = tpu.matmul %896, %897, %cst_421 {dimension_numbers = #tpu.dot_dimension_numbers<[1], [1], [0], [0], [0, 0, 1, 0], [], []>} : vector<16x16xf32>, vector<16x16xf32>, vector<16x16xf32> -> vector<16x16xf32>
    %cst_422 = arith.constant -1.000000e+30 : f32
    %900 = vector.broadcast %cst_422 : f32 to vector<16x16xf32>
    %901 = arith.select %596, %899, %900 : vector<16x16xi1>, vector<16x16xf32>
    %cst_423 = arith.constant dense<0xFF800000> : vector<16xf32>
    %902 = vector.multi_reduction <maximumf>, %901, %cst_423 [1] : vector<16x16xf32> to vector<16xf32>
    %903 = vector.shape_cast %902 : vector<16xf32> to vector<16x1xf32>
    %904 = vector.broadcast %903 : vector<16x1xf32> to vector<16x16xf32>
    %905 = arith.subf %901, %904 : vector<16x16xf32>
    %906 = math.exp %905 : vector<16x16xf32>
    %cst_424 = arith.constant dense<0.000000e+00> : vector<16xf32>
    %907 = vector.multi_reduction <add>, %906, %cst_424 [1] : vector<16x16xf32> to vector<16xf32>
    %908 = vector.shape_cast %907 : vector<16xf32> to vector<16x1xf32>
    %909 = tpu.reciprocal %908 {approx = true} : vector<16x1xf32> -> vector<16x1xf32>
    %910 = vector.broadcast %909 : vector<16x1xf32> to vector<16x16xf32>
    %911 = arith.mulf %906, %910 : vector<16x16xf32>
    %cst_425 = arith.constant dense<0.000000e+00> : vector<16x16xf32>
    %912 = tpu.matmul %911, %898, %cst_425 {dimension_numbers = #tpu.dot_dimension_numbers<[1], [0], [0], [1], [0, 0, 1, 1], [], []>} : vector<16x16xf32>, vector<16x16xf32>, vector<16x16xf32> -> vector<16x16xf32>
    %913 = vector.extract_strided_slice %875 {offsets = [16, 0], sizes = [16, 32], strides = [1, 1]} : vector<32x32xf32> to vector<16x32xf32>
    %cst_426 = arith.constant dense<0.000000e+00> : vector<16x32xf32>
    %914 = tpu.matmul %912, %913, %cst_426 {dimension_numbers = #tpu.dot_dimension_numbers<[1], [0], [0], [1], [0, 0, 1, 1], [], []>} : vector<16x16xf32>, vector<16x32xf32>, vector<16x32xf32> -> vector<16x32xf32>
    %915 = arith.addf %895, %914 : vector<16x32xf32>
    %916 = arith.addf %845, %915 : vector<16x32xf32>
    %c1_427 = arith.constant 1 : index
    %c0_428 = arith.constant 0 : index
    %c0_429 = arith.constant 0 : index
    %917 = vector.load %arg42[%c1_427, %c0_428, %c0_429] : memref<2x2x32xf32, #tpu.memory_space<vmem>>, vector<1x1x32xf32>
    %918 = vector.shape_cast %917 : vector<1x1x32xf32> to vector<1x32xf32>
    %c1_430 = arith.constant 1 : index
    %c1_431 = arith.constant 1 : index
    %c0_432 = arith.constant 0 : index
    %919 = vector.load %arg42[%c1_430, %c1_431, %c0_432] : memref<2x2x32xf32, #tpu.memory_space<vmem>>, vector<1x1x32xf32>
    %920 = vector.shape_cast %919 : vector<1x1x32xf32> to vector<1x32xf32>
    %cst_433 = arith.constant dense<0.000000e+00> : vector<16xf32>
    %921 = vector.multi_reduction <add>, %916, %cst_433 [1] : vector<16x32xf32> to vector<16xf32>
    %922 = vector.shape_cast %921 : vector<16xf32> to vector<16x1xf32>
    %cst_434 = arith.constant 3.200000e+01 : f32
    %923 = vector.broadcast %cst_434 : f32 to vector<16x1xf32>
    %924 = arith.divf %922, %923 : vector<16x1xf32>
    %925 = vector.broadcast %924 : vector<16x1xf32> to vector<16x32xf32>
    %926 = arith.subf %916, %925 : vector<16x32xf32>
    %927 = arith.mulf %926, %926 : vector<16x32xf32>
    %cst_435 = arith.constant dense<0.000000e+00> : vector<16xf32>
    %928 = vector.multi_reduction <add>, %927, %cst_435 [1] : vector<16x32xf32> to vector<16xf32>
    %929 = vector.shape_cast %928 : vector<16xf32> to vector<16x1xf32>
    %cst_436 = arith.constant 3.200000e+01 : f32
    %930 = vector.broadcast %cst_436 : f32 to vector<16x1xf32>
    %931 = arith.divf %929, %930 : vector<16x1xf32>
    %932 = vector.broadcast %924 : vector<16x1xf32> to vector<16x32xf32>
    %933 = arith.subf %916, %932 : vector<16x32xf32>
    %cst_437 = arith.constant 9.99999974E-6 : f32
    %934 = vector.broadcast %cst_437 : f32 to vector<16x1xf32>
    %935 = arith.addf %931, %934 : vector<16x1xf32>
    %936 = math.rsqrt %935 : vector<16x1xf32>
    %937 = vector.broadcast %936 : vector<16x1xf32> to vector<16x32xf32>
    %938 = arith.mulf %933, %937 : vector<16x32xf32>
    %939 = vector.broadcast %918 : vector<1x32xf32> to vector<16x32xf32>
    %940 = arith.mulf %938, %939 : vector<16x32xf32>
    %941 = vector.broadcast %920 : vector<1x32xf32> to vector<16x32xf32>
    %942 = arith.addf %940, %941 : vector<16x32xf32>
    %c1_438 = arith.constant 1 : index
    %c0_439 = arith.constant 0 : index
    %c0_440 = arith.constant 0 : index
    %943 = vector.load %arg43[%c1_438, %c0_439, %c0_440] : memref<2x32x32xf32, #tpu.memory_space<vmem>>, vector<1x32x32xf32>
    %944 = vector.shape_cast %943 : vector<1x32x32xf32> to vector<32x32xf32>
    %c1_441 = arith.constant 1 : index
    %c0_442 = arith.constant 0 : index
    %c0_443 = arith.constant 0 : index
    %945 = vector.load %arg44[%c1_441, %c0_442, %c0_443] : memref<2x32x64xf32, #tpu.memory_space<vmem>>, vector<1x32x64xf32>
    %946 = vector.shape_cast %945 : vector<1x32x64xf32> to vector<32x64xf32>
    %c1_444 = arith.constant 1 : index
    %c0_445 = arith.constant 0 : index
    %c0_446 = arith.constant 0 : index
    %947 = vector.load %arg45[%c1_444, %c0_445, %c0_446] : memref<2x32x32xf32, #tpu.memory_space<vmem>>, vector<1x32x32xf32>
    %948 = vector.shape_cast %947 : vector<1x32x32xf32> to vector<32x32xf32>
    %cst_447 = arith.constant dense<0.000000e+00> : vector<16x32xf32>
    %949 = tpu.matmul %942, %944, %cst_447 {dimension_numbers = #tpu.dot_dimension_numbers<[1], [0], [0], [1], [0, 0, 1, 1], [], []>} : vector<16x32xf32>, vector<32x32xf32>, vector<16x32xf32> -> vector<16x32xf32>
    %cst_448 = arith.constant dense<0.000000e+00> : vector<4x64xf32>
    %950 = tpu.matmul %661, %946, %cst_448 {dimension_numbers = #tpu.dot_dimension_numbers<[1], [0], [0], [1], [0, 0, 1, 1], [], []>} : vector<4x32xf32>, vector<32x64xf32>, vector<4x64xf32> -> vector<4x64xf32>
    %951 = vector.extract_strided_slice %949 {offsets = [0, 0], sizes = [16, 16], strides = [1, 1]} : vector<16x32xf32> to vector<16x16xf32>
    %952 = vector.extract_strided_slice %950 {offsets = [0, 0], sizes = [4, 16], strides = [1, 1]} : vector<4x64xf32> to vector<4x16xf32>
    %953 = vector.extract_strided_slice %950 {offsets = [0, 32], sizes = [4, 16], strides = [1, 1]} : vector<4x64xf32> to vector<4x16xf32>
    %cst_449 = arith.constant dense<0.000000e+00> : vector<4x16xf32>
    %954 = tpu.matmul %952, %951, %cst_449 {dimension_numbers = #tpu.dot_dimension_numbers<[1], [1], [0], [0], [0, 0, 1, 0], [], []>} : vector<4x16xf32>, vector<16x16xf32>, vector<4x16xf32> -> vector<4x16xf32>
    %cst_450 = arith.constant dense<0xFF800000> : vector<16xf32>
    %955 = vector.multi_reduction <maximumf>, %954, %cst_450 [0] : vector<4x16xf32> to vector<16xf32>
    %956 = vector.shape_cast %955 : vector<16xf32> to vector<1x16xf32>
    %957 = vector.broadcast %956 : vector<1x16xf32> to vector<4x16xf32>
    %958 = arith.subf %954, %957 : vector<4x16xf32>
    %959 = math.exp %958 : vector<4x16xf32>
    %cst_451 = arith.constant dense<0.000000e+00> : vector<16xf32>
    %960 = vector.multi_reduction <add>, %959, %cst_451 [0] : vector<4x16xf32> to vector<16xf32>
    %961 = vector.shape_cast %960 : vector<16xf32> to vector<1x16xf32>
    %962 = tpu.reciprocal %961 {approx = true} : vector<1x16xf32> -> vector<1x16xf32>
    %963 = vector.broadcast %962 : vector<1x16xf32> to vector<4x16xf32>
    %964 = arith.mulf %959, %963 : vector<4x16xf32>
    %cst_452 = arith.constant dense<0.000000e+00> : vector<16x16xf32>
    %965 = tpu.matmul %964, %953, %cst_452 {dimension_numbers = #tpu.dot_dimension_numbers<[0], [0], [1], [1], [0, 1, 1, 1], [], []>} : vector<4x16xf32>, vector<4x16xf32>, vector<16x16xf32> -> vector<16x16xf32>
    %966 = vector.extract_strided_slice %948 {offsets = [0, 0], sizes = [16, 32], strides = [1, 1]} : vector<32x32xf32> to vector<16x32xf32>
    %cst_453 = arith.constant dense<0.000000e+00> : vector<16x32xf32>
    %967 = tpu.matmul %965, %966, %cst_453 {dimension_numbers = #tpu.dot_dimension_numbers<[1], [0], [0], [1], [0, 0, 1, 1], [], []>} : vector<16x16xf32>, vector<16x32xf32>, vector<16x32xf32> -> vector<16x32xf32>
    %968 = vector.extract_strided_slice %949 {offsets = [0, 16], sizes = [16, 16], strides = [1, 1]} : vector<16x32xf32> to vector<16x16xf32>
    %969 = vector.extract_strided_slice %950 {offsets = [0, 16], sizes = [4, 16], strides = [1, 1]} : vector<4x64xf32> to vector<4x16xf32>
    %970 = vector.extract_strided_slice %950 {offsets = [0, 48], sizes = [4, 16], strides = [1, 1]} : vector<4x64xf32> to vector<4x16xf32>
    %cst_454 = arith.constant dense<0.000000e+00> : vector<4x16xf32>
    %971 = tpu.matmul %969, %968, %cst_454 {dimension_numbers = #tpu.dot_dimension_numbers<[1], [1], [0], [0], [0, 0, 1, 0], [], []>} : vector<4x16xf32>, vector<16x16xf32>, vector<4x16xf32> -> vector<4x16xf32>
    %cst_455 = arith.constant dense<0xFF800000> : vector<16xf32>
    %972 = vector.multi_reduction <maximumf>, %971, %cst_455 [0] : vector<4x16xf32> to vector<16xf32>
    %973 = vector.shape_cast %972 : vector<16xf32> to vector<1x16xf32>
    %974 = vector.broadcast %973 : vector<1x16xf32> to vector<4x16xf32>
    %975 = arith.subf %971, %974 : vector<4x16xf32>
    %976 = math.exp %975 : vector<4x16xf32>
    %cst_456 = arith.constant dense<0.000000e+00> : vector<16xf32>
    %977 = vector.multi_reduction <add>, %976, %cst_456 [0] : vector<4x16xf32> to vector<16xf32>
    %978 = vector.shape_cast %977 : vector<16xf32> to vector<1x16xf32>
    %979 = tpu.reciprocal %978 {approx = true} : vector<1x16xf32> -> vector<1x16xf32>
    %980 = vector.broadcast %979 : vector<1x16xf32> to vector<4x16xf32>
    %981 = arith.mulf %976, %980 : vector<4x16xf32>
    %cst_457 = arith.constant dense<0.000000e+00> : vector<16x16xf32>
    %982 = tpu.matmul %981, %970, %cst_457 {dimension_numbers = #tpu.dot_dimension_numbers<[0], [0], [1], [1], [0, 1, 1, 1], [], []>} : vector<4x16xf32>, vector<4x16xf32>, vector<16x16xf32> -> vector<16x16xf32>
    %983 = vector.extract_strided_slice %948 {offsets = [16, 0], sizes = [16, 32], strides = [1, 1]} : vector<32x32xf32> to vector<16x32xf32>
    %cst_458 = arith.constant dense<0.000000e+00> : vector<16x32xf32>
    %984 = tpu.matmul %982, %983, %cst_458 {dimension_numbers = #tpu.dot_dimension_numbers<[1], [0], [0], [1], [0, 0, 1, 1], [], []>} : vector<16x16xf32>, vector<16x32xf32>, vector<16x32xf32> -> vector<16x32xf32>
    %985 = arith.addf %967, %984 : vector<16x32xf32>
    %986 = arith.addf %964, %981 : vector<4x16xf32>
    %987 = arith.addf %916, %985 : vector<16x32xf32>
    %c1_459 = arith.constant 1 : index
    %c0_460 = arith.constant 0 : index
    %c0_461 = arith.constant 0 : index
    %988 = vector.load %arg46[%c1_459, %c0_460, %c0_461] : memref<2x2x32xf32, #tpu.memory_space<vmem>>, vector<1x1x32xf32>
    %989 = vector.shape_cast %988 : vector<1x1x32xf32> to vector<1x32xf32>
    %c1_462 = arith.constant 1 : index
    %c1_463 = arith.constant 1 : index
    %c0_464 = arith.constant 0 : index
    %990 = vector.load %arg46[%c1_462, %c1_463, %c0_464] : memref<2x2x32xf32, #tpu.memory_space<vmem>>, vector<1x1x32xf32>
    %991 = vector.shape_cast %990 : vector<1x1x32xf32> to vector<1x32xf32>
    %cst_465 = arith.constant dense<0.000000e+00> : vector<16xf32>
    %992 = vector.multi_reduction <add>, %987, %cst_465 [1] : vector<16x32xf32> to vector<16xf32>
    %993 = vector.shape_cast %992 : vector<16xf32> to vector<16x1xf32>
    %cst_466 = arith.constant 3.200000e+01 : f32
    %994 = vector.broadcast %cst_466 : f32 to vector<16x1xf32>
    %995 = arith.divf %993, %994 : vector<16x1xf32>
    %996 = vector.broadcast %995 : vector<16x1xf32> to vector<16x32xf32>
    %997 = arith.subf %987, %996 : vector<16x32xf32>
    %998 = arith.mulf %997, %997 : vector<16x32xf32>
    %cst_467 = arith.constant dense<0.000000e+00> : vector<16xf32>
    %999 = vector.multi_reduction <add>, %998, %cst_467 [1] : vector<16x32xf32> to vector<16xf32>
    %1000 = vector.shape_cast %999 : vector<16xf32> to vector<16x1xf32>
    %cst_468 = arith.constant 3.200000e+01 : f32
    %1001 = vector.broadcast %cst_468 : f32 to vector<16x1xf32>
    %1002 = arith.divf %1000, %1001 : vector<16x1xf32>
    %1003 = vector.broadcast %995 : vector<16x1xf32> to vector<16x32xf32>
    %1004 = arith.subf %987, %1003 : vector<16x32xf32>
    %cst_469 = arith.constant 9.99999974E-6 : f32
    %1005 = vector.broadcast %cst_469 : f32 to vector<16x1xf32>
    %1006 = arith.addf %1002, %1005 : vector<16x1xf32>
    %1007 = math.rsqrt %1006 : vector<16x1xf32>
    %1008 = vector.broadcast %1007 : vector<16x1xf32> to vector<16x32xf32>
    %1009 = arith.mulf %1004, %1008 : vector<16x32xf32>
    %1010 = vector.broadcast %989 : vector<1x32xf32> to vector<16x32xf32>
    %1011 = arith.mulf %1009, %1010 : vector<16x32xf32>
    %1012 = vector.broadcast %991 : vector<1x32xf32> to vector<16x32xf32>
    %1013 = arith.addf %1011, %1012 : vector<16x32xf32>
    %c1_470 = arith.constant 1 : index
    %c0_471 = arith.constant 0 : index
    %c0_472 = arith.constant 0 : index
    %1014 = vector.load %arg47[%c1_470, %c0_471, %c0_472] : memref<2x32x128xf32, #tpu.memory_space<vmem>>, vector<1x32x128xf32>
    %1015 = vector.shape_cast %1014 : vector<1x32x128xf32> to vector<32x128xf32>
    %cst_473 = arith.constant dense<0.000000e+00> : vector<16x128xf32>
    %1016 = tpu.matmul %1013, %1015, %cst_473 {dimension_numbers = #tpu.dot_dimension_numbers<[1], [0], [0], [1], [0, 0, 1, 1], [], []>} : vector<16x32xf32>, vector<32x128xf32>, vector<16x128xf32> -> vector<16x128xf32>
    %c1_474 = arith.constant 1 : index
    %c0_475 = arith.constant 0 : index
    %c0_476 = arith.constant 0 : index
    %1017 = vector.load %arg48[%c1_474, %c0_475, %c0_476] : memref<2x1x128xf32, #tpu.memory_space<vmem>>, vector<1x1x128xf32>
    %1018 = vector.shape_cast %1017 : vector<1x1x128xf32> to vector<1x128xf32>
    %1019 = vector.broadcast %1018 : vector<1x128xf32> to vector<16x128xf32>
    %1020 = arith.addf %1016, %1019 : vector<16x128xf32>
    %cst_477 = arith.constant 0.000000e+00 : f32
    %1021 = vector.broadcast %cst_477 : f32 to vector<16x128xf32>
    %1022 = arith.maximumf %1020, %1021 : vector<16x128xf32>
    %c1_478 = arith.constant 1 : index
    %c0_479 = arith.constant 0 : index
    %c0_480 = arith.constant 0 : index
    %1023 = vector.load %arg49[%c1_478, %c0_479, %c0_480] : memref<2x128x32xf32, #tpu.memory_space<vmem>>, vector<1x128x32xf32>
    %1024 = vector.shape_cast %1023 : vector<1x128x32xf32> to vector<128x32xf32>
    %cst_481 = arith.constant dense<0.000000e+00> : vector<16x32xf32>
    %1025 = tpu.matmul %1022, %1024, %cst_481 {dimension_numbers = #tpu.dot_dimension_numbers<[1], [0], [0], [1], [0, 0, 1, 1], [], []>} : vector<16x128xf32>, vector<128x32xf32>, vector<16x32xf32> -> vector<16x32xf32>
    %c1_482 = arith.constant 1 : index
    %c0_483 = arith.constant 0 : index
    %c0_484 = arith.constant 0 : index
    %1026 = vector.load %arg50[%c1_482, %c0_483, %c0_484] : memref<2x1x32xf32, #tpu.memory_space<vmem>>, vector<1x1x32xf32>
    %1027 = vector.shape_cast %1026 : vector<1x1x32xf32> to vector<1x32xf32>
    %1028 = vector.broadcast %1027 : vector<1x32xf32> to vector<16x32xf32>
    %1029 = arith.addf %1025, %1028 : vector<16x32xf32>
    %1030 = arith.addf %987, %1029 : vector<16x32xf32>
    %c0_485 = arith.constant 0 : index
    %c0_486 = arith.constant 0 : index
    %1031 = vector.load %arg51[%c0_485, %c0_486] : memref<2x32xf32, #tpu.memory_space<vmem>>, vector<1x32xf32>
    %c1_487 = arith.constant 1 : index
    %c0_488 = arith.constant 0 : index
    %1032 = vector.load %arg51[%c1_487, %c0_488] : memref<2x32xf32, #tpu.memory_space<vmem>>, vector<1x32xf32>
    %cst_489 = arith.constant dense<0.000000e+00> : vector<16xf32>
    %1033 = vector.multi_reduction <add>, %1030, %cst_489 [1] : vector<16x32xf32> to vector<16xf32>
    %1034 = vector.shape_cast %1033 : vector<16xf32> to vector<16x1xf32>
    %cst_490 = arith.constant 3.200000e+01 : f32
    %1035 = vector.broadcast %cst_490 : f32 to vector<16x1xf32>
    %1036 = arith.divf %1034, %1035 : vector<16x1xf32>
    %1037 = vector.broadcast %1036 : vector<16x1xf32> to vector<16x32xf32>
    %1038 = arith.subf %1030, %1037 : vector<16x32xf32>
    %1039 = arith.mulf %1038, %1038 : vector<16x32xf32>
    %cst_491 = arith.constant dense<0.000000e+00> : vector<16xf32>
    %1040 = vector.multi_reduction <add>, %1039, %cst_491 [1] : vector<16x32xf32> to vector<16xf32>
    %1041 = vector.shape_cast %1040 : vector<16xf32> to vector<16x1xf32>
    %cst_492 = arith.constant 3.200000e+01 : f32
    %1042 = vector.broadcast %cst_492 : f32 to vector<16x1xf32>
    %1043 = arith.divf %1041, %1042 : vector<16x1xf32>
    %1044 = vector.broadcast %1036 : vector<16x1xf32> to vector<16x32xf32>
    %1045 = arith.subf %1030, %1044 : vector<16x32xf32>
    %cst_493 = arith.constant 9.99999974E-6 : f32
    %1046 = vector.broadcast %cst_493 : f32 to vector<16x1xf32>
    %1047 = arith.addf %1043, %1046 : vector<16x1xf32>
    %1048 = math.rsqrt %1047 : vector<16x1xf32>
    %1049 = vector.broadcast %1048 : vector<16x1xf32> to vector<16x32xf32>
    %1050 = arith.mulf %1045, %1049 : vector<16x32xf32>
    %1051 = vector.broadcast %1031 : vector<1x32xf32> to vector<16x32xf32>
    %1052 = arith.mulf %1050, %1051 : vector<16x32xf32>
    %1053 = vector.broadcast %1032 : vector<1x32xf32> to vector<16x32xf32>
    %1054 = arith.addf %1052, %1053 : vector<16x32xf32>
    %c0_494 = arith.constant 0 : index
    %c0_495 = arith.constant 0 : index
    %c0_496 = arith.constant 0 : index
    %1055 = vector.load %arg52[%c0_494, %c0_495, %c0_496] : memref<1x20x32xf32, #tpu.memory_space<vmem>>, vector<1x16x32xf32>
    %1056 = vector.shape_cast %1055 : vector<1x16x32xf32> to vector<16x32xf32>
    %1057 = vector.shape_cast %1054 : vector<16x32xf32> to vector<1x16x32xf32>
    tpu.vector_store %arg52[%c0_494, %c0_495, %c0_496], %1057 {strides = array<i32>} : memref<1x20x32xf32, #tpu.memory_space<vmem>>, vector<1x16x32xf32>,
    %c0_497 = arith.constant 0 : index
    %c16_498 = arith.constant 16 : index
    %c0_499 = arith.constant 0 : index
    %1058 = vector.load %arg52[%c0_497, %c16_498, %c0_499] : memref<1x20x32xf32, #tpu.memory_space<vmem>>, vector<1x4x32xf32>
    %1059 = vector.shape_cast %1058 : vector<1x4x32xf32> to vector<4x32xf32>
    %1060 = vector.shape_cast %593 : vector<4x32xf32> to vector<1x4x32xf32>
    tpu.vector_store %arg52[%c0_497, %c16_498, %c0_499], %1060 {strides = array<i32>} : memref<1x20x32xf32, #tpu.memory_space<vmem>>, vector<1x4x32xf32>,
    %cst_500 = arith.constant dense<0.000000e+00> : vector<16xf32>
    %1061 = vector.multi_reduction <add>, %986, %cst_500 [0] : vector<4x16xf32> to vector<16xf32>
    %1062 = vector.shape_cast %1061 : vector<16xf32> to vector<1x16xf32>
    %1063 = tpu.reciprocal %1062 {approx = true} : vector<1x16xf32> -> vector<1x16xf32>
    %1064 = vector.broadcast %1063 : vector<1x16xf32> to vector<4x16xf32>
    %1065 = arith.mulf %986, %1064 : vector<4x16xf32>
    %1066 = arith.subf %292, %1054 : vector<16x32xf32>
    %1067 = arith.mulf %1066, %1066 : vector<16x32xf32>
    %cst_501 = arith.constant dense<0.000000e+00> : vector<16xf32>
    %1068 = vector.multi_reduction <add>, %1067, %cst_501 [1] : vector<16x32xf32> to vector<16xf32>
    %1069 = vector.shape_cast %1068 : vector<16xf32> to vector<16x1xf32>
    %cst_502 = arith.constant dense<0.000000e+00> : vector<1xf32>
    %1070 = vector.multi_reduction <add>, %1069, %cst_502 [0] : vector<16x1xf32> to vector<1xf32>
    %1071 = vector.shape_cast %1070 : vector<1xf32> to vector<1x1xf32>
    %1072 = tpu.iota {dimensions = array<i32: 1>} : vector<16x64xi32>
    %1073 = tpu.iota {dimensions = array<i32: 0>} : vector<16x64xi32>
    %c0_i32_503 = arith.constant 0 : i32
    %1074 = vector.broadcast %c0_i32_503 : i32 to vector<16x64xi32>
    %1075 = arith.addi %1073, %1074 : vector<16x64xi32>
    %1076 = arith.cmpi eq, %1072, %1075 : vector<16x64xi32>
    %1077 = arith.extui %1076 : vector<16x64xi1> to vector<16x64xi32>
    %1078 = arith.sitofp %1077 : vector<16x64xi32> to vector<16x64xf32>
    %cst_504 = arith.constant dense<0.000000e+00> : vector<4x64xf32>
    %1079 = tpu.matmul %512, %1078, %cst_504 {dimension_numbers = #tpu.dot_dimension_numbers<[1], [0], [0], [1], [0, 0, 1, 1], [], []>} : vector<4x16xf32>, vector<16x64xf32>, vector<4x64xf32> -> vector<4x64xf32>
    %c16_i32 = arith.constant 16 : i32
    %1080 = vector.broadcast %c16_i32 : i32 to vector<16x64xi32>
    %1081 = arith.addi %1073, %1080 : vector<16x64xi32>
    %1082 = arith.cmpi eq, %1072, %1081 : vector<16x64xi32>
    %1083 = arith.extui %1082 : vector<16x64xi1> to vector<16x64xi32>
    %1084 = arith.sitofp %1083 : vector<16x64xi32> to vector<16x64xf32>
    %cst_505 = arith.constant dense<0.000000e+00> : vector<4x64xf32>
    %1085 = tpu.matmul %1065, %1084, %cst_505 {dimension_numbers = #tpu.dot_dimension_numbers<[1], [0], [0], [1], [0, 0, 1, 1], [], []>} : vector<4x16xf32>, vector<16x64xf32>, vector<4x64xf32> -> vector<4x64xf32>
    %1086 = arith.addf %1079, %1085 : vector<4x64xf32>
    %c32_i32 = arith.constant 32 : i32
    %1087 = vector.broadcast %c32_i32 : i32 to vector<16x64xi32>
    %1088 = arith.addi %1073, %1087 : vector<16x64xi32>
    %1089 = arith.cmpi eq, %1072, %1088 : vector<16x64xi32>
    %1090 = arith.extui %1089 : vector<16x64xi1> to vector<16x64xi32>
    %1091 = arith.sitofp %1090 : vector<16x64xi32> to vector<16x64xf32>
    %cst_506 = arith.constant dense<0.000000e+00> : vector<4x64xf32>
    %1092 = tpu.matmul %502, %1091, %cst_506 {dimension_numbers = #tpu.dot_dimension_numbers<[1], [0], [0], [1], [0, 0, 1, 1], [], []>} : vector<4x16xf32>, vector<16x64xf32>, vector<4x64xf32> -> vector<4x64xf32>
    %1093 = arith.addf %1086, %1092 : vector<4x64xf32>
    %1094 = vector.shape_cast %1071 : vector<1x1xf32> to vector<1x1xf32>
    %1095 = vector.broadcast %1094 : vector<1x1xf32> to vector<4x16xf32>
    %c48_i32 = arith.constant 48 : i32
    %1096 = vector.broadcast %c48_i32 : i32 to vector<16x64xi32>
    %1097 = arith.addi %1073, %1096 : vector<16x64xi32>
    %1098 = arith.cmpi eq, %1072, %1097 : vector<16x64xi32>
    %1099 = arith.extui %1098 : vector<16x64xi1> to vector<16x64xi32>
    %1100 = arith.sitofp %1099 : vector<16x64xi32> to vector<16x64xf32>
    %cst_507 = arith.constant dense<0.000000e+00> : vector<4x64xf32>
    %1101 = tpu.matmul %1095, %1100, %cst_507 {dimension_numbers = #tpu.dot_dimension_numbers<[1], [0], [0], [1], [0, 0, 1, 1], [], []>} : vector<4x16xf32>, vector<16x64xf32>, vector<4x64xf32> -> vector<4x64xf32>
    %1102 = arith.addf %1093, %1101 : vector<4x64xf32>
    %c0_508 = arith.constant 0 : index
    %c0_509 = arith.constant 0 : index
    %c0_510 = arith.constant 0 : index
    %1103 = vector.load %arg53[%c0_508, %c0_509, %c0_510] : memref<1x4x64xf32, #tpu.memory_space<vmem>>, vector<1x4x64xf32>
    %1104 = vector.shape_cast %1103 : vector<1x4x64xf32> to vector<4x64xf32>
    %1105 = vector.shape_cast %1102 : vector<4x64xf32> to vector<1x4x64xf32>
    tpu.vector_store %arg53[%c0_508, %c0_509, %c0_510], %1105 {strides = array<i32>} : memref<1x4x64xf32, #tpu.memory_space<vmem>>, vector<1x4x64xf32>,
    return
  }
  func.func @transform_0(%arg0: i32) -> (i32, i32, i32) {
    %c0_i32 = arith.constant 0 : i32
    %c0_i32_0 = arith.constant 0 : i32
    %c0_i32_1 = arith.constant 0 : i32
    return %arg0, %c0_i32, %c0_i32_0 : i32, i32, i32
  }
  func.func @transform_1(%arg0: i32) -> (i32, i32) {
    %c0_i32 = arith.constant 0 : i32
    %c0_i32_0 = arith.constant 0 : i32
    %c0_i32_1 = arith.constant 0 : i32
    return %c0_i32, %c0_i32_0 : i32, i32
  }
  func.func @transform_2(%arg0: i32) -> (i32, i32) {
    %c0_i32 = arith.constant 0 : i32
    %c0_i32_0 = arith.constant 0 : i32
    %c0_i32_1 = arith.constant 0 : i32
    return %c0_i32, %c0_i32_0 : i32, i32
  }
  func.func @transform_3(%arg0: i32) -> (i32, i32, i32) {
    %c0_i32 = arith.constant 0 : i32
    %c0_i32_0 = arith.constant 0 : i32
    %c0_i32_1 = arith.constant 0 : i32
    %c0_i32_2 = arith.constant 0 : i32
    return %c0_i32, %c0_i32_0, %c0_i32_1 : i32, i32, i32
  }
  func.func @transform_4(%arg0: i32) -> (i32, i32, i32) {
    %c0_i32 = arith.constant 0 : i32
    %c0_i32_0 = arith.constant 0 : i32
    %c0_i32_1 = arith.constant 0 : i32
    %c0_i32_2 = arith.constant 0 : i32
    return %c0_i32, %c0_i32_0, %c0_i32_1 : i32, i32, i32
  }
  func.func @transform_5(%arg0: i32) -> (i32, i32, i32) {
    %c0_i32 = arith.constant 0 : i32
    %c0_i32_0 = arith.constant 0 : i32
    %c0_i32_1 = arith.constant 0 : i32
    %c0_i32_2 = arith.constant 0 : i32
    return %c0_i32, %c0_i32_0, %c0_i32_1 : i32, i32, i32
  }
  func.func @transform_6(%arg0: i32) -> (i32, i32, i32) {
    %c0_i32 = arith.constant 0 : i32
    %c0_i32_0 = arith.constant 0 : i32
    %c0_i32_1 = arith.constant 0 : i32
    %c0_i32_2 = arith.constant 0 : i32
    return %c0_i32, %c0_i32_0, %c0_i32_1 : i32, i32, i32
  }
  func.func @transform_7(%arg0: i32) -> (i32, i32, i32) {
    %c0_i32 = arith.constant 0 : i32
    %c0_i32_0 = arith.constant 0 : i32
    %c0_i32_1 = arith.constant 0 : i32
    %c0_i32_2 = arith.constant 0 : i32
    return %c0_i32, %c0_i32_0, %c0_i32_1 : i32, i32, i32
  }
  func.func @transform_8(%arg0: i32) -> (i32, i32, i32) {
    %c0_i32 = arith.constant 0 : i32
    %c0_i32_0 = arith.constant 0 : i32
    %c0_i32_1 = arith.constant 0 : i32
    %c0_i32_2 = arith.constant 0 : i32
    return %c0_i32, %c0_i32_0, %c0_i32_1 : i32, i32, i32
  }
  func.func @transform_9(%arg0: i32) -> (i32, i32, i32) {
    %c0_i32 = arith.constant 0 : i32
    %c0_i32_0 = arith.constant 0 : i32
    %c0_i32_1 = arith.constant 0 : i32
    %c0_i32_2 = arith.constant 0 : i32
    return %c0_i32, %c0_i32_0, %c0_i32_1 : i32, i32, i32
  }
  func.func @transform_10(%arg0: i32) -> (i32, i32, i32) {
    %c0_i32 = arith.constant 0 : i32
    %c0_i32_0 = arith.constant 0 : i32
    %c0_i32_1 = arith.constant 0 : i32
    %c0_i32_2 = arith.constant 0 : i32
    return %c0_i32, %c0_i32_0, %c0_i32_1 : i32, i32, i32
  }
  func.func @transform_11(%arg0: i32) -> (i32, i32, i32) {
    %c0_i32 = arith.constant 0 : i32
    %c0_i32_0 = arith.constant 0 : i32
    %c0_i32_1 = arith.constant 0 : i32
    %c0_i32_2 = arith.constant 0 : i32
    return %c0_i32, %c0_i32_0, %c0_i32_1 : i32, i32, i32
  }
  func.func @transform_12(%arg0: i32) -> (i32, i32, i32) {
    %c0_i32 = arith.constant 0 : i32
    %c0_i32_0 = arith.constant 0 : i32
    %c0_i32_1 = arith.constant 0 : i32
    %c0_i32_2 = arith.constant 0 : i32
    return %c0_i32, %c0_i32_0, %c0_i32_1 : i32, i32, i32
  }
  func.func @transform_13(%arg0: i32) -> (i32, i32) {
    %c0_i32 = arith.constant 0 : i32
    %c0_i32_0 = arith.constant 0 : i32
    %c0_i32_1 = arith.constant 0 : i32
    return %c0_i32, %c0_i32_0 : i32, i32
  }
  func.func @transform_14(%arg0: i32) -> (i32, i32) {
    %c0_i32 = arith.constant 0 : i32
    %c0_i32_0 = arith.constant 0 : i32
    %c0_i32_1 = arith.constant 0 : i32
    return %c0_i32, %c0_i32_0 : i32, i32
  }
  func.func @transform_15(%arg0: i32) -> (i32, i32) {
    %c0_i32 = arith.constant 0 : i32
    %c0_i32_0 = arith.constant 0 : i32
    %c0_i32_1 = arith.constant 0 : i32
    return %c0_i32, %c0_i32_0 : i32, i32
  }
  func.func @transform_16(%arg0: i32) -> (i32, i32) {
    %c0_i32 = arith.constant 0 : i32
    %c0_i32_0 = arith.constant 0 : i32
    %c0_i32_1 = arith.constant 0 : i32
    return %c0_i32, %c0_i32_0 : i32, i32
  }
  func.func @transform_17(%arg0: i32) -> (i32, i32) {
    %c0_i32 = arith.constant 0 : i32
    %c0_i32_0 = arith.constant 0 : i32
    %c0_i32_1 = arith.constant 0 : i32
    return %c0_i32, %c0_i32_0 : i32, i32
  }
  func.func @transform_18(%arg0: i32) -> (i32, i32) {
    %c0_i32 = arith.constant 0 : i32
    %c0_i32_0 = arith.constant 0 : i32
    %c0_i32_1 = arith.constant 0 : i32
    return %c0_i32, %c0_i32_0 : i32, i32
  }
  func.func @transform_19(%arg0: i32) -> (i32, i32) {
    %c0_i32 = arith.constant 0 : i32
    %c0_i32_0 = arith.constant 0 : i32
    %c0_i32_1 = arith.constant 0 : i32
    return %c0_i32, %c0_i32_0 : i32, i32
  }
  func.func @transform_20(%arg0: i32) -> (i32, i32) {
    %c0_i32 = arith.constant 0 : i32
    %c0_i32_0 = arith.constant 0 : i32
    %c0_i32_1 = arith.constant 0 : i32
    return %c0_i32, %c0_i32_0 : i32, i32
  }
  func.func @transform_21(%arg0: i32) -> (i32, i32) {
    %c0_i32 = arith.constant 0 : i32
    %c0_i32_0 = arith.constant 0 : i32
    %c0_i32_1 = arith.constant 0 : i32
    return %c0_i32, %c0_i32_0 : i32, i32
  }
  func.func @transform_22(%arg0: i32) -> (i32, i32) {
    %c0_i32 = arith.constant 0 : i32
    %c0_i32_0 = arith.constant 0 : i32
    %c0_i32_1 = arith.constant 0 : i32
    return %c0_i32, %c0_i32_0 : i32, i32
  }
  func.func @transform_23(%arg0: i32) -> (i32, i32) {
    %c0_i32 = arith.constant 0 : i32
    %c0_i32_0 = arith.constant 0 : i32
    %c0_i32_1 = arith.constant 0 : i32
    return %c0_i32, %c0_i32_0 : i32, i32
  }
  func.func @transform_24(%arg0: i32) -> (i32, i32) {
    %c0_i32 = arith.constant 0 : i32
    %c0_i32_0 = arith.constant 0 : i32
    %c0_i32_1 = arith.constant 0 : i32
    return %c0_i32, %c0_i32_0 : i32, i32
  }
  func.func @transform_25(%arg0: i32) -> (i32, i32) {
    %c0_i32 = arith.constant 0 : i32
    %c0_i32_0 = arith.constant 0 : i32
    %c0_i32_1 = arith.constant 0 : i32
    return %c0_i32, %c0_i32_0 : i32, i32
  }
  func.func @transform_26(%arg0: i32) -> (i32, i32) {
    %c0_i32 = arith.constant 0 : i32
    %c0_i32_0 = arith.constant 0 : i32
    %c0_i32_1 = arith.constant 0 : i32
    return %c0_i32, %c0_i32_0 : i32, i32
  }
  func.func @transform_27(%arg0: i32) -> (i32, i32) {
    %c0_i32 = arith.constant 0 : i32
    %c0_i32_0 = arith.constant 0 : i32
    %c0_i32_1 = arith.constant 0 : i32
    return %c0_i32, %c0_i32_0 : i32, i32
  }
  func.func @transform_28(%arg0: i32) -> (i32, i32) {
    %c0_i32 = arith.constant 0 : i32
    %c0_i32_0 = arith.constant 0 : i32
    %c0_i32_1 = arith.constant 0 : i32
    return %c0_i32, %c0_i32_0 : i32, i32
  }
  func.func @transform_29(%arg0: i32) -> (i32, i32) {
    %c0_i32 = arith.constant 0 : i32
    %c0_i32_0 = arith.constant 0 : i32
    %c0_i32_1 = arith.constant 0 : i32
    return %c0_i32, %c0_i32_0 : i32, i32
  }
  func.func @transform_30(%arg0: i32) -> (i32, i32) {
    %c0_i32 = arith.constant 0 : i32
    %c0_i32_0 = arith.constant 0 : i32
    %c0_i32_1 = arith.constant 0 : i32
    return %c0_i32, %c0_i32_0 : i32, i32
  }
  func.func @transform_31(%arg0: i32) -> (i32, i32) {
    %c0_i32 = arith.constant 0 : i32
    %c0_i32_0 = arith.constant 0 : i32
    %c0_i32_1 = arith.constant 0 : i32
    return %c0_i32, %c0_i32_0 : i32, i32
  }
  func.func @transform_32(%arg0: i32) -> (i32, i32) {
    %c0_i32 = arith.constant 0 : i32
    %c0_i32_0 = arith.constant 0 : i32
    %c0_i32_1 = arith.constant 0 : i32
    return %c0_i32, %c0_i32_0 : i32, i32
  }
  func.func @transform_33(%arg0: i32) -> (i32, i32) {
    %c0_i32 = arith.constant 0 : i32
    %c0_i32_0 = arith.constant 0 : i32
    %c0_i32_1 = arith.constant 0 : i32
    return %c0_i32, %c0_i32_0 : i32, i32
  }
  func.func @transform_34(%arg0: i32) -> (i32, i32) {
    %c0_i32 = arith.constant 0 : i32
    %c0_i32_0 = arith.constant 0 : i32
    %c0_i32_1 = arith.constant 0 : i32
    return %c0_i32, %c0_i32_0 : i32, i32
  }
  func.func @transform_35(%arg0: i32) -> (i32, i32) {
    %c0_i32 = arith.constant 0 : i32
    %c0_i32_0 = arith.constant 0 : i32
    %c0_i32_1 = arith.constant 0 : i32
    return %c0_i32, %c0_i32_0 : i32, i32
  }
  func.func @transform_36(%arg0: i32) -> (i32, i32) {
    %c0_i32 = arith.constant 0 : i32
    %c0_i32_0 = arith.constant 0 : i32
    %c0_i32_1 = arith.constant 0 : i32
    return %c0_i32, %c0_i32_0 : i32, i32
  }
  func.func @transform_37(%arg0: i32) -> (i32, i32) {
    %c0_i32 = arith.constant 0 : i32
    %c0_i32_0 = arith.constant 0 : i32
    %c0_i32_1 = arith.constant 0 : i32
    return %c0_i32, %c0_i32_0 : i32, i32
  }
  func.func @transform_38(%arg0: i32) -> (i32, i32, i32) {
    %c0_i32 = arith.constant 0 : i32
    %c0_i32_0 = arith.constant 0 : i32
    %c0_i32_1 = arith.constant 0 : i32
    %c0_i32_2 = arith.constant 0 : i32
    return %c0_i32, %c0_i32_0, %c0_i32_1 : i32, i32, i32
  }
  func.func @transform_39(%arg0: i32) -> (i32, i32, i32) {
    %c0_i32 = arith.constant 0 : i32
    %c0_i32_0 = arith.constant 0 : i32
    %c0_i32_1 = arith.constant 0 : i32
    %c0_i32_2 = arith.constant 0 : i32
    return %c0_i32, %c0_i32_0, %c0_i32_1 : i32, i32, i32
  }
  func.func @transform_40(%arg0: i32) -> (i32, i32, i32) {
    %c0_i32 = arith.constant 0 : i32
    %c0_i32_0 = arith.constant 0 : i32
    %c0_i32_1 = arith.constant 0 : i32
    %c0_i32_2 = arith.constant 0 : i32
    return %c0_i32, %c0_i32_0, %c0_i32_1 : i32, i32, i32
  }
  func.func @transform_41(%arg0: i32) -> (i32, i32, i32) {
    %c0_i32 = arith.constant 0 : i32
    %c0_i32_0 = arith.constant 0 : i32
    %c0_i32_1 = arith.constant 0 : i32
    %c0_i32_2 = arith.constant 0 : i32
    return %c0_i32, %c0_i32_0, %c0_i32_1 : i32, i32, i32
  }
  func.func @transform_42(%arg0: i32) -> (i32, i32, i32) {
    %c0_i32 = arith.constant 0 : i32
    %c0_i32_0 = arith.constant 0 : i32
    %c0_i32_1 = arith.constant 0 : i32
    %c0_i32_2 = arith.constant 0 : i32
    return %c0_i32, %c0_i32_0, %c0_i32_1 : i32, i32, i32
  }
  func.func @transform_43(%arg0: i32) -> (i32, i32, i32) {
    %c0_i32 = arith.constant 0 : i32
    %c0_i32_0 = arith.constant 0 : i32
    %c0_i32_1 = arith.constant 0 : i32
    %c0_i32_2 = arith.constant 0 : i32
    return %c0_i32, %c0_i32_0, %c0_i32_1 : i32, i32, i32
  }
  func.func @transform_44(%arg0: i32) -> (i32, i32, i32) {
    %c0_i32 = arith.constant 0 : i32
    %c0_i32_0 = arith.constant 0 : i32
    %c0_i32_1 = arith.constant 0 : i32
    %c0_i32_2 = arith.constant 0 : i32
    return %c0_i32, %c0_i32_0, %c0_i32_1 : i32, i32, i32
  }
  func.func @transform_45(%arg0: i32) -> (i32, i32, i32) {
    %c0_i32 = arith.constant 0 : i32
    %c0_i32_0 = arith.constant 0 : i32
    %c0_i32_1 = arith.constant 0 : i32
    %c0_i32_2 = arith.constant 0 : i32
    return %c0_i32, %c0_i32_0, %c0_i32_1 : i32, i32, i32
  }
  func.func @transform_46(%arg0: i32) -> (i32, i32, i32) {
    %c0_i32 = arith.constant 0 : i32
    %c0_i32_0 = arith.constant 0 : i32
    %c0_i32_1 = arith.constant 0 : i32
    %c0_i32_2 = arith.constant 0 : i32
    return %c0_i32, %c0_i32_0, %c0_i32_1 : i32, i32, i32
  }
  func.func @transform_47(%arg0: i32) -> (i32, i32, i32) {
    %c0_i32 = arith.constant 0 : i32
    %c0_i32_0 = arith.constant 0 : i32
    %c0_i32_1 = arith.constant 0 : i32
    %c0_i32_2 = arith.constant 0 : i32
    return %c0_i32, %c0_i32_0, %c0_i32_1 : i32, i32, i32
  }
  func.func @transform_48(%arg0: i32) -> (i32, i32, i32) {
    %c0_i32 = arith.constant 0 : i32
    %c0_i32_0 = arith.constant 0 : i32
    %c0_i32_1 = arith.constant 0 : i32
    %c0_i32_2 = arith.constant 0 : i32
    return %c0_i32, %c0_i32_0, %c0_i32_1 : i32, i32, i32
  }
  func.func @transform_49(%arg0: i32) -> (i32, i32, i32) {
    %c0_i32 = arith.constant 0 : i32
    %c0_i32_0 = arith.constant 0 : i32
    %c0_i32_1 = arith.constant 0 : i32
    %c0_i32_2 = arith.constant 0 : i32
    return %c0_i32, %c0_i32_0, %c0_i32_1 : i32, i32, i32
  }
  func.func @transform_50(%arg0: i32) -> (i32, i32) {
    %c0_i32 = arith.constant 0 : i32
    %c0_i32_0 = arith.constant 0 : i32
    %c0_i32_1 = arith.constant 0 : i32
    return %c0_i32, %c0_i32_0 : i32, i32
  }
  func.func @transform_51(%arg0: i32) -> (i32, i32, i32) {
    %c0_i32 = arith.constant 0 : i32
    %c0_i32_0 = arith.constant 0 : i32
    %c0_i32_1 = arith.constant 0 : i32
    return %arg0, %c0_i32, %c0_i32_0 : i32, i32, i32
  }
  func.func @transform_52(%arg0: i32) -> (i32, i32, i32) {
    %c0_i32 = arith.constant 0 : i32
    %c0_i32_0 = arith.constant 0 : i32
    %c0_i32_1 = arith.constant 0 : i32
    return %arg0, %c0_i32, %c0_i32_0 : i32, i32, i32
  }
}

</mosaic_0001>

<llo_original>
// kernel: dino_slot_forward.1
$region0: #{dino_slot_forward.1}
  #allocation0 [shape = 'u32[]', space=smem, size = 0x4, offset = 0x4, fixed_abs, tag = 'smem constant byte address 0x4 - core index']
  #allocation1 [shape = 'u32[72,128]{1,0:T(1,128)}', space=vmem, size = 0x9000, scoped, tag = 'internal scratch']
  #allocation2 [shape = 'f32[17,32]{1,0:T(8,128)}', space=vmem, size = 0x3000, scoped, tag = 'scratch operand']
  %s0 = inlined_call_operand.smem [shape: u32[53], index: -1, kind: input, shape index: {}]
  %s1 = sld [smem:[%s0]]
  %s2 = scalar_lea.smem %s0, 1
  %s3 = sld [smem:[%s2]]
  %s4 = scalar_lea.smem %s0, 2
  %s5 = sld [smem:[%s4]]
  %s6 = scalar_lea.smem %s0, 3
  %s7 = sld [smem:[%s6]]
  %s8 = scalar_lea.smem %s0, 4
  %s9 = sld [smem:[%s8]]
  %s10 = scalar_lea.smem %s0, 5
  %s11 = sld [smem:[%s10]]
  %s12 = scalar_lea.smem %s0, 6
  %s13 = sld [smem:[%s12]]
  %s14 = scalar_lea.smem %s0, 7
  %s15 = sld [smem:[%s14]]
  %s16 = scalar_lea.smem %s0, 8
  %s17 = sld [smem:[%s16]]
  %s18 = scalar_lea.smem %s0, 9
  %s19 = sld [smem:[%s18]]
  %s20 = scalar_lea.smem %s0, 10
  %s21 = sld [smem:[%s20]]
  %s22 = scalar_lea.smem %s0, 11
  %s23 = sld [smem:[%s22]]
  %s24 = scalar_lea.smem %s0, 12
  %s25 = sld [smem:[%s24]]
  %s26 = scalar_lea.smem %s0, 13
  %s27 = sld [smem:[%s26]]
  %s28 = scalar_lea.smem %s0, 14
  %s29 = sld [smem:[%s28]]
  %s30 = scalar_lea.smem %s0, 15
  %s31 = sld [smem:[%s30]]
  %s32 = scalar_lea.smem %s0, 16
  %s33 = sld [smem:[%s32]]
  %s34 = scalar_lea.smem %s0, 17
  %s35 = sld [smem:[%s34]]
  %s36 = scalar_lea.smem %s0, 18
  %s37 = sld [smem:[%s36]]
  %s38 = scalar_lea.smem %s0, 19
  %s39 = sld [smem:[%s38]]
  %s40 = scalar_lea.smem %s0, 20
  %s41 = sld [smem:[%s40]]
  %s42 = scalar_lea.smem %s0, 21
  %s43 = sld [smem:[%s42]]
  %s44 = scalar_lea.smem %s0, 22
  %s45 = sld [smem:[%s44]]
  %s46 = scalar_lea.smem %s0, 23
  %s47 = sld [smem:[%s46]]
  %s48 = scalar_lea.smem %s0, 24
  %s49 = sld [smem:[%s48]]
  %s50 = scalar_lea.smem %s0, 25
  %s51 = sld [smem:[%s50]]
  %s52 = scalar_lea.smem %s0, 26
  %s53 = sld [smem:[%s52]]
  %s54 = scalar_lea.smem %s0, 27
  %s55 = sld [smem:[%s54]]
  %s56 = scalar_lea.smem %s0, 28
  %s57 = sld [smem:[%s56]]
  %s58 = scalar_lea.smem %s0, 29
  %s59 = sld [smem:[%s58]]
  %s60 = scalar_lea.smem %s0, 30
  %s61 = sld [smem:[%s60]]
  %s62 = scalar_lea.smem %s0, 31
  %s63 = sld [smem:[%s62]]
  %s64 = scalar_lea.smem %s0, 32
  %s65 = sld [smem:[%s64]]
  %s66 = scalar_lea.smem %s0, 33
  %s67 = sld [smem:[%s66]]
  %s68 = scalar_lea.smem %s0, 34
  %s69 = sld [smem:[%s68]]
  %s70 = scalar_lea.smem %s0, 35
  %s71 = sld [smem:[%s70]]
  %s72 = scalar_lea.smem %s0, 36
  %s73 = sld [smem:[%s72]]
  %s74 = scalar_lea.smem %s0, 37
  %s75 = sld [smem:[%s74]]
  %s76 = scalar_lea.smem %s0, 38
  %s77 = sld [smem:[%s76]]
  %s78 = scalar_lea.smem %s0, 39
  %s79 = sld [smem:[%s78]]
  %s80 = scalar_lea.smem %s0, 40
  %s81 = sld [smem:[%s80]]
  %s82 = scalar_lea.smem %s0, 41
  %s83 = sld [smem:[%s82]]
  %s84 = scalar_lea.smem %s0, 42
  %s85 = sld [smem:[%s84]]
  %s86 = scalar_lea.smem %s0, 43
  %s87 = sld [smem:[%s86]]
  %s88 = scalar_lea.smem %s0, 44
  %s89 = sld [smem:[%s88]]
  %s90 = scalar_lea.smem %s0, 45
  %s91 = sld [smem:[%s90]]
  %s92 = scalar_lea.smem %s0, 46
  %s93 = sld [smem:[%s92]]
  %s94 = scalar_lea.smem %s0, 47
  %s95 = sld [smem:[%s94]]
  %s96 = scalar_lea.smem %s0, 48
  %s97 = sld [smem:[%s96]]
  %s98 = scalar_lea.smem %s0, 49
  %s99 = sld [smem:[%s98]]
  %s100 = scalar_lea.smem %s0, 50
  %s101 = sld [smem:[%s100]]
  %s102 = scalar_lea.smem %s0, 51
  %s103 = sld [smem:[%s102]]
  %s104 = scalar_lea.smem %s0, 52
  %s105 = sld [smem:[%s104]]
  %106 = xla_tuple %s103, %s105
  %s107 = sld [smem:[#allocation0]]
  $region285: #{dino_slot_forward.1} parent=0
    _
  %s109 = ssub.s32 1, %s107
  %s110 = scalar_select 0, %s109, %s107
  $region1: #{dino_slot_forward.1} parent=0
    #allocation3 [shape = 'u8[512]{0}', space=vmem, size = 0x400, scoped, tag = 'input window, operand 16, single buffered']
    #allocation4 [shape = 's32[2]{0}', space=sflag, size = 0x8, scoped, tag = 'scoped memory for dino_slot_forward.1']
    #allocation5 [shape = 'u8[512]{0}', space=vmem, size = 0x400, scoped, tag = 'input window, operand 18, single buffered']
    #allocation6 [shape = 's32[1]{0}', space=sflag, size = 0x4, scoped, tag = 'scoped memory for dino_slot_forward.1']
    #allocation7 [shape = 'u8[512]{0}', space=vmem, size = 0x400, scoped, tag = 'input window, operand 26, single buffered']
    #allocation8 [shape = 'u8[512]{0}', space=vmem, size = 0x400, scoped, tag = 'input window, operand 27, single buffered']
    #allocation9 [shape = 's32[1]{0}', space=sflag, size = 0x4, scoped, tag = 'scoped memory for dino_slot_forward.1']
    #allocation10 [shape = 'u8[512]{0}', space=vmem, size = 0x400, scoped, tag = 'input window, operand 30, single buffered']
    #allocation11 [shape = 'u8[512]{0}', space=vmem, size = 0x400, scoped, tag = 'input window, operand 32, single buffered']
    #allocation12 [shape = 's32[1]{0}', space=sflag, size = 0x4, scoped, tag = 'scoped memory for dino_slot_forward.1']
    #allocation13 [shape = 'u8[512]{0}', space=vmem, size = 0x400, scoped, tag = 'input window, operand 33, single buffered']
    #allocation14 [shape = 'u8[1024]{0}', space=vmem, size = 0x400, scoped, tag = 'input window, operand 47, single buffered']
    #allocation15 [shape = 's32[1]{0}', space=sflag, size = 0x4, scoped, tag = 'scoped memory for dino_slot_forward.1']
    #allocation16 [shape = 'u8[1024]{0}', space=vmem, size = 0x400, scoped, tag = 'input window, operand 49, single buffered']
    #allocation17 [shape = 'u8[1024]{0}', space=vmem, size = 0x400, scoped, tag = 'input window, operand 50, single buffered']
    #allocation18 [shape = 's32[1]{0}', space=sflag, size = 0x4, scoped, tag = 'scoped memory for dino_slot_forward.1']
    %111 = vsyncpa [#allocation4], 0
    %112 = vsyncpa [#allocation6], 0
    %113 = vsyncpa [#allocation9], 0
    %114 = vsyncpa [#allocation12], 0
    %115 = vsyncpa [#allocation15], 0
    %116 = vsyncpa [#allocation18], 0
    loop: start=0, step=1, limit=4
    $region2: #{dino_slot_forward.1} parent=1 // loop_pre_header
      _
    $region3: #{dino_slot_forward.1} parent=1 // loop_header
      %s118 = sphi 0, %s122
      %p119 = scmp.ge.s32.totalorder %s118, 4
      %s128 = sphi 0, %s130
      %s131 = sphi 0, %s128
      %s132 = sphi 0, %s131
      %s148 = sphi 0, %s132
      %s152 = sphi 0, %s152
      %s154 = sphi 0, %s152
      %s155 = sphi 0, %s154
      %s169 = sphi 0, %s155
      %s173 = sphi 0, %s173
      %s175 = sphi 0, %s173
      %s176 = sphi 0, %s175
      %s190 = sphi 0, %s176
      %s194 = sphi 0, %s194
      %s196 = sphi 0, %s194
      %s197 = sphi 0, %s196
      %s211 = sphi 0, %s197
      %s215 = sphi 0, %s215
      %s217 = sphi 0, %s215
      %s218 = sphi 0, %s217
      %s232 = sphi 0, %s218
      %s236 = sphi 0, %s236
      %s238 = sphi 0, %s236
      %s239 = sphi 0, %s238
      %s253 = sphi 0, %s239
      %s257 = sphi 0, %s257
      %s259 = sphi 0, %s257
      %s260 = sphi 0, %s259
      %s274 = sphi 0, %s260
      %s278 = sphi 0, %s278
      %s280 = sphi 0, %s278
      %s281 = sphi 0, %s280
      %s295 = sphi 0, %s281
      %s299 = sphi 0, %s299
      %s301 = sphi 0, %s299
      %s302 = sphi 0, %s301
      %s316 = sphi 0, %s302
      %s320 = sphi 0, %s320
      %s322 = sphi 0, %s320
      %s323 = sphi 0, %s322
      %s337 = sphi 0, %s323
      %s341 = sphi 0, %s341
      %s343 = sphi 0, %s341
      %s344 = sphi 0, %s343
      %s358 = sphi 0, %s344
      %s362 = sphi 0, %s362
      %s364 = sphi 0, %s362
      %s365 = sphi 0, %s364
      %s379 = sphi 0, %s365
      %s383 = sphi 0, %s383
      %s385 = sphi 0, %s383
      %s386 = sphi 0, %s385
      %s400 = sphi 0, %s386
      %s404 = sphi 0, %s404
      %s406 = sphi 0, %s404
      %s407 = sphi 0, %s406
      %s421 = sphi 0, %s407
      %s425 = sphi 0, %s425
      %s427 = sphi 0, %s425
      %s428 = sphi 0, %s427
      %s442 = sphi 0, %s428
      %s446 = sphi 0, %s446
      %s448 = sphi 0, %s446
      %s449 = sphi 0, %s448
      %s463 = sphi 0, %s449
      %s467 = sphi 0, %s467
      %s469 = sphi 0, %s467
      %s470 = sphi 0, %s469
      %s484 = sphi 0, %s470
      %s488 = sphi 0, %s488
      %s490 = sphi 0, %s488
      %s491 = sphi 0, %s490
      %s505 = sphi 0, %s491
      %s509 = sphi 0, %s509
      %s511 = sphi 0, %s509
      %s512 = sphi 0, %s511
      %s526 = sphi 0, %s512
      %s530 = sphi 0, %s530
      %s532 = sphi 0, %s530
      %s533 = sphi 0, %s532
      %s547 = sphi 0, %s533
      %s551 = sphi 0, %s551
      %s553 = sphi 0, %s551
      %s554 = sphi 0, %s553
      %s568 = sphi 0, %s554
      %s572 = sphi 0, %s572
      %s574 = sphi 0, %s572
      %s575 = sphi 0, %s574
      %s589 = sphi 0, %s575
      %s593 = sphi 0, %s593
      %s595 = sphi 0, %s593
      %s596 = sphi 0, %s595
      %s610 = sphi 0, %s596
      %s614 = sphi 0, %s614
      %s616 = sphi 0, %s614
      %s617 = sphi 0, %s616
      %s631 = sphi 0, %s617
      %s635 = sphi 0, %s635
      %s637 = sphi 0, %s635
      %s638 = sphi 0, %s637
      %s652 = sphi 0, %s638
      %s656 = sphi 0, %s656
      %s658 = sphi 0, %s656
      %s659 = sphi 0, %s658
      %s673 = sphi 0, %s659
      %s677 = sphi 0, %s677
      %s679 = sphi 0, %s677
      %s680 = sphi 0, %s679
      %s694 = sphi 0, %s680
      %s698 = sphi 0, %s698
      %s700 = sphi 0, %s698
      %s701 = sphi 0, %s700
      %s715 = sphi 0, %s701
      %s719 = sphi 0, %s719
      %s721 = sphi 0, %s719
      %s722 = sphi 0, %s721
      %s736 = sphi 0, %s722
      %s740 = sphi 0, %s740
      %s742 = sphi 0, %s740
      %s743 = sphi 0, %s742
      %s757 = sphi 0, %s743
      %s761 = sphi 0, %s761
      %s763 = sphi 0, %s761
      %s764 = sphi 0, %s763
      %s778 = sphi 0, %s764
      %s782 = sphi 0, %s782
      %s784 = sphi 0, %s782
      %s785 = sphi 0, %s784
      %s799 = sphi 0, %s785
      %s803 = sphi 0, %s803
      %s805 = sphi 0, %s803
      %s806 = sphi 0, %s805
      %s820 = sphi 0, %s806
      %s824 = sphi 0, %s824
      %s826 = sphi 0, %s824
      %s827 = sphi 0, %s826
      %s841 = sphi 0, %s827
      %s845 = sphi 0, %s845
      %s847 = sphi 0, %s845
      %s848 = sphi 0, %s847
      %s862 = sphi 0, %s848
      %s866 = sphi 0, %s866
      %s868 = sphi 0, %s866
      %s869 = sphi 0, %s868
      %s883 = sphi 0, %s869
      %s887 = sphi 0, %s887
      %s889 = sphi 0, %s887
      %s890 = sphi 0, %s889
      %s904 = sphi 0, %s890
      %s908 = sphi 0, %s908
      %s910 = sphi 0, %s908
      %s911 = sphi 0, %s910
      %s925 = sphi 0, %s911
      %s929 = sphi 0, %s929
      %s931 = sphi 0, %s929
      %s932 = sphi 0, %s931
      %s946 = sphi 0, %s932
      %s950 = sphi 0, %s950
      %s952 = sphi 0, %s950
      %s953 = sphi 0, %s952
      %s967 = sphi 0, %s953
      %s971 = sphi 0, %s971
      %s973 = sphi 0, %s971
      %s974 = sphi 0, %s973
      %s988 = sphi 0, %s974
      %s992 = sphi 0, %s992
      %s994 = sphi 0, %s992
      %s995 = sphi 0, %s994
      %s1009 = sphi 0, %s995
      %s1013 = sphi 0, %s1013
      %s1015 = sphi 0, %s1013
      %s1016 = sphi 0, %s1015
      %s1030 = sphi 0, %s1016
      %s1034 = sphi 0, %s1034
      %s1036 = sphi 0, %s1034
      %s1037 = sphi 0, %s1036
      %s1051 = sphi 0, %s1037
      %s1055 = sphi 0, %s1055
      %s1057 = sphi 0, %s1055
      %s1058 = sphi 0, %s1057
      %s1072 = sphi 0, %s1058
      %s1076 = sphi 0, %s1076
      %s1078 = sphi 0, %s1076
      %s1079 = sphi 0, %s1078
      %s1093 = sphi 0, %s1079
      %s1097 = sphi 0, %s1097
      %s1099 = sphi 0, %s1097
      %s1100 = sphi 0, %s1099
      %s1114 = sphi 0, %s1100
      %s1118 = sphi 0, %s1118
      %s1120 = sphi 0, %s1118
      %s1121 = sphi 0, %s1120
      %s1135 = sphi 0, %s1121
      %s1139 = sphi 0, %s1139
      %s1141 = sphi 0, %s1139
      %s1142 = sphi 0, %s1141
      %s1156 = sphi 0, %s1142
      %s1160 = sphi 0, %s1160
      %s1162 = sphi 0, %s1160
      %s1163 = sphi 0, %s1162
      %s1177 = sphi 0, %s1163
      %s1181 = sphi 0, %s1181
      %s1183 = sphi 0, %s1181
      %s1184 = sphi 0, %s1183
      %s1198 = sphi 0, %s1184
      %s1204 = sphi 0, %s1206
      %s1207 = sphi 0, %s1204
      %s1208 = sphi 0, %s1207
      %s1224 = sphi 0, %s1208
      %s1230 = sphi 0, %s1232
      %s1233 = sphi 0, %s1230
      %s1234 = sphi 0, %s1233
      %s1250 = sphi 0, %s1234
    $region4: #{dino_slot_forward.1} parent=1 // loop_header_branch
      %121 = sbr.rel (%p119) target = $region8
    $region5: #{dino_slot_forward.1} parent=1 // loop_body
      %s123 = ssub.s32 %s118, 1
      %s124 = ssub.s32 %s118, 2
      %s125 = sadd.s32 %s118, 1
      %s126 = ssub.s32 %s118, %s125
      %p127 = scmp.eq.s32.totalorder %s126, 0
      %s129 = sadd.s32 %s128, 1
      %s130 = scalar_select %p127, %s128, %s129
      %p133 = pneg %p127
      %p134 = scmp.eq.s32.totalorder %s118, 1
      %p135 = por %p133, %p134
      %p136 = scmp.ne.s32.totalorder %s128, %s131
      %p137 = scmp.eq.s32.totalorder %s118, 0
      %p138 = por %p136, %p137
      %p139 = scmp.ne.s32.totalorder %s128, %s131
      %p140 = scmp.eq.s32.totalorder %s123, 1
      %p141 = por %p139, %p140
      %p142 = scmp.ne.s32.totalorder %s131, %s132
      %p143 = scmp.eq.s32.totalorder %s123, 0
      %p144 = por %p142, %p143
      %p145 = scmp.ne.s32.totalorder %s131, %s132
      %p146 = scmp.eq.s32.totalorder %s124, 1
      %p147 = por %p145, %p146
      %p149 = scmp.ne.s32.totalorder %s132, %s148
      %p150 = scmp.eq.s32.totalorder %s124, 0
      %p151 = por %p149, %p150
      %s153 = sadd.s32 %s152, 1
      %p156 = scmp.eq.s32.totalorder %s118, 1
      %p157 = scmp.ne.s32.totalorder %s152, %s154
      %p158 = scmp.eq.s32.totalorder %s118, 0
      %p159 = por %p157, %p158
      %p160 = scmp.ne.s32.totalorder %s152, %s154
      %p161 = scmp.eq.s32.totalorder %s123, 1
      %p162 = por %p160, %p161
      %p163 = scmp.ne.s32.totalorder %s154, %s155
      %p164 = scmp.eq.s32.totalorder %s123, 0
      %p165 = por %p163, %p164
      %p166 = scmp.ne.s32.totalorder %s154, %s155
      %p167 = scmp.eq.s32.totalorder %s124, 1
      %p168 = por %p166, %p167
      %p170 = scmp.ne.s32.totalorder %s155, %s169
      %p171 = scmp.eq.s32.totalorder %s124, 0
      %p172 = por %p170, %p171
      %s174 = sadd.s32 %s173, 1
      %p177 = scmp.eq.s32.totalorder %s118, 1
      %p178 = scmp.ne.s32.totalorder %s173, %s175
      %p179 = scmp.eq.s32.totalorder %s118, 0
      %p180 = por %p178, %p179
      %p181 = scmp.ne.s32.totalorder %s173, %s175
      %p182 = scmp.eq.s32.totalorder %s123, 1
      %p183 = por %p181, %p182
      %p184 = scmp.ne.s32.totalorder %s175, %s176
      %p185 = scmp.eq.s32.totalorder %s123, 0
      %p186 = por %p184, %p185
      %p187 = scmp.ne.s32.totalorder %s175, %s176
      %p188 = scmp.eq.s32.totalorder %s124, 1
      %p189 = por %p187, %p188
      %p191 = scmp.ne.s32.totalorder %s176, %s190
      %p192 = scmp.eq.s32.totalorder %s124, 0
      %p193 = por %p191, %p192
      %s195 = sadd.s32 %s194, 1
      %p198 = scmp.eq.s32.totalorder %s118, 1
      %p199 = scmp.ne.s32.totalorder %s194, %s196
      %p200 = scmp.eq.s32.totalorder %s118, 0
      %p201 = por %p199, %p200
      %p202 = scmp.ne.s32.totalorder %s194, %s196
      %p203 = scmp.eq.s32.totalorder %s123, 1
      %p204 = por %p202, %p203
      %p205 = scmp.ne.s32.totalorder %s196, %s197
      %p206 = scmp.eq.s32.totalorder %s123, 0
      %p207 = por %p205, %p206
      %p208 = scmp.ne.s32.totalorder %s196, %s197
      %p209 = scmp.eq.s32.totalorder %s124, 1
      %p210 = por %p208, %p209
      %p212 = scmp.ne.s32.totalorder %s197, %s211
      %p213 = scmp.eq.s32.totalorder %s124, 0
      %p214 = por %p212, %p213
      %s216 = sadd.s32 %s215, 1
      %p219 = scmp.eq.s32.totalorder %s118, 1
      %p220 = scmp.ne.s32.totalorder %s215, %s217
      %p221 = scmp.eq.s32.totalorder %s118, 0
      %p222 = por %p220, %p221
      %p223 = scmp.ne.s32.totalorder %s215, %s217
      %p224 = scmp.eq.s32.totalorder %s123, 1
      %p225 = por %p223, %p224
      %p226 = scmp.ne.s32.totalorder %s217, %s218
      %p227 = scmp.eq.s32.totalorder %s123, 0
      %p228 = por %p226, %p227
      %p229 = scmp.ne.s32.totalorder %s217, %s218
      %p230 = scmp.eq.s32.totalorder %s124, 1
      %p231 = por %p229, %p230
      %p233 = scmp.ne.s32.totalorder %s218, %s232
      %p234 = scmp.eq.s32.totalorder %s124, 0
      %p235 = por %p233, %p234
      %s237 = sadd.s32 %s236, 1
      %p240 = scmp.eq.s32.totalorder %s118, 1
      %p241 = scmp.ne.s32.totalorder %s236, %s238
      %p242 = scmp.eq.s32.totalorder %s118, 0
      %p243 = por %p241, %p242
      %p244 = scmp.ne.s32.totalorder %s236, %s238
      %p245 = scmp.eq.s32.totalorder %s123, 1
      %p246 = por %p244, %p245
      %p247 = scmp.ne.s32.totalorder %s238, %s239
      %p248 = scmp.eq.s32.totalorder %s123, 0
      %p249 = por %p247, %p248
      %p250 = scmp.ne.s32.totalorder %s238, %s239
      %p251 = scmp.eq.s32.totalorder %s124, 1
      %p252 = por %p250, %p251
      %p254 = scmp.ne.s32.totalorder %s239, %s253
      %p255 = scmp.eq.s32.totalorder %s124, 0
      %p256 = por %p254, %p255
      %s258 = sadd.s32 %s257, 1
      %p261 = scmp.eq.s32.totalorder %s118, 1
      %p262 = scmp.ne.s32.totalorder %s257, %s259
      %p263 = scmp.eq.s32.totalorder %s118, 0
      %p264 = por %p262, %p263
      %p265 = scmp.ne.s32.totalorder %s257, %s259
      %p266 = scmp.eq.s32.totalorder %s123, 1
      %p267 = por %p265, %p266
      %p268 = scmp.ne.s32.totalorder %s259, %s260
      %p269 = scmp.eq.s32.totalorder %s123, 0
      %p270 = por %p268, %p269
      %p271 = scmp.ne.s32.totalorder %s259, %s260
      %p272 = scmp.eq.s32.totalorder %s124, 1
      %p273 = por %p271, %p272
      %p275 = scmp.ne.s32.totalorder %s260, %s274
      %p276 = scmp.eq.s32.totalorder %s124, 0
      %p277 = por %p275, %p276
      %s279 = sadd.s32 %s278, 1
      %p282 = scmp.eq.s32.totalorder %s118, 1
      %p283 = scmp.ne.s32.totalorder %s278, %s280
      %p284 = scmp.eq.s32.totalorder %s118, 0
      %p285 = por %p283, %p284
      %p286 = scmp.ne.s32.totalorder %s278, %s280
      %p287 = scmp.eq.s32.totalorder %s123, 1
      %p288 = por %p286, %p287
      %p289 = scmp.ne.s32.totalorder %s280, %s281
      %p290 = scmp.eq.s32.totalorder %s123, 0
      %p291 = por %p289, %p290
      %p292 = scmp.ne.s32.totalorder %s280, %s281
      %p293 = scmp.eq.s32.totalorder %s124, 1
      %p294 = por %p292, %p293
      %p296 = scmp.ne.s32.totalorder %s281, %s295
      %p297 = scmp.eq.s32.totalorder %s124, 0
      %p298 = por %p296, %p297
      %s300 = sadd.s32 %s299, 1
      %p303 = scmp.eq.s32.totalorder %s118, 1
      %p304 = scmp.ne.s32.totalorder %s299, %s301
      %p305 = scmp.eq.s32.totalorder %s118, 0
      %p306 = por %p304, %p305
      %p307 = scmp.ne.s32.totalorder %s299, %s301
      %p308 = scmp.eq.s32.totalorder %s123, 1
      %p309 = por %p307, %p308
      %p310 = scmp.ne.s32.totalorder %s301, %s302
      %p311 = scmp.eq.s32.totalorder %s123, 0
      %p312 = por %p310, %p311
      %p313 = scmp.ne.s32.totalorder %s301, %s302
      %p314 = scmp.eq.s32.totalorder %s124, 1
      %p315 = por %p313, %p314
      %p317 = scmp.ne.s32.totalorder %s302, %s316
      %p318 = scmp.eq.s32.totalorder %s124, 0
      %p319 = por %p317, %p318
      %s321 = sadd.s32 %s320, 1
      %p324 = scmp.eq.s32.totalorder %s118, 1
      %p325 = scmp.ne.s32.totalorder %s320, %s322
      %p326 = scmp.eq.s32.totalorder %s118, 0
      %p327 = por %p325, %p326
      %p328 = scmp.ne.s32.totalorder %s320, %s322
      %p329 = scmp.eq.s32.totalorder %s123, 1
      %p330 = por %p328, %p329
      %p331 = scmp.ne.s32.totalorder %s322, %s323
      %p332 = scmp.eq.s32.totalorder %s123, 0
      %p333 = por %p331, %p332
      %p334 = scmp.ne.s32.totalorder %s322, %s323
      %p335 = scmp.eq.s32.totalorder %s124, 1
      %p336 = por %p334, %p335
      %p338 = scmp.ne.s32.totalorder %s323, %s337
      %p339 = scmp.eq.s32.totalorder %s124, 0
      %p340 = por %p338, %p339
      %s342 = sadd.s32 %s341, 1
      %p345 = scmp.eq.s32.totalorder %s118, 1
      %p346 = scmp.ne.s32.totalorder %s341, %s343
      %p347 = scmp.eq.s32.totalorder %s118, 0
      %p348 = por %p346, %p347
      %p349 = scmp.ne.s32.totalorder %s341, %s343
      %p350 = scmp.eq.s32.totalorder %s123, 1
      %p351 = por %p349, %p350
      %p352 = scmp.ne.s32.totalorder %s343, %s344
      %p353 = scmp.eq.s32.totalorder %s123, 0
      %p354 = por %p352, %p353
      %p355 = scmp.ne.s32.totalorder %s343, %s344
      %p356 = scmp.eq.s32.totalorder %s124, 1
      %p357 = por %p355, %p356
      %p359 = scmp.ne.s32.totalorder %s344, %s358
      %p360 = scmp.eq.s32.totalorder %s124, 0
      %p361 = por %p359, %p360
      %s363 = sadd.s32 %s362, 1
      %p366 = scmp.eq.s32.totalorder %s118, 1
      %p367 = scmp.ne.s32.totalorder %s362, %s364
      %p368 = scmp.eq.s32.totalorder %s118, 0
      %p369 = por %p367, %p368
      %p370 = scmp.ne.s32.totalorder %s362, %s364
      %p371 = scmp.eq.s32.totalorder %s123, 1
      %p372 = por %p370, %p371
      %p373 = scmp.ne.s32.totalorder %s364, %s365
      %p374 = scmp.eq.s32.totalorder %s123, 0
      %p375 = por %p373, %p374
      %p376 = scmp.ne.s32.totalorder %s364, %s365
      %p377 = scmp.eq.s32.totalorder %s124, 1
      %p378 = por %p376, %p377
      %p380 = scmp.ne.s32.totalorder %s365, %s379
      %p381 = scmp.eq.s32.totalorder %s124, 0
      %p382 = por %p380, %p381
      %s384 = sadd.s32 %s383, 1
      %p387 = scmp.eq.s32.totalorder %s118, 1
      %p388 = scmp.ne.s32.totalorder %s383, %s385
      %p389 = scmp.eq.s32.totalorder %s118, 0
      %p390 = por %p388, %p389
      %p391 = scmp.ne.s32.totalorder %s383, %s385
      %p392 = scmp.eq.s32.totalorder %s123, 1
      %p393 = por %p391, %p392
      %p394 = scmp.ne.s32.totalorder %s385, %s386
      %p395 = scmp.eq.s32.totalorder %s123, 0
      %p396 = por %p394, %p395
      %p397 = scmp.ne.s32.totalorder %s385, %s386
      %p398 = scmp.eq.s32.totalorder %s124, 1
      %p399 = por %p397, %p398
      %p401 = scmp.ne.s32.totalorder %s386, %s400
      %p402 = scmp.eq.s32.totalorder %s124, 0
      %p403 = por %p401, %p402
      %s405 = sadd.s32 %s404, 1
      %p408 = scmp.eq.s32.totalorder %s118, 1
      %p409 = scmp.ne.s32.totalorder %s404, %s406
      %p410 = scmp.eq.s32.totalorder %s118, 0
      %p411 = por %p409, %p410
      %p412 = scmp.ne.s32.totalorder %s404, %s406
      %p413 = scmp.eq.s32.totalorder %s123, 1
      %p414 = por %p412, %p413
      %p415 = scmp.ne.s32.totalorder %s406, %s407
      %p416 = scmp.eq.s32.totalorder %s123, 0
      %p417 = por %p415, %p416
      %p418 = scmp.ne.s32.totalorder %s406, %s407
      %p419 = scmp.eq.s32.totalorder %s124, 1
      %p420 = por %p418, %p419
      %p422 = scmp.ne.s32.totalorder %s407, %s421
      %p423 = scmp.eq.s32.totalorder %s124, 0
      %p424 = por %p422, %p423
      %s426 = sadd.s32 %s425, 1
      %p429 = scmp.eq.s32.totalorder %s118, 1
      %p430 = scmp.ne.s32.totalorder %s425, %s427
      %p431 = scmp.eq.s32.totalorder %s118, 0
      %p432 = por %p430, %p431
      %p433 = scmp.ne.s32.totalorder %s425, %s427
      %p434 = scmp.eq.s32.totalorder %s123, 1
      %p435 = por %p433, %p434
      %p436 = scmp.ne.s32.totalorder %s427, %s428
      %p437 = scmp.eq.s32.totalorder %s123, 0
      %p438 = por %p436, %p437
      %p439 = scmp.ne.s32.totalorder %s427, %s428
      %p440 = scmp.eq.s32.totalorder %s124, 1
      %p441 = por %p439, %p440
      %p443 = scmp.ne.s32.totalorder %s428, %s442
      %p444 = scmp.eq.s32.totalorder %s124, 0
      %p445 = por %p443, %p444
      %s447 = sadd.s32 %s446, 1
      %p450 = scmp.eq.s32.totalorder %s118, 1
      %p451 = scmp.ne.s32.totalorder %s446, %s448
      %p452 = scmp.eq.s32.totalorder %s118, 0
      %p453 = por %p451, %p452
      %p454 = scmp.ne.s32.totalorder %s446, %s448
      %p455 = scmp.eq.s32.totalorder %s123, 1
      %p456 = por %p454, %p455
      %p457 = scmp.ne.s32.totalorder %s448, %s449
      %p458 = scmp.eq.s32.totalorder %s123, 0
      %p459 = por %p457, %p458
      %p460 = scmp.ne.s32.totalorder %s448, %s449
      %p461 = scmp.eq.s32.totalorder %s124, 1
      %p462 = por %p460, %p461
      %p464 = scmp.ne.s32.totalorder %s449, %s463
      %p465 = scmp.eq.s32.totalorder %s124, 0
      %p466 = por %p464, %p465
      %s468 = sadd.s32 %s467, 1
      %p471 = scmp.eq.s32.totalorder %s118, 1
      %p472 = scmp.ne.s32.totalorder %s467, %s469
      %p473 = scmp.eq.s32.totalorder %s118, 0
      %p474 = por %p472, %p473
      %p475 = scmp.ne.s32.totalorder %s467, %s469
      %p476 = scmp.eq.s32.totalorder %s123, 1
      %p477 = por %p475, %p476
      %p478 = scmp.ne.s32.totalorder %s469, %s470
      %p479 = scmp.eq.s32.totalorder %s123, 0
      %p480 = por %p478, %p479
      %p481 = scmp.ne.s32.totalorder %s469, %s470
      %p482 = scmp.eq.s32.totalorder %s124, 1
      %p483 = por %p481, %p482
      %p485 = scmp.ne.s32.totalorder %s470, %s484
      %p486 = scmp.eq.s32.totalorder %s124, 0
      %p487 = por %p485, %p486
      %s489 = sadd.s32 %s488, 1
      %p492 = scmp.eq.s32.totalorder %s118, 1
      %p493 = scmp.ne.s32.totalorder %s488, %s490
      %p494 = scmp.eq.s32.totalorder %s118, 0
      %p495 = por %p493, %p494
      %p496 = scmp.ne.s32.totalorder %s488, %s490
      %p497 = scmp.eq.s32.totalorder %s123, 1
      %p498 = por %p496, %p497
      %p499 = scmp.ne.s32.totalorder %s490, %s491
      %p500 = scmp.eq.s32.totalorder %s123, 0
      %p501 = por %p499, %p500
      %p502 = scmp.ne.s32.totalorder %s490, %s491
      %p503 = scmp.eq.s32.totalorder %s124, 1
      %p504 = por %p502, %p503
      %p506 = scmp.ne.s32.totalorder %s491, %s505
      %p507 = scmp.eq.s32.totalorder %s124, 0
      %p508 = por %p506, %p507
      %s510 = sadd.s32 %s509, 1
      %p513 = scmp.eq.s32.totalorder %s118, 1
      %p514 = scmp.ne.s32.totalorder %s509, %s511
      %p515 = scmp.eq.s32.totalorder %s118, 0
      %p516 = por %p514, %p515
      %p517 = scmp.ne.s32.totalorder %s509, %s511
      %p518 = scmp.eq.s32.totalorder %s123, 1
      %p519 = por %p517, %p518
      %p520 = scmp.ne.s32.totalorder %s511, %s512
      %p521 = scmp.eq.s32.totalorder %s123, 0
      %p522 = por %p520, %p521
      %p523 = scmp.ne.s32.totalorder %s511, %s512
      %p524 = scmp.eq.s32.totalorder %s124, 1
      %p525 = por %p523, %p524
      %p527 = scmp.ne.s32.totalorder %s512, %s526
      %p528 = scmp.eq.s32.totalorder %s124, 0
      %p529 = por %p527, %p528
      %s531 = sadd.s32 %s530, 1
      %p534 = scmp.eq.s32.totalorder %s118, 1
      %p535 = scmp.ne.s32.totalorder %s530, %s532
      %p536 = scmp.eq.s32.totalorder %s118, 0
      %p537 = por %p535, %p536
      %p538 = scmp.ne.s32.totalorder %s530, %s532
      %p539 = scmp.eq.s32.totalorder %s123, 1
      %p540 = por %p538, %p539
      %p541 = scmp.ne.s32.totalorder %s532, %s533
      %p542 = scmp.eq.s32.totalorder %s123, 0
      %p543 = por %p541, %p542
      %p544 = scmp.ne.s32.totalorder %s532, %s533
      %p545 = scmp.eq.s32.totalorder %s124, 1
      %p546 = por %p544, %p545
      %p548 = scmp.ne.s32.totalorder %s533, %s547
      %p549 = scmp.eq.s32.totalorder %s124, 0
      %p550 = por %p548, %p549
      %s552 = sadd.s32 %s551, 1
      %p555 = scmp.eq.s32.totalorder %s118, 1
      %p556 = scmp.ne.s32.totalorder %s551, %s553
      %p557 = scmp.eq.s32.totalorder %s118, 0
      %p558 = por %p556, %p557
      %p559 = scmp.ne.s32.totalorder %s551, %s553
      %p560 = scmp.eq.s32.totalorder %s123, 1
      %p561 = por %p559, %p560
      %p562 = scmp.ne.s32.totalorder %s553, %s554
      %p563 = scmp.eq.s32.totalorder %s123, 0
      %p564 = por %p562, %p563
      %p565 = scmp.ne.s32.totalorder %s553, %s554
      %p566 = scmp.eq.s32.totalorder %s124, 1
      %p567 = por %p565, %p566
      %p569 = scmp.ne.s32.totalorder %s554, %s568
      %p570 = scmp.eq.s32.totalorder %s124, 0
      %p571 = por %p569, %p570
      %s573 = sadd.s32 %s572, 1
      %p576 = scmp.eq.s32.totalorder %s118, 1
      %p577 = scmp.ne.s32.totalorder %s572, %s574
      %p578 = scmp.eq.s32.totalorder %s118, 0
      %p579 = por %p577, %p578
      %p580 = scmp.ne.s32.totalorder %s572, %s574
      %p581 = scmp.eq.s32.totalorder %s123, 1
      %p582 = por %p580, %p581
      %p583 = scmp.ne.s32.totalorder %s574, %s575
      %p584 = scmp.eq.s32.totalorder %s123, 0
      %p585 = por %p583, %p584
      %p586 = scmp.ne.s32.totalorder %s574, %s575
      %p587 = scmp.eq.s32.totalorder %s124, 1
      %p588 = por %p586, %p587
      %p590 = scmp.ne.s32.totalorder %s575, %s589
      %p591 = scmp.eq.s32.totalorder %s124, 0
      %p592 = por %p590, %p591
      %s594 = sadd.s32 %s593, 1
      %p597 = scmp.eq.s32.totalorder %s118, 1
      %p598 = scmp.ne.s32.totalorder %s593, %s595
      %p599 = scmp.eq.s32.totalorder %s118, 0
      %p600 = por %p598, %p599
      %p601 = scmp.ne.s32.totalorder %s593, %s595
      %p602 = scmp.eq.s32.totalorder %s123, 1
      %p603 = por %p601, %p602
      %p604 = scmp.ne.s32.totalorder %s595, %s596
      %p605 = scmp.eq.s32.totalorder %s123, 0
      %p606 = por %p604, %p605
      %p607 = scmp.ne.s32.totalorder %s595, %s596
      %p608 = scmp.eq.s32.totalorder %s124, 1
      %p609 = por %p607, %p608
      %p611 = scmp.ne.s32.totalorder %s596, %s610
      %p612 = scmp.eq.s32.totalorder %s124, 0
      %p613 = por %p611, %p612
      %s615 = sadd.s32 %s614, 1
      %p618 = scmp.eq.s32.totalorder %s118, 1
      %p619 = scmp.ne.s32.totalorder %s614, %s616
      %p620 = scmp.eq.s32.totalorder %s118, 0
      %p621 = por %p619, %p620
      %p622 = scmp.ne.s32.totalorder %s614, %s616
      %p623 = scmp.eq.s32.totalorder %s123, 1
      %p624 = por %p622, %p623
      %p625 = scmp.ne.s32.totalorder %s616, %s617
      %p626 = scmp.eq.s32.totalorder %s123, 0
      %p627 = por %p625, %p626
      %p628 = scmp.ne.s32.totalorder %s616, %s617
      %p629 = scmp.eq.s32.totalorder %s124, 1
      %p630 = por %p628, %p629
      %p632 = scmp.ne.s32.totalorder %s617, %s631
      %p633 = scmp.eq.s32.totalorder %s124, 0
      %p634 = por %p632, %p633
      %s636 = sadd.s32 %s635, 1
      %p639 = scmp.eq.s32.totalorder %s118, 1
      %p640 = scmp.ne.s32.totalorder %s635, %s637
      %p641 = scmp.eq.s32.totalorder %s118, 0
      %p642 = por %p640, %p641
      %p643 = scmp.ne.s32.totalorder %s635, %s637
      %p644 = scmp.eq.s32.totalorder %s123, 1
      %p645 = por %p643, %p644
      %p646 = scmp.ne.s32.totalorder %s637, %s638
      %p647 = scmp.eq.s32.totalorder %s123, 0
      %p648 = por %p646, %p647
      %p649 = scmp.ne.s32.totalorder %s637, %s638
      %p650 = scmp.eq.s32.totalorder %s124, 1
      %p651 = por %p649, %p650
      %p653 = scmp.ne.s32.totalorder %s638, %s652
      %p654 = scmp.eq.s32.totalorder %s124, 0
      %p655 = por %p653, %p654
      %s657 = sadd.s32 %s656, 1
      %p660 = scmp.eq.s32.totalorder %s118, 1
      %p661 = scmp.ne.s32.totalorder %s656, %s658
      %p662 = scmp.eq.s32.totalorder %s118, 0
      %p663 = por %p661, %p662
      %p664 = scmp.ne.s32.totalorder %s656, %s658
      %p665 = scmp.eq.s32.totalorder %s123, 1
      %p666 = por %p664, %p665
      %p667 = scmp.ne.s32.totalorder %s658, %s659
      %p668 = scmp.eq.s32.totalorder %s123, 0
      %p669 = por %p667, %p668
      %p670 = scmp.ne.s32.totalorder %s658, %s659
      %p671 = scmp.eq.s32.totalorder %s124, 1
      %p672 = por %p670, %p671
      %p674 = scmp.ne.s32.totalorder %s659, %s673
      %p675 = scmp.eq.s32.totalorder %s124, 0
      %p676 = por %p674, %p675
      %s678 = sadd.s32 %s677, 1
      %p681 = scmp.eq.s32.totalorder %s118, 1
      %p682 = scmp.ne.s32.totalorder %s677, %s679
      %p683 = scmp.eq.s32.totalorder %s118, 0
      %p684 = por %p682, %p683
      %p685 = scmp.ne.s32.totalorder %s677, %s679
      %p686 = scmp.eq.s32.totalorder %s123, 1
      %p687 = por %p685, %p686
      %p688 = scmp.ne.s32.totalorder %s679, %s680
      %p689 = scmp.eq.s32.totalorder %s123, 0
      %p690 = por %p688, %p689
      %p691 = scmp.ne.s32.totalorder %s679, %s680
      %p692 = scmp.eq.s32.totalorder %s124, 1
      %p693 = por %p691, %p692
      %p695 = scmp.ne.s32.totalorder %s680, %s694
      %p696 = scmp.eq.s32.totalorder %s124, 0
      %p697 = por %p695, %p696
      %s699 = sadd.s32 %s698, 1
      %p702 = scmp.eq.s32.totalorder %s118, 1
      %p703 = scmp.ne.s32.totalorder %s698, %s700
      %p704 = scmp.eq.s32.totalorder %s118, 0
      %p705 = por %p703, %p704
      %p706 = scmp.ne.s32.totalorder %s698, %s700
      %p707 = scmp.eq.s32.totalorder %s123, 1
      %p708 = por %p706, %p707
      %p709 = scmp.ne.s32.totalorder %s700, %s701
      %p710 = scmp.eq.s32.totalorder %s123, 0
      %p711 = por %p709, %p710
      %p712 = scmp.ne.s32.totalorder %s700, %s701
      %p713 = scmp.eq.s32.totalorder %s124, 1
      %p714 = por %p712, %p713
      %p716 = scmp.ne.s32.totalorder %s701, %s715
      %p717 = scmp.eq.s32.totalorder %s124, 0
      %p718 = por %p716, %p717
      %s720 = sadd.s32 %s719, 1
      %p723 = scmp.eq.s32.totalorder %s118, 1
      %p724 = scmp.ne.s32.totalorder %s719, %s721
      %p725 = scmp.eq.s32.totalorder %s118, 0
      %p726 = por %p724, %p725
      %p727 = scmp.ne.s32.totalorder %s719, %s721
      %p728 = scmp.eq.s32.totalorder %s123, 1
      %p729 = por %p727, %p728
      %p730 = scmp.ne.s32.totalorder %s721, %s722
      %p731 = scmp.eq.s32.totalorder %s123, 0
      %p732 = por %p730, %p731
      %p733 = scmp.ne.s32.totalorder %s721, %s722
      %p734 = scmp.eq.s32.totalorder %s124, 1
      %p735 = por %p733, %p734
      %p737 = scmp.ne.s32.totalorder %s722, %s736
      %p738 = scmp.eq.s32.totalorder %s124, 0
      %p739 = por %p737, %p738
      %s741 = sadd.s32 %s740, 1
      %p744 = scmp.eq.s32.totalorder %s118, 1
      %p745 = scmp.ne.s32.totalorder %s740, %s742
      %p746 = scmp.eq.s32.totalorder %s118, 0
      %p747 = por %p745, %p746
      %p748 = scmp.ne.s32.totalorder %s740, %s742
      %p749 = scmp.eq.s32.totalorder %s123, 1
      %p750 = por %p748, %p749
      %p751 = scmp.ne.s32.totalorder %s742, %s743
      %p752 = scmp.eq.s32.totalorder %s123, 0
      %p753 = por %p751, %p752
      %p754 = scmp.ne.s32.totalorder %s742, %s743
      %p755 = scmp.eq.s32.totalorder %s124, 1
      %p756 = por %p754, %p755
      %p758 = scmp.ne.s32.totalorder %s743, %s757
      %p759 = scmp.eq.s32.totalorder %s124, 0
      %p760 = por %p758, %p759
      %s762 = sadd.s32 %s761, 1
      %p765 = scmp.eq.s32.totalorder %s118, 1
      %p766 = scmp.ne.s32.totalorder %s761, %s763
      %p767 = scmp.eq.s32.totalorder %s118, 0
      %p768 = por %p766, %p767
      %p769 = scmp.ne.s32.totalorder %s761, %s763
      %p770 = scmp.eq.s32.totalorder %s123, 1
      %p771 = por %p769, %p770
      %p772 = scmp.ne.s32.totalorder %s763, %s764
      %p773 = scmp.eq.s32.totalorder %s123, 0
      %p774 = por %p772, %p773
      %p775 = scmp.ne.s32.totalorder %s763, %s764
      %p776 = scmp.eq.s32.totalorder %s124, 1
      %p777 = por %p775, %p776
      %p779 = scmp.ne.s32.totalorder %s764, %s778
      %p780 = scmp.eq.s32.totalorder %s124, 0
      %p781 = por %p779, %p780
      %s783 = sadd.s32 %s782, 1
      %p786 = scmp.eq.s32.totalorder %s118, 1
      %p787 = scmp.ne.s32.totalorder %s782, %s784
      %p788 = scmp.eq.s32.totalorder %s118, 0
      %p789 = por %p787, %p788
      %p790 = scmp.ne.s32.totalorder %s782, %s784
      %p791 = scmp.eq.s32.totalorder %s123, 1
      %p792 = por %p790, %p791
      %p793 = scmp.ne.s32.totalorder %s784, %s785
      %p794 = scmp.eq.s32.totalorder %s123, 0
      %p795 = por %p793, %p794
      %p796 = scmp.ne.s32.totalorder %s784, %s785
      %p797 = scmp.eq.s32.totalorder %s124, 1
      %p798 = por %p796, %p797
      %p800 = scmp.ne.s32.totalorder %s785, %s799
      %p801 = scmp.eq.s32.totalorder %s124, 0
      %p802 = por %p800, %p801
      %s804 = sadd.s32 %s803, 1
      %p807 = scmp.eq.s32.totalorder %s118, 1
      %p808 = scmp.ne.s32.totalorder %s803, %s805
      %p809 = scmp.eq.s32.totalorder %s118, 0
      %p810 = por %p808, %p809
      %p811 = scmp.ne.s32.totalorder %s803, %s805
      %p812 = scmp.eq.s32.totalorder %s123, 1
      %p813 = por %p811, %p812
      %p814 = scmp.ne.s32.totalorder %s805, %s806
      %p815 = scmp.eq.s32.totalorder %s123, 0
      %p816 = por %p814, %p815
      %p817 = scmp.ne.s32.totalorder %s805, %s806
      %p818 = scmp.eq.s32.totalorder %s124, 1
      %p819 = por %p817, %p818
      %p821 = scmp.ne.s32.totalorder %s806, %s820
      %p822 = scmp.eq.s32.totalorder %s124, 0
      %p823 = por %p821, %p822
      %s825 = sadd.s32 %s824, 1
      %p828 = scmp.eq.s32.totalorder %s118, 1
      %p829 = scmp.ne.s32.totalorder %s824, %s826
      %p830 = scmp.eq.s32.totalorder %s118, 0
      %p831 = por %p829, %p830
      %p832 = scmp.ne.s32.totalorder %s824, %s826
      %p833 = scmp.eq.s32.totalorder %s123, 1
      %p834 = por %p832, %p833
      %p835 = scmp.ne.s32.totalorder %s826, %s827
      %p836 = scmp.eq.s32.totalorder %s123, 0
      %p837 = por %p835, %p836
      %p838 = scmp.ne.s32.totalorder %s826, %s827
      %p839 = scmp.eq.s32.totalorder %s124, 1
      %p840 = por %p838, %p839
      %p842 = scmp.ne.s32.totalorder %s827, %s841
      %p843 = scmp.eq.s32.totalorder %s124, 0
      %p844 = por %p842, %p843
      %s846 = sadd.s32 %s845, 1
      %p849 = scmp.eq.s32.totalorder %s118, 1
      %p850 = scmp.ne.s32.totalorder %s845, %s847
      %p851 = scmp.eq.s32.totalorder %s118, 0
      %p852 = por %p850, %p851
      %p853 = scmp.ne.s32.totalorder %s845, %s847
      %p854 = scmp.eq.s32.totalorder %s123, 1
      %p855 = por %p853, %p854
      %p856 = scmp.ne.s32.totalorder %s847, %s848
      %p857 = scmp.eq.s32.totalorder %s123, 0
      %p858 = por %p856, %p857
      %p859 = scmp.ne.s32.totalorder %s847, %s848
      %p860 = scmp.eq.s32.totalorder %s124, 1
      %p861 = por %p859, %p860
      %p863 = scmp.ne.s32.totalorder %s848, %s862
      %p864 = scmp.eq.s32.totalorder %s124, 0
      %p865 = por %p863, %p864
      %s867 = sadd.s32 %s866, 1
      %p870 = scmp.eq.s32.totalorder %s118, 1
      %p871 = scmp.ne.s32.totalorder %s866, %s868
      %p872 = scmp.eq.s32.totalorder %s118, 0
      %p873 = por %p871, %p872
      %p874 = scmp.ne.s32.totalorder %s866, %s868
      %p875 = scmp.eq.s32.totalorder %s123, 1
      %p876 = por %p874, %p875
      %p877 = scmp.ne.s32.totalorder %s868, %s869
      %p878 = scmp.eq.s32.totalorder %s123, 0
      %p879 = por %p877, %p878
      %p880 = scmp.ne.s32.totalorder %s868, %s869
      %p881 = scmp.eq.s32.totalorder %s124, 1
      %p882 = por %p880, %p881
      %p884 = scmp.ne.s32.totalorder %s869, %s883
      %p885 = scmp.eq.s32.totalorder %s124, 0
      %p886 = por %p884, %p885
      %s888 = sadd.s32 %s887, 1
      %p891 = scmp.eq.s32.totalorder %s118, 1
      %p892 = scmp.ne.s32.totalorder %s887, %s889
      %p893 = scmp.eq.s32.totalorder %s118, 0
      %p894 = por %p892, %p893
      %p895 = scmp.ne.s32.totalorder %s887, %s889
      %p896 = scmp.eq.s32.totalorder %s123, 1
      %p897 = por %p895, %p896
      %p898 = scmp.ne.s32.totalorder %s889, %s890
      %p899 = scmp.eq.s32.totalorder %s123, 0
      %p900 = por %p898, %p899
      %p901 = scmp.ne.s32.totalorder %s889, %s890
      %p902 = scmp.eq.s32.totalorder %s124, 1
      %p903 = por %p901, %p902
      %p905 = scmp.ne.s32.totalorder %s890, %s904
      %p906 = scmp.eq.s32.totalorder %s124, 0
      %p907 = por %p905, %p906
      %s909 = sadd.s32 %s908, 1
      %p912 = scmp.eq.s32.totalorder %s118, 1
      %p913 = scmp.ne.s32.totalorder %s908, %s910
      %p914 = scmp.eq.s32.totalorder %s118, 0
      %p915 = por %p913, %p914
      %p916 = scmp.ne.s32.totalorder %s908, %s910
      %p917 = scmp.eq.s32.totalorder %s123, 1
      %p918 = por %p916, %p917
      %p919 = scmp.ne.s32.totalorder %s910, %s911
      %p920 = scmp.eq.s32.totalorder %s123, 0
      %p921 = por %p919, %p920
      %p922 = scmp.ne.s32.totalorder %s910, %s911
      %p923 = scmp.eq.s32.totalorder %s124, 1
      %p924 = por %p922, %p923
      %p926 = scmp.ne.s32.totalorder %s911, %s925
      %p927 = scmp.eq.s32.totalorder %s124, 0
      %p928 = por %p926, %p927
      %s930 = sadd.s32 %s929, 1
      %p933 = scmp.eq.s32.totalorder %s118, 1
      %p934 = scmp.ne.s32.totalorder %s929, %s931
      %p935 = scmp.eq.s32.totalorder %s118, 0
      %p936 = por %p934, %p935
      %p937 = scmp.ne.s32.totalorder %s929, %s931
      %p938 = scmp.eq.s32.totalorder %s123, 1
      %p939 = por %p937, %p938
      %p940 = scmp.ne.s32.totalorder %s931, %s932
      %p941 = scmp.eq.s32.totalorder %s123, 0
      %p942 = por %p940, %p941
      %p943 = scmp.ne.s32.totalorder %s931, %s932
      %p944 = scmp.eq.s32.totalorder %s124, 1
      %p945 = por %p943, %p944
      %p947 = scmp.ne.s32.totalorder %s932, %s946
      %p948 = scmp.eq.s32.totalorder %s124, 0
      %p949 = por %p947, %p948
      %s951 = sadd.s32 %s950, 1
      %p954 = scmp.eq.s32.totalorder %s118, 1
      %p955 = scmp.ne.s32.totalorder %s950, %s952
      %p956 = scmp.eq.s32.totalorder %s118, 0
      %p957 = por %p955, %p956
      %p958 = scmp.ne.s32.totalorder %s950, %s952
      %p959 = scmp.eq.s32.totalorder %s123, 1
      %p960 = por %p958, %p959
      %p961 = scmp.ne.s32.totalorder %s952, %s953
      %p962 = scmp.eq.s32.totalorder %s123, 0
      %p963 = por %p961, %p962
      %p964 = scmp.ne.s32.totalorder %s952, %s953
      %p965 = scmp.eq.s32.totalorder %s124, 1
      %p966 = por %p964, %p965
      %p968 = scmp.ne.s32.totalorder %s953, %s967
      %p969 = scmp.eq.s32.totalorder %s124, 0
      %p970 = por %p968, %p969
      %s972 = sadd.s32 %s971, 1
      %p975 = scmp.eq.s32.totalorder %s118, 1
      %p976 = scmp.ne.s32.totalorder %s971, %s973
      %p977 = scmp.eq.s32.totalorder %s118, 0
      %p978 = por %p976, %p977
      %p979 = scmp.ne.s32.totalorder %s971, %s973
      %p980 = scmp.eq.s32.totalorder %s123, 1
      %p981 = por %p979, %p980
      %p982 = scmp.ne.s32.totalorder %s973, %s974
      %p983 = scmp.eq.s32.totalorder %s123, 0
      %p984 = por %p982, %p983
      %p985 = scmp.ne.s32.totalorder %s973, %s974
      %p986 = scmp.eq.s32.totalorder %s124, 1
      %p987 = por %p985, %p986
      %p989 = scmp.ne.s32.totalorder %s974, %s988
      %p990 = scmp.eq.s32.totalorder %s124, 0
      %p991 = por %p989, %p990
      %s993 = sadd.s32 %s992, 1
      %p996 = scmp.eq.s32.totalorder %s118, 1
      %p997 = scmp.ne.s32.totalorder %s992, %s994
      %p998 = scmp.eq.s32.totalorder %s118, 0
      %p999 = por %p997, %p998
      %p1000 = scmp.ne.s32.totalorder %s992, %s994
      %p1001 = scmp.eq.s32.totalorder %s123, 1
      %p1002 = por %p1000, %p1001
      %p1003 = scmp.ne.s32.totalorder %s994, %s995
      %p1004 = scmp.eq.s32.totalorder %s123, 0
      %p1005 = por %p1003, %p1004
      %p1006 = scmp.ne.s32.totalorder %s994, %s995
      %p1007 = scmp.eq.s32.totalorder %s124, 1
      %p1008 = por %p1006, %p1007
      %p1010 = scmp.ne.s32.totalorder %s995, %s1009
      %p1011 = scmp.eq.s32.totalorder %s124, 0
      %p1012 = por %p1010, %p1011
      %s1014 = sadd.s32 %s1013, 1
      %p1017 = scmp.eq.s32.totalorder %s118, 1
      %p1018 = scmp.ne.s32.totalorder %s1013, %s1015
      %p1019 = scmp.eq.s32.totalorder %s118, 0
      %p1020 = por %p1018, %p1019
      %p1021 = scmp.ne.s32.totalorder %s1013, %s1015
      %p1022 = scmp.eq.s32.totalorder %s123, 1
      %p1023 = por %p1021, %p1022
      %p1024 = scmp.ne.s32.totalorder %s1015, %s1016
      %p1025 = scmp.eq.s32.totalorder %s123, 0
      %p1026 = por %p1024, %p1025
      %p1027 = scmp.ne.s32.totalorder %s1015, %s1016
      %p1028 = scmp.eq.s32.totalorder %s124, 1
      %p1029 = por %p1027, %p1028
      %p1031 = scmp.ne.s32.totalorder %s1016, %s1030
      %p1032 = scmp.eq.s32.totalorder %s124, 0
      %p1033 = por %p1031, %p1032
      %s1035 = sadd.s32 %s1034, 1
      %p1038 = scmp.eq.s32.totalorder %s118, 1
      %p1039 = scmp.ne.s32.totalorder %s1034, %s1036
      %p1040 = scmp.eq.s32.totalorder %s118, 0
      %p1041 = por %p1039, %p1040
      %p1042 = scmp.ne.s32.totalorder %s1034, %s1036
      %p1043 = scmp.eq.s32.totalorder %s123, 1
      %p1044 = por %p1042, %p1043
      %p1045 = scmp.ne.s32.totalorder %s1036, %s1037
      %p1046 = scmp.eq.s32.totalorder %s123, 0
      %p1047 = por %p1045, %p1046
      %p1048 = scmp.ne.s32.totalorder %s1036, %s1037
      %p1049 = scmp.eq.s32.totalorder %s124, 1
      %p1050 = por %p1048, %p1049
      %p1052 = scmp.ne.s32.totalorder %s1037, %s1051
      %p1053 = scmp.eq.s32.totalorder %s124, 0
      %p1054 = por %p1052, %p1053
      %s1056 = sadd.s32 %s1055, 1
      %p1059 = scmp.eq.s32.totalorder %s118, 1
      %p1060 = scmp.ne.s32.totalorder %s1055, %s1057
      %p1061 = scmp.eq.s32.totalorder %s118, 0
      %p1062 = por %p1060, %p1061
      %p1063 = scmp.ne.s32.totalorder %s1055, %s1057
      %p1064 = scmp.eq.s32.totalorder %s123, 1
      %p1065 = por %p1063, %p1064
      %p1066 = scmp.ne.s32.totalorder %s1057, %s1058
      %p1067 = scmp.eq.s32.totalorder %s123, 0
      %p1068 = por %p1066, %p1067
      %p1069 = scmp.ne.s32.totalorder %s1057, %s1058
      %p1070 = scmp.eq.s32.totalorder %s124, 1
      %p1071 = por %p1069, %p1070
      %p1073 = scmp.ne.s32.totalorder %s1058, %s1072
      %p1074 = scmp.eq.s32.totalorder %s124, 0
      %p1075 = por %p1073, %p1074
      %s1077 = sadd.s32 %s1076, 1
      %p1080 = scmp.eq.s32.totalorder %s118, 1
      %p1081 = scmp.ne.s32.totalorder %s1076, %s1078
      %p1082 = scmp.eq.s32.totalorder %s118, 0
      %p1083 = por %p1081, %p1082
      %p1084 = scmp.ne.s32.totalorder %s1076, %s1078
      %p1085 = scmp.eq.s32.totalorder %s123, 1
      %p1086 = por %p1084, %p1085
      %p1087 = scmp.ne.s32.totalorder %s1078, %s1079
      %p1088 = scmp.eq.s32.totalorder %s123, 0
      %p1089 = por %p1087, %p1088
      %p1090 = scmp.ne.s32.totalorder %s1078, %s1079
      %p1091 = scmp.eq.s32.totalorder %s124, 1
      %p1092 = por %p1090, %p1091
      %p1094 = scmp.ne.s32.totalorder %s1079, %s1093
      %p1095 = scmp.eq.s32.totalorder %s124, 0
      %p1096 = por %p1094, %p1095
      %s1098 = sadd.s32 %s1097, 1
      %p1101 = scmp.eq.s32.totalorder %s118, 1
      %p1102 = scmp.ne.s32.totalorder %s1097, %s1099
      %p1103 = scmp.eq.s32.totalorder %s118, 0
      %p1104 = por %p1102, %p1103
      %p1105 = scmp.ne.s32.totalorder %s1097, %s1099
      %p1106 = scmp.eq.s32.totalorder %s123, 1
      %p1107 = por %p1105, %p1106
      %p1108 = scmp.ne.s32.totalorder %s1099, %s1100
      %p1109 = scmp.eq.s32.totalorder %s123, 0
      %p1110 = por %p1108, %p1109
      %p1111 = scmp.ne.s32.totalorder %s1099, %s1100
      %p1112 = scmp.eq.s32.totalorder %s124, 1
      %p1113 = por %p1111, %p1112
      %p1115 = scmp.ne.s32.totalorder %s1100, %s1114
      %p1116 = scmp.eq.s32.totalorder %s124, 0
      %p1117 = por %p1115, %p1116
      %s1119 = sadd.s32 %s1118, 1
      %p1122 = scmp.eq.s32.totalorder %s118, 1
      %p1123 = scmp.ne.s32.totalorder %s1118, %s1120
      %p1124 = scmp.eq.s32.totalorder %s118, 0
      %p1125 = por %p1123, %p1124
      %p1126 = scmp.ne.s32.totalorder %s1118, %s1120
      %p1127 = scmp.eq.s32.totalorder %s123, 1
      %p1128 = por %p1126, %p1127
      %p1129 = scmp.ne.s32.totalorder %s1120, %s1121
      %p1130 = scmp.eq.s32.totalorder %s123, 0
      %p1131 = por %p1129, %p1130
      %p1132 = scmp.ne.s32.totalorder %s1120, %s1121
      %p1133 = scmp.eq.s32.totalorder %s124, 1
      %p1134 = por %p1132, %p1133
      %p1136 = scmp.ne.s32.totalorder %s1121, %s1135
      %p1137 = scmp.eq.s32.totalorder %s124, 0
      %p1138 = por %p1136, %p1137
      %s1140 = sadd.s32 %s1139, 1
      %p1143 = scmp.eq.s32.totalorder %s118, 1
      %p1144 = scmp.ne.s32.totalorder %s1139, %s1141
      %p1145 = scmp.eq.s32.totalorder %s118, 0
      %p1146 = por %p1144, %p1145
      %p1147 = scmp.ne.s32.totalorder %s1139, %s1141
      %p1148 = scmp.eq.s32.totalorder %s123, 1
      %p1149 = por %p1147, %p1148
      %p1150 = scmp.ne.s32.totalorder %s1141, %s1142
      %p1151 = scmp.eq.s32.totalorder %s123, 0
      %p1152 = por %p1150, %p1151
      %p1153 = scmp.ne.s32.totalorder %s1141, %s1142
      %p1154 = scmp.eq.s32.totalorder %s124, 1
      %p1155 = por %p1153, %p1154
      %p1157 = scmp.ne.s32.totalorder %s1142, %s1156
      %p1158 = scmp.eq.s32.totalorder %s124, 0
      %p1159 = por %p1157, %p1158
      %s1161 = sadd.s32 %s1160, 1
      %p1164 = scmp.eq.s32.totalorder %s118, 1
      %p1165 = scmp.ne.s32.totalorder %s1160, %s1162
      %p1166 = scmp.eq.s32.totalorder %s118, 0
      %p1167 = por %p1165, %p1166
      %p1168 = scmp.ne.s32.totalorder %s1160, %s1162
      %p1169 = scmp.eq.s32.totalorder %s123, 1
      %p1170 = por %p1168, %p1169
      %p1171 = scmp.ne.s32.totalorder %s1162, %s1163
      %p1172 = scmp.eq.s32.totalorder %s123, 0
      %p1173 = por %p1171, %p1172
      %p1174 = scmp.ne.s32.totalorder %s1162, %s1163
      %p1175 = scmp.eq.s32.totalorder %s124, 1
      %p1176 = por %p1174, %p1175
      %p1178 = scmp.ne.s32.totalorder %s1163, %s1177
      %p1179 = scmp.eq.s32.totalorder %s124, 0
      %p1180 = por %p1178, %p1179
      %s1182 = sadd.s32 %s1181, 1
      %p1185 = scmp.eq.s32.totalorder %s118, 1
      %p1186 = scmp.ne.s32.totalorder %s1181, %s1183
      %p1187 = scmp.eq.s32.totalorder %s118, 0
      %p1188 = por %p1186, %p1187
      %p1189 = scmp.ne.s32.totalorder %s1181, %s1183
      %p1190 = scmp.eq.s32.totalorder %s123, 1
      %p1191 = por %p1189, %p1190
      %p1192 = scmp.ne.s32.totalorder %s1183, %s1184
      %p1193 = scmp.eq.s32.totalorder %s123, 0
      %p1194 = por %p1192, %p1193
      %p1195 = scmp.ne.s32.totalorder %s1183, %s1184
      %p1196 = scmp.eq.s32.totalorder %s124, 1
      %p1197 = por %p1195, %p1196
      %p1199 = scmp.ne.s32.totalorder %s1184, %s1198
      %p1200 = scmp.eq.s32.totalorder %s124, 0
      %p1201 = por %p1199, %p1200
      %s1202 = ssub.s32 %s118, %s125
      %p1203 = scmp.eq.s32.totalorder %s1202, 0
      %s1205 = sadd.s32 %s1204, 1
      %s1206 = scalar_select %p1203, %s1204, %s1205
      %p1209 = pneg %p1203
      %p1210 = scmp.eq.s32.totalorder %s118, 1
      %p1211 = por %p1209, %p1210
      %p1212 = scmp.ne.s32.totalorder %s1204, %s1207
      %p1213 = scmp.eq.s32.totalorder %s118, 0
      %p1214 = por %p1212, %p1213
      %p1215 = scmp.ne.s32.totalorder %s1204, %s1207
      %p1216 = scmp.eq.s32.totalorder %s123, 1
      %p1217 = por %p1215, %p1216
      %p1218 = scmp.ne.s32.totalorder %s1207, %s1208
      %p1219 = scmp.eq.s32.totalorder %s123, 0
      %p1220 = por %p1218, %p1219
      %p1221 = scmp.ne.s32.totalorder %s1207, %s1208
      %p1222 = scmp.eq.s32.totalorder %s124, 1
      %p1223 = por %p1221, %p1222
      %p1225 = scmp.ne.s32.totalorder %s1208, %s1224
      %p1226 = scmp.eq.s32.totalorder %s124, 0
      %p1227 = por %p1225, %p1226
      %s1228 = ssub.s32 %s118, %s125
      %p1229 = scmp.eq.s32.totalorder %s1228, 0
      %s1231 = sadd.s32 %s1230, 1
      %s1232 = scalar_select %p1229, %s1230, %s1231
      %p1235 = pneg %p1229
      %p1236 = scmp.eq.s32.totalorder %s118, 1
      %p1237 = por %p1235, %p1236
      %p1238 = scmp.ne.s32.totalorder %s1230, %s1233
      %p1239 = scmp.eq.s32.totalorder %s118, 0
      %p1240 = por %p1238, %p1239
      %p1241 = scmp.ne.s32.totalorder %s1230, %s1233
      %p1242 = scmp.eq.s32.totalorder %s123, 1
      %p1243 = por %p1241, %p1242
      %p1244 = scmp.ne.s32.totalorder %s1233, %s1234
      %p1245 = scmp.eq.s32.totalorder %s123, 0
      %p1246 = por %p1244, %p1245
      %p1247 = scmp.ne.s32.totalorder %s1233, %s1234
      %p1248 = scmp.eq.s32.totalorder %s124, 1
      %p1249 = por %p1247, %p1248
      %p1251 = scmp.ne.s32.totalorder %s1234, %s1250
      %p1252 = scmp.eq.s32.totalorder %s124, 0
      %p1253 = por %p1251, %p1252
      %p1254 = scmp.le.s32.totalorder 1, %s118
      %p1255 = scmp.lt.s32.totalorder %s118, 3
      %p1256 = pnand %p1254, %p1255
      %p1257 = pneg %p1256
      // Predicated region
      $region9: #{dino_slot_forward.1} parent=5 // pred_check
        _
      $region10: #{dino_slot_forward.1} parent=5 // pred_check_branch
        %1259 = sbr.rel (%p1256) target = $region12
      $region11: #{dino_slot_forward.1} parent=5 // pred_region
        %s1260 = ssub.s32 %s118, 1
        // Predicated region
        $region13: #{dino_slot_forward.1} parent=11 // pred_check
          %p1261 = pneg %p165
        $region14: #{dino_slot_forward.1} parent=11 // pred_check_branch
          %1263 = sbr.rel (%p1261) target = $region16
        $region15: #{dino_slot_forward.1} parent=11 // pred_region
          _
        $region16: #{dino_slot_forward.1} parent=11 // pred_fallthru
          _
        // Predicated region
        $region17: #{dino_slot_forward.1} parent=11 // pred_check
          %p1264 = pneg %p186
        $region18: #{dino_slot_forward.1} parent=11 // pred_check_branch
          %1266 = sbr.rel (%p1264) target = $region20
        $region19: #{dino_slot_forward.1} parent=11 // pred_region
          _
        $region20: #{dino_slot_forward.1} parent=11 // pred_fallthru
          _
        // Predicated region
        $region21: #{dino_slot_forward.1} parent=11 // pred_check
          %p1267 = pneg %p207
        $region22: #{dino_slot_forward.1} parent=11 // pred_check_branch
          %1269 = sbr.rel (%p1267) target = $region24
        $region23: #{dino_slot_forward.1} parent=11 // pred_region
          _
        $region24: #{dino_slot_forward.1} parent=11 // pred_fallthru
          _
        // Predicated region
        $region25: #{dino_slot_forward.1} parent=11 // pred_check
          %p1270 = pneg %p228
        $region26: #{dino_slot_forward.1} parent=11 // pred_check_branch
          %1272 = sbr.rel (%p1270) target = $region28
        $region27: #{dino_slot_forward.1} parent=11 // pred_region
          _
        $region28: #{dino_slot_forward.1} parent=11 // pred_fallthru
          _
        // Predicated region
        $region29: #{dino_slot_forward.1} parent=11 // pred_check
          %p1273 = pneg %p249
        $region30: #{dino_slot_forward.1} parent=11 // pred_check_branch
          %1275 = sbr.rel (%p1273) target = $region32
        $region31: #{dino_slot_forward.1} parent=11 // pred_region
          _
        $region32: #{dino_slot_forward.1} parent=11 // pred_fallthru
          _
        // Predicated region
        $region33: #{dino_slot_forward.1} parent=11 // pred_check
          %p1276 = pneg %p270
        $region34: #{dino_slot_forward.1} parent=11 // pred_check_branch
          %1278 = sbr.rel (%p1276) target = $region36
        $region35: #{dino_slot_forward.1} parent=11 // pred_region
          _
        $region36: #{dino_slot_forward.1} parent=11 // pred_fallthru
          _
        // Predicated region
        $region37: #{dino_slot_forward.1} parent=11 // pred_check
          %p1279 = pneg %p291
        $region38: #{dino_slot_forward.1} parent=11 // pred_check_branch
          %1281 = sbr.rel (%p1279) target = $region40
        $region39: #{dino_slot_forward.1} parent=11 // pred_region
          _
        $region40: #{dino_slot_forward.1} parent=11 // pred_fallthru
          _
        // Predicated region
        $region41: #{dino_slot_forward.1} parent=11 // pred_check
          %p1282 = pneg %p312
        $region42: #{dino_slot_forward.1} parent=11 // pred_check_branch
          %1284 = sbr.rel (%p1282) target = $region44
        $region43: #{dino_slot_forward.1} parent=11 // pred_region
          _
        $region44: #{dino_slot_forward.1} parent=11 // pred_fallthru
          _
        // Predicated region
        $region45: #{dino_slot_forward.1} parent=11 // pred_check
          %p1285 = pneg %p333
        $region46: #{dino_slot_forward.1} parent=11 // pred_check_branch
          %1287 = sbr.rel (%p1285) target = $region48
        $region47: #{dino_slot_forward.1} parent=11 // pred_region
          _
        $region48: #{dino_slot_forward.1} parent=11 // pred_fallthru
          _
        // Predicated region
        $region49: #{dino_slot_forward.1} parent=11 // pred_check
          %p1288 = pneg %p354
        $region50: #{dino_slot_forward.1} parent=11 // pred_check_branch
          %1290 = sbr.rel (%p1288) target = $region52
        $region51: #{dino_slot_forward.1} parent=11 // pred_region
          _
        $region52: #{dino_slot_forward.1} parent=11 // pred_fallthru
          _
        // Predicated region
        $region53: #{dino_slot_forward.1} parent=11 // pred_check
          %p1291 = pneg %p375
        $region54: #{dino_slot_forward.1} parent=11 // pred_check_branch
          %1293 = sbr.rel (%p1291) target = $region56
        $region55: #{dino_slot_forward.1} parent=11 // pred_region
          _
        $region56: #{dino_slot_forward.1} parent=11 // pred_fallthru
          _
        // Predicated region
        $region57: #{dino_slot_forward.1} parent=11 // pred_check
          %p1294 = pneg %p396
        $region58: #{dino_slot_forward.1} parent=11 // pred_check_branch
          %1296 = sbr.rel (%p1294) target = $region60
        $region59: #{dino_slot_forward.1} parent=11 // pred_region
          _
        $region60: #{dino_slot_forward.1} parent=11 // pred_fallthru
          _
        // Predicated region
        $region61: #{dino_slot_forward.1} parent=11 // pred_check
          %p1297 = pneg %p417
        $region62: #{dino_slot_forward.1} parent=11 // pred_check_branch
          %1299 = sbr.rel (%p1297) target = $region64
        $region63: #{dino_slot_forward.1} parent=11 // pred_region
          _
        $region64: #{dino_slot_forward.1} parent=11 // pred_fallthru
          _
        // Predicated region
        $region65: #{dino_slot_forward.1} parent=11 // pred_check
          %p1300 = pneg %p438
        $region66: #{dino_slot_forward.1} parent=11 // pred_check_branch
          %1302 = sbr.rel (%p1300) target = $region68
        $region67: #{dino_slot_forward.1} parent=11 // pred_region
          _
        $region68: #{dino_slot_forward.1} parent=11 // pred_fallthru
          _
        // Predicated region
        $region69: #{dino_slot_forward.1} parent=11 // pred_check
          %p1303 = pneg %p459
        $region70: #{dino_slot_forward.1} parent=11 // pred_check_branch
          %1305 = sbr.rel (%p1303) target = $region72
        $region71: #{dino_slot_forward.1} parent=11 // pred_region
          _
        $region72: #{dino_slot_forward.1} parent=11 // pred_fallthru
          _
        // Predicated region
        $region73: #{dino_slot_forward.1} parent=11 // pred_check
          %p1306 = pneg %p480
        $region74: #{dino_slot_forward.1} parent=11 // pred_check_branch
          %1308 = sbr.rel (%p1306) target = $region76
        $region75: #{dino_slot_forward.1} parent=11 // pred_region
          %1310 = vsyncadd [#allocation4], 0
          %s1312 = sshll.u32 %s33, 4
          %s1313 = int_to_ptr.hbm [resolvable:$true] %s1312
          %s1314 = sshll.u32 [#allocation3], 4
          %s1315 = int_to_ptr.vmem [resolvable:$true] %s1314
          %1317 = dma.hbm_to_vmem [thread:$0]  %s1313, 16, %s1315, [#allocation4]
        $region76: #{dino_slot_forward.1} parent=11 // pred_fallthru
          _
        // Predicated region
        $region77: #{dino_slot_forward.1} parent=11 // pred_check
          %p1318 = pneg %p501
        $region78: #{dino_slot_forward.1} parent=11 // pred_check_branch
          %1320 = sbr.rel (%p1318) target = $region80
        $region79: #{dino_slot_forward.1} parent=11 // pred_region
          _
        $region80: #{dino_slot_forward.1} parent=11 // pred_fallthru
          _
        // Predicated region
        $region81: #{dino_slot_forward.1} parent=11 // pred_check
          %p1321 = pneg %p522
        $region82: #{dino_slot_forward.1} parent=11 // pred_check_branch
          %1323 = sbr.rel (%p1321) target = $region84
        $region83: #{dino_slot_forward.1} parent=11 // pred_region
          %1325 = vsyncadd [#allocation6], 0
          %s1327 = sshll.u32 %s37, 4
          %s1328 = int_to_ptr.hbm [resolvable:$true] %s1327
          %s1329 = sshll.u32 [#allocation5], 4
          %s1330 = int_to_ptr.vmem [resolvable:$true] %s1329
          %1332 = dma.hbm_to_vmem [thread:$0]  %s1328, 16, %s1330, [#allocation6]
        $region84: #{dino_slot_forward.1} parent=11 // pred_fallthru
          _
        // Predicated region
        $region85: #{dino_slot_forward.1} parent=11 // pred_check
          %p1333 = pneg %p543
        $region86: #{dino_slot_forward.1} parent=11 // pred_check_branch
          %1335 = sbr.rel (%p1333) target = $region88
        $region87: #{dino_slot_forward.1} parent=11 // pred_region
          _
        $region88: #{dino_slot_forward.1} parent=11 // pred_fallthru
          _
        // Predicated region
        $region89: #{dino_slot_forward.1} parent=11 // pred_check
          %p1336 = pneg %p564
        $region90: #{dino_slot_forward.1} parent=11 // pred_check_branch
          %1338 = sbr.rel (%p1336) target = $region92
        $region91: #{dino_slot_forward.1} parent=11 // pred_region
          _
        $region92: #{dino_slot_forward.1} parent=11 // pred_fallthru
          _
        // Predicated region
        $region93: #{dino_slot_forward.1} parent=11 // pred_check
          %p1339 = pneg %p585
        $region94: #{dino_slot_forward.1} parent=11 // pred_check_branch
          %1341 = sbr.rel (%p1339) target = $region96
        $region95: #{dino_slot_forward.1} parent=11 // pred_region
          _
        $region96: #{dino_slot_forward.1} parent=11 // pred_fallthru
          _
        // Predicated region
        $region97: #{dino_slot_forward.1} parent=11 // pred_check
          %p1342 = pneg %p606
        $region98: #{dino_slot_forward.1} parent=11 // pred_check_branch
          %1344 = sbr.rel (%p1342) target = $region100
        $region99: #{dino_slot_forward.1} parent=11 // pred_region
          _
        $region100: #{dino_slot_forward.1} parent=11 // pred_fallthru
          _
        // Predicated region
        $region101: #{dino_slot_forward.1} parent=11 // pred_check
          %p1345 = pneg %p627
        $region102: #{dino_slot_forward.1} parent=11 // pred_check_branch
          %1347 = sbr.rel (%p1345) target = $region104
        $region103: #{dino_slot_forward.1} parent=11 // pred_region
          _
        $region104: #{dino_slot_forward.1} parent=11 // pred_fallthru
          _
        // Predicated region
        $region105: #{dino_slot_forward.1} parent=11 // pred_check
          %p1348 = pneg %p648
        $region106: #{dino_slot_forward.1} parent=11 // pred_check_branch
          %1350 = sbr.rel (%p1348) target = $region108
        $region107: #{dino_slot_forward.1} parent=11 // pred_region
          _
        $region108: #{dino_slot_forward.1} parent=11 // pred_fallthru
          _
        // Predicated region
        $region109: #{dino_slot_forward.1} parent=11 // pred_check
          %p1351 = pneg %p669
        $region110: #{dino_slot_forward.1} parent=11 // pred_check_branch
          %1353 = sbr.rel (%p1351) target = $region112
        $region111: #{dino_slot_forward.1} parent=11 // pred_region
          _
        $region112: #{dino_slot_forward.1} parent=11 // pred_fallthru
          _
        // Predicated region
        $region113: #{dino_slot_forward.1} parent=11 // pred_check
          %p1354 = pneg %p690
        $region114: #{dino_slot_forward.1} parent=11 // pred_check_branch
          %1356 = sbr.rel (%p1354) target = $region116
        $region115: #{dino_slot_forward.1} parent=11 // pred_region
          %1358 = vsyncadd [#allocation6], 0
          %s1360 = sshll.u32 %s53, 4
          %s1361 = int_to_ptr.hbm [resolvable:$true] %s1360
          %s1362 = sshll.u32 [#allocation7], 4
          %s1363 = int_to_ptr.vmem [resolvable:$true] %s1362
          %1365 = dma.hbm_to_vmem [thread:$0]  %s1361, 16, %s1363, [#allocation6]
        $region116: #{dino_slot_forward.1} parent=11 // pred_fallthru
          _
        // Predicated region
        $region117: #{dino_slot_forward.1} parent=11 // pred_check
          %p1366 = pneg %p711
        $region118: #{dino_slot_forward.1} parent=11 // pred_check_branch
          %1368 = sbr.rel (%p1366) target = $region120
        $region119: #{dino_slot_forward.1} parent=11 // pred_region
          %1370 = vsyncadd [#allocation9], 0
          %s1372 = sshll.u32 %s55, 4
          %s1373 = int_to_ptr.hbm [resolvable:$true] %s1372
          %s1374 = sshll.u32 [#allocation8], 4
          %s1375 = int_to_ptr.vmem [resolvable:$true] %s1374
          %1377 = dma.hbm_to_vmem [thread:$0]  %s1373, 16, %s1375, [#allocation9]
        $region120: #{dino_slot_forward.1} parent=11 // pred_fallthru
          _
        // Predicated region
        $region121: #{dino_slot_forward.1} parent=11 // pred_check
          %p1378 = pneg %p732
        $region122: #{dino_slot_forward.1} parent=11 // pred_check_branch
          %1380 = sbr.rel (%p1378) target = $region124
        $region123: #{dino_slot_forward.1} parent=11 // pred_region
          _
        $region124: #{dino_slot_forward.1} parent=11 // pred_fallthru
          _
        // Predicated region
        $region125: #{dino_slot_forward.1} parent=11 // pred_check
          %p1381 = pneg %p753
        $region126: #{dino_slot_forward.1} parent=11 // pred_check_branch
          %1383 = sbr.rel (%p1381) target = $region128
        $region127: #{dino_slot_forward.1} parent=11 // pred_region
          _
        $region128: #{dino_slot_forward.1} parent=11 // pred_fallthru
          _
        // Predicated region
        $region129: #{dino_slot_forward.1} parent=11 // pred_check
          %p1384 = pneg %p774
        $region130: #{dino_slot_forward.1} parent=11 // pred_check_branch
          %1386 = sbr.rel (%p1384) target = $region132
        $region131: #{dino_slot_forward.1} parent=11 // pred_region
          %1388 = vsyncadd [#allocation9], 0
          %s1390 = sshll.u32 %s61, 4
          %s1391 = int_to_ptr.hbm [resolvable:$true] %s1390
          %s1392 = sshll.u32 [#allocation10], 4
          %s1393 = int_to_ptr.vmem [resolvable:$true] %s1392
          %1395 = dma.hbm_to_vmem [thread:$0]  %s1391, 16, %s1393, [#allocation9]
        $region132: #{dino_slot_forward.1} parent=11 // pred_fallthru
          _
        // Predicated region
        $region133: #{dino_slot_forward.1} parent=11 // pred_check
          %p1396 = pneg %p795
        $region134: #{dino_slot_forward.1} parent=11 // pred_check_branch
          %1398 = sbr.rel (%p1396) target = $region136
        $region135: #{dino_slot_forward.1} parent=11 // pred_region
          _
        $region136: #{dino_slot_forward.1} parent=11 // pred_fallthru
          _
        // Predicated region
        $region137: #{dino_slot_forward.1} parent=11 // pred_check
          %p1399 = pneg %p816
        $region138: #{dino_slot_forward.1} parent=11 // pred_check_branch
          %1401 = sbr.rel (%p1399) target = $region140
        $region139: #{dino_slot_forward.1} parent=11 // pred_region
          %1403 = vsyncadd [#allocation12], 0
          %s1405 = sshll.u32 %s65, 4
          %s1406 = int_to_ptr.hbm [resolvable:$true] %s1405
          %s1407 = sshll.u32 [#allocation11], 4
          %s1408 = int_to_ptr.vmem [resolvable:$true] %s1407
          %1410 = dma.hbm_to_vmem [thread:$0]  %s1406, 16, %s1408, [#allocation12]
        $region140: #{dino_slot_forward.1} parent=11 // pred_fallthru
          _
        // Predicated region
        $region141: #{dino_slot_forward.1} parent=11 // pred_check
          %p1411 = pneg %p837
        $region142: #{dino_slot_forward.1} parent=11 // pred_check_branch
          %1413 = sbr.rel (%p1411) target = $region144
        $region143: #{dino_slot_forward.1} parent=11 // pred_region
          %1415 = vsyncadd [#allocation12], 0
          %s1417 = sshll.u32 %s67, 4
          %s1418 = int_to_ptr.hbm [resolvable:$true] %s1417
          %s1419 = sshll.u32 [#allocation13], 4
          %s1420 = int_to_ptr.vmem [resolvable:$true] %s1419
          %1422 = dma.hbm_to_vmem [thread:$0]  %s1418, 16, %s1420, [#allocation12]
        $region144: #{dino_slot_forward.1} parent=11 // pred_fallthru
          _
        // Predicated region
        $region145: #{dino_slot_forward.1} parent=11 // pred_check
          %p1423 = pneg %p858
        $region146: #{dino_slot_forward.1} parent=11 // pred_check_branch
          %1425 = sbr.rel (%p1423) target = $region148
        $region147: #{dino_slot_forward.1} parent=11 // pred_region
          _
        $region148: #{dino_slot_forward.1} parent=11 // pred_fallthru
          _
        // Predicated region
        $region149: #{dino_slot_forward.1} parent=11 // pred_check
          %p1426 = pneg %p879
        $region150: #{dino_slot_forward.1} parent=11 // pred_check_branch
          %1428 = sbr.rel (%p1426) target = $region152
        $region151: #{dino_slot_forward.1} parent=11 // pred_region
          _
        $region152: #{dino_slot_forward.1} parent=11 // pred_fallthru
          _
        // Predicated region
        $region153: #{dino_slot_forward.1} parent=11 // pred_check
          %p1429 = pneg %p900
        $region154: #{dino_slot_forward.1} parent=11 // pred_check_branch
          %1431 = sbr.rel (%p1429) target = $region156
        $region155: #{dino_slot_forward.1} parent=11 // pred_region
          _
        $region156: #{dino_slot_forward.1} parent=11 // pred_fallthru
          _
        // Predicated region
        $region157: #{dino_slot_forward.1} parent=11 // pred_check
          %p1432 = pneg %p921
        $region158: #{dino_slot_forward.1} parent=11 // pred_check_branch
          %1434 = sbr.rel (%p1432) target = $region160
        $region159: #{dino_slot_forward.1} parent=11 // pred_region
          _
        $region160: #{dino_slot_forward.1} parent=11 // pred_fallthru
          _
        // Predicated region
        $region161: #{dino_slot_forward.1} parent=11 // pred_check
          %p1435 = pneg %p942
        $region162: #{dino_slot_forward.1} parent=11 // pred_check_branch
          %1437 = sbr.rel (%p1435) target = $region164
        $region163: #{dino_slot_forward.1} parent=11 // pred_region
          _
        $region164: #{dino_slot_forward.1} parent=11 // pred_fallthru
          _
        // Predicated region
        $region165: #{dino_slot_forward.1} parent=11 // pred_check
          %p1438 = pneg %p963
        $region166: #{dino_slot_forward.1} parent=11 // pred_check_branch
          %1440 = sbr.rel (%p1438) target = $region168
        $region167: #{dino_slot_forward.1} parent=11 // pred_region
          _
        $region168: #{dino_slot_forward.1} parent=11 // pred_fallthru
          _
        // Predicated region
        $region169: #{dino_slot_forward.1} parent=11 // pred_check
          %p1441 = pneg %p984
        $region170: #{dino_slot_forward.1} parent=11 // pred_check_branch
          %1443 = sbr.rel (%p1441) target = $region172
        $region171: #{dino_slot_forward.1} parent=11 // pred_region
          _
        $region172: #{dino_slot_forward.1} parent=11 // pred_fallthru
          _
        // Predicated region
        $region173: #{dino_slot_forward.1} parent=11 // pred_check
          %p1444 = pneg %p1005
        $region174: #{dino_slot_forward.1} parent=11 // pred_check_branch
          %1446 = sbr.rel (%p1444) target = $region176
        $region175: #{dino_slot_forward.1} parent=11 // pred_region
          _
        $region176: #{dino_slot_forward.1} parent=11 // pred_fallthru
          _
        // Predicated region
        $region177: #{dino_slot_forward.1} parent=11 // pred_check
          %p1447 = pneg %p1026
        $region178: #{dino_slot_forward.1} parent=11 // pred_check_branch
          %1449 = sbr.rel (%p1447) target = $region180
        $region179: #{dino_slot_forward.1} parent=11 // pred_region
          _
        $region180: #{dino_slot_forward.1} parent=11 // pred_fallthru
          _
        // Predicated region
        $region181: #{dino_slot_forward.1} parent=11 // pred_check
          %p1450 = pneg %p1047
        $region182: #{dino_slot_forward.1} parent=11 // pred_check_branch
          %1452 = sbr.rel (%p1450) target = $region184
        $region183: #{dino_slot_forward.1} parent=11 // pred_region
          _
        $region184: #{dino_slot_forward.1} parent=11 // pred_fallthru
          _
        // Predicated region
        $region185: #{dino_slot_forward.1} parent=11 // pred_check
          %p1453 = pneg %p1068
        $region186: #{dino_slot_forward.1} parent=11 // pred_check_branch
          %1455 = sbr.rel (%p1453) target = $region188
        $region187: #{dino_slot_forward.1} parent=11 // pred_region
          _
        $region188: #{dino_slot_forward.1} parent=11 // pred_fallthru
          _
        // Predicated region
        $region189: #{dino_slot_forward.1} parent=11 // pred_check
          %p1456 = pneg %p1089
        $region190: #{dino_slot_forward.1} parent=11 // pred_check_branch
          %1458 = sbr.rel (%p1456) target = $region192
        $region191: #{dino_slot_forward.1} parent=11 // pred_region
          _
        $region192: #{dino_slot_forward.1} parent=11 // pred_fallthru
          _
        // Predicated region
        $region193: #{dino_slot_forward.1} parent=11 // pred_check
          %p1459 = pneg %p1110
        $region194: #{dino_slot_forward.1} parent=11 // pred_check_branch
          %1461 = sbr.rel (%p1459) target = $region196
        $region195: #{dino_slot_forward.1} parent=11 // pred_region
          _
        $region196: #{dino_slot_forward.1} parent=11 // pred_fallthru
          _
        // Predicated region
        $region197: #{dino_slot_forward.1} parent=11 // pred_check
          %p1462 = pneg %p1131
        $region198: #{dino_slot_forward.1} parent=11 // pred_check_branch
          %1464 = sbr.rel (%p1462) target = $region200
        $region199: #{dino_slot_forward.1} parent=11 // pred_region
          %1466 = vsyncadd [#allocation15], 0
          %s1467 = sshll.u32 %s95, 4
          %s1468 = int_to_ptr.hbm [resolvable:$true] %s1467
          %s1469 = sshll.u32 [#allocation14], 4
          %s1470 = int_to_ptr.vmem [resolvable:$true] %s1469
          %1475 = dma.hbm_to_vmem [thread:$0]  %s1468, 32, %s1470, [#allocation15], 16, 16, 1
        $region200: #{dino_slot_forward.1} parent=11 // pred_fallthru
          _
        // Predicated region
        $region201: #{dino_slot_forward.1} parent=11 // pred_check
          %p1476 = pneg %p1152
        $region202: #{dino_slot_forward.1} parent=11 // pred_check_branch
          %1478 = sbr.rel (%p1476) target = $region204
        $region203: #{dino_slot_forward.1} parent=11 // pred_region
          _
        $region204: #{dino_slot_forward.1} parent=11 // pred_fallthru
          _
        // Predicated region
        $region205: #{dino_slot_forward.1} parent=11 // pred_check
          %p1479 = pneg %p1173
        $region206: #{dino_slot_forward.1} parent=11 // pred_check_branch
          %1481 = sbr.rel (%p1479) target = $region208
        $region207: #{dino_slot_forward.1} parent=11 // pred_region
          %1483 = vsyncadd [#allocation15], 0
          %s1484 = sshll.u32 %s99, 4
          %s1485 = int_to_ptr.hbm [resolvable:$true] %s1484
          %s1486 = sshll.u32 [#allocation16], 4
          %s1487 = int_to_ptr.vmem [resolvable:$true] %s1486
          %1492 = dma.hbm_to_vmem [thread:$0]  %s1485, 32, %s1487, [#allocation15], 16, 16, 1
        $region208: #{dino_slot_forward.1} parent=11 // pred_fallthru
          _
        // Predicated region
        $region209: #{dino_slot_forward.1} parent=11 // pred_check
          %p1493 = pneg %p1194
        $region210: #{dino_slot_forward.1} parent=11 // pred_check_branch
          %1495 = sbr.rel (%p1493) target = $region212
        $region211: #{dino_slot_forward.1} parent=11 // pred_region
          %1497 = vsyncadd [#allocation18], 0
          %s1499 = sshll.u32 %s101, 4
          %s1500 = int_to_ptr.hbm [resolvable:$true] %s1499
          %s1501 = sshll.u32 [#allocation17], 4
          %s1502 = int_to_ptr.vmem [resolvable:$true] %s1501
          %1504 = dma.hbm_to_vmem [thread:$0]  %s1500, 32, %s1502, [#allocation18]
        $region212: #{dino_slot_forward.1} parent=11 // pred_fallthru
          _
      $region12: #{dino_slot_forward.1} parent=5 // pred_fallthru
        _
      %p1505 = scmp.lt.s32.totalorder %s118, 2
      // Predicated region
      $region213: #{dino_slot_forward.1} parent=5 // pred_check
        %p1506 = pneg %p1505
      $region214: #{dino_slot_forward.1} parent=5 // pred_check_branch
        %1508 = sbr.rel (%p1506) target = $region216
      $region215: #{dino_slot_forward.1} parent=5 // pred_region
        // Predicated region
        $region217: #{dino_slot_forward.1} parent=215 // pred_check
          %p1509 = pneg %p138
        $region218: #{dino_slot_forward.1} parent=215 // pred_check_branch
          %1511 = sbr.rel (%p1509) target = $region220
        $region219: #{dino_slot_forward.1} parent=215 // pred_region
          %p1512 = scmp.lt.s32.totalorder %s118, 1
          %s1513 = scalar_select %p1512, %s118, 1
          %s1514 = smul.addr %s1513, 2
          %s1515 = smul.addr %s1514, 8
          %s1516 = scalar_lea.vmem %s1, %s1515
        $region220: #{dino_slot_forward.1} parent=215 // pred_fallthru
          _
      $region216: #{dino_slot_forward.1} parent=5 // pred_fallthru
        _
      %p1517 = scmp.le.s32.totalorder 1, %s118
      %p1518 = scmp.lt.s32.totalorder %s118, 3
      %p1519 = pnand %p1517, %p1518
      %p1520 = pneg %p1519
      // Predicated region
      $region221: #{dino_slot_forward.1} parent=5 // pred_check
        _
      $region222: #{dino_slot_forward.1} parent=5 // pred_check_branch
        %1522 = sbr.rel (%p1519) target = $region224
      $region223: #{dino_slot_forward.1} parent=5 // pred_region
        %s1523 = ssub.s32 %s118, 1
        // Predicated region
        $region225: #{dino_slot_forward.1} parent=223 // pred_check
          %p1524 = pneg %p480
        $region226: #{dino_slot_forward.1} parent=223 // pred_check_branch
          %1526 = sbr.rel (%p1524) target = $region228
        $region227: #{dino_slot_forward.1} parent=223 // pred_region
          %1528 = dma.done [#allocation4], 16
        $region228: #{dino_slot_forward.1} parent=223 // pred_fallthru
          _
        // Predicated region
        $region229: #{dino_slot_forward.1} parent=223 // pred_check
          %p1529 = pneg %p522
        $region230: #{dino_slot_forward.1} parent=223 // pred_check_branch
          %1531 = sbr.rel (%p1529) target = $region232
        $region231: #{dino_slot_forward.1} parent=223 // pred_region
          %1533 = dma.done [#allocation6], 16
        $region232: #{dino_slot_forward.1} parent=223 // pred_fallthru
          _
        // Predicated region
        $region233: #{dino_slot_forward.1} parent=223 // pred_check
          %p1534 = pneg %p690
        $region234: #{dino_slot_forward.1} parent=223 // pred_check_branch
          %1536 = sbr.rel (%p1534) target = $region236
        $region235: #{dino_slot_forward.1} parent=223 // pred_region
          %1538 = dma.done [#allocation6], 16
        $region236: #{dino_slot_forward.1} parent=223 // pred_fallthru
          _
        // Predicated region
        $region237: #{dino_slot_forward.1} parent=223 // pred_check
          %p1539 = pneg %p711
        $region238: #{dino_slot_forward.1} parent=223 // pred_check_branch
          %1541 = sbr.rel (%p1539) target = $region240
        $region239: #{dino_slot_forward.1} parent=223 // pred_region
          %1543 = dma.done [#allocation9], 16
        $region240: #{dino_slot_forward.1} parent=223 // pred_fallthru
          _
        // Predicated region
        $region241: #{dino_slot_forward.1} parent=223 // pred_check
          %p1544 = pneg %p774
        $region242: #{dino_slot_forward.1} parent=223 // pred_check_branch
          %1546 = sbr.rel (%p1544) target = $region244
        $region243: #{dino_slot_forward.1} parent=223 // pred_region
          %1548 = dma.done [#allocation9], 16
        $region244: #{dino_slot_forward.1} parent=223 // pred_fallthru
          _
        // Predicated region
        $region245: #{dino_slot_forward.1} parent=223 // pred_check
          %p1549 = pneg %p816
        $region246: #{dino_slot_forward.1} parent=223 // pred_check_branch
          %1551 = sbr.rel (%p1549) target = $region248
        $region247: #{dino_slot_forward.1} parent=223 // pred_region
          %1553 = dma.done [#allocation12], 16
        $region248: #{dino_slot_forward.1} parent=223 // pred_fallthru
          _
        // Predicated region
        $region249: #{dino_slot_forward.1} parent=223 // pred_check
          %p1554 = pneg %p837
        $region250: #{dino_slot_forward.1} parent=223 // pred_check_branch
          %1556 = sbr.rel (%p1554) target = $region252
        $region251: #{dino_slot_forward.1} parent=223 // pred_region
          %1558 = dma.done [#allocation12], 16
        $region252: #{dino_slot_forward.1} parent=223 // pred_fallthru
          _
        // Predicated region
        $region253: #{dino_slot_forward.1} parent=223 // pred_check
          %p1559 = pneg %p1131
        $region254: #{dino_slot_forward.1} parent=223 // pred_check_branch
          %1561 = sbr.rel (%p1559) target = $region256
        $region255: #{dino_slot_forward.1} parent=223 // pred_region
          %1563 = dma.done [#allocation15], 32
        $region256: #{dino_slot_forward.1} parent=223 // pred_fallthru
          _
        // Predicated region
        $region257: #{dino_slot_forward.1} parent=223 // pred_check
          %p1564 = pneg %p1173
        $region258: #{dino_slot_forward.1} parent=223 // pred_check_branch
          %1566 = sbr.rel (%p1564) target = $region260
        $region259: #{dino_slot_forward.1} parent=223 // pred_region
          %1568 = dma.done [#allocation15], 32
        $region260: #{dino_slot_forward.1} parent=223 // pred_fallthru
          _
        // Predicated region
        $region261: #{dino_slot_forward.1} parent=223 // pred_check
          %p1569 = pneg %p1194
        $region262: #{dino_slot_forward.1} parent=223 // pred_check_branch
          %1571 = sbr.rel (%p1569) target = $region264
        $region263: #{dino_slot_forward.1} parent=223 // pred_region
          %1573 = dma.done [#allocation18], 32
        $region264: #{dino_slot_forward.1} parent=223 // pred_fallthru
          _
        %p1574 = scmp.lt.s32.totalorder %s123, 1
        %s1575 = scalar_select %p1574, %s123, 1
        %s1576 = smul.addr %s1575, 2
        %s1577 = smul.addr %s1576, 8
        %s1578 = scalar_lea.vmem %s1, %s1577
        %p1579 = pneg %p144
        %p1580 = pneg %p141
        %p1581 = pneg %p165
        %p1582 = pneg %p162
        %p1583 = pneg %p186
        %p1584 = pneg %p183
        %p1585 = pneg %p207
        %p1586 = pneg %p204
        %p1587 = pneg %p228
        %p1588 = pneg %p225
        %p1589 = pneg %p249
        %p1590 = pneg %p246
        %p1591 = pneg %p270
        %p1592 = pneg %p267
        %p1593 = pneg %p291
        %p1594 = pneg %p288
        %p1595 = pneg %p312
        %p1596 = pneg %p309
        %p1597 = pneg %p333
        %p1598 = pneg %p330
        %p1599 = pneg %p354
        %p1600 = pneg %p351
        %p1601 = pneg %p375
        %p1602 = pneg %p372
        %p1603 = pneg %p396
        %p1604 = pneg %p393
        %p1605 = pneg %p417
        %p1606 = pneg %p414
        %p1607 = pneg %p438
        %p1608 = pneg %p435
        %p1609 = pneg %p459
        %p1610 = pneg %p456
        %p1611 = pneg %p480
        %p1612 = pneg %p477
        %p1613 = pneg %p501
        %p1614 = pneg %p498
        %p1615 = pneg %p522
        %p1616 = pneg %p519
        %p1617 = pneg %p543
        %p1618 = pneg %p540
        %p1619 = pneg %p564
        %p1620 = pneg %p561
        %p1621 = pneg %p585
        %p1622 = pneg %p582
        %p1623 = pneg %p606
        %p1624 = pneg %p603
        %p1625 = pneg %p627
        %p1626 = pneg %p624
        %p1627 = pneg %p648
        %p1628 = pneg %p645
        %p1629 = pneg %p669
        %p1630 = pneg %p666
        %p1631 = pneg %p690
        %p1632 = pneg %p687
        %p1633 = pneg %p711
        %p1634 = pneg %p708
        %p1635 = pneg %p732
        %p1636 = pneg %p729
        %p1637 = pneg %p753
        %p1638 = pneg %p750
        %p1639 = pneg %p774
        %p1640 = pneg %p771
        %p1641 = pneg %p795
        %p1642 = pneg %p792
        %p1643 = pneg %p816
        %p1644 = pneg %p813
        %p1645 = pneg %p837
        %p1646 = pneg %p834
        %p1647 = pneg %p858
        %p1648 = pneg %p855
        %p1649 = pneg %p879
        %p1650 = pneg %p876
        %p1651 = pneg %p900
        %p1652 = pneg %p897
        %p1653 = pneg %p921
        %p1654 = pneg %p918
        %p1655 = pneg %p942
        %p1656 = pneg %p939
        %p1657 = pneg %p963
        %p1658 = pneg %p960
        %p1659 = pneg %p984
        %p1660 = pneg %p981
        %p1661 = pneg %p1005
        %p1662 = pneg %p1002
        %p1663 = pneg %p1026
        %p1664 = pneg %p1023
        %p1665 = pneg %p1047
        %p1666 = pneg %p1044
        %p1667 = pneg %p1068
        %p1668 = pneg %p1065
        %p1669 = pneg %p1089
        %p1670 = pneg %p1086
        %p1671 = pneg %p1110
        %p1672 = pneg %p1107
        %p1673 = pneg %p1131
        %p1674 = pneg %p1128
        %p1675 = pneg %p1152
        %p1676 = pneg %p1149
        %p1677 = pneg %p1173
        %p1678 = pneg %p1170
        %p1679 = pneg %p1194
        %p1680 = pneg %p1191
        %p1681 = pneg %p1220
        %p1682 = pneg %p1217
        %p1683 = scmp.lt.s32.totalorder %s123, 1
        %s1684 = scalar_select %p1683, %s123, 1
        %s1685 = smul.addr %s1684, 3
        %s1686 = smul.addr %s1685, 8
        %s1687 = scalar_lea.vmem %s103, %s1686
        %p1688 = pneg %p1246
        %p1689 = pneg %p1243
        %p1690 = scmp.lt.s32.totalorder %s123, 1
        %s1691 = scalar_select %p1690, %s123, 1
        %s1692 = smul.addr %s1691, 4
        %s1693 = scalar_lea.vmem %s105, %s1692
        %p1694 = scmp.lt.s32.totalorder %s123, 1
        %s1695 = scalar_select %p1694, %s123, 1
        %s1696 = smul.addr %s1695, 2
        %s1697 = smul.addr %s1696, 8
        %s1698 = scalar_lea.vmem %s1, %s1697
        %p1699 = scmp.lt.s32.totalorder %s123, 1
        %s1700 = scalar_select %p1699, %s123, 1
        %s1701 = smul.addr %s1700, 3
        %s1702 = smul.addr %s1701, 8
        %s1703 = scalar_lea.vmem %s103, %s1702
        %p1704 = scmp.lt.s32.totalorder %s123, 1
        %s1705 = scalar_select %p1704, %s123, 1
        %s1706 = smul.addr %s1705, 4
        %s1707 = scalar_lea.vmem %s105, %s1706
        %v1708 = vld [vmem:[%s1698] sm:$0xff]
        %v1709 = vld [vmem:[%s1698 + $0x8] sm:$0xff]
        %v1710 = vld [vmem:[%s3] sm:$0xff]
        %v1711 = vld [vmem:[%s3 + $0x8] sm:$0xff]
        %v1712 = vld [vmem:[%s3 + $0x10] sm:$0xff]
        %v1713 = vld [vmem:[%s3 + $0x18] sm:$0xff]
        %v1714 = vld [vmem:[%s3 + $0x20] sm:$0xff]
        %v1715 = vld [vmem:[%s3 + $0x28] sm:$0xff]
        %vm1716 = vcmask 392192
        %v1718 = vsel %vm1716, %v1708, 0
        %v1721 = vsel %vm1716, %v1709, 0
        %1723 = vmatpush.msra.mxu0 0.0
        %1724 = vmatpush.msra.mxu0 0.0
        %1725 = vmatpush.msra.mxu0 0.0
        %1726 = vmatpush.msra.mxu0 0.0
        %1727 = vmatpush.msra.mxu0 0.0
        %1728 = vmatpush.msra.mxu0 0.0
        %1729 = vmatpush.msra.mxu0 0.0
        %1730 = vmatpush.msra.mxu0 0.0
        %1731 = vmatpush.msra.mxu0 0.0
        %1732 = vmatpush.msra.mxu0 0.0
        %1733 = vmatpush.msra.mxu0 %v1715
        %1734 = vmatpush.msra.mxu0 %v1714
        %1735 = vmatpush.msra.mxu0 %v1713
        %1736 = vmatpush.msra.mxu0 %v1712
        %1737 = vmatpush.msra.mxu0 %v1711
        %1738 = vmatpush.msra.mxu0 %v1710
        %1739 = vmatmul.f32.gmra.mxu0 %v1718
        %v1740 = vpop.f32.mrf.mxu0
        %v1741 = vadd.f32 0.0, %v1740
        %1742 = vmatmul.f32.gmra.mxu0 %v1721
        %v1743 = vpop.f32.mrf.mxu0
        %v1744 = vadd.f32 0.0, %v1743
        %1745 = vdwg.mxu0
        %vm1746 = vcmask 261120
        %1747 = vst.msk [vmem:[#allocation2] sm:$0xff] %vm1746, %v1741
        %1748 = vst.msk [vmem:[#allocation2 + $0x8] sm:$0xff] %vm1746, %v1744
        %vm1749 = vcmask 253952
        %1750 = vst.msk [vmem:[#allocation2 + $0x10] sm:$0x1] %vm1749, 0.0
        %v1751 = vld [vmem:[#allocation2] sm:$0xff]
        %v1752 = vld [vmem:[#allocation2 + $0x8] sm:$0xff]
        %v1753 = vld [vmem:[#allocation2 + $0x10] sm:$0x1]
        %v1754 = vld [vmem:[%s5] sm:$0xff]
        %v1755 = vld [vmem:[%s5 + $0x8] sm:$0xff]
        %v1756 = vld [vmem:[%s5 + $0x10] sm:$0x1]
        %v1757 = vadd.f32 %v1751, %v1754
        %v1758 = vadd.f32 %v1752, %v1755
        %v1759 = vadd.f32 %v1753, %v1756
        %v1760 = vld [vmem:[%s7] sm:$0x1]
        %v1761 = vld [vmem:[%s7 + $0x1] sm:$0x1]
        %v1762 = vsel %vm1746, %v1757, 0.0
        %1763 = vadd.xlane.f32.xlu0 %v1762
        %v1764 = vpop.xlane.xlu0 %1763
        %v1765 = vsel %vm1746, %v1758, 0.0
        %1766 = vadd.xlane.f32.xlu0 %v1765
        %v1767 = vpop.xlane.xlu0 %1766
        %v1768 = vsel %vm1749, %v1759, 0.0
        %1769 = vadd.xlane.f32.xlu0 %v1768
        %v1770 = vpop.xlane.xlu0 %1769
        %v1771 = vrcp.pop 32.0
        %v1772 = vmul.f32 32.0, %v1771
        %v1773 = vsub.f32 1.0, %v1772
        %v1774 = vmul.f32 %v1771, %v1773
        %v1775 = vadd.f32 %v1771, %v1774
        %vm1776 = vweird.f32 %v1771
        %v1777 = vsel %vm1776, %v1771, %v1775
        %v1778 = vmul.f32 %v1764, %v1777
        %v1779 = vmul.f32 %v1767, %v1777
        %v1780 = vmul.f32 %v1770, %v1777
        %v1781 = vsub.f32 %v1757, %v1778
        %v1782 = vsub.f32 %v1758, %v1779
        %v1783 = vsub.f32 %v1759, %v1780
        %v1784 = vmul.f32 %v1781, %v1781
        %v1785 = vmul.f32 %v1782, %v1782
        %v1786 = vmul.f32 %v1783, %v1783
        %v1787 = vsel %vm1746, %v1784, 0.0
        %1788 = vadd.xlane.f32.xlu0 %v1787
        %v1789 = vpop.xlane.xlu0 %1788
        %v1790 = vsel %vm1746, %v1785, 0.0
        %1791 = vadd.xlane.f32.xlu0 %v1790
        %v1792 = vpop.xlane.xlu0 %1791
        %v1793 = vsel %vm1749, %v1786, 0.0
        %1794 = vadd.xlane.f32.xlu0 %v1793
        %v1795 = vpop.xlane.xlu0 %1794
        %v1796 = vmul.f32 %v1789, %v1777
        %v1797 = vmul.f32 %v1792, %v1777
        %v1798 = vmul.f32 %v1795, %v1777
        %v1799 = vadd.f32 %v1796, 1e-05
        %v1800 = vadd.f32 %v1797, 1e-05
        %v1801 = vadd.f32 %v1798, 1e-05
        %v1802 = vrsqrt.pop %v1799
        %v1803 = vmul.f32 %v1802, %v1799
        %v1804 = vmul.f32 %v1803, %v1802
        %v1805 = vmul.f32 0.5, %v1804
        %v1806 = vsub.f32 1.5, %v1805
        %v1807 = vmul.f32 %v1802, %v1806
        %vm1808 = vweird.f32 %v1799
        %vm1809 = vweird.f32 %v1802
        %vm1810 = vmor %vm1808, %vm1809
        %v1811 = vsel %vm1810, %v1802, %v1807
        %v1812 = vrsqrt.pop %v1800
        %v1813 = vmul.f32 %v1812, %v1800
        %v1814 = vmul.f32 %v1813, %v1812
        %v1815 = vmul.f32 0.5, %v1814
        %v1816 = vsub.f32 1.5, %v1815
        %v1817 = vmul.f32 %v1812, %v1816
        %vm1818 = vweird.f32 %v1800
        %vm1819 = vweird.f32 %v1812
        %vm1820 = vmor %vm1818, %vm1819
        %v1821 = vsel %vm1820, %v1812, %v1817
        %v1822 = vrsqrt.pop %v1801
        %v1823 = vmul.f32 %v1822, %v1801
        %v1824 = vmul.f32 %v1823, %v1822
        %v1825 = vmul.f32 0.5, %v1824
        %v1826 = vsub.f32 1.5, %v1825
        %v1827 = vmul.f32 %v1822, %v1826
        %vm1828 = vweird.f32 %v1801
        %vm1829 = vweird.f32 %v1822
        %vm1830 = vmor %vm1828, %vm1829
        %v1831 = vsel %vm1830, %v1822, %v1827
        %v1832 = vmul.f32 %v1781, %v1811
        %v1833 = vmul.f32 %v1782, %v1821
        %v1834 = vmul.f32 %v1783, %v1831
        %v1835 = vperm.slane %v1760, 0
        %v1836 = vmul.f32 %v1832, %v1835
        %v1837 = vmul.f32 %v1833, %v1835
        %v1838 = vmul.f32 %v1834, %v1835
        %v1839 = vperm.slane %v1761, 0
        %v1840 = vadd.f32 %v1836, %v1839
        %v1841 = vadd.f32 %v1837, %v1839
        %v1842 = vadd.f32 %v1838, %v1839
        %v1843 = vld [vmem:[%s9] sm:$0xff]
        %v1844 = vld [vmem:[%s9 + $0x8] sm:$0xff]
        %v1845 = vld [vmem:[%s9 + $0x10] sm:$0xff]
        %v1846 = vld [vmem:[%s9 + $0x18] sm:$0xff]
        %v1847 = vld [vmem:[%s11] sm:$0x1]
        %v1848 = vld [vmem:[%s13] sm:$0xff]
        %v1849 = vld [vmem:[%s13 + $0x8] sm:$0xff]
        %v1850 = vld [vmem:[%s13 + $0x10] sm:$0xff]
        %v1851 = vld [vmem:[%s13 + $0x18] sm:$0xff]
        %v1852 = vld [vmem:[%s15] sm:$0x1]
        %v1854 = vperm.slane %v1847, 0
        %v1857 = vsel %vm1746, %v1840, 0
        %v1860 = vsel %vm1746, %v1841, 0
        %v1863 = vsel %vm1746, %v1842, 0
        %1865 = vmatpush.msra.mxu0 0.0
        %1866 = vmatpush.msra.mxu0 0.0
        %1867 = vmatpush.msra.mxu0 0.0
        %1868 = vmatpush.msra.mxu0 0.0
        %1869 = vmatpush.msra.mxu0 0.0
        %1870 = vmatpush.msra.mxu0 0.0
        %1871 = vmatpush.msra.mxu0 0.0
        %1872 = vmatpush.msra.mxu0 0.0
        %1873 = vmatpush.msra.mxu0 0.0
        %1874 = vmatpush.msra.mxu0 0.0
        %1875 = vmatpush.msra.mxu0 0.0
        %1876 = vmatpush.msra.mxu0 0.0
        %1877 = vmatpush.msra.mxu0 %v1846
        %1878 = vmatpush.msra.mxu0 %v1845
        %1879 = vmatpush.msra.mxu0 %v1844
        %1880 = vmatpush.msra.mxu0 %v1843
        %1881 = vmatmul.f32.gmra.mxu0 %v1857
        %v1882 = vpop.f32.mrf.mxu0
        %v1883 = vadd.f32 %v1854, %v1882
        %1884 = vmatmul.f32.gmra.mxu0 %v1860
        %v1885 = vpop.f32.mrf.mxu0
        %v1886 = vadd.f32 %v1854, %v1885
        %1887 = vmatmul.f32.gmra.mxu0 %v1863
        %v1888 = vpop.f32.mrf.mxu0
        %v1889 = vadd.f32 %v1854, %v1888
        %1890 = vdwg.mxu0
        %1894 = vrot.lane.b32.xlu0 %v1883, 96
        %v1895 = vpop.permute.xlu0 %1894
        %1896 = vrot.lane.b32.xlu0 %v1886, 96
        %v1897 = vpop.permute.xlu0 %1896
        %1898 = vrot.lane.b32.xlu0 %v1889, 96
        %v1899 = vpop.permute.xlu0 %1898
        %vm1900 = vcmask 130048
        %v1901 = vsel %vm1900, %v1883, 0
        %v1903 = vsel %vm1900, %v1886, 0
        %v1905 = vsel %vm1900, %v1889, 0
        %v1907 = vsel %vm1900, %v1895, 0
        %v1909 = vsel %vm1900, %v1897, 0
        %v1911 = vsel %vm1900, %v1899, 0
        %1913 = vmatpush.xpose.msra.mxu0 0.0
        %1914 = vmatpush.xpose.msra.mxu0 0.0
        %1915 = vmatpush.xpose.msra.mxu0 0.0
        %1916 = vmatpush.xpose.msra.mxu0 0.0
        %1917 = vmatpush.xpose.msra.mxu0 0.0
        %1918 = vmatpush.xpose.msra.mxu0 0.0
        %1919 = vmatpush.xpose.msra.mxu0 0.0
        %1920 = vmatpush.xpose.msra.mxu0 0.0
        %1921 = vmatpush.xpose.msra.mxu0 0.0
        %1922 = vmatpush.xpose.msra.mxu0 0.0
        %1923 = vmatpush.xpose.msra.mxu0 0.0
        %1924 = vmatpush.xpose.msra.mxu0 0.0
        %1925 = vmatpush.xpose.msra.mxu0 0.0
        %1926 = vmatpush.xpose.msra.mxu0 %v1911
        %1927 = vmatpush.xpose.msra.mxu0 %v1909
        %1928 = vmatpush.xpose.msra.mxu0 %v1907
        %1929 = vmatmul.f32.gmra.mxu0 %v1901
        %v1930 = vpop.f32.mrf.mxu0
        %v1931 = vadd.f32 0.0, %v1930
        %1932 = vmatmul.f32.gmra.mxu0 %v1903
        %v1933 = vpop.f32.mrf.mxu0
        %v1934 = vadd.f32 0.0, %v1933
        %1935 = vmatmul.f32.gmra.mxu0 %v1905
        %v1936 = vpop.f32.mrf.mxu0
        %v1937 = vadd.f32 0.0, %v1936
        %1938 = vdwg.mxu0
        %vm1939 = vcmask 138240
        %v1940 = vsel %vm1939, %v1931, -inf
        %1941 = vmax.xlane.f32.xlu0 %v1940
        %v1942 = vpop.xlane.xlu0 %1941
        %v1943 = vsel %vm1939, %v1934, -inf
        %1944 = vmax.xlane.f32.xlu0 %v1943
        %v1945 = vpop.xlane.xlu0 %1944
        %vm1946 = vcmask 131072
        %v1947 = vsel %vm1946, %v1937, -inf
        %1948 = vmax.xlane.f32.xlu0 %v1947
        %v1949 = vpop.xlane.xlu0 %1948
        %v1950 = vsub.f32 %v1931, %v1942
        %v1951 = vsub.f32 %v1934, %v1945
        %v1952 = vsub.f32 %v1937, %v1949
        %v1953 = vmul.f32 %v1950, 1.442695
        %v1954 = vpow.pop %v1953
        %v1955 = vmul.f32 %v1951, 1.442695
        %v1956 = vpow.pop %v1955
        %v1957 = vmul.f32 %v1952, 1.442695
        %v1958 = vpow.pop %v1957
        %v1959 = vsel %vm1939, %v1954, 0.0
        %1960 = vadd.xlane.f32.xlu0 %v1959
        %v1961 = vpop.xlane.xlu0 %1960
        %v1962 = vsel %vm1939, %v1956, 0.0
        %1963 = vadd.xlane.f32.xlu0 %v1962
        %v1964 = vpop.xlane.xlu0 %1963
        %v1965 = vsel %vm1946, %v1958, 0.0
        %1966 = vadd.xlane.f32.xlu0 %v1965
        %v1967 = vpop.xlane.xlu0 %1966
        %v1968 = vrcp.pop %v1961
        %v1969 = vrcp.pop %v1964
        %v1970 = vrcp.pop %v1967
        %v1971 = vmul.f32 %v1954, %v1968
        %v1972 = vmul.f32 %v1956, %v1969
        %v1973 = vmul.f32 %v1958, %v1970
        %1974 = vrot.lane.b32.xlu0 %v1883, 64
        %v1975 = vpop.permute.xlu0 %1974
        %1976 = vrot.lane.b32.xlu0 %v1886, 64
        %v1977 = vpop.permute.xlu0 %1976
        %1978 = vrot.lane.b32.xlu0 %v1889, 64
        %v1979 = vpop.permute.xlu0 %1978
        %v1983 = vsel %vm1939, %v1971, 0
        %v1986 = vsel %vm1939, %v1972, 0
        %v1989 = vsel %vm1939, %v1973, 0
        %vm1991 = vcmask 1040384
        %v1992 = vsel %vm1991, %v1979, 0
        %1994 = vmatpush.msra.mxu0 0.0
        %1995 = vmatpush.msra.mxu0 0.0
        %1996 = vmatpush.msra.mxu0 0.0
        %1997 = vmatpush.msra.mxu0 0.0
        %1998 = vmatpush.msra.mxu0 0.0
        %1999 = vmatpush.msra.mxu0 0.0
        %2000 = vmatpush.msra.mxu0 0.0
        %2001 = vmatpush.msra.mxu0 0.0
        %2002 = vmatpush.msra.mxu0 0.0
        %2003 = vmatpush.msra.mxu0 0.0
        %2004 = vmatpush.msra.mxu0 0.0
        %2005 = vmatpush.msra.mxu0 0.0
        %2006 = vmatpush.msra.mxu0 0.0
        %2007 = vmatpush.msra.mxu0 %v1992
        %2008 = vmatpush.msra.mxu0 %v1977
        %2009 = vmatpush.msra.mxu0 %v1975
        %2010 = vmatmul.f32.gmra.mxu0 %v1983
        %v2011 = vpop.f32.mrf.mxu0
        %v2012 = vadd.f32 0.0, %v2011
        %2013 = vmatmul.f32.gmra.mxu0 %v1986
        %v2014 = vpop.f32.mrf.mxu0
        %v2015 = vadd.f32 0.0, %v2014
        %2016 = vmatmul.f32.gmra.mxu0 %v1989
        %v2017 = vpop.f32.mrf.mxu0
        %v2018 = vadd.f32 0.0, %v2017
        %2019 = vdwg.mxu0
        %2020 = vrot.lane.b32.xlu0 %v1883, 112
        %v2021 = vpop.permute.xlu0 %2020
        %2022 = vrot.lane.b32.xlu0 %v1886, 112
        %v2023 = vpop.permute.xlu0 %2022
        %2024 = vrot.lane.b32.xlu0 %v1889, 112
        %v2025 = vpop.permute.xlu0 %2024
        %2026 = vrot.lane.b32.xlu0 %v1883, 80
        %v2027 = vpop.permute.xlu0 %2026
        %2028 = vrot.lane.b32.xlu0 %v1886, 80
        %v2029 = vpop.permute.xlu0 %2028
        %2030 = vrot.lane.b32.xlu0 %v1889, 80
        %v2031 = vpop.permute.xlu0 %2030
        %v2032 = vsel %vm1900, %v2021, 0
        %v2034 = vsel %vm1900, %v2023, 0
        %v2036 = vsel %vm1900, %v2025, 0
        %v2038 = vsel %vm1900, %v2027, 0
        %v2040 = vsel %vm1900, %v2029, 0
        %v2042 = vsel %vm1900, %v2031, 0
        %2044 = vmatpush.xpose.msra.mxu0 0.0
        %2045 = vmatpush.xpose.msra.mxu0 0.0
        %2046 = vmatpush.xpose.msra.mxu0 0.0
        %2047 = vmatpush.xpose.msra.mxu0 0.0
        %2048 = vmatpush.xpose.msra.mxu0 0.0
        %2049 = vmatpush.xpose.msra.mxu0 0.0
        %2050 = vmatpush.xpose.msra.mxu0 0.0
        %2051 = vmatpush.xpose.msra.mxu0 0.0
        %2052 = vmatpush.xpose.msra.mxu0 0.0
        %2053 = vmatpush.xpose.msra.mxu0 0.0
        %2054 = vmatpush.xpose.msra.mxu0 0.0
        %2055 = vmatpush.xpose.msra.mxu0 0.0
        %2056 = vmatpush.xpose.msra.mxu0 0.0
        %2057 = vmatpush.xpose.msra.mxu0 %v2042
        %2058 = vmatpush.xpose.msra.mxu0 %v2040
        %2059 = vmatpush.xpose.msra.mxu0 %v2038
        %2060 = vmatmul.f32.gmra.mxu0 %v2032
        %v2061 = vpop.f32.mrf.mxu0
        %v2062 = vadd.f32 0.0, %v2061
        %2063 = vmatmul.f32.gmra.mxu0 %v2034
        %v2064 = vpop.f32.mrf.mxu0
        %v2065 = vadd.f32 0.0, %v2064
        %2066 = vmatmul.f32.gmra.mxu0 %v2036
        %v2067 = vpop.f32.mrf.mxu0
        %v2068 = vadd.f32 0.0, %v2067
        %2069 = vdwg.mxu0
        %v2070 = vsel %vm1939, %v2062, -inf
        %2071 = vmax.xlane.f32.xlu0 %v2070
        %v2072 = vpop.xlane.xlu0 %2071
        %v2073 = vsel %vm1939, %v2065, -inf
        %2074 = vmax.xlane.f32.xlu0 %v2073
        %v2075 = vpop.xlane.xlu0 %2074
        %v2076 = vsel %vm1946, %v2068, -inf
        %2077 = vmax.xlane.f32.xlu0 %v2076
        %v2078 = vpop.xlane.xlu0 %2077
        %v2079 = vsub.f32 %v2062, %v2072
        %v2080 = vsub.f32 %v2065, %v2075
        %v2081 = vsub.f32 %v2068, %v2078
        %v2082 = vmul.f32 %v2079, 1.442695
        %v2083 = vpow.pop %v2082
        %v2084 = vmul.f32 %v2080, 1.442695
        %v2085 = vpow.pop %v2084
        %v2086 = vmul.f32 %v2081, 1.442695
        %v2087 = vpow.pop %v2086
        %v2088 = vsel %vm1939, %v2083, 0.0
        %2089 = vadd.xlane.f32.xlu0 %v2088
        %v2090 = vpop.xlane.xlu0 %2089
        %v2091 = vsel %vm1939, %v2085, 0.0
        %2092 = vadd.xlane.f32.xlu0 %v2091
        %v2093 = vpop.xlane.xlu0 %2092
        %v2094 = vsel %vm1946, %v2087, 0.0
        %2095 = vadd.xlane.f32.xlu0 %v2094
        %v2096 = vpop.xlane.xlu0 %2095
        %v2097 = vrcp.pop %v2090
        %v2098 = vrcp.pop %v2093
        %v2099 = vrcp.pop %v2096
        %v2100 = vmul.f32 %v2083, %v2097
        %v2101 = vmul.f32 %v2085, %v2098
        %v2102 = vmul.f32 %v2087, %v2099
        %2103 = vrot.lane.b32.xlu0 %v1883, 48
        %v2104 = vpop.permute.xlu0 %2103
        %2105 = vrot.lane.b32.xlu0 %v1886, 48
        %v2106 = vpop.permute.xlu0 %2105
        %2107 = vrot.lane.b32.xlu0 %v1889, 48
        %v2108 = vpop.permute.xlu0 %2107
        %v2112 = vsel %vm1939, %v2100, 0
        %v2115 = vsel %vm1939, %v2101, 0
        %v2118 = vsel %vm1939, %v2102, 0
        %v2120 = vsel %vm1991, %v2108, 0
        %2122 = vmatpush.msra.mxu0 0.0
        %2123 = vmatpush.msra.mxu0 0.0
        %2124 = vmatpush.msra.mxu0 0.0
        %2125 = vmatpush.msra.mxu0 0.0
        %2126 = vmatpush.msra.mxu0 0.0
        %2127 = vmatpush.msra.mxu0 0.0
        %2128 = vmatpush.msra.mxu0 0.0
        %2129 = vmatpush.msra.mxu0 0.0
        %2130 = vmatpush.msra.mxu0 0.0
        %2131 = vmatpush.msra.mxu0 0.0
        %2132 = vmatpush.msra.mxu0 0.0
        %2133 = vmatpush.msra.mxu0 0.0
        %2134 = vmatpush.msra.mxu0 0.0
        %2135 = vmatpush.msra.mxu0 %v2120
        %2136 = vmatpush.msra.mxu0 %v2106
        %2137 = vmatpush.msra.mxu0 %v2104
        %2138 = vmatmul.f32.gmra.mxu0 %v2112
        %v2139 = vpop.f32.mrf.mxu0
        %v2140 = vadd.f32 0.0, %v2139
        %2141 = vmatmul.f32.gmra.mxu0 %v2115
        %v2142 = vpop.f32.mrf.mxu0
        %v2143 = vadd.f32 0.0, %v2142
        %2144 = vmatmul.f32.gmra.mxu0 %v2118
        %v2145 = vpop.f32.mrf.mxu0
        %v2146 = vadd.f32 0.0, %v2145
        %2147 = vdwg.mxu0
        %v2149 = vsel %vm1900, %v2140, 0
        %v2152 = vsel %vm1900, %v2143, 0
        %v2155 = vsel %vm1900, %v2146, 0
        %2157 = vmatpush.msra.mxu0 0.0
        %2158 = vmatpush.msra.mxu0 0.0
        %2159 = vmatpush.msra.mxu0 0.0
        %2160 = vmatpush.msra.mxu0 0.0
        %2161 = vmatpush.msra.mxu0 0.0
        %2162 = vmatpush.msra.mxu0 0.0
        %2163 = vmatpush.msra.mxu0 0.0
        %2164 = vmatpush.msra.mxu0 0.0
        %2165 = vmatpush.msra.mxu0 0.0
        %2166 = vmatpush.msra.mxu0 0.0
        %2167 = vmatpush.msra.mxu0 0.0
        %2168 = vmatpush.msra.mxu0 0.0
        %2169 = vmatpush.msra.mxu0 0.0
        %2170 = vmatpush.msra.mxu0 0.0
        %2171 = vmatpush.msra.mxu0 %v1851
        %2172 = vmatpush.msra.mxu0 %v1850
        %2173 = vmatmul.f32.gmra.mxu0 %v2149
        %v2174 = vpop.f32.mrf.mxu0
        %v2175 = vadd.f32 0.0, %v2174
        %2176 = vmatmul.f32.gmra.mxu0 %v2152
        %v2177 = vpop.f32.mrf.mxu0
        %v2178 = vadd.f32 0.0, %v2177
        %2179 = vmatmul.f32.gmra.mxu0 %v2155
        %v2180 = vpop.f32.mrf.mxu0
        %v2181 = vadd.f32 0.0, %v2180
        %2182 = vdwg.mxu0
        %v2184 = vsel %vm1900, %v2012, 0
        %v2187 = vsel %vm1900, %v2015, 0
        %v2190 = vsel %vm1900, %v2018, 0
        %2192 = vmatpush.msra.mxu0 0.0
        %2193 = vmatpush.msra.mxu0 0.0
        %2194 = vmatpush.msra.mxu0 0.0
        %2195 = vmatpush.msra.mxu0 0.0
        %2196 = vmatpush.msra.mxu0 0.0
        %2197 = vmatpush.msra.mxu0 0.0
        %2198 = vmatpush.msra.mxu0 0.0
        %2199 = vmatpush.msra.mxu0 0.0
        %2200 = vmatpush.msra.mxu0 0.0
        %2201 = vmatpush.msra.mxu0 0.0
        %2202 = vmatpush.msra.mxu0 0.0
        %2203 = vmatpush.msra.mxu0 0.0
        %2204 = vmatpush.msra.mxu0 0.0
        %2205 = vmatpush.msra.mxu0 0.0
        %2206 = vmatpush.msra.mxu0 %v1849
        %2207 = vmatpush.msra.mxu0 %v1848
        %2208 = vmatmul.f32.gmra.mxu0 %v2184
        %v2209 = vpop.f32.mrf.mxu0
        %v2210 = vadd.f32 %v2175, %v2209
        %2211 = vmatmul.f32.gmra.mxu0 %v2187
        %v2212 = vpop.f32.mrf.mxu0
        %v2213 = vadd.f32 %v2178, %v2212
        %2214 = vmatmul.f32.gmra.mxu0 %v2190
        %v2215 = vpop.f32.mrf.mxu0
        %v2216 = vadd.f32 %v2181, %v2215
        %2217 = vdwg.mxu0
        %v2219 = vperm.slane %v1852, 0
        %v2221 = vadd.f32 %v2210, %v2219
        %v2222 = vadd.f32 %v2213, %v2219
        %v2223 = vadd.f32 %v2216, %v2219
        %v2224 = vadd.f32 %v1757, %v2221
        %v2225 = vadd.f32 %v1758, %v2222
        %v2226 = vadd.f32 %v1759, %v2223
        %v2227 = vld [vmem:[%s17] sm:$0x1]
        %v2228 = vld [vmem:[%s17 + $0x1] sm:$0x1]
        %v2229 = vsel %vm1746, %v2224, 0.0
        %2230 = vadd.xlane.f32.xlu0 %v2229
        %v2231 = vpop.xlane.xlu0 %2230
        %v2232 = vsel %vm1746, %v2225, 0.0
        %2233 = vadd.xlane.f32.xlu0 %v2232
        %v2234 = vpop.xlane.xlu0 %2233
        %v2235 = vsel %vm1749, %v2226, 0.0
        %2236 = vadd.xlane.f32.xlu0 %v2235
        %v2237 = vpop.xlane.xlu0 %2236
        %v2238 = vmul.f32 %v2231, %v1777
        %v2239 = vmul.f32 %v2234, %v1777
        %v2240 = vmul.f32 %v2237, %v1777
        %v2241 = vsub.f32 %v2224, %v2238
        %v2242 = vsub.f32 %v2225, %v2239
        %v2243 = vsub.f32 %v2226, %v2240
        %v2244 = vmul.f32 %v2241, %v2241
        %v2245 = vmul.f32 %v2242, %v2242
        %v2246 = vmul.f32 %v2243, %v2243
        %v2247 = vsel %vm1746, %v2244, 0.0
        %2248 = vadd.xlane.f32.xlu0 %v2247
        %v2249 = vpop.xlane.xlu0 %2248
        %v2250 = vsel %vm1746, %v2245, 0.0
        %2251 = vadd.xlane.f32.xlu0 %v2250
        %v2252 = vpop.xlane.xlu0 %2251
        %v2253 = vsel %vm1749, %v2246, 0.0
        %2254 = vadd.xlane.f32.xlu0 %v2253
        %v2255 = vpop.xlane.xlu0 %2254
        %v2256 = vmul.f32 %v2249, %v1777
        %v2257 = vmul.f32 %v2252, %v1777
        %v2258 = vmul.f32 %v2255, %v1777
        %v2259 = vadd.f32 %v2256, 1e-05
        %v2260 = vadd.f32 %v2257, 1e-05
        %v2261 = vadd.f32 %v2258, 1e-05
        %v2262 = vrsqrt.pop %v2259
        %v2263 = vmul.f32 %v2262, %v2259
        %v2264 = vmul.f32 %v2263, %v2262
        %v2265 = vmul.f32 0.5, %v2264
        %v2266 = vsub.f32 1.5, %v2265
        %v2267 = vmul.f32 %v2262, %v2266
        %vm2268 = vweird.f32 %v2259
        %vm2269 = vweird.f32 %v2262
        %vm2270 = vmor %vm2268, %vm2269
        %v2271 = vsel %vm2270, %v2262, %v2267
        %v2272 = vrsqrt.pop %v2260
        %v2273 = vmul.f32 %v2272, %v2260
        %v2274 = vmul.f32 %v2273, %v2272
        %v2275 = vmul.f32 0.5, %v2274
        %v2276 = vsub.f32 1.5, %v2275
        %v2277 = vmul.f32 %v2272, %v2276
        %vm2278 = vweird.f32 %v2260
        %vm2279 = vweird.f32 %v2272
        %vm2280 = vmor %vm2278, %vm2279
        %v2281 = vsel %vm2280, %v2272, %v2277
        %v2282 = vrsqrt.pop %v2261
        %v2283 = vmul.f32 %v2282, %v2261
        %v2284 = vmul.f32 %v2283, %v2282
        %v2285 = vmul.f32 0.5, %v2284
        %v2286 = vsub.f32 1.5, %v2285
        %v2287 = vmul.f32 %v2282, %v2286
        %vm2288 = vweird.f32 %v2261
        %vm2289 = vweird.f32 %v2282
        %vm2290 = vmor %vm2288, %vm2289
        %v2291 = vsel %vm2290, %v2282, %v2287
        %v2292 = vmul.f32 %v2241, %v2271
        %v2293 = vmul.f32 %v2242, %v2281
        %v2294 = vmul.f32 %v2243, %v2291
        %v2295 = vperm.slane %v2227, 0
        %v2296 = vmul.f32 %v2292, %v2295
        %v2297 = vmul.f32 %v2293, %v2295
        %v2298 = vmul.f32 %v2294, %v2295
        %v2299 = vperm.slane %v2228, 0
        %v2300 = vadd.f32 %v2296, %v2299
        %v2301 = vadd.f32 %v2297, %v2299
        %v2302 = vadd.f32 %v2298, %v2299
        %v2303 = vld [vmem:[%s19] sm:$0xff]
        %v2304 = vld [vmem:[%s19 + $0x8] sm:$0xff]
        %v2305 = vld [vmem:[%s19 + $0x10] sm:$0xff]
        %v2306 = vld [vmem:[%s19 + $0x18] sm:$0xff]
        %v2307 = vld [vmem:[%s21] sm:$0x1]
        %v2309 = vperm.slane %v2307, 0
        %v2312 = vsel %vm1746, %v2300, 0
        %v2315 = vsel %vm1746, %v2301, 0
        %v2318 = vsel %vm1746, %v2302, 0
        %2320 = vmatpush.msra.mxu0 0.0
        %2321 = vmatpush.msra.mxu0 0.0
        %2322 = vmatpush.msra.mxu0 0.0
        %2323 = vmatpush.msra.mxu0 0.0
        %2324 = vmatpush.msra.mxu0 0.0
        %2325 = vmatpush.msra.mxu0 0.0
        %2326 = vmatpush.msra.mxu0 0.0
        %2327 = vmatpush.msra.mxu0 0.0
        %2328 = vmatpush.msra.mxu0 0.0
        %2329 = vmatpush.msra.mxu0 0.0
        %2330 = vmatpush.msra.mxu0 0.0
        %2331 = vmatpush.msra.mxu0 0.0
        %2332 = vmatpush.msra.mxu0 %v2306
        %2333 = vmatpush.msra.mxu0 %v2305
        %2334 = vmatpush.msra.mxu0 %v2304
        %2335 = vmatpush.msra.mxu0 %v2303
        %2336 = vmatmul.f32.gmra.mxu0 %v2312
        %v2337 = vpop.f32.mrf.mxu0
        %v2338 = vadd.f32 %v2309, %v2337
        %2339 = vmatmul.f32.gmra.mxu0 %v2315
        %v2340 = vpop.f32.mrf.mxu0
        %v2341 = vadd.f32 %v2309, %v2340
        %2342 = vmatmul.f32.gmra.mxu0 %v2318
        %v2343 = vpop.f32.mrf.mxu0
        %v2344 = vadd.f32 %v2309, %v2343
        %2345 = vdwg.mxu0
        %v2346 = vmul.f32 %v2338, %v2338
        %v2347 = vmul.f32 %v2341, %v2341
        %v2348 = vmul.f32 %v2344, %v2344
        %v2349 = vmul.f32 %v2338, %v2346
        %v2350 = vmul.f32 %v2341, %v2347
        %v2351 = vmul.f32 %v2344, %v2348
        %v2352 = vmul.f32 %v2349, 0.044715
        %v2353 = vmul.f32 %v2350, 0.044715
        %v2354 = vmul.f32 %v2351, 0.044715
        %v2355 = vadd.f32 %v2338, %v2352
        %v2356 = vadd.f32 %v2341, %v2353
        %v2357 = vadd.f32 %v2344, %v2354
        %v2358 = vmul.f32 %v2355, 0.7978846
        %v2359 = vmul.f32 %v2356, 0.7978846
        %v2360 = vmul.f32 %v2357, 0.7978846
        %v2361 = vtanh.pop %v2358
        %v2362 = vtanh.pop %v2359
        %v2363 = vtanh.pop %v2360
        %v2364 = vadd.f32 %v2361, 1.0
        %v2365 = vadd.f32 %v2362, 1.0
        %v2366 = vadd.f32 %v2363, 1.0
        %v2367 = vmul.f32 %v2364, 0.5
        %v2368 = vmul.f32 %v2365, 0.5
        %v2369 = vmul.f32 %v2366, 0.5
        %v2370 = vmul.f32 %v2338, %v2367
        %v2371 = vmul.f32 %v2341, %v2368
        %v2372 = vmul.f32 %v2344, %v2369
        %v2373 = vld [vmem:[%s23] sm:$0xff]
        %v2374 = vld [vmem:[%s23 + $0x8] sm:$0xff]
        %v2375 = vld [vmem:[%s23 + $0x10] sm:$0xff]
        %v2376 = vld [vmem:[%s23 + $0x18] sm:$0xff]
        %v2377 = vld [vmem:[%s23 + $0x20] sm:$0xff]
        %v2378 = vld [vmem:[%s23 + $0x28] sm:$0xff]
        %v2379 = vld [vmem:[%s23 + $0x30] sm:$0xff]
        %v2380 = vld [vmem:[%s23 + $0x38] sm:$0xff]
        %v2381 = vld [vmem:[%s23 + $0x40] sm:$0xff]
        %v2382 = vld [vmem:[%s23 + $0x48] sm:$0xff]
        %v2383 = vld [vmem:[%s23 + $0x50] sm:$0xff]
        %v2384 = vld [vmem:[%s23 + $0x58] sm:$0xff]
        %v2385 = vld [vmem:[%s23 + $0x60] sm:$0xff]
        %v2386 = vld [vmem:[%s23 + $0x68] sm:$0xff]
        %v2387 = vld [vmem:[%s23 + $0x70] sm:$0xff]
        %v2388 = vld [vmem:[%s23 + $0x78] sm:$0xff]
        %v2389 = vld [vmem:[%s25] sm:$0x1]
        %v2391 = vperm.slane %v2389, 0
        %2393 = vmatpush.msra.mxu0 %v2388
        %2394 = vmatpush.msra.mxu0 %v2387
        %2395 = vmatpush.msra.mxu0 %v2386
        %2396 = vmatpush.msra.mxu0 %v2385
        %2397 = vmatpush.msra.mxu0 %v2384
        %2398 = vmatpush.msra.mxu0 %v2383
        %2399 = vmatpush.msra.mxu0 %v2382
        %2400 = vmatpush.msra.mxu0 %v2381
        %2401 = vmatpush.msra.mxu0 %v2380
        %2402 = vmatpush.msra.mxu0 %v2379
        %2403 = vmatpush.msra.mxu0 %v2378
        %2404 = vmatpush.msra.mxu0 %v2377
        %2405 = vmatpush.msra.mxu0 %v2376
        %2406 = vmatpush.msra.mxu0 %v2375
        %2407 = vmatpush.msra.mxu0 %v2374
        %2408 = vmatpush.msra.mxu0 %v2373
        %2409 = vmatmul.f32.gmra.mxu0 %v2370
        %v2410 = vpop.f32.mrf.mxu0
        %v2411 = vadd.f32 %v2391, %v2410
        %2412 = vmatmul.f32.gmra.mxu0 %v2371
        %v2413 = vpop.f32.mrf.mxu0
        %v2414 = vadd.f32 %v2391, %v2413
        %2415 = vmatmul.f32.gmra.mxu0 %v2372
        %v2416 = vpop.f32.mrf.mxu0
        %v2417 = vadd.f32 %v2391, %v2416
        %2418 = vdwg.mxu0
        %v2419 = vadd.f32 %v2224, %v2411
        %v2420 = vadd.f32 %v2225, %v2414
        %v2421 = vadd.f32 %v2226, %v2417
        %s2422 = scalar_lea.vmem %s7, 2
        %v2423 = vld [vmem:[%s2422] sm:$0x1]
        %v2424 = vld [vmem:[%s2422 + $0x1] sm:$0x1]
        %v2425 = vsel %vm1746, %v2419, 0.0
        %2426 = vadd.xlane.f32.xlu0 %v2425
        %v2427 = vpop.xlane.xlu0 %2426
        %v2428 = vsel %vm1746, %v2420, 0.0
        %2429 = vadd.xlane.f32.xlu0 %v2428
        %v2430 = vpop.xlane.xlu0 %2429
        %v2431 = vsel %vm1749, %v2421, 0.0
        %2432 = vadd.xlane.f32.xlu0 %v2431
        %v2433 = vpop.xlane.xlu0 %2432
        %v2434 = vmul.f32 %v2427, %v1777
        %v2435 = vmul.f32 %v2430, %v1777
        %v2436 = vmul.f32 %v2433, %v1777
        %v2437 = vsub.f32 %v2419, %v2434
        %v2438 = vsub.f32 %v2420, %v2435
        %v2439 = vsub.f32 %v2421, %v2436
        %v2440 = vmul.f32 %v2437, %v2437
        %v2441 = vmul.f32 %v2438, %v2438
        %v2442 = vmul.f32 %v2439, %v2439
        %v2443 = vsel %vm1746, %v2440, 0.0
        %2444 = vadd.xlane.f32.xlu0 %v2443
        %v2445 = vpop.xlane.xlu0 %2444
        %v2446 = vsel %vm1746, %v2441, 0.0
        %2447 = vadd.xlane.f32.xlu0 %v2446
        %v2448 = vpop.xlane.xlu0 %2447
        %v2449 = vsel %vm1749, %v2442, 0.0
        %2450 = vadd.xlane.f32.xlu0 %v2449
        %v2451 = vpop.xlane.xlu0 %2450
        %v2452 = vmul.f32 %v2445, %v1777
        %v2453 = vmul.f32 %v2448, %v1777
        %v2454 = vmul.f32 %v2451, %v1777
        %v2455 = vadd.f32 %v2452, 1e-05
        %v2456 = vadd.f32 %v2453, 1e-05
        %v2457 = vadd.f32 %v2454, 1e-05
        %v2458 = vrsqrt.pop %v2455
        %v2459 = vmul.f32 %v2458, %v2455
        %v2460 = vmul.f32 %v2459, %v2458
        %v2461 = vmul.f32 0.5, %v2460
        %v2462 = vsub.f32 1.5, %v2461
        %v2463 = vmul.f32 %v2458, %v2462
        %vm2464 = vweird.f32 %v2455
        %vm2465 = vweird.f32 %v2458
        %vm2466 = vmor %vm2464, %vm2465
        %v2467 = vsel %vm2466, %v2458, %v2463
        %v2468 = vrsqrt.pop %v2456
        %v2469 = vmul.f32 %v2468, %v2456
        %v2470 = vmul.f32 %v2469, %v2468
        %v2471 = vmul.f32 0.5, %v2470
        %v2472 = vsub.f32 1.5, %v2471
        %v2473 = vmul.f32 %v2468, %v2472
        %vm2474 = vweird.f32 %v2456
        %vm2475 = vweird.f32 %v2468
        %vm2476 = vmor %vm2474, %vm2475
        %v2477 = vsel %vm2476, %v2468, %v2473
        %v2478 = vrsqrt.pop %v2457
        %v2479 = vmul.f32 %v2478, %v2457
        %v2480 = vmul.f32 %v2479, %v2478
        %v2481 = vmul.f32 0.5, %v2480
        %v2482 = vsub.f32 1.5, %v2481
        %v2483 = vmul.f32 %v2478, %v2482
        %vm2484 = vweird.f32 %v2457
        %vm2485 = vweird.f32 %v2478
        %vm2486 = vmor %vm2484, %vm2485
        %v2487 = vsel %vm2486, %v2478, %v2483
        %v2488 = vmul.f32 %v2437, %v2467
        %v2489 = vmul.f32 %v2438, %v2477
        %v2490 = vmul.f32 %v2439, %v2487
        %v2491 = vperm.slane %v2423, 0
        %v2492 = vmul.f32 %v2488, %v2491
        %v2493 = vmul.f32 %v2489, %v2491
        %v2494 = vmul.f32 %v2490, %v2491
        %v2495 = vperm.slane %v2424, 0
        %v2496 = vadd.f32 %v2492, %v2495
        %v2497 = vadd.f32 %v2493, %v2495
        %v2498 = vadd.f32 %v2494, %v2495
        %s2499 = scalar_lea.vmem %s9, 32
        %v2500 = vld [vmem:[%s2499] sm:$0xff]
        %v2501 = vld [vmem:[%s2499 + $0x8] sm:$0xff]
        %v2502 = vld [vmem:[%s2499 + $0x10] sm:$0xff]
        %v2503 = vld [vmem:[%s2499 + $0x18] sm:$0xff]
        %s2504 = scalar_lea.vmem %s11, 1
        %v2505 = vld [vmem:[%s2504] sm:$0x1]
        %s2506 = scalar_lea.vmem %s13, 32
        %v2507 = vld [vmem:[%s2506] sm:$0xff]
        %v2508 = vld [vmem:[%s2506 + $0x8] sm:$0xff]
        %v2509 = vld [vmem:[%s2506 + $0x10] sm:$0xff]
        %v2510 = vld [vmem:[%s2506 + $0x18] sm:$0xff]
        %s2511 = scalar_lea.vmem %s15, 1
        %v2512 = vld [vmem:[%s2511] sm:$0x1]
        %v2514 = vperm.slane %v2505, 0
        %v2517 = vsel %vm1746, %v2496, 0
        %v2520 = vsel %vm1746, %v2497, 0
        %v2523 = vsel %vm1746, %v2498, 0
        %2525 = vmatpush.msra.mxu0 0.0
        %2526 = vmatpush.msra.mxu0 0.0
        %2527 = vmatpush.msra.mxu0 0.0
        %2528 = vmatpush.msra.mxu0 0.0
        %2529 = vmatpush.msra.mxu0 0.0
        %2530 = vmatpush.msra.mxu0 0.0
        %2531 = vmatpush.msra.mxu0 0.0
        %2532 = vmatpush.msra.mxu0 0.0
        %2533 = vmatpush.msra.mxu0 0.0
        %2534 = vmatpush.msra.mxu0 0.0
        %2535 = vmatpush.msra.mxu0 0.0
        %2536 = vmatpush.msra.mxu0 0.0
        %2537 = vmatpush.msra.mxu0 %v2503
        %2538 = vmatpush.msra.mxu0 %v2502
        %2539 = vmatpush.msra.mxu0 %v2501
        %2540 = vmatpush.msra.mxu0 %v2500
        %2541 = vmatmul.f32.gmra.mxu0 %v2517
        %v2542 = vpop.f32.mrf.mxu0
        %v2543 = vadd.f32 %v2514, %v2542
        %2544 = vmatmul.f32.gmra.mxu0 %v2520
        %v2545 = vpop.f32.mrf.mxu0
        %v2546 = vadd.f32 %v2514, %v2545
        %2547 = vmatmul.f32.gmra.mxu0 %v2523
        %v2548 = vpop.f32.mrf.mxu0
        %v2549 = vadd.f32 %v2514, %v2548
        %2550 = vdwg.mxu0
        %2554 = vrot.lane.b32.xlu0 %v2543, 96
        %v2555 = vpop.permute.xlu0 %2554
        %2556 = vrot.lane.b32.xlu0 %v2546, 96
        %v2557 = vpop.permute.xlu0 %2556
        %2558 = vrot.lane.b32.xlu0 %v2549, 96
        %v2559 = vpop.permute.xlu0 %2558
        %v2560 = vsel %vm1900, %v2543, 0
        %v2562 = vsel %vm1900, %v2546, 0
        %v2564 = vsel %vm1900, %v2549, 0
        %v2566 = vsel %vm1900, %v2555, 0
        %v2568 = vsel %vm1900, %v2557, 0
        %v2570 = vsel %vm1900, %v2559, 0
        %2572 = vmatpush.xpose.msra.mxu0 0.0
        %2573 = vmatpush.xpose.msra.mxu0 0.0
        %2574 = vmatpush.xpose.msra.mxu0 0.0
        %2575 = vmatpush.xpose.msra.mxu0 0.0
        %2576 = vmatpush.xpose.msra.mxu0 0.0
        %2577 = vmatpush.xpose.msra.mxu0 0.0
        %2578 = vmatpush.xpose.msra.mxu0 0.0
        %2579 = vmatpush.xpose.msra.mxu0 0.0
        %2580 = vmatpush.xpose.msra.mxu0 0.0
        %2581 = vmatpush.xpose.msra.mxu0 0.0
        %2582 = vmatpush.xpose.msra.mxu0 0.0
        %2583 = vmatpush.xpose.msra.mxu0 0.0
        %2584 = vmatpush.xpose.msra.mxu0 0.0
        %2585 = vmatpush.xpose.msra.mxu0 %v2570
        %2586 = vmatpush.xpose.msra.mxu0 %v2568
        %2587 = vmatpush.xpose.msra.mxu0 %v2566
        %2588 = vmatmul.f32.gmra.mxu0 %v2560
        %v2589 = vpop.f32.mrf.mxu0
        %v2590 = vadd.f32 0.0, %v2589
        %2591 = vmatmul.f32.gmra.mxu0 %v2562
        %v2592 = vpop.f32.mrf.mxu0
        %v2593 = vadd.f32 0.0, %v2592
        %2594 = vmatmul.f32.gmra.mxu0 %v2564
        %v2595 = vpop.f32.mrf.mxu0
        %v2596 = vadd.f32 0.0, %v2595
        %2597 = vdwg.mxu0
        %v2598 = vsel %vm1939, %v2590, -inf
        %2599 = vmax.xlane.f32.xlu0 %v2598
        %v2600 = vpop.xlane.xlu0 %2599
        %v2601 = vsel %vm1939, %v2593, -inf
        %2602 = vmax.xlane.f32.xlu0 %v2601
        %v2603 = vpop.xlane.xlu0 %2602
        %v2604 = vsel %vm1946, %v2596, -inf
        %2605 = vmax.xlane.f32.xlu0 %v2604
        %v2606 = vpop.xlane.xlu0 %2605
        %v2607 = vsub.f32 %v2590, %v2600
        %v2608 = vsub.f32 %v2593, %v2603
        %v2609 = vsub.f32 %v2596, %v2606
        %v2610 = vmul.f32 %v2607, 1.442695
        %v2611 = vpow.pop %v2610
        %v2612 = vmul.f32 %v2608, 1.442695
        %v2613 = vpow.pop %v2612
        %v2614 = vmul.f32 %v2609, 1.442695
        %v2615 = vpow.pop %v2614
        %v2616 = vsel %vm1939, %v2611, 0.0
        %2617 = vadd.xlane.f32.xlu0 %v2616
        %v2618 = vpop.xlane.xlu0 %2617
        %v2619 = vsel %vm1939, %v2613, 0.0
        %2620 = vadd.xlane.f32.xlu0 %v2619
        %v2621 = vpop.xlane.xlu0 %2620
        %v2622 = vsel %vm1946, %v2615, 0.0
        %2623 = vadd.xlane.f32.xlu0 %v2622
        %v2624 = vpop.xlane.xlu0 %2623
        %v2625 = vrcp.pop %v2618
        %v2626 = vrcp.pop %v2621
        %v2627 = vrcp.pop %v2624
        %v2628 = vmul.f32 %v2611, %v2625
        %v2629 = vmul.f32 %v2613, %v2626
        %v2630 = vmul.f32 %v2615, %v2627
        %2631 = vrot.lane.b32.xlu0 %v2543, 64
        %v2632 = vpop.permute.xlu0 %2631
        %2633 = vrot.lane.b32.xlu0 %v2546, 64
        %v2634 = vpop.permute.xlu0 %2633
        %2635 = vrot.lane.b32.xlu0 %v2549, 64
        %v2636 = vpop.permute.xlu0 %2635
        %v2640 = vsel %vm1939, %v2628, 0
        %v2643 = vsel %vm1939, %v2629, 0
        %v2646 = vsel %vm1939, %v2630, 0
        %v2648 = vsel %vm1991, %v2636, 0
        %2650 = vmatpush.msra.mxu0 0.0
        %2651 = vmatpush.msra.mxu0 0.0
        %2652 = vmatpush.msra.mxu0 0.0
        %2653 = vmatpush.msra.mxu0 0.0
        %2654 = vmatpush.msra.mxu0 0.0
        %2655 = vmatpush.msra.mxu0 0.0
        %2656 = vmatpush.msra.mxu0 0.0
        %2657 = vmatpush.msra.mxu0 0.0
        %2658 = vmatpush.msra.mxu0 0.0
        %2659 = vmatpush.msra.mxu0 0.0
        %2660 = vmatpush.msra.mxu0 0.0
        %2661 = vmatpush.msra.mxu0 0.0
        %2662 = vmatpush.msra.mxu0 0.0
        %2663 = vmatpush.msra.mxu0 %v2648
        %2664 = vmatpush.msra.mxu0 %v2634
        %2665 = vmatpush.msra.mxu0 %v2632
        %2666 = vmatmul.f32.gmra.mxu0 %v2640
        %v2667 = vpop.f32.mrf.mxu0
        %v2668 = vadd.f32 0.0, %v2667
        %2669 = vmatmul.f32.gmra.mxu0 %v2643
        %v2670 = vpop.f32.mrf.mxu0
        %v2671 = vadd.f32 0.0, %v2670
        %2672 = vmatmul.f32.gmra.mxu0 %v2646
        %v2673 = vpop.f32.mrf.mxu0
        %v2674 = vadd.f32 0.0, %v2673
        %2675 = vdwg.mxu0
        %2676 = vrot.lane.b32.xlu0 %v2543, 112
        %v2677 = vpop.permute.xlu0 %2676
        %2678 = vrot.lane.b32.xlu0 %v2546, 112
        %v2679 = vpop.permute.xlu0 %2678
        %2680 = vrot.lane.b32.xlu0 %v2549, 112
        %v2681 = vpop.permute.xlu0 %2680
        %2682 = vrot.lane.b32.xlu0 %v2543, 80
        %v2683 = vpop.permute.xlu0 %2682
        %2684 = vrot.lane.b32.xlu0 %v2546, 80
        %v2685 = vpop.permute.xlu0 %2684
        %2686 = vrot.lane.b32.xlu0 %v2549, 80
        %v2687 = vpop.permute.xlu0 %2686
        %v2688 = vsel %vm1900, %v2677, 0
        %v2690 = vsel %vm1900, %v2679, 0
        %v2692 = vsel %vm1900, %v2681, 0
        %v2694 = vsel %vm1900, %v2683, 0
        %v2696 = vsel %vm1900, %v2685, 0
        %v2698 = vsel %vm1900, %v2687, 0
        %2700 = vmatpush.xpose.msra.mxu0 0.0
        %2701 = vmatpush.xpose.msra.mxu0 0.0
        %2702 = vmatpush.xpose.msra.mxu0 0.0
        %2703 = vmatpush.xpose.msra.mxu0 0.0
        %2704 = vmatpush.xpose.msra.mxu0 0.0
        %2705 = vmatpush.xpose.msra.mxu0 0.0
        %2706 = vmatpush.xpose.msra.mxu0 0.0
        %2707 = vmatpush.xpose.msra.mxu0 0.0
        %2708 = vmatpush.xpose.msra.mxu0 0.0
        %2709 = vmatpush.xpose.msra.mxu0 0.0
        %2710 = vmatpush.xpose.msra.mxu0 0.0
        %2711 = vmatpush.xpose.msra.mxu0 0.0
        %2712 = vmatpush.xpose.msra.mxu0 0.0
        %2713 = vmatpush.xpose.msra.mxu0 %v2698
        %2714 = vmatpush.xpose.msra.mxu0 %v2696
        %2715 = vmatpush.xpose.msra.mxu0 %v2694
        %2716 = vmatmul.f32.gmra.mxu0 %v2688
        %v2717 = vpop.f32.mrf.mxu0
        %v2718 = vadd.f32 0.0, %v2717
        %2719 = vmatmul.f32.gmra.mxu0 %v2690
        %v2720 = vpop.f32.mrf.mxu0
        %v2721 = vadd.f32 0.0, %v2720
        %2722 = vmatmul.f32.gmra.mxu0 %v2692
        %v2723 = vpop.f32.mrf.mxu0
        %v2724 = vadd.f32 0.0, %v2723
        %2725 = vdwg.mxu0
        %v2726 = vsel %vm1939, %v2718, -inf
        %2727 = vmax.xlane.f32.xlu0 %v2726
        %v2728 = vpop.xlane.xlu0 %2727
        %v2729 = vsel %vm1939, %v2721, -inf
        %2730 = vmax.xlane.f32.xlu0 %v2729
        %v2731 = vpop.xlane.xlu0 %2730
        %v2732 = vsel %vm1946, %v2724, -inf
        %2733 = vmax.xlane.f32.xlu0 %v2732
        %v2734 = vpop.xlane.xlu0 %2733
        %v2735 = vsub.f32 %v2718, %v2728
        %v2736 = vsub.f32 %v2721, %v2731
        %v2737 = vsub.f32 %v2724, %v2734
        %v2738 = vmul.f32 %v2735, 1.442695
        %v2739 = vpow.pop %v2738
        %v2740 = vmul.f32 %v2736, 1.442695
        %v2741 = vpow.pop %v2740
        %v2742 = vmul.f32 %v2737, 1.442695
        %v2743 = vpow.pop %v2742
        %v2744 = vsel %vm1939, %v2739, 0.0
        %2745 = vadd.xlane.f32.xlu0 %v2744
        %v2746 = vpop.xlane.xlu0 %2745
        %v2747 = vsel %vm1939, %v2741, 0.0
        %2748 = vadd.xlane.f32.xlu0 %v2747
        %v2749 = vpop.xlane.xlu0 %2748
        %v2750 = vsel %vm1946, %v2743, 0.0
        %2751 = vadd.xlane.f32.xlu0 %v2750
        %v2752 = vpop.xlane.xlu0 %2751
        %v2753 = vrcp.pop %v2746
        %v2754 = vrcp.pop %v2749
        %v2755 = vrcp.pop %v2752
        %v2756 = vmul.f32 %v2739, %v2753
        %v2757 = vmul.f32 %v2741, %v2754
        %v2758 = vmul.f32 %v2743, %v2755
        %2759 = vrot.lane.b32.xlu0 %v2543, 48
        %v2760 = vpop.permute.xlu0 %2759
        %2761 = vrot.lane.b32.xlu0 %v2546, 48
        %v2762 = vpop.permute.xlu0 %2761
        %2763 = vrot.lane.b32.xlu0 %v2549, 48
        %v2764 = vpop.permute.xlu0 %2763
        %v2768 = vsel %vm1939, %v2756, 0
        %v2771 = vsel %vm1939, %v2757, 0
        %v2774 = vsel %vm1939, %v2758, 0
        %v2776 = vsel %vm1991, %v2764, 0
        %2778 = vmatpush.msra.mxu0 0.0
        %2779 = vmatpush.msra.mxu0 0.0
        %2780 = vmatpush.msra.mxu0 0.0
        %2781 = vmatpush.msra.mxu0 0.0
        %2782 = vmatpush.msra.mxu0 0.0
        %2783 = vmatpush.msra.mxu0 0.0
        %2784 = vmatpush.msra.mxu0 0.0
        %2785 = vmatpush.msra.mxu0 0.0
        %2786 = vmatpush.msra.mxu0 0.0
        %2787 = vmatpush.msra.mxu0 0.0
        %2788 = vmatpush.msra.mxu0 0.0
        %2789 = vmatpush.msra.mxu0 0.0
        %2790 = vmatpush.msra.mxu0 0.0
        %2791 = vmatpush.msra.mxu0 %v2776
        %2792 = vmatpush.msra.mxu0 %v2762
        %2793 = vmatpush.msra.mxu0 %v2760
        %2794 = vmatmul.f32.gmra.mxu0 %v2768
        %v2795 = vpop.f32.mrf.mxu0
        %v2796 = vadd.f32 0.0, %v2795
        %2797 = vmatmul.f32.gmra.mxu0 %v2771
        %v2798 = vpop.f32.mrf.mxu0
        %v2799 = vadd.f32 0.0, %v2798
        %2800 = vmatmul.f32.gmra.mxu0 %v2774
        %v2801 = vpop.f32.mrf.mxu0
        %v2802 = vadd.f32 0.0, %v2801
        %2803 = vdwg.mxu0
        %v2805 = vsel %vm1900, %v2796, 0
        %v2808 = vsel %vm1900, %v2799, 0
        %v2811 = vsel %vm1900, %v2802, 0
        %2813 = vmatpush.msra.mxu0 0.0
        %2814 = vmatpush.msra.mxu0 0.0
        %2815 = vmatpush.msra.mxu0 0.0
        %2816 = vmatpush.msra.mxu0 0.0
        %2817 = vmatpush.msra.mxu0 0.0
        %2818 = vmatpush.msra.mxu0 0.0
        %2819 = vmatpush.msra.mxu0 0.0
        %2820 = vmatpush.msra.mxu0 0.0
        %2821 = vmatpush.msra.mxu0 0.0
        %2822 = vmatpush.msra.mxu0 0.0
        %2823 = vmatpush.msra.mxu0 0.0
        %2824 = vmatpush.msra.mxu0 0.0
        %2825 = vmatpush.msra.mxu0 0.0
        %2826 = vmatpush.msra.mxu0 0.0
        %2827 = vmatpush.msra.mxu0 %v2510
        %2828 = vmatpush.msra.mxu0 %v2509
        %2829 = vmatmul.f32.gmra.mxu0 %v2805
        %v2830 = vpop.f32.mrf.mxu0
        %v2831 = vadd.f32 0.0, %v2830
        %2832 = vmatmul.f32.gmra.mxu0 %v2808
        %v2833 = vpop.f32.mrf.mxu0
        %v2834 = vadd.f32 0.0, %v2833
        %2835 = vmatmul.f32.gmra.mxu0 %v2811
        %v2836 = vpop.f32.mrf.mxu0
        %v2837 = vadd.f32 0.0, %v2836
        %2838 = vdwg.mxu0
        %v2840 = vsel %vm1900, %v2668, 0
        %v2843 = vsel %vm1900, %v2671, 0
        %v2846 = vsel %vm1900, %v2674, 0
        %2848 = vmatpush.msra.mxu0 0.0
        %2849 = vmatpush.msra.mxu0 0.0
        %2850 = vmatpush.msra.mxu0 0.0
        %2851 = vmatpush.msra.mxu0 0.0
        %2852 = vmatpush.msra.mxu0 0.0
        %2853 = vmatpush.msra.mxu0 0.0
        %2854 = vmatpush.msra.mxu0 0.0
        %2855 = vmatpush.msra.mxu0 0.0
        %2856 = vmatpush.msra.mxu0 0.0
        %2857 = vmatpush.msra.mxu0 0.0
        %2858 = vmatpush.msra.mxu0 0.0
        %2859 = vmatpush.msra.mxu0 0.0
        %2860 = vmatpush.msra.mxu0 0.0
        %2861 = vmatpush.msra.mxu0 0.0
        %2862 = vmatpush.msra.mxu0 %v2508
        %2863 = vmatpush.msra.mxu0 %v2507
        %2864 = vmatmul.f32.gmra.mxu0 %v2840
        %v2865 = vpop.f32.mrf.mxu0
        %v2866 = vadd.f32 %v2831, %v2865
        %2867 = vmatmul.f32.gmra.mxu0 %v2843
        %v2868 = vpop.f32.mrf.mxu0
        %v2869 = vadd.f32 %v2834, %v2868
        %2870 = vmatmul.f32.gmra.mxu0 %v2846
        %v2871 = vpop.f32.mrf.mxu0
        %v2872 = vadd.f32 %v2837, %v2871
        %2873 = vdwg.mxu0
        %v2875 = vperm.slane %v2512, 0
        %v2877 = vadd.f32 %v2866, %v2875
        %v2878 = vadd.f32 %v2869, %v2875
        %v2879 = vadd.f32 %v2872, %v2875
        %v2880 = vadd.f32 %v2419, %v2877
        %v2881 = vadd.f32 %v2420, %v2878
        %v2882 = vadd.f32 %v2421, %v2879
        %s2883 = scalar_lea.vmem %s17, 2
        %v2884 = vld [vmem:[%s2883] sm:$0x1]
        %v2885 = vld [vmem:[%s2883 + $0x1] sm:$0x1]
        %v2886 = vsel %vm1746, %v2880, 0.0
        %2887 = vadd.xlane.f32.xlu0 %v2886
        %v2888 = vpop.xlane.xlu0 %2887
        %v2889 = vsel %vm1746, %v2881, 0.0
        %2890 = vadd.xlane.f32.xlu0 %v2889
        %v2891 = vpop.xlane.xlu0 %2890
        %v2892 = vsel %vm1749, %v2882, 0.0
        %2893 = vadd.xlane.f32.xlu0 %v2892
        %v2894 = vpop.xlane.xlu0 %2893
        %v2895 = vmul.f32 %v2888, %v1777
        %v2896 = vmul.f32 %v2891, %v1777
        %v2897 = vmul.f32 %v2894, %v1777
        %v2898 = vsub.f32 %v2880, %v2895
        %v2899 = vsub.f32 %v2881, %v2896
        %v2900 = vsub.f32 %v2882, %v2897
        %v2901 = vmul.f32 %v2898, %v2898
        %v2902 = vmul.f32 %v2899, %v2899
        %v2903 = vmul.f32 %v2900, %v2900
        %v2904 = vsel %vm1746, %v2901, 0.0
        %2905 = vadd.xlane.f32.xlu0 %v2904
        %v2906 = vpop.xlane.xlu0 %2905
        %v2907 = vsel %vm1746, %v2902, 0.0
        %2908 = vadd.xlane.f32.xlu0 %v2907
        %v2909 = vpop.xlane.xlu0 %2908
        %v2910 = vsel %vm1749, %v2903, 0.0
        %2911 = vadd.xlane.f32.xlu0 %v2910
        %v2912 = vpop.xlane.xlu0 %2911
        %v2913 = vmul.f32 %v2906, %v1777
        %v2914 = vmul.f32 %v2909, %v1777
        %v2915 = vmul.f32 %v2912, %v1777
        %v2916 = vadd.f32 %v2913, 1e-05
        %v2917 = vadd.f32 %v2914, 1e-05
        %v2918 = vadd.f32 %v2915, 1e-05
        %v2919 = vrsqrt.pop %v2916
        %v2920 = vmul.f32 %v2919, %v2916
        %v2921 = vmul.f32 %v2920, %v2919
        %v2922 = vmul.f32 0.5, %v2921
        %v2923 = vsub.f32 1.5, %v2922
        %v2924 = vmul.f32 %v2919, %v2923
        %vm2925 = vweird.f32 %v2916
        %vm2926 = vweird.f32 %v2919
        %vm2927 = vmor %vm2925, %vm2926
        %v2928 = vsel %vm2927, %v2919, %v2924
        %v2929 = vrsqrt.pop %v2917
        %v2930 = vmul.f32 %v2929, %v2917
        %v2931 = vmul.f32 %v2930, %v2929
        %v2932 = vmul.f32 0.5, %v2931
        %v2933 = vsub.f32 1.5, %v2932
        %v2934 = vmul.f32 %v2929, %v2933
        %vm2935 = vweird.f32 %v2917
        %vm2936 = vweird.f32 %v2929
        %vm2937 = vmor %vm2935, %vm2936
        %v2938 = vsel %vm2937, %v2929, %v2934
        %v2939 = vrsqrt.pop %v2918
        %v2940 = vmul.f32 %v2939, %v2918
        %v2941 = vmul.f32 %v2940, %v2939
        %v2942 = vmul.f32 0.5, %v2941
        %v2943 = vsub.f32 1.5, %v2942
        %v2944 = vmul.f32 %v2939, %v2943
        %vm2945 = vweird.f32 %v2918
        %vm2946 = vweird.f32 %v2939
        %vm2947 = vmor %vm2945, %vm2946
        %v2948 = vsel %vm2947, %v2939, %v2944
        %v2949 = vmul.f32 %v2898, %v2928
        %v2950 = vmul.f32 %v2899, %v2938
        %v2951 = vmul.f32 %v2900, %v2948
        %v2952 = vperm.slane %v2884, 0
        %v2953 = vmul.f32 %v2949, %v2952
        %v2954 = vmul.f32 %v2950, %v2952
        %v2955 = vmul.f32 %v2951, %v2952
        %v2956 = vperm.slane %v2885, 0
        %v2957 = vadd.f32 %v2953, %v2956
        %v2958 = vadd.f32 %v2954, %v2956
        %v2959 = vadd.f32 %v2955, %v2956
        %s2960 = scalar_lea.vmem %s19, 32
        %v2961 = vld [vmem:[%s2960] sm:$0xff]
        %v2962 = vld [vmem:[%s2960 + $0x8] sm:$0xff]
        %v2963 = vld [vmem:[%s2960 + $0x10] sm:$0xff]
        %v2964 = vld [vmem:[%s2960 + $0x18] sm:$0xff]
        %s2965 = scalar_lea.vmem %s21, 1
        %v2966 = vld [vmem:[%s2965] sm:$0x1]
        %v2968 = vperm.slane %v2966, 0
        %v2971 = vsel %vm1746, %v2957, 0
        %v2974 = vsel %vm1746, %v2958, 0
        %v2977 = vsel %vm1746, %v2959, 0
        %2979 = vmatpush.msra.mxu0 0.0
        %2980 = vmatpush.msra.mxu0 0.0
        %2981 = vmatpush.msra.mxu0 0.0
        %2982 = vmatpush.msra.mxu0 0.0
        %2983 = vmatpush.msra.mxu0 0.0
        %2984 = vmatpush.msra.mxu0 0.0
        %2985 = vmatpush.msra.mxu0 0.0
        %2986 = vmatpush.msra.mxu0 0.0
        %2987 = vmatpush.msra.mxu0 0.0
        %2988 = vmatpush.msra.mxu0 0.0
        %2989 = vmatpush.msra.mxu0 0.0
        %2990 = vmatpush.msra.mxu0 0.0
        %2991 = vmatpush.msra.mxu0 %v2964
        %2992 = vmatpush.msra.mxu0 %v2963
        %2993 = vmatpush.msra.mxu0 %v2962
        %2994 = vmatpush.msra.mxu0 %v2961
        %2995 = vmatmul.f32.gmra.mxu0 %v2971
        %v2996 = vpop.f32.mrf.mxu0
        %v2997 = vadd.f32 %v2968, %v2996
        %2998 = vmatmul.f32.gmra.mxu0 %v2974
        %v2999 = vpop.f32.mrf.mxu0
        %v3000 = vadd.f32 %v2968, %v2999
        %3001 = vmatmul.f32.gmra.mxu0 %v2977
        %v3002 = vpop.f32.mrf.mxu0
        %v3003 = vadd.f32 %v2968, %v3002
        %3004 = vdwg.mxu0
        %v3005 = vmul.f32 %v2997, %v2997
        %v3006 = vmul.f32 %v3000, %v3000
        %v3007 = vmul.f32 %v3003, %v3003
        %v3008 = vmul.f32 %v2997, %v3005
        %v3009 = vmul.f32 %v3000, %v3006
        %v3010 = vmul.f32 %v3003, %v3007
        %v3011 = vmul.f32 %v3008, 0.044715
        %v3012 = vmul.f32 %v3009, 0.044715
        %v3013 = vmul.f32 %v3010, 0.044715
        %v3014 = vadd.f32 %v2997, %v3011
        %v3015 = vadd.f32 %v3000, %v3012
        %v3016 = vadd.f32 %v3003, %v3013
        %v3017 = vmul.f32 %v3014, 0.7978846
        %v3018 = vmul.f32 %v3015, 0.7978846
        %v3019 = vmul.f32 %v3016, 0.7978846
        %v3020 = vtanh.pop %v3017
        %v3021 = vtanh.pop %v3018
        %v3022 = vtanh.pop %v3019
        %v3023 = vadd.f32 %v3020, 1.0
        %v3024 = vadd.f32 %v3021, 1.0
        %v3025 = vadd.f32 %v3022, 1.0
        %v3026 = vmul.f32 %v3023, 0.5
        %v3027 = vmul.f32 %v3024, 0.5
        %v3028 = vmul.f32 %v3025, 0.5
        %v3029 = vmul.f32 %v2997, %v3026
        %v3030 = vmul.f32 %v3000, %v3027
        %v3031 = vmul.f32 %v3003, %v3028
        %s3032 = scalar_lea.vmem %s23, 128
        %v3033 = vld [vmem:[%s3032] sm:$0xff]
        %v3034 = vld [vmem:[%s3032 + $0x8] sm:$0xff]
        %v3035 = vld [vmem:[%s3032 + $0x10] sm:$0xff]
        %v3036 = vld [vmem:[%s3032 + $0x18] sm:$0xff]
        %v3037 = vld [vmem:[%s3032 + $0x20] sm:$0xff]
        %v3038 = vld [vmem:[%s3032 + $0x28] sm:$0xff]
        %v3039 = vld [vmem:[%s3032 + $0x30] sm:$0xff]
        %v3040 = vld [vmem:[%s3032 + $0x38] sm:$0xff]
        %v3041 = vld [vmem:[%s3032 + $0x40] sm:$0xff]
        %v3042 = vld [vmem:[%s3032 + $0x48] sm:$0xff]
        %v3043 = vld [vmem:[%s3032 + $0x50] sm:$0xff]
        %v3044 = vld [vmem:[%s3032 + $0x58] sm:$0xff]
        %v3045 = vld [vmem:[%s3032 + $0x60] sm:$0xff]
        %v3046 = vld [vmem:[%s3032 + $0x68] sm:$0xff]
        %v3047 = vld [vmem:[%s3032 + $0x70] sm:$0xff]
        %v3048 = vld [vmem:[%s3032 + $0x78] sm:$0xff]
        %s3049 = scalar_lea.vmem %s25, 1
        %v3050 = vld [vmem:[%s3049] sm:$0x1]
        %v3052 = vperm.slane %v3050, 0
        %3054 = vmatpush.msra.mxu0 %v3048
        %3055 = vmatpush.msra.mxu0 %v3047
        %3056 = vmatpush.msra.mxu0 %v3046
        %3057 = vmatpush.msra.mxu0 %v3045
        %3058 = vmatpush.msra.mxu0 %v3044
        %3059 = vmatpush.msra.mxu0 %v3043
        %3060 = vmatpush.msra.mxu0 %v3042
        %3061 = vmatpush.msra.mxu0 %v3041
        %3062 = vmatpush.msra.mxu0 %v3040
        %3063 = vmatpush.msra.mxu0 %v3039
        %3064 = vmatpush.msra.mxu0 %v3038
        %3065 = vmatpush.msra.mxu0 %v3037
        %3066 = vmatpush.msra.mxu0 %v3036
        %3067 = vmatpush.msra.mxu0 %v3035
        %3068 = vmatpush.msra.mxu0 %v3034
        %3069 = vmatpush.msra.mxu0 %v3033
        %3070 = vmatmul.f32.gmra.mxu0 %v3029
        %v3071 = vpop.f32.mrf.mxu0
        %v3072 = vadd.f32 %v3052, %v3071
        %3073 = vmatmul.f32.gmra.mxu0 %v3030
        %v3074 = vpop.f32.mrf.mxu0
        %v3075 = vadd.f32 %v3052, %v3074
        %3076 = vmatmul.f32.gmra.mxu0 %v3031
        %v3077 = vpop.f32.mrf.mxu0
        %3078 = vdwg.mxu0
        %v3079 = vadd.f32 %v2880, %v3072
        %v3080 = vadd.f32 %v2881, %v3075
        %v3081 = vld [vmem:[%s27] sm:$0x1]
        %v3082 = vld [vmem:[%s27 + $0x1] sm:$0x1]
        %v3083 = vsel %vm1746, %v3079, 0.0
        %3084 = vadd.xlane.f32.xlu0 %v3083
        %v3085 = vpop.xlane.xlu0 %3084
        %v3086 = vsel %vm1746, %v3080, 0.0
        %3087 = vadd.xlane.f32.xlu0 %v3086
        %v3088 = vpop.xlane.xlu0 %3087
        %v3089 = vmul.f32 %v3085, %v1777
        %v3090 = vmul.f32 %v3088, %v1777
        %v3091 = vsub.f32 %v3079, %v3089
        %v3092 = vsub.f32 %v3080, %v3090
        %v3093 = vmul.f32 %v3091, %v3091
        %v3094 = vmul.f32 %v3092, %v3092
        %v3095 = vsel %vm1746, %v3093, 0.0
        %3096 = vadd.xlane.f32.xlu0 %v3095
        %v3097 = vpop.xlane.xlu0 %3096
        %v3098 = vsel %vm1746, %v3094, 0.0
        %3099 = vadd.xlane.f32.xlu0 %v3098
        %v3100 = vpop.xlane.xlu0 %3099
        %v3101 = vmul.f32 %v3097, %v1777
        %v3102 = vmul.f32 %v3100, %v1777
        %v3103 = vadd.f32 %v3101, 1e-05
        %v3104 = vadd.f32 %v3102, 1e-05
        %v3105 = vrsqrt.pop %v3103
        %v3106 = vmul.f32 %v3105, %v3103
        %v3107 = vmul.f32 %v3106, %v3105
        %v3108 = vmul.f32 0.5, %v3107
        %v3109 = vsub.f32 1.5, %v3108
        %v3110 = vmul.f32 %v3105, %v3109
        %vm3111 = vweird.f32 %v3103
        %vm3112 = vweird.f32 %v3105
        %vm3113 = vmor %vm3111, %vm3112
        %v3114 = vsel %vm3113, %v3105, %v3110
        %v3115 = vrsqrt.pop %v3104
        %v3116 = vmul.f32 %v3115, %v3104
        %v3117 = vmul.f32 %v3116, %v3115
        %v3118 = vmul.f32 0.5, %v3117
        %v3119 = vsub.f32 1.5, %v3118
        %v3120 = vmul.f32 %v3115, %v3119
        %vm3121 = vweird.f32 %v3104
        %vm3122 = vweird.f32 %v3115
        %vm3123 = vmor %vm3121, %vm3122
        %v3124 = vsel %vm3123, %v3115, %v3120
        %v3125 = vmul.f32 %v3091, %v3114
        %v3126 = vmul.f32 %v3092, %v3124
        %v3127 = vperm.slane %v3081, 0
        %v3128 = vmul.f32 %v3125, %v3127
        %v3129 = vmul.f32 %v3126, %v3127
        %v3130 = vperm.slane %v3082, 0
        %v3131 = vadd.f32 %v3128, %v3130
        %v3132 = vadd.f32 %v3129, %v3130
        %v3133 = vld [vmem:[%s29] sm:$0x1]
        %v3134 = vld [vmem:[%s29 + $0x1] sm:$0x1]
        %v3135 = vsel %vm1746, %v3131, 0.0
        %3136 = vadd.xlane.f32.xlu0 %v3135
        %v3137 = vpop.xlane.xlu0 %3136
        %v3138 = vsel %vm1746, %v3132, 0.0
        %3139 = vadd.xlane.f32.xlu0 %v3138
        %v3140 = vpop.xlane.xlu0 %3139
        %v3141 = vmul.f32 %v3137, %v1777
        %v3142 = vmul.f32 %v3140, %v1777
        %v3143 = vsub.f32 %v3131, %v3141
        %v3144 = vsub.f32 %v3132, %v3142
        %v3145 = vmul.f32 %v3143, %v3143
        %v3146 = vmul.f32 %v3144, %v3144
        %v3147 = vsel %vm1746, %v3145, 0.0
        %3148 = vadd.xlane.f32.xlu0 %v3147
        %v3149 = vpop.xlane.xlu0 %3148
        %v3150 = vsel %vm1746, %v3146, 0.0
        %3151 = vadd.xlane.f32.xlu0 %v3150
        %v3152 = vpop.xlane.xlu0 %3151
        %v3153 = vmul.f32 %v3149, %v1777
        %v3154 = vmul.f32 %v3152, %v1777
        %v3155 = vadd.f32 %v3153, 1e-05
        %v3156 = vadd.f32 %v3154, 1e-05
        %v3157 = vrsqrt.pop %v3155
        %v3158 = vmul.f32 %v3157, %v3155
        %v3159 = vmul.f32 %v3158, %v3157
        %v3160 = vmul.f32 0.5, %v3159
        %v3161 = vsub.f32 1.5, %v3160
        %v3162 = vmul.f32 %v3157, %v3161
        %vm3163 = vweird.f32 %v3155
        %vm3164 = vweird.f32 %v3157
        %vm3165 = vmor %vm3163, %vm3164
        %v3166 = vsel %vm3165, %v3157, %v3162
        %v3167 = vrsqrt.pop %v3156
        %v3168 = vmul.f32 %v3167, %v3156
        %v3169 = vmul.f32 %v3168, %v3167
        %v3170 = vmul.f32 0.5, %v3169
        %v3171 = vsub.f32 1.5, %v3170
        %v3172 = vmul.f32 %v3167, %v3171
        %vm3173 = vweird.f32 %v3156
        %vm3174 = vweird.f32 %v3167
        %vm3175 = vmor %vm3173, %vm3174
        %v3176 = vsel %vm3175, %v3167, %v3172
        %v3177 = vmul.f32 %v3143, %v3166
        %v3178 = vmul.f32 %v3144, %v3176
        %v3179 = vperm.slane %v3133, 0
        %v3180 = vmul.f32 %v3177, %v3179
        %v3181 = vmul.f32 %v3178, %v3179
        %v3182 = vperm.slane %v3134, 0
        %v3183 = vadd.f32 %v3180, %v3182
        %v3184 = vadd.f32 %v3181, %v3182
        %v3185 = vld [vmem:[%s31] sm:$0xff]
        %v3186 = vld [vmem:[%s31 + $0x8] sm:$0xff]
        %v3187 = vld [vmem:[%s31 + $0x10] sm:$0xff]
        %v3188 = vld [vmem:[%s31 + $0x18] sm:$0xff]
        %v3189 = vld [vmem:[#allocation3] sm:$0x1]
        %v3191 = vperm.slane %v3189, 0
        %v3194 = vsel %vm1746, %v3183, 0
        %v3197 = vsel %vm1746, %v3184, 0
        %3199 = vmatpush.msra.mxu0 0.0
        %3200 = vmatpush.msra.mxu0 0.0
        %3201 = vmatpush.msra.mxu0 0.0
        %3202 = vmatpush.msra.mxu0 0.0
        %3203 = vmatpush.msra.mxu0 0.0
        %3204 = vmatpush.msra.mxu0 0.0
        %3205 = vmatpush.msra.mxu0 0.0
        %3206 = vmatpush.msra.mxu0 0.0
        %3207 = vmatpush.msra.mxu0 0.0
        %3208 = vmatpush.msra.mxu0 0.0
        %3209 = vmatpush.msra.mxu0 0.0
        %3210 = vmatpush.msra.mxu0 0.0
        %3211 = vmatpush.msra.mxu0 %v3188
        %3212 = vmatpush.msra.mxu0 %v3187
        %3213 = vmatpush.msra.mxu0 %v3186
        %3214 = vmatpush.msra.mxu0 %v3185
        %3215 = vmatmul.f32.gmra.mxu0 %v3194
        %v3216 = vpop.f32.mrf.mxu0
        %v3217 = vadd.f32 %v3191, %v3216
        %3218 = vmatmul.f32.gmra.mxu0 %v3197
        %v3219 = vpop.f32.mrf.mxu0
        %v3220 = vadd.f32 %v3191, %v3219
        %3221 = vdwg.mxu0
        %v3222 = vmax.f32 %v3217, 0.0
        %v3223 = vmax.f32 %v3220, 0.0
        %v3224 = vld [vmem:[%s35] sm:$0xff]
        %v3225 = vld [vmem:[%s35 + $0x8] sm:$0xff]
        %v3226 = vld [vmem:[%s35 + $0x10] sm:$0xff]
        %v3227 = vld [vmem:[%s35 + $0x18] sm:$0xff]
        %v3228 = vld [vmem:[#allocation5] sm:$0x1]
        %v3230 = vperm.slane %v3228, 0
        %v3233 = vsel %vm1746, %v3222, 0
        %v3236 = vsel %vm1746, %v3223, 0
        %3238 = vmatpush.msra.mxu0 0.0
        %3239 = vmatpush.msra.mxu0 0.0
        %3240 = vmatpush.msra.mxu0 0.0
        %3241 = vmatpush.msra.mxu0 0.0
        %3242 = vmatpush.msra.mxu0 0.0
        %3243 = vmatpush.msra.mxu0 0.0
        %3244 = vmatpush.msra.mxu0 0.0
        %3245 = vmatpush.msra.mxu0 0.0
        %3246 = vmatpush.msra.mxu0 0.0
        %3247 = vmatpush.msra.mxu0 0.0
        %3248 = vmatpush.msra.mxu0 0.0
        %3249 = vmatpush.msra.mxu0 0.0
        %3250 = vmatpush.msra.mxu0 %v3227
        %3251 = vmatpush.msra.mxu0 %v3226
        %3252 = vmatpush.msra.mxu0 %v3225
        %3253 = vmatpush.msra.mxu0 %v3224
        %3254 = vmatmul.f32.gmra.mxu0 %v3233
        %v3255 = vpop.f32.mrf.mxu0
        %v3256 = vadd.f32 %v3230, %v3255
        %3257 = vmatmul.f32.gmra.mxu0 %v3236
        %v3258 = vpop.f32.mrf.mxu0
        %v3259 = vadd.f32 %v3230, %v3258
        %3260 = vdwg.mxu0
        %v3261 = vld [vmem:[%s41] sm:$0x1]
        %v3262 = vld [vmem:[%s41 + $0x1] sm:$0x1]
        %v3263 = vsel %vm1746, %v3256, 0.0
        %3264 = vadd.xlane.f32.xlu0 %v3263
        %v3265 = vpop.xlane.xlu0 %3264
        %v3266 = vsel %vm1746, %v3259, 0.0
        %3267 = vadd.xlane.f32.xlu0 %v3266
        %v3268 = vpop.xlane.xlu0 %3267
        %v3269 = vmul.f32 %v3265, %v1777
        %v3270 = vmul.f32 %v3268, %v1777
        %v3271 = vsub.f32 %v3256, %v3269
        %v3272 = vsub.f32 %v3259, %v3270
        %v3273 = vmul.f32 %v3271, %v3271
        %v3274 = vmul.f32 %v3272, %v3272
        %v3275 = vsel %vm1746, %v3273, 0.0
        %3276 = vadd.xlane.f32.xlu0 %v3275
        %v3277 = vpop.xlane.xlu0 %3276
        %v3278 = vsel %vm1746, %v3274, 0.0
        %3279 = vadd.xlane.f32.xlu0 %v3278
        %v3280 = vpop.xlane.xlu0 %3279
        %v3281 = vmul.f32 %v3277, %v1777
        %v3282 = vmul.f32 %v3280, %v1777
        %v3283 = vadd.f32 %v3281, 1e-05
        %v3284 = vadd.f32 %v3282, 1e-05
        %v3285 = vrsqrt.pop %v3283
        %v3286 = vmul.f32 %v3285, %v3283
        %v3287 = vmul.f32 %v3286, %v3285
        %v3288 = vmul.f32 0.5, %v3287
        %v3289 = vsub.f32 1.5, %v3288
        %v3290 = vmul.f32 %v3285, %v3289
        %vm3291 = vweird.f32 %v3283
        %vm3292 = vweird.f32 %v3285
        %vm3293 = vmor %vm3291, %vm3292
        %v3294 = vsel %vm3293, %v3285, %v3290
        %v3295 = vrsqrt.pop %v3284
        %v3296 = vmul.f32 %v3295, %v3284
        %v3297 = vmul.f32 %v3296, %v3295
        %v3298 = vmul.f32 0.5, %v3297
        %v3299 = vsub.f32 1.5, %v3298
        %v3300 = vmul.f32 %v3295, %v3299
        %vm3301 = vweird.f32 %v3284
        %vm3302 = vweird.f32 %v3295
        %vm3303 = vmor %vm3301, %vm3302
        %v3304 = vsel %vm3303, %v3295, %v3300
        %v3305 = vmul.f32 %v3271, %v3294
        %v3306 = vmul.f32 %v3272, %v3304
        %v3307 = vperm.slane %v3261, 0
        %v3308 = vmul.f32 %v3305, %v3307
        %v3309 = vmul.f32 %v3306, %v3307
        %v3310 = vperm.slane %v3262, 0
        %v3311 = vadd.f32 %v3308, %v3310
        %v3312 = vadd.f32 %v3309, %v3310
        %v3313 = vld [vmem:[%s43] sm:$0xff]
        %v3314 = vld [vmem:[%s43 + $0x8] sm:$0xff]
        %v3315 = vld [vmem:[%s43 + $0x10] sm:$0xff]
        %v3316 = vld [vmem:[%s43 + $0x18] sm:$0xff]
        %v3318 = vsel %vm1746, %v3311, 0
        %v3321 = vsel %vm1746, %v3312, 0
        %3323 = vmatpush.msra.mxu0 0.0
        %3324 = vmatpush.msra.mxu0 0.0
        %3325 = vmatpush.msra.mxu0 0.0
        %3326 = vmatpush.msra.mxu0 0.0
        %3327 = vmatpush.msra.mxu0 0.0
        %3328 = vmatpush.msra.mxu0 0.0
        %3329 = vmatpush.msra.mxu0 0.0
        %3330 = vmatpush.msra.mxu0 0.0
        %3331 = vmatpush.msra.mxu0 0.0
        %3332 = vmatpush.msra.mxu0 0.0
        %3333 = vmatpush.msra.mxu0 0.0
        %3334 = vmatpush.msra.mxu0 0.0
        %3335 = vmatpush.msra.mxu0 %v3316
        %3336 = vmatpush.msra.mxu0 %v3315
        %3337 = vmatpush.msra.mxu0 %v3314
        %3338 = vmatpush.msra.mxu0 %v3313
        %3339 = vmatmul.f32.gmra.mxu0 %v3318
        %v3340 = vpop.f32.mrf.mxu0
        %v3341 = vadd.f32 0.0, %v3340
        %3342 = vmatmul.f32.gmra.mxu0 %v3321
        %v3343 = vpop.f32.mrf.mxu0
        %v3344 = vadd.f32 0.0, %v3343
        %3345 = vdwg.mxu0
        %v3346 = vld [vmem:[%s39] sm:$0xf]
        %v3347 = vld [vmem:[%s45] sm:$0x1]
        %v3348 = vld [vmem:[%s45 + $0x1] sm:$0x1]
        %vm3349 = vcmask 257024
        %v3350 = vsel %vm3349, %v3346, 0.0
        %3351 = vadd.xlane.f32.xlu0 %v3350
        %v3352 = vpop.xlane.xlu0 %3351
        %v3353 = vmul.f32 %v3352, %v1777
        %v3354 = vsub.f32 %v3346, %v3353
        %v3355 = vmul.f32 %v3354, %v3354
        %v3356 = vsel %vm3349, %v3355, 0.0
        %3357 = vadd.xlane.f32.xlu0 %v3356
        %v3358 = vpop.xlane.xlu0 %3357
        %v3359 = vmul.f32 %v3358, %v1777
        %v3360 = vadd.f32 %v3359, 1e-05
        %v3361 = vrsqrt.pop %v3360
        %v3362 = vmul.f32 %v3361, %v3360
        %v3363 = vmul.f32 %v3362, %v3361
        %v3364 = vmul.f32 0.5, %v3363
        %v3365 = vsub.f32 1.5, %v3364
        %v3366 = vmul.f32 %v3361, %v3365
        %vm3367 = vweird.f32 %v3360
        %vm3368 = vweird.f32 %v3361
        %vm3369 = vmor %vm3367, %vm3368
        %v3370 = vsel %vm3369, %v3361, %v3366
        %v3371 = vmul.f32 %v3354, %v3370
        %v3372 = vperm.slane %v3347, 0
        %v3373 = vmul.f32 %v3371, %v3372
        %v3374 = vperm.slane %v3348, 0
        %v3375 = vadd.f32 %v3373, %v3374
        %v3376 = vld [vmem:[%s47] sm:$0xff]
        %v3377 = vld [vmem:[%s47 + $0x8] sm:$0xff]
        %v3378 = vld [vmem:[%s47 + $0x10] sm:$0xff]
        %v3379 = vld [vmem:[%s47 + $0x18] sm:$0xff]
        %v3381 = vsel %vm1746, %v3375, 0
        %3383 = vmatpush.msra.mxu0 0.0
        %3384 = vmatpush.msra.mxu0 0.0
        %3385 = vmatpush.msra.mxu0 0.0
        %3386 = vmatpush.msra.mxu0 0.0
        %3387 = vmatpush.msra.mxu0 0.0
        %3388 = vmatpush.msra.mxu0 0.0
        %3389 = vmatpush.msra.mxu0 0.0
        %3390 = vmatpush.msra.mxu0 0.0
        %3391 = vmatpush.msra.mxu0 0.0
        %3392 = vmatpush.msra.mxu0 0.0
        %3393 = vmatpush.msra.mxu0 0.0
        %3394 = vmatpush.msra.mxu0 0.0
        %3395 = vmatpush.msra.mxu0 %v3379
        %3396 = vmatpush.msra.mxu0 %v3378
        %3397 = vmatpush.msra.mxu0 %v3377
        %3398 = vmatpush.msra.mxu0 %v3376
        %3399 = vmatmul.f32.gmra.mxu0 %v3381
        %v3400 = vpop.f32.mrf.mxu0
        %v3401 = vadd.f32 0.0, %v3400
        %3402 = vdwg.mxu0
        %v3404 = vsel %vm1746, %v3401, 0
        %v3407 = vsel %vm1746, %v3341, 0
        %v3410 = vsel %vm1746, %v3344, 0
        %3412 = vmatpush.xpose.msra.mxu0 0.0
        %3413 = vmatpush.xpose.msra.mxu0 0.0
        %3414 = vmatpush.xpose.msra.mxu0 0.0
        %3415 = vmatpush.xpose.msra.mxu0 0.0
        %3416 = vmatpush.xpose.msra.mxu0 0.0
        %3417 = vmatpush.xpose.msra.mxu0 0.0
        %3418 = vmatpush.xpose.msra.mxu0 0.0
        %3419 = vmatpush.xpose.msra.mxu0 0.0
        %3420 = vmatpush.xpose.msra.mxu0 0.0
        %3421 = vmatpush.xpose.msra.mxu0 0.0
        %3422 = vmatpush.xpose.msra.mxu0 0.0
        %3423 = vmatpush.xpose.msra.mxu0 0.0
        %3424 = vmatpush.xpose.msra.mxu0 0.0
        %3425 = vmatpush.xpose.msra.mxu0 0.0
        %3426 = vmatpush.xpose.msra.mxu0 %v3410
        %3427 = vmatpush.xpose.msra.mxu0 %v3407
        %3428 = vmatmul.f32.gmra.mxu0 %v3404
        %v3429 = vpop.f32.mrf.mxu0
        %v3430 = vadd.f32 0.0, %v3429
        %3431 = vdwg.mxu0
        %vm3432 = vcmask 125952
        %v3433 = vsel %vm3432, %v3430, -inf
        %v3434 = vrot.slane %v3433, 4
        %v3435 = vmax.f32 %v3433, %v3434
        %v3436 = vrot.slane %v3435, 2
        %v3437 = vmax.f32 %v3435, %v3436
        %v3438 = vrot.slane %v3437, 1
        %v3439 = vmax.f32 %v3437, %v3438
        %v3440 = vsub.f32 %v3430, %v3439
        %v3441 = vmul.f32 %v3440, 1.442695
        %v3442 = vpow.pop %v3441
        %v3443 = vsel %vm3432, %v3442, 0.0
        %v3444 = vrot.slane %v3443, 4
        %v3445 = vadd.f32 %v3443, %v3444
        %v3446 = vrot.slane %v3445, 2
        %v3447 = vadd.f32 %v3445, %v3446
        %v3448 = vrot.slane %v3447, 1
        %v3449 = vadd.f32 %v3447, %v3448
        %v3450 = vrcp.pop %v3449
        %v3451 = vmul.f32 %v3442, %v3450
        %v3452 = vadd.f32 %v3451, 1e-08
        %v3453 = vsel %vm3432, %v3452, 0.0
        %3454 = vadd.xlane.f32.xlu0 %v3453
        %v3455 = vpop.xlane.xlu0 %3454
        %v3456 = vrcp.pop %v3455
        %v3457 = vmul.f32 %v3452, %v3456
        %3458 = vrot.lane.b32.xlu0 %v3341, 96
        %v3459 = vpop.permute.xlu0 %3458
        %3460 = vrot.lane.b32.xlu0 %v3344, 96
        %v3461 = vpop.permute.xlu0 %3460
        %v3465 = vsel %vm1900, %v3457, 0
        %3467 = vmatpush.msra.mxu0 0.0
        %3468 = vmatpush.msra.mxu0 0.0
        %3469 = vmatpush.msra.mxu0 0.0
        %3470 = vmatpush.msra.mxu0 0.0
        %3471 = vmatpush.msra.mxu0 0.0
        %3472 = vmatpush.msra.mxu0 0.0
        %3473 = vmatpush.msra.mxu0 0.0
        %3474 = vmatpush.msra.mxu0 0.0
        %3475 = vmatpush.msra.mxu0 0.0
        %3476 = vmatpush.msra.mxu0 0.0
        %3477 = vmatpush.msra.mxu0 0.0
        %3478 = vmatpush.msra.mxu0 0.0
        %3479 = vmatpush.msra.mxu0 0.0
        %3480 = vmatpush.msra.mxu0 0.0
        %3481 = vmatpush.msra.mxu0 %v3461
        %3482 = vmatpush.msra.mxu0 %v3459
        %3483 = vmatmul.f32.gmra.mxu0 %v3465
        %v3484 = vpop.f32.mrf.mxu0
        %v3485 = vadd.f32 0.0, %v3484
        %3486 = vdwg.mxu0
        %v3487 = vld [vmem:[%s49] sm:$0xff]
        %v3488 = vld [vmem:[%s49 + $0x8] sm:$0xff]
        %v3489 = vld [vmem:[%s49 + $0x10] sm:$0xff]
        %v3490 = vld [vmem:[%s49 + $0x18] sm:$0xff]
        %v3491 = vld [vmem:[#allocation7] sm:$0x1]
        %v3493 = vperm.slane %v3491, 0
        %v3496 = vsel %vm1746, %v3485, 0
        %3498 = vmatpush.msra.mxu0 0.0
        %3499 = vmatpush.msra.mxu0 0.0
        %3500 = vmatpush.msra.mxu0 0.0
        %3501 = vmatpush.msra.mxu0 0.0
        %3502 = vmatpush.msra.mxu0 0.0
        %3503 = vmatpush.msra.mxu0 0.0
        %3504 = vmatpush.msra.mxu0 0.0
        %3505 = vmatpush.msra.mxu0 0.0
        %3506 = vmatpush.msra.mxu0 0.0
        %3507 = vmatpush.msra.mxu0 0.0
        %3508 = vmatpush.msra.mxu0 0.0
        %3509 = vmatpush.msra.mxu0 0.0
        %3510 = vmatpush.msra.mxu0 %v3490
        %3511 = vmatpush.msra.mxu0 %v3489
        %3512 = vmatpush.msra.mxu0 %v3488
        %3513 = vmatpush.msra.mxu0 %v3487
        %3514 = vmatmul.f32.gmra.mxu0 %v3496
        %v3515 = vpop.f32.mrf.mxu0
        %v3516 = vadd.f32 %v3493, %v3515
        %3517 = vdwg.mxu0
        %v3518 = vld [vmem:[%s51] sm:$0xff]
        %v3519 = vld [vmem:[%s51 + $0x8] sm:$0xff]
        %v3520 = vld [vmem:[%s51 + $0x10] sm:$0xff]
        %v3521 = vld [vmem:[%s51 + $0x18] sm:$0xff]
        %v3522 = vld [vmem:[#allocation8] sm:$0x1]
        %v3524 = vperm.slane %v3522, 0
        %v3527 = vsel %vm1746, %v3346, 0
        %3529 = vmatpush.msra.mxu0 0.0
        %3530 = vmatpush.msra.mxu0 0.0
        %3531 = vmatpush.msra.mxu0 0.0
        %3532 = vmatpush.msra.mxu0 0.0
        %3533 = vmatpush.msra.mxu0 0.0
        %3534 = vmatpush.msra.mxu0 0.0
        %3535 = vmatpush.msra.mxu0 0.0
        %3536 = vmatpush.msra.mxu0 0.0
        %3537 = vmatpush.msra.mxu0 0.0
        %3538 = vmatpush.msra.mxu0 0.0
        %3539 = vmatpush.msra.mxu0 0.0
        %3540 = vmatpush.msra.mxu0 0.0
        %3541 = vmatpush.msra.mxu0 %v3521
        %3542 = vmatpush.msra.mxu0 %v3520
        %3543 = vmatpush.msra.mxu0 %v3519
        %3544 = vmatpush.msra.mxu0 %v3518
        %3545 = vmatmul.f32.gmra.mxu0 %v3527
        %v3546 = vpop.f32.mrf.mxu0
        %v3547 = vadd.f32 %v3524, %v3546
        %3548 = vdwg.mxu0
        %v3549 = vadd.f32 %v3516, %v3547
        %v3550 = vxor.u32 %v3549, 2147483648
        %v3551 = vmul.f32 %v3550, 1.442695
        %v3552 = vpow.pop %v3551
        %v3553 = vadd.f32 %v3552, 1.0
        %v3554 = vrcp.pop %v3553
        %v3555 = vmul.f32 %v3553, %v3554
        %v3556 = vsub.f32 1.0, %v3555
        %v3557 = vmul.f32 %v3554, %v3556
        %v3558 = vadd.f32 %v3554, %v3557
        %vm3559 = vweird.f32 %v3553
        %vm3560 = vweird.f32 %v3554
        %vm3561 = vmor %vm3559, %vm3560
        %v3562 = vsel %vm3561, %v3554, %v3558
        %v3563 = vand.u32 2147483647, %v3553
        %vm3564 = vcmp.eq.f32.partialorder %v3563, 8.507059e+37
        %v3565 = vand.u32 %v3553, 2147483648
        %v3566 = vor.u32 1.1754944e-38, %v3565
        %v3567 = vsel %vm3564, %v3566, %v3562
        %v3568 = vmul.f32 1.0, %v3567
        %3570 = vrot.lane.b32.xlu0 %v3547, 64
        %v3571 = vpop.permute.xlu0 %3570
        %v3573 = vmul.f32 %v3568, %v3571
        %3575 = vrot.lane.b32.xlu0 %v3573, 64
        %v3576 = vpop.permute.xlu0 %3575
        %v3578 = vadd.f32 %v3516, %v3576
        %v3579 = vtanh.pop %v3578
        %v3580 = vsub.f32 1.0, %v3568
        %3582 = vrot.lane.b32.xlu0 %v3579, 96
        %v3583 = vpop.permute.xlu0 %3582
        %v3585 = vmul.f32 %v3580, %v3583
        %3586 = vrot.lane.b32.xlu0 %v3346, 32
        %v3587 = vpop.permute.xlu0 %3586
        %v3589 = vmul.f32 %v3568, %v3587
        %v3590 = vadd.f32 %v3585, %v3589
        %v3591 = vld [vmem:[%s57] sm:$0x1]
        %v3592 = vld [vmem:[%s57 + $0x1] sm:$0x1]
        %3594 = vrot.lane.b32.xlu0 %v3590, 96
        %v3595 = vpop.permute.xlu0 %3594
        %v3597 = vsel %vm3349, %v3595, 0.0
        %3598 = vadd.xlane.f32.xlu0 %v3597
        %v3599 = vpop.xlane.xlu0 %3598
        %v3600 = vmul.f32 %v3599, %v1777
        %v3601 = vsub.f32 %v3590, %v3600
        %v3602 = vmul.f32 %v3601, %v3601
        %3604 = vrot.lane.b32.xlu0 %v3602, 96
        %v3605 = vpop.permute.xlu0 %3604
        %v3607 = vsel %vm3349, %v3605, 0.0
        %3608 = vadd.xlane.f32.xlu0 %v3607
        %v3609 = vpop.xlane.xlu0 %3608
        %v3610 = vmul.f32 %v3609, %v1777
        %v3611 = vadd.f32 %v3610, 1e-05
        %v3612 = vrsqrt.pop %v3611
        %v3613 = vmul.f32 %v3612, %v3611
        %v3614 = vmul.f32 %v3613, %v3612
        %v3615 = vmul.f32 0.5, %v3614
        %v3616 = vsub.f32 1.5, %v3615
        %v3617 = vmul.f32 %v3612, %v3616
        %vm3618 = vweird.f32 %v3611
        %vm3619 = vweird.f32 %v3612
        %vm3620 = vmor %vm3618, %vm3619
        %v3621 = vsel %vm3620, %v3612, %v3617
        %v3622 = vmul.f32 %v3601, %v3621
        %v3623 = vperm.slane %v3591, 0
        %3625 = vrot.lane.b32.xlu0 %v3623, 32
        %v3626 = vpop.permute.xlu0 %3625
        %v3628 = vmul.f32 %v3622, %v3626
        %v3629 = vperm.slane %v3592, 0
        %3631 = vrot.lane.b32.xlu0 %v3629, 32
        %v3632 = vpop.permute.xlu0 %3631
        %v3634 = vadd.f32 %v3628, %v3632
        %v3635 = vld [vmem:[%s59] sm:$0xff]
        %v3636 = vld [vmem:[%s59 + $0x8] sm:$0xff]
        %v3637 = vld [vmem:[%s59 + $0x10] sm:$0xff]
        %v3638 = vld [vmem:[%s59 + $0x18] sm:$0xff]
        %v3639 = vld [vmem:[#allocation10] sm:$0x1]
        %v3641 = vperm.slane %v3639, 0
        %3644 = vrot.lane.b32.xlu0 %v3634, 96
        %v3645 = vpop.permute.xlu0 %3644
        %v3646 = vsel %vm1746, %v3645, 0
        %3648 = vmatpush.msra.mxu0 0.0
        %3649 = vmatpush.msra.mxu0 0.0
        %3650 = vmatpush.msra.mxu0 0.0
        %3651 = vmatpush.msra.mxu0 0.0
        %3652 = vmatpush.msra.mxu0 0.0
        %3653 = vmatpush.msra.mxu0 0.0
        %3654 = vmatpush.msra.mxu0 0.0
        %3655 = vmatpush.msra.mxu0 0.0
        %3656 = vmatpush.msra.mxu0 0.0
        %3657 = vmatpush.msra.mxu0 0.0
        %3658 = vmatpush.msra.mxu0 0.0
        %3659 = vmatpush.msra.mxu0 0.0
        %3660 = vmatpush.msra.mxu0 %v3638
        %3661 = vmatpush.msra.mxu0 %v3637
        %3662 = vmatpush.msra.mxu0 %v3636
        %3663 = vmatpush.msra.mxu0 %v3635
        %3664 = vmatmul.f32.gmra.mxu0 %v3646
        %v3665 = vpop.f32.mrf.mxu0
        %v3666 = vadd.f32 %v3641, %v3665
        %3667 = vdwg.mxu0
        %v3668 = vmax.f32 %v3666, 0.0
        %v3669 = vld [vmem:[%s63] sm:$0xff]
        %v3670 = vld [vmem:[%s63 + $0x8] sm:$0xff]
        %v3671 = vld [vmem:[%s63 + $0x10] sm:$0xff]
        %v3672 = vld [vmem:[%s63 + $0x18] sm:$0xff]
        %v3673 = vld [vmem:[%s63 + $0x20] sm:$0xff]
        %v3674 = vld [vmem:[%s63 + $0x28] sm:$0xff]
        %v3675 = vld [vmem:[%s63 + $0x30] sm:$0xff]
        %v3676 = vld [vmem:[%s63 + $0x38] sm:$0xff]
        %v3677 = vld [vmem:[#allocation11] sm:$0x1]
        %v3679 = vperm.slane %v3677, 0
        %vm3681 = vcmask 523264
        %v3683 = vsel %vm3681, %v3668, 0
        %3685 = vmatpush.msra.mxu0 0.0
        %3686 = vmatpush.msra.mxu0 0.0
        %3687 = vmatpush.msra.mxu0 0.0
        %3688 = vmatpush.msra.mxu0 0.0
        %3689 = vmatpush.msra.mxu0 0.0
        %3690 = vmatpush.msra.mxu0 0.0
        %3691 = vmatpush.msra.mxu0 0.0
        %3692 = vmatpush.msra.mxu0 0.0
        %3693 = vmatpush.msra.mxu0 %v3676
        %3694 = vmatpush.msra.mxu0 %v3675
        %3695 = vmatpush.msra.mxu0 %v3674
        %3696 = vmatpush.msra.mxu0 %v3673
        %3697 = vmatpush.msra.mxu0 %v3672
        %3698 = vmatpush.msra.mxu0 %v3671
        %3699 = vmatpush.msra.mxu0 %v3670
        %3700 = vmatpush.msra.mxu0 %v3669
        %3701 = vmatmul.f32.gmra.mxu0 %v3683
        %v3702 = vpop.f32.mrf.mxu0
        %v3703 = vadd.f32 %v3679, %v3702
        %3704 = vdwg.mxu0
        %3706 = vrot.lane.b32.xlu0 %v3703, 32
        %v3707 = vpop.permute.xlu0 %3706
        %v3709 = vadd.f32 %v3590, %v3707
        %3711 = vrot.lane.b32.xlu0 %v3709, 96
        %v3712 = vpop.permute.xlu0 %3711
        %v3714 = vsel %vm3349, %v3712, 0.0
        %3715 = vadd.xlane.f32.xlu0 %v3714
        %v3716 = vpop.xlane.xlu0 %3715
        %v3717 = vmul.f32 %v3716, %v1777
        %v3718 = vsub.f32 %v3709, %v3717
        %v3719 = vmul.f32 %v3718, %v3718
        %3721 = vrot.lane.b32.xlu0 %v3719, 96
        %v3722 = vpop.permute.xlu0 %3721
        %v3724 = vsel %vm3349, %v3722, 0.0
        %3725 = vadd.xlane.f32.xlu0 %v3724
        %v3726 = vpop.xlane.xlu0 %3725
        %v3727 = vmul.f32 %v3726, %v1777
        %v3728 = vadd.f32 %v3727, 1e-05
        %v3729 = vrsqrt.pop %v3728
        %v3730 = vmul.f32 %v3729, %v3728
        %v3731 = vmul.f32 %v3730, %v3729
        %v3732 = vmul.f32 0.5, %v3731
        %v3733 = vsub.f32 1.5, %v3732
        %v3734 = vmul.f32 %v3729, %v3733
        %vm3735 = vweird.f32 %v3728
        %vm3736 = vweird.f32 %v3729
        %vm3737 = vmor %vm3735, %vm3736
        %v3738 = vsel %vm3737, %v3729, %v3734
        %v3739 = vmul.f32 %v3718, %v3738
        %3741 = vrot.lane.b32.xlu0 %v3372, 32
        %v3742 = vpop.permute.xlu0 %3741
        %v3744 = vmul.f32 %v3739, %v3742
        %3746 = vrot.lane.b32.xlu0 %v3374, 32
        %v3747 = vpop.permute.xlu0 %3746
        %v3749 = vadd.f32 %v3744, %v3747
        %3751 = vrot.lane.b32.xlu0 %v3749, 96
        %v3752 = vpop.permute.xlu0 %3751
        %v3753 = vsel %vm1746, %v3752, 0
        %3755 = vmatpush.msra.mxu0 0.0
        %3756 = vmatpush.msra.mxu0 0.0
        %3757 = vmatpush.msra.mxu0 0.0
        %3758 = vmatpush.msra.mxu0 0.0
        %3759 = vmatpush.msra.mxu0 0.0
        %3760 = vmatpush.msra.mxu0 0.0
        %3761 = vmatpush.msra.mxu0 0.0
        %3762 = vmatpush.msra.mxu0 0.0
        %3763 = vmatpush.msra.mxu0 0.0
        %3764 = vmatpush.msra.mxu0 0.0
        %3765 = vmatpush.msra.mxu0 0.0
        %3766 = vmatpush.msra.mxu0 0.0
        %3767 = vmatpush.msra.mxu0 %v3379
        %3768 = vmatpush.msra.mxu0 %v3378
        %3769 = vmatpush.msra.mxu0 %v3377
        %3770 = vmatpush.msra.mxu0 %v3376
        %3771 = vmatmul.f32.gmra.mxu0 %v3753
        %v3772 = vpop.f32.mrf.mxu0
        %v3773 = vadd.f32 0.0, %v3772
        %3774 = vdwg.mxu0
        %v3776 = vsel %vm1746, %v3773, 0
        %3778 = vmatpush.xpose.msra.mxu0 0.0
        %3779 = vmatpush.xpose.msra.mxu0 0.0
        %3780 = vmatpush.xpose.msra.mxu0 0.0
        %3781 = vmatpush.xpose.msra.mxu0 0.0
        %3782 = vmatpush.xpose.msra.mxu0 0.0
        %3783 = vmatpush.xpose.msra.mxu0 0.0
        %3784 = vmatpush.xpose.msra.mxu0 0.0
        %3785 = vmatpush.xpose.msra.mxu0 0.0
        %3786 = vmatpush.xpose.msra.mxu0 0.0
        %3787 = vmatpush.xpose.msra.mxu0 0.0
        %3788 = vmatpush.xpose.msra.mxu0 0.0
        %3789 = vmatpush.xpose.msra.mxu0 0.0
        %3790 = vmatpush.xpose.msra.mxu0 0.0
        %3791 = vmatpush.xpose.msra.mxu0 0.0
        %3792 = vmatpush.xpose.msra.mxu0 %v3410
        %3793 = vmatpush.xpose.msra.mxu0 %v3407
        %3794 = vmatmul.f32.gmra.mxu0 %v3776
        %v3795 = vpop.f32.mrf.mxu0
        %v3796 = vadd.f32 0.0, %v3795
        %3797 = vdwg.mxu0
        %v3798 = vsel %vm3432, %v3796, -inf
        %v3799 = vrot.slane %v3798, 4
        %v3800 = vmax.f32 %v3798, %v3799
        %v3801 = vrot.slane %v3800, 2
        %v3802 = vmax.f32 %v3800, %v3801
        %v3803 = vrot.slane %v3802, 1
        %v3804 = vmax.f32 %v3802, %v3803
        %v3805 = vsub.f32 %v3796, %v3804
        %v3806 = vmul.f32 %v3805, 1.442695
        %v3807 = vpow.pop %v3806
        %v3808 = vsel %vm3432, %v3807, 0.0
        %v3809 = vrot.slane %v3808, 4
        %v3810 = vadd.f32 %v3808, %v3809
        %v3811 = vrot.slane %v3810, 2
        %v3812 = vadd.f32 %v3810, %v3811
        %v3813 = vrot.slane %v3812, 1
        %v3814 = vadd.f32 %v3812, %v3813
        %v3815 = vrcp.pop %v3814
        %v3816 = vmul.f32 %v3807, %v3815
        %v3817 = vadd.f32 %v3816, 1e-08
        %v3818 = vsel %vm3432, %v3817, 0.0
        %3819 = vadd.xlane.f32.xlu0 %v3818
        %v3820 = vpop.xlane.xlu0 %3819
        %v3821 = vrcp.pop %v3820
        %v3822 = vmul.f32 %v3817, %v3821
        %v3824 = vsel %vm1900, %v3822, 0
        %3826 = vmatpush.msra.mxu0 0.0
        %3827 = vmatpush.msra.mxu0 0.0
        %3828 = vmatpush.msra.mxu0 0.0
        %3829 = vmatpush.msra.mxu0 0.0
        %3830 = vmatpush.msra.mxu0 0.0
        %3831 = vmatpush.msra.mxu0 0.0
        %3832 = vmatpush.msra.mxu0 0.0
        %3833 = vmatpush.msra.mxu0 0.0
        %3834 = vmatpush.msra.mxu0 0.0
        %3835 = vmatpush.msra.mxu0 0.0
        %3836 = vmatpush.msra.mxu0 0.0
        %3837 = vmatpush.msra.mxu0 0.0
        %3838 = vmatpush.msra.mxu0 0.0
        %3839 = vmatpush.msra.mxu0 0.0
        %3840 = vmatpush.msra.mxu0 %v3461
        %3841 = vmatpush.msra.mxu0 %v3459
        %3842 = vmatmul.f32.gmra.mxu0 %v3824
        %v3843 = vpop.f32.mrf.mxu0
        %v3844 = vadd.f32 0.0, %v3843
        %3845 = vdwg.mxu0
        %v3847 = vsel %vm1746, %v3844, 0
        %3849 = vmatpush.msra.mxu0 0.0
        %3850 = vmatpush.msra.mxu0 0.0
        %3851 = vmatpush.msra.mxu0 0.0
        %3852 = vmatpush.msra.mxu0 0.0
        %3853 = vmatpush.msra.mxu0 0.0
        %3854 = vmatpush.msra.mxu0 0.0
        %3855 = vmatpush.msra.mxu0 0.0
        %3856 = vmatpush.msra.mxu0 0.0
        %3857 = vmatpush.msra.mxu0 0.0
        %3858 = vmatpush.msra.mxu0 0.0
        %3859 = vmatpush.msra.mxu0 0.0
        %3860 = vmatpush.msra.mxu0 0.0
        %3861 = vmatpush.msra.mxu0 %v3490
        %3862 = vmatpush.msra.mxu0 %v3489
        %3863 = vmatpush.msra.mxu0 %v3488
        %3864 = vmatpush.msra.mxu0 %v3487
        %3865 = vmatmul.f32.gmra.mxu0 %v3847
        %v3866 = vpop.f32.mrf.mxu0
        %v3867 = vadd.f32 %v3493, %v3866
        %3868 = vdwg.mxu0
        %v3869 = vsel %vm1746, %v3712, 0
        %3871 = vmatpush.msra.mxu0 0.0
        %3872 = vmatpush.msra.mxu0 0.0
        %3873 = vmatpush.msra.mxu0 0.0
        %3874 = vmatpush.msra.mxu0 0.0
        %3875 = vmatpush.msra.mxu0 0.0
        %3876 = vmatpush.msra.mxu0 0.0
        %3877 = vmatpush.msra.mxu0 0.0
        %3878 = vmatpush.msra.mxu0 0.0
        %3879 = vmatpush.msra.mxu0 0.0
        %3880 = vmatpush.msra.mxu0 0.0
        %3881 = vmatpush.msra.mxu0 0.0
        %3882 = vmatpush.msra.mxu0 0.0
        %3883 = vmatpush.msra.mxu0 %v3521
        %3884 = vmatpush.msra.mxu0 %v3520
        %3885 = vmatpush.msra.mxu0 %v3519
        %3886 = vmatpush.msra.mxu0 %v3518
        %3887 = vmatmul.f32.gmra.mxu0 %v3869
        %v3888 = vpop.f32.mrf.mxu0
        %v3889 = vadd.f32 %v3524, %v3888
        %3890 = vdwg.mxu0
        %v3891 = vadd.f32 %v3867, %v3889
        %v3892 = vxor.u32 %v3891, 2147483648
        %v3893 = vmul.f32 %v3892, 1.442695
        %v3894 = vpow.pop %v3893
        %v3895 = vadd.f32 %v3894, 1.0
        %v3896 = vrcp.pop %v3895
        %v3897 = vmul.f32 %v3895, %v3896
        %v3898 = vsub.f32 1.0, %v3897
        %v3899 = vmul.f32 %v3896, %v3898
        %v3900 = vadd.f32 %v3896, %v3899
        %vm3901 = vweird.f32 %v3895
        %vm3902 = vweird.f32 %v3896
        %vm3903 = vmor %vm3901, %vm3902
        %v3904 = vsel %vm3903, %v3896, %v3900
        %v3905 = vand.u32 2147483647, %v3895
        %vm3906 = vcmp.eq.f32.partialorder %v3905, 8.507059e+37
        %v3907 = vand.u32 %v3895, 2147483648
        %v3908 = vor.u32 1.1754944e-38, %v3907
        %v3909 = vsel %vm3906, %v3908, %v3904
        %v3910 = vmul.f32 1.0, %v3909
        %3912 = vrot.lane.b32.xlu0 %v3889, 64
        %v3913 = vpop.permute.xlu0 %3912
        %v3915 = vmul.f32 %v3910, %v3913
        %3917 = vrot.lane.b32.xlu0 %v3915, 64
        %v3918 = vpop.permute.xlu0 %3917
        %v3920 = vadd.f32 %v3867, %v3918
        %v3921 = vtanh.pop %v3920
        %v3922 = vsub.f32 1.0, %v3910
        %3924 = vrot.lane.b32.xlu0 %v3921, 96
        %v3925 = vpop.permute.xlu0 %3924
        %v3927 = vmul.f32 %v3922, %v3925
        %v3928 = vmul.f32 %v3910, %v3709
        %v3929 = vadd.f32 %v3927, %v3928
        %3931 = vrot.lane.b32.xlu0 %v3929, 96
        %v3932 = vpop.permute.xlu0 %3931
        %v3934 = vsel %vm3349, %v3932, 0.0
        %3935 = vadd.xlane.f32.xlu0 %v3934
        %v3936 = vpop.xlane.xlu0 %3935
        %v3937 = vmul.f32 %v3936, %v1777
        %v3938 = vsub.f32 %v3929, %v3937
        %v3939 = vmul.f32 %v3938, %v3938
        %3941 = vrot.lane.b32.xlu0 %v3939, 96
        %v3942 = vpop.permute.xlu0 %3941
        %v3944 = vsel %vm3349, %v3942, 0.0
        %3945 = vadd.xlane.f32.xlu0 %v3944
        %v3946 = vpop.xlane.xlu0 %3945
        %v3947 = vmul.f32 %v3946, %v1777
        %v3948 = vadd.f32 %v3947, 1e-05
        %v3949 = vrsqrt.pop %v3948
        %v3950 = vmul.f32 %v3949, %v3948
        %v3951 = vmul.f32 %v3950, %v3949
        %v3952 = vmul.f32 0.5, %v3951
        %v3953 = vsub.f32 1.5, %v3952
        %v3954 = vmul.f32 %v3949, %v3953
        %vm3955 = vweird.f32 %v3948
        %vm3956 = vweird.f32 %v3949
        %vm3957 = vmor %vm3955, %vm3956
        %v3958 = vsel %vm3957, %v3949, %v3954
        %v3959 = vmul.f32 %v3938, %v3958
        %v3960 = vmul.f32 %v3959, %v3626
        %v3961 = vadd.f32 %v3960, %v3632
        %3963 = vrot.lane.b32.xlu0 %v3961, 96
        %v3964 = vpop.permute.xlu0 %3963
        %v3965 = vsel %vm1746, %v3964, 0
        %3967 = vmatpush.msra.mxu0 0.0
        %3968 = vmatpush.msra.mxu0 0.0
        %3969 = vmatpush.msra.mxu0 0.0
        %3970 = vmatpush.msra.mxu0 0.0
        %3971 = vmatpush.msra.mxu0 0.0
        %3972 = vmatpush.msra.mxu0 0.0
        %3973 = vmatpush.msra.mxu0 0.0
        %3974 = vmatpush.msra.mxu0 0.0
        %3975 = vmatpush.msra.mxu0 0.0
        %3976 = vmatpush.msra.mxu0 0.0
        %3977 = vmatpush.msra.mxu0 0.0
        %3978 = vmatpush.msra.mxu0 0.0
        %3979 = vmatpush.msra.mxu0 %v3638
        %3980 = vmatpush.msra.mxu0 %v3637
        %3981 = vmatpush.msra.mxu0 %v3636
        %3982 = vmatpush.msra.mxu0 %v3635
        %3983 = vmatmul.f32.gmra.mxu0 %v3965
        %v3984 = vpop.f32.mrf.mxu0
        %v3985 = vadd.f32 %v3641, %v3984
        %3986 = vdwg.mxu0
        %v3987 = vmax.f32 %v3985, 0.0
        %v3989 = vsel %vm3681, %v3987, 0
        %3991 = vmatpush.msra.mxu0 0.0
        %3992 = vmatpush.msra.mxu0 0.0
        %3993 = vmatpush.msra.mxu0 0.0
        %3994 = vmatpush.msra.mxu0 0.0
        %3995 = vmatpush.msra.mxu0 0.0
        %3996 = vmatpush.msra.mxu0 0.0
        %3997 = vmatpush.msra.mxu0 0.0
        %3998 = vmatpush.msra.mxu0 0.0
        %3999 = vmatpush.msra.mxu0 %v3676
        %4000 = vmatpush.msra.mxu0 %v3675
        %4001 = vmatpush.msra.mxu0 %v3674
        %4002 = vmatpush.msra.mxu0 %v3673
        %4003 = vmatpush.msra.mxu0 %v3672
        %4004 = vmatpush.msra.mxu0 %v3671
        %4005 = vmatpush.msra.mxu0 %v3670
        %4006 = vmatpush.msra.mxu0 %v3669
        %4007 = vmatmul.f32.gmra.mxu0 %v3989
        %v4008 = vpop.f32.mrf.mxu0
        %v4009 = vadd.f32 %v3679, %v4008
        %4010 = vdwg.mxu0
        %4012 = vrot.lane.b32.xlu0 %v4009, 32
        %v4013 = vpop.permute.xlu0 %4012
        %v4015 = vadd.f32 %v3929, %v4013
        %v4016 = vlaneseq
        %v4017 = vshrl.u32 %v4016, 7
        %v4018 = vadd.s32 %v4017, 8
        %v4019 = vlaneseq
        %v4020 = vand.u32 %v4019, 127
        %vm4021 = vcmp.le.s32.totalorder %v4020, %v4017
        %vm4022 = vcmp.le.s32.totalorder %v4020, %v4018
        %v4023 = vsub.s32 %v4017, 1
        %v4024 = vsub.s32 %v4018, 1
        %vm4025 = vcmp.eq.s32.totalorder %v4020, %v4023
        %vm4026 = vcmp.eq.s32.totalorder %v4020, %v4024
        %v4027 = vsel %vm4025, 1, 0
        %v4028 = vsel %vm4026, 1, 0
        %v4029 = vcvt.s32.f32 %v4027
        %v4030 = vcvt.s32.f32 %v4028
        %v4032 = vsel %vm1900, %v4029, 0
        %v4035 = vsel %vm1900, %v4030, 0
        %4037 = vmatpush.msra.mxu0 0.0
        %4038 = vmatpush.msra.mxu0 0.0
        %4039 = vmatpush.msra.mxu0 0.0
        %4040 = vmatpush.msra.mxu0 0.0
        %4041 = vmatpush.msra.mxu0 0.0
        %4042 = vmatpush.msra.mxu0 0.0
        %4043 = vmatpush.msra.mxu0 0.0
        %4044 = vmatpush.msra.mxu0 0.0
        %4045 = vmatpush.msra.mxu0 0.0
        %4046 = vmatpush.msra.mxu0 0.0
        %4047 = vmatpush.msra.mxu0 0.0
        %4048 = vmatpush.msra.mxu0 0.0
        %4049 = vmatpush.msra.mxu0 0.0
        %4050 = vmatpush.msra.mxu0 0.0
        %4051 = vmatpush.msra.mxu0 %v3132
        %4052 = vmatpush.msra.mxu0 %v3131
        %4053 = vmatmul.f32.gmra.mxu0 %v4032
        %v4054 = vpop.f32.mrf.mxu0
        %v4055 = vadd.f32 0.0, %v4054
        %4056 = vmatmul.f32.gmra.mxu0 %v4035
        %v4057 = vpop.f32.mrf.mxu0
        %v4058 = vadd.f32 0.0, %v4057
        %4059 = vdwg.mxu0
        %vm4060 = vcmp.eq.s32.totalorder %v4017, 0
        %vm4061 = vcmp.eq.s32.totalorder %v4018, 0
        %v4062 = vld [vmem:[#allocation13] sm:$0x1]
        %v4064 = vperm.slane %v4062, 0
        %v4066 = vsel %vm4060, %v4064, %v4055
        %v4067 = vsel %vm4061, %v4064, %v4058
        %v4068 = vld [vmem:[%s69] sm:$0xff]
        %v4069 = vld [vmem:[%s69 + $0x8] sm:$0xff]
        %v4070 = vld [vmem:[%s69 + $0x10] sm:$0xff]
        %v4071 = vld [vmem:[%s69 + $0x18] sm:$0xff]
        %v4073 = vsel %vm1746, %v4066, 0
        %v4076 = vsel %vm1746, %v4067, 0
        %4078 = vmatpush.msra.mxu0 0.0
        %4079 = vmatpush.msra.mxu0 0.0
        %4080 = vmatpush.msra.mxu0 0.0
        %4081 = vmatpush.msra.mxu0 0.0
        %4082 = vmatpush.msra.mxu0 0.0
        %4083 = vmatpush.msra.mxu0 0.0
        %4084 = vmatpush.msra.mxu0 0.0
        %4085 = vmatpush.msra.mxu0 0.0
        %4086 = vmatpush.msra.mxu0 0.0
        %4087 = vmatpush.msra.mxu0 0.0
        %4088 = vmatpush.msra.mxu0 0.0
        %4089 = vmatpush.msra.mxu0 0.0
        %4090 = vmatpush.msra.mxu0 %v4071
        %4091 = vmatpush.msra.mxu0 %v4070
        %4092 = vmatpush.msra.mxu0 %v4069
        %4093 = vmatpush.msra.mxu0 %v4068
        %4094 = vmatmul.f32.gmra.mxu0 %v4073
        %v4095 = vpop.f32.mrf.mxu0
        %v4096 = vadd.f32 0.0, %v4095
        %4097 = vmatmul.f32.gmra.mxu0 %v4076
        %v4098 = vpop.f32.mrf.mxu0
        %v4099 = vadd.f32 0.0, %v4098
        %4100 = vdwg.mxu0
        %v4101 = vld [vmem:[%s71] sm:$0x1]
        %v4102 = vld [vmem:[%s71 + $0x1] sm:$0x1]
        %v4103 = vsel %vm1746, %v4096, 0.0
        %4104 = vadd.xlane.f32.xlu0 %v4103
        %v4105 = vpop.xlane.xlu0 %4104
        %v4106 = vsel %vm1746, %v4099, 0.0
        %4107 = vadd.xlane.f32.xlu0 %v4106
        %v4108 = vpop.xlane.xlu0 %4107
        %v4109 = vmul.f32 %v4105, %v1777
        %v4110 = vmul.f32 %v4108, %v1777
        %v4111 = vsub.f32 %v4096, %v4109
        %v4112 = vsub.f32 %v4099, %v4110
        %v4113 = vmul.f32 %v4111, %v4111
        %v4114 = vmul.f32 %v4112, %v4112
        %v4115 = vsel %vm1746, %v4113, 0.0
        %4116 = vadd.xlane.f32.xlu0 %v4115
        %v4117 = vpop.xlane.xlu0 %4116
        %v4118 = vsel %vm1746, %v4114, 0.0
        %4119 = vadd.xlane.f32.xlu0 %v4118
        %v4120 = vpop.xlane.xlu0 %4119
        %v4121 = vmul.f32 %v4117, %v1777
        %v4122 = vmul.f32 %v4120, %v1777
        %v4123 = vadd.f32 %v4121, 1e-05
        %v4124 = vadd.f32 %v4122, 1e-05
        %v4125 = vrsqrt.pop %v4123
        %v4126 = vmul.f32 %v4125, %v4123
        %v4127 = vmul.f32 %v4126, %v4125
        %v4128 = vmul.f32 0.5, %v4127
        %v4129 = vsub.f32 1.5, %v4128
        %v4130 = vmul.f32 %v4125, %v4129
        %vm4131 = vweird.f32 %v4123
        %vm4132 = vweird.f32 %v4125
        %vm4133 = vmor %vm4131, %vm4132
        %v4134 = vsel %vm4133, %v4125, %v4130
        %v4135 = vrsqrt.pop %v4124
        %v4136 = vmul.f32 %v4135, %v4124
        %v4137 = vmul.f32 %v4136, %v4135
        %v4138 = vmul.f32 0.5, %v4137
        %v4139 = vsub.f32 1.5, %v4138
        %v4140 = vmul.f32 %v4135, %v4139
        %vm4141 = vweird.f32 %v4124
        %vm4142 = vweird.f32 %v4135
        %vm4143 = vmor %vm4141, %vm4142
        %v4144 = vsel %vm4143, %v4135, %v4140
        %v4145 = vmul.f32 %v4111, %v4134
        %v4146 = vmul.f32 %v4112, %v4144
        %v4147 = vperm.slane %v4101, 0
        %v4148 = vmul.f32 %v4145, %v4147
        %v4149 = vmul.f32 %v4146, %v4147
        %v4150 = vperm.slane %v4102, 0
        %v4151 = vadd.f32 %v4148, %v4150
        %v4152 = vadd.f32 %v4149, %v4150
        %v4153 = vld [vmem:[%s73] sm:$0xff]
        %v4154 = vld [vmem:[%s73 + $0x8] sm:$0xff]
        %v4155 = vld [vmem:[%s73 + $0x10] sm:$0xff]
        %v4156 = vld [vmem:[%s73 + $0x18] sm:$0xff]
        %4158 = vrot.lane.b32.xlu0 %v4015, 96
        %v4159 = vpop.permute.xlu0 %4158
        %v4160 = vsel %vm1746, %v4159, 0
        %4162 = vmatpush.msra.mxu0 0.0
        %4163 = vmatpush.msra.mxu0 0.0
        %4164 = vmatpush.msra.mxu0 0.0
        %4165 = vmatpush.msra.mxu0 0.0
        %4166 = vmatpush.msra.mxu0 0.0
        %4167 = vmatpush.msra.mxu0 0.0
        %4168 = vmatpush.msra.mxu0 0.0
        %4169 = vmatpush.msra.mxu0 0.0
        %4170 = vmatpush.msra.mxu0 0.0
        %4171 = vmatpush.msra.mxu0 0.0
        %4172 = vmatpush.msra.mxu0 0.0
        %4173 = vmatpush.msra.mxu0 0.0
        %4174 = vmatpush.msra.mxu0 %v4156
        %4175 = vmatpush.msra.mxu0 %v4155
        %4176 = vmatpush.msra.mxu0 %v4154
        %4177 = vmatpush.msra.mxu0 %v4153
        %4178 = vmatmul.f32.gmra.mxu0 %v4160
        %v4179 = vpop.f32.mrf.mxu0
        %v4180 = vadd.f32 0.0, %v4179
        %4181 = vdwg.mxu0
        %v4182 = vld [vmem:[%s75] sm:$0x1]
        %v4183 = vld [vmem:[%s75 + $0x1] sm:$0x1]
        %v4184 = vsel %vm3349, %v4180, 0.0
        %4185 = vadd.xlane.f32.xlu0 %v4184
        %v4186 = vpop.xlane.xlu0 %4185
        %v4187 = vmul.f32 %v4186, %v1777
        %v4188 = vsub.f32 %v4180, %v4187
        %v4189 = vmul.f32 %v4188, %v4188
        %v4190 = vsel %vm3349, %v4189, 0.0
        %4191 = vadd.xlane.f32.xlu0 %v4190
        %v4192 = vpop.xlane.xlu0 %4191
        %v4193 = vmul.f32 %v4192, %v1777
        %v4194 = vadd.f32 %v4193, 1e-05
        %v4195 = vrsqrt.pop %v4194
        %v4196 = vmul.f32 %v4195, %v4194
        %v4197 = vmul.f32 %v4196, %v4195
        %v4198 = vmul.f32 0.5, %v4197
        %v4199 = vsub.f32 1.5, %v4198
        %v4200 = vmul.f32 %v4195, %v4199
        %vm4201 = vweird.f32 %v4194
        %vm4202 = vweird.f32 %v4195
        %vm4203 = vmor %vm4201, %vm4202
        %v4204 = vsel %vm4203, %v4195, %v4200
        %v4205 = vmul.f32 %v4188, %v4204
        %v4206 = vperm.slane %v4182, 0
        %v4207 = vmul.f32 %v4205, %v4206
        %v4208 = vperm.slane %v4183, 0
        %v4209 = vadd.f32 %v4207, %v4208
        %v4210 = vld [vmem:[%s77] sm:$0x1]
        %v4211 = vld [vmem:[%s77 + $0x1] sm:$0x1]
        %v4212 = vsel %vm1746, %v4151, 0.0
        %4213 = vadd.xlane.f32.xlu0 %v4212
        %v4214 = vpop.xlane.xlu0 %4213
        %v4215 = vsel %vm1746, %v4152, 0.0
        %4216 = vadd.xlane.f32.xlu0 %v4215
        %v4217 = vpop.xlane.xlu0 %4216
        %v4218 = vmul.f32 %v4214, %v1777
        %v4219 = vmul.f32 %v4217, %v1777
        %v4220 = vsub.f32 %v4151, %v4218
        %v4221 = vsub.f32 %v4152, %v4219
        %v4222 = vmul.f32 %v4220, %v4220
        %v4223 = vmul.f32 %v4221, %v4221
        %v4224 = vsel %vm1746, %v4222, 0.0
        %4225 = vadd.xlane.f32.xlu0 %v4224
        %v4226 = vpop.xlane.xlu0 %4225
        %v4227 = vsel %vm1746, %v4223, 0.0
        %4228 = vadd.xlane.f32.xlu0 %v4227
        %v4229 = vpop.xlane.xlu0 %4228
        %v4230 = vmul.f32 %v4226, %v1777
        %v4231 = vmul.f32 %v4229, %v1777
        %v4232 = vadd.f32 %v4230, 1e-05
        %v4233 = vadd.f32 %v4231, 1e-05
        %v4234 = vrsqrt.pop %v4232
        %v4235 = vmul.f32 %v4234, %v4232
        %v4236 = vmul.f32 %v4235, %v4234
        %v4237 = vmul.f32 0.5, %v4236
        %v4238 = vsub.f32 1.5, %v4237
        %v4239 = vmul.f32 %v4234, %v4238
        %vm4240 = vweird.f32 %v4232
        %vm4241 = vweird.f32 %v4234
        %vm4242 = vmor %vm4240, %vm4241
        %v4243 = vsel %vm4242, %v4234, %v4239
        %v4244 = vrsqrt.pop %v4233
        %v4245 = vmul.f32 %v4244, %v4233
        %v4246 = vmul.f32 %v4245, %v4244
        %v4247 = vmul.f32 0.5, %v4246
        %v4248 = vsub.f32 1.5, %v4247
        %v4249 = vmul.f32 %v4244, %v4248
        %vm4250 = vweird.f32 %v4233
        %vm4251 = vweird.f32 %v4244
        %vm4252 = vmor %vm4250, %vm4251
        %v4253 = vsel %vm4252, %v4244, %v4249
        %v4254 = vmul.f32 %v4220, %v4243
        %v4255 = vmul.f32 %v4221, %v4253
        %v4256 = vperm.slane %v4210, 0
        %v4257 = vmul.f32 %v4254, %v4256
        %v4258 = vmul.f32 %v4255, %v4256
        %v4259 = vperm.slane %v4211, 0
        %v4260 = vadd.f32 %v4257, %v4259
        %v4261 = vadd.f32 %v4258, %v4259
        %v4262 = vld [vmem:[%s79] sm:$0xff]
        %v4263 = vld [vmem:[%s79 + $0x8] sm:$0xff]
        %v4264 = vld [vmem:[%s79 + $0x10] sm:$0xff]
        %v4265 = vld [vmem:[%s79 + $0x18] sm:$0xff]
        %v4266 = vld [vmem:[%s81] sm:$0xff]
        %v4267 = vld [vmem:[%s81 + $0x8] sm:$0xff]
        %v4268 = vld [vmem:[%s81 + $0x10] sm:$0xff]
        %v4269 = vld [vmem:[%s81 + $0x18] sm:$0xff]
        %v4271 = vsel %vm1746, %v4260, 0
        %v4274 = vsel %vm1746, %v4261, 0
        %4276 = vmatpush.msra.mxu0 0.0
        %4277 = vmatpush.msra.mxu0 0.0
        %4278 = vmatpush.msra.mxu0 0.0
        %4279 = vmatpush.msra.mxu0 0.0
        %4280 = vmatpush.msra.mxu0 0.0
        %4281 = vmatpush.msra.mxu0 0.0
        %4282 = vmatpush.msra.mxu0 0.0
        %4283 = vmatpush.msra.mxu0 0.0
        %4284 = vmatpush.msra.mxu0 0.0
        %4285 = vmatpush.msra.mxu0 0.0
        %4286 = vmatpush.msra.mxu0 0.0
        %4287 = vmatpush.msra.mxu0 0.0
        %4288 = vmatpush.msra.mxu0 %v4265
        %4289 = vmatpush.msra.mxu0 %v4264
        %4290 = vmatpush.msra.mxu0 %v4263
        %4291 = vmatpush.msra.mxu0 %v4262
        %4292 = vmatmul.f32.gmra.mxu0 %v4271
        %v4293 = vpop.f32.mrf.mxu0
        %v4294 = vadd.f32 0.0, %v4293
        %4295 = vmatmul.f32.gmra.mxu0 %v4274
        %v4296 = vpop.f32.mrf.mxu0
        %v4297 = vadd.f32 0.0, %v4296
        %4298 = vdwg.mxu0
        %4301 = vrot.lane.b32.xlu0 %v4294, 96
        %v4302 = vpop.permute.xlu0 %4301
        %4303 = vrot.lane.b32.xlu0 %v4297, 96
        %v4304 = vpop.permute.xlu0 %4303
        %v4305 = vsel %vm1900, %v4294, 0
        %v4307 = vsel %vm1900, %v4297, 0
        %v4309 = vsel %vm1900, %v4302, 0
        %v4311 = vsel %vm1900, %v4304, 0
        %4313 = vmatpush.xpose.msra.mxu0 0.0
        %4314 = vmatpush.xpose.msra.mxu0 0.0
        %4315 = vmatpush.xpose.msra.mxu0 0.0
        %4316 = vmatpush.xpose.msra.mxu0 0.0
        %4317 = vmatpush.xpose.msra.mxu0 0.0
        %4318 = vmatpush.xpose.msra.mxu0 0.0
        %4319 = vmatpush.xpose.msra.mxu0 0.0
        %4320 = vmatpush.xpose.msra.mxu0 0.0
        %4321 = vmatpush.xpose.msra.mxu0 0.0
        %4322 = vmatpush.xpose.msra.mxu0 0.0
        %4323 = vmatpush.xpose.msra.mxu0 0.0
        %4324 = vmatpush.xpose.msra.mxu0 0.0
        %4325 = vmatpush.xpose.msra.mxu0 0.0
        %4326 = vmatpush.xpose.msra.mxu0 0.0
        %4327 = vmatpush.xpose.msra.mxu0 %v4311
        %4328 = vmatpush.xpose.msra.mxu0 %v4309
        %4329 = vmatmul.f32.gmra.mxu0 %v4305
        %v4330 = vpop.f32.mrf.mxu0
        %v4331 = vadd.f32 0.0, %v4330
        %4332 = vmatmul.f32.gmra.mxu0 %v4307
        %v4333 = vpop.f32.mrf.mxu0
        %v4334 = vadd.f32 0.0, %v4333
        %4335 = vdwg.mxu0
        %v4336 = vsel %vm4021, %v4331, -1e+30
        %v4337 = vsel %vm4022, %v4334, -1e+30
        %v4338 = vsel %vm1900, %v4336, -inf
        %4339 = vmax.xlane.f32.xlu0 %v4338
        %v4340 = vpop.xlane.xlu0 %4339
        %v4341 = vsel %vm1900, %v4337, -inf
        %4342 = vmax.xlane.f32.xlu0 %v4341
        %v4343 = vpop.xlane.xlu0 %4342
        %v4344 = vsub.f32 %v4336, %v4340
        %v4345 = vsub.f32 %v4337, %v4343
        %v4346 = vmul.f32 %v4344, 1.442695
        %v4347 = vpow.pop %v4346
        %v4348 = vmul.f32 %v4345, 1.442695
        %v4349 = vpow.pop %v4348
        %v4350 = vsel %vm1900, %v4347, 0.0
        %4351 = vadd.xlane.f32.xlu0 %v4350
        %v4352 = vpop.xlane.xlu0 %4351
        %v4353 = vsel %vm1900, %v4349, 0.0
        %4354 = vadd.xlane.f32.xlu0 %v4353
        %v4355 = vpop.xlane.xlu0 %4354
        %v4356 = vrcp.pop %v4352
        %v4357 = vrcp.pop %v4355
        %v4358 = vmul.f32 %v4347, %v4356
        %v4359 = vmul.f32 %v4349, %v4357
        %4360 = vrot.lane.b32.xlu0 %v4294, 64
        %v4361 = vpop.permute.xlu0 %4360
        %4362 = vrot.lane.b32.xlu0 %v4297, 64
        %v4363 = vpop.permute.xlu0 %4362
        %v4367 = vsel %vm1900, %v4358, 0
        %v4370 = vsel %vm1900, %v4359, 0
        %4372 = vmatpush.msra.mxu0 0.0
        %4373 = vmatpush.msra.mxu0 0.0
        %4374 = vmatpush.msra.mxu0 0.0
        %4375 = vmatpush.msra.mxu0 0.0
        %4376 = vmatpush.msra.mxu0 0.0
        %4377 = vmatpush.msra.mxu0 0.0
        %4378 = vmatpush.msra.mxu0 0.0
        %4379 = vmatpush.msra.mxu0 0.0
        %4380 = vmatpush.msra.mxu0 0.0
        %4381 = vmatpush.msra.mxu0 0.0
        %4382 = vmatpush.msra.mxu0 0.0
        %4383 = vmatpush.msra.mxu0 0.0
        %4384 = vmatpush.msra.mxu0 0.0
        %4385 = vmatpush.msra.mxu0 0.0
        %4386 = vmatpush.msra.mxu0 %v4363
        %4387 = vmatpush.msra.mxu0 %v4361
        %4388 = vmatmul.f32.gmra.mxu0 %v4367
        %v4389 = vpop.f32.mrf.mxu0
        %v4390 = vadd.f32 0.0, %v4389
        %4391 = vmatmul.f32.gmra.mxu0 %v4370
        %v4392 = vpop.f32.mrf.mxu0
        %v4393 = vadd.f32 0.0, %v4392
        %4394 = vdwg.mxu0
        %4395 = vrot.lane.b32.xlu0 %v4294, 112
        %v4396 = vpop.permute.xlu0 %4395
        %4397 = vrot.lane.b32.xlu0 %v4297, 112
        %v4398 = vpop.permute.xlu0 %4397
        %4399 = vrot.lane.b32.xlu0 %v4294, 80
        %v4400 = vpop.permute.xlu0 %4399
        %4401 = vrot.lane.b32.xlu0 %v4297, 80
        %v4402 = vpop.permute.xlu0 %4401
        %v4403 = vsel %vm1900, %v4396, 0
        %v4405 = vsel %vm1900, %v4398, 0
        %v4407 = vsel %vm1900, %v4400, 0
        %v4409 = vsel %vm1900, %v4402, 0
        %4411 = vmatpush.xpose.msra.mxu0 0.0
        %4412 = vmatpush.xpose.msra.mxu0 0.0
        %4413 = vmatpush.xpose.msra.mxu0 0.0
        %4414 = vmatpush.xpose.msra.mxu0 0.0
        %4415 = vmatpush.xpose.msra.mxu0 0.0
        %4416 = vmatpush.xpose.msra.mxu0 0.0
        %4417 = vmatpush.xpose.msra.mxu0 0.0
        %4418 = vmatpush.xpose.msra.mxu0 0.0
        %4419 = vmatpush.xpose.msra.mxu0 0.0
        %4420 = vmatpush.xpose.msra.mxu0 0.0
        %4421 = vmatpush.xpose.msra.mxu0 0.0
        %4422 = vmatpush.xpose.msra.mxu0 0.0
        %4423 = vmatpush.xpose.msra.mxu0 0.0
        %4424 = vmatpush.xpose.msra.mxu0 0.0
        %4425 = vmatpush.xpose.msra.mxu0 %v4409
        %4426 = vmatpush.xpose.msra.mxu0 %v4407
        %4427 = vmatmul.f32.gmra.mxu0 %v4403
        %v4428 = vpop.f32.mrf.mxu0
        %v4429 = vadd.f32 0.0, %v4428
        %4430 = vmatmul.f32.gmra.mxu0 %v4405
        %v4431 = vpop.f32.mrf.mxu0
        %v4432 = vadd.f32 0.0, %v4431
        %4433 = vdwg.mxu0
        %v4434 = vsel %vm4021, %v4429, -1e+30
        %v4435 = vsel %vm4022, %v4432, -1e+30
        %v4436 = vsel %vm1900, %v4434, -inf
        %4437 = vmax.xlane.f32.xlu0 %v4436
        %v4438 = vpop.xlane.xlu0 %4437
        %v4439 = vsel %vm1900, %v4435, -inf
        %4440 = vmax.xlane.f32.xlu0 %v4439
        %v4441 = vpop.xlane.xlu0 %4440
        %v4442 = vsub.f32 %v4434, %v4438
        %v4443 = vsub.f32 %v4435, %v4441
        %v4444 = vmul.f32 %v4442, 1.442695
        %v4445 = vpow.pop %v4444
        %v4446 = vmul.f32 %v4443, 1.442695
        %v4447 = vpow.pop %v4446
        %v4448 = vsel %vm1900, %v4445, 0.0
        %4449 = vadd.xlane.f32.xlu0 %v4448
        %v4450 = vpop.xlane.xlu0 %4449
        %v4451 = vsel %vm1900, %v4447, 0.0
        %4452 = vadd.xlane.f32.xlu0 %v4451
        %v4453 = vpop.xlane.xlu0 %4452
        %v4454 = vrcp.pop %v4450
        %v4455 = vrcp.pop %v4453
        %v4456 = vmul.f32 %v4445, %v4454
        %v4457 = vmul.f32 %v4447, %v4455
        %4458 = vrot.lane.b32.xlu0 %v4294, 48
        %v4459 = vpop.permute.xlu0 %4458
        %4460 = vrot.lane.b32.xlu0 %v4297, 48
        %v4461 = vpop.permute.xlu0 %4460
        %v4465 = vsel %vm1900, %v4456, 0
        %v4468 = vsel %vm1900, %v4457, 0
        %4470 = vmatpush.msra.mxu0 0.0
        %4471 = vmatpush.msra.mxu0 0.0
        %4472 = vmatpush.msra.mxu0 0.0
        %4473 = vmatpush.msra.mxu0 0.0
        %4474 = vmatpush.msra.mxu0 0.0
        %4475 = vmatpush.msra.mxu0 0.0
        %4476 = vmatpush.msra.mxu0 0.0
        %4477 = vmatpush.msra.mxu0 0.0
        %4478 = vmatpush.msra.mxu0 0.0
        %4479 = vmatpush.msra.mxu0 0.0
        %4480 = vmatpush.msra.mxu0 0.0
        %4481 = vmatpush.msra.mxu0 0.0
        %4482 = vmatpush.msra.mxu0 0.0
        %4483 = vmatpush.msra.mxu0 0.0
        %4484 = vmatpush.msra.mxu0 %v4461
        %4485 = vmatpush.msra.mxu0 %v4459
        %4486 = vmatmul.f32.gmra.mxu0 %v4465
        %v4487 = vpop.f32.mrf.mxu0
        %v4488 = vadd.f32 0.0, %v4487
        %4489 = vmatmul.f32.gmra.mxu0 %v4468
        %v4490 = vpop.f32.mrf.mxu0
        %v4491 = vadd.f32 0.0, %v4490
        %4492 = vdwg.mxu0
        %v4494 = vsel %vm1900, %v4488, 0
        %v4497 = vsel %vm1900, %v4491, 0
        %4499 = vmatpush.msra.mxu0 0.0
        %4500 = vmatpush.msra.mxu0 0.0
        %4501 = vmatpush.msra.mxu0 0.0
        %4502 = vmatpush.msra.mxu0 0.0
        %4503 = vmatpush.msra.mxu0 0.0
        %4504 = vmatpush.msra.mxu0 0.0
        %4505 = vmatpush.msra.mxu0 0.0
        %4506 = vmatpush.msra.mxu0 0.0
        %4507 = vmatpush.msra.mxu0 0.0
        %4508 = vmatpush.msra.mxu0 0.0
        %4509 = vmatpush.msra.mxu0 0.0
        %4510 = vmatpush.msra.mxu0 0.0
        %4511 = vmatpush.msra.mxu0 0.0
        %4512 = vmatpush.msra.mxu0 0.0
        %4513 = vmatpush.msra.mxu0 %v4269
        %4514 = vmatpush.msra.mxu0 %v4268
        %4515 = vmatmul.f32.gmra.mxu0 %v4494
        %v4516 = vpop.f32.mrf.mxu0
        %v4517 = vadd.f32 0.0, %v4516
        %4518 = vmatmul.f32.gmra.mxu0 %v4497
        %v4519 = vpop.f32.mrf.mxu0
        %v4520 = vadd.f32 0.0, %v4519
        %4521 = vdwg.mxu0
        %v4523 = vsel %vm1900, %v4390, 0
        %v4526 = vsel %vm1900, %v4393, 0
        %4528 = vmatpush.msra.mxu0 0.0
        %4529 = vmatpush.msra.mxu0 0.0
        %4530 = vmatpush.msra.mxu0 0.0
        %4531 = vmatpush.msra.mxu0 0.0
        %4532 = vmatpush.msra.mxu0 0.0
        %4533 = vmatpush.msra.mxu0 0.0
        %4534 = vmatpush.msra.mxu0 0.0
        %4535 = vmatpush.msra.mxu0 0.0
        %4536 = vmatpush.msra.mxu0 0.0
        %4537 = vmatpush.msra.mxu0 0.0
        %4538 = vmatpush.msra.mxu0 0.0
        %4539 = vmatpush.msra.mxu0 0.0
        %4540 = vmatpush.msra.mxu0 0.0
        %4541 = vmatpush.msra.mxu0 0.0
        %4542 = vmatpush.msra.mxu0 %v4267
        %4543 = vmatpush.msra.mxu0 %v4266
        %4544 = vmatmul.f32.gmra.mxu0 %v4523
        %v4545 = vpop.f32.mrf.mxu0
        %v4546 = vadd.f32 %v4517, %v4545
        %4547 = vmatmul.f32.gmra.mxu0 %v4526
        %v4548 = vpop.f32.mrf.mxu0
        %v4549 = vadd.f32 %v4520, %v4548
        %4550 = vdwg.mxu0
        %v4551 = vadd.f32 %v4260, %v4546
        %v4552 = vadd.f32 %v4261, %v4549
        %v4553 = vld [vmem:[%s83] sm:$0x1]
        %v4554 = vld [vmem:[%s83 + $0x1] sm:$0x1]
        %v4555 = vsel %vm1746, %v4551, 0.0
        %4556 = vadd.xlane.f32.xlu0 %v4555
        %v4557 = vpop.xlane.xlu0 %4556
        %v4558 = vsel %vm1746, %v4552, 0.0
        %4559 = vadd.xlane.f32.xlu0 %v4558
        %v4560 = vpop.xlane.xlu0 %4559
        %v4561 = vmul.f32 %v4557, %v1777
        %v4562 = vmul.f32 %v4560, %v1777
        %v4563 = vsub.f32 %v4551, %v4561
        %v4564 = vsub.f32 %v4552, %v4562
        %v4565 = vmul.f32 %v4563, %v4563
        %v4566 = vmul.f32 %v4564, %v4564
        %v4567 = vsel %vm1746, %v4565, 0.0
        %4568 = vadd.xlane.f32.xlu0 %v4567
        %v4569 = vpop.xlane.xlu0 %4568
        %v4570 = vsel %vm1746, %v4566, 0.0
        %4571 = vadd.xlane.f32.xlu0 %v4570
        %v4572 = vpop.xlane.xlu0 %4571
        %v4573 = vmul.f32 %v4569, %v1777
        %v4574 = vmul.f32 %v4572, %v1777
        %v4575 = vadd.f32 %v4573, 1e-05
        %v4576 = vadd.f32 %v4574, 1e-05
        %v4577 = vrsqrt.pop %v4575
        %v4578 = vmul.f32 %v4577, %v4575
        %v4579 = vmul.f32 %v4578, %v4577
        %v4580 = vmul.f32 0.5, %v4579
        %v4581 = vsub.f32 1.5, %v4580
        %v4582 = vmul.f32 %v4577, %v4581
        %vm4583 = vweird.f32 %v4575
        %vm4584 = vweird.f32 %v4577
        %vm4585 = vmor %vm4583, %vm4584
        %v4586 = vsel %vm4585, %v4577, %v4582
        %v4587 = vrsqrt.pop %v4576
        %v4588 = vmul.f32 %v4587, %v4576
        %v4589 = vmul.f32 %v4588, %v4587
        %v4590 = vmul.f32 0.5, %v4589
        %v4591 = vsub.f32 1.5, %v4590
        %v4592 = vmul.f32 %v4587, %v4591
        %vm4593 = vweird.f32 %v4576
        %vm4594 = vweird.f32 %v4587
        %vm4595 = vmor %vm4593, %vm4594
        %v4596 = vsel %vm4595, %v4587, %v4592
        %v4597 = vmul.f32 %v4563, %v4586
        %v4598 = vmul.f32 %v4564, %v4596
        %v4599 = vperm.slane %v4553, 0
        %v4600 = vmul.f32 %v4597, %v4599
        %v4601 = vmul.f32 %v4598, %v4599
        %v4602 = vperm.slane %v4554, 0
        %v4603 = vadd.f32 %v4600, %v4602
        %v4604 = vadd.f32 %v4601, %v4602
        %v4605 = vld [vmem:[%s85] sm:$0xff]
        %v4606 = vld [vmem:[%s85 + $0x8] sm:$0xff]
        %v4607 = vld [vmem:[%s85 + $0x10] sm:$0xff]
        %v4608 = vld [vmem:[%s85 + $0x18] sm:$0xff]
        %v4609 = vld [vmem:[%s87] sm:$0xff]
        %v4610 = vld [vmem:[%s87 + $0x8] sm:$0xff]
        %v4611 = vld [vmem:[%s87 + $0x10] sm:$0xff]
        %v4612 = vld [vmem:[%s87 + $0x18] sm:$0xff]
        %v4613 = vld [vmem:[%s89] sm:$0xff]
        %v4614 = vld [vmem:[%s89 + $0x8] sm:$0xff]
        %v4615 = vld [vmem:[%s89 + $0x10] sm:$0xff]
        %v4616 = vld [vmem:[%s89 + $0x18] sm:$0xff]
        %v4618 = vsel %vm1746, %v4603, 0
        %v4621 = vsel %vm1746, %v4604, 0
        %4623 = vmatpush.msra.mxu0 0.0
        %4624 = vmatpush.msra.mxu0 0.0
        %4625 = vmatpush.msra.mxu0 0.0
        %4626 = vmatpush.msra.mxu0 0.0
        %4627 = vmatpush.msra.mxu0 0.0
        %4628 = vmatpush.msra.mxu0 0.0
        %4629 = vmatpush.msra.mxu0 0.0
        %4630 = vmatpush.msra.mxu0 0.0
        %4631 = vmatpush.msra.mxu0 0.0
        %4632 = vmatpush.msra.mxu0 0.0
        %4633 = vmatpush.msra.mxu0 0.0
        %4634 = vmatpush.msra.mxu0 0.0
        %4635 = vmatpush.msra.mxu0 %v4608
        %4636 = vmatpush.msra.mxu0 %v4607
        %4637 = vmatpush.msra.mxu0 %v4606
        %4638 = vmatpush.msra.mxu0 %v4605
        %4639 = vmatmul.f32.gmra.mxu0 %v4618
        %v4640 = vpop.f32.mrf.mxu0
        %v4641 = vadd.f32 0.0, %v4640
        %4642 = vmatmul.f32.gmra.mxu0 %v4621
        %v4643 = vpop.f32.mrf.mxu0
        %v4644 = vadd.f32 0.0, %v4643
        %4645 = vdwg.mxu0
        %v4647 = vsel %vm1746, %v4209, 0
        %4649 = vmatpush.msra.mxu0 0.0
        %4650 = vmatpush.msra.mxu0 0.0
        %4651 = vmatpush.msra.mxu0 0.0
        %4652 = vmatpush.msra.mxu0 0.0
        %4653 = vmatpush.msra.mxu0 0.0
        %4654 = vmatpush.msra.mxu0 0.0
        %4655 = vmatpush.msra.mxu0 0.0
        %4656 = vmatpush.msra.mxu0 0.0
        %4657 = vmatpush.msra.mxu0 0.0
        %4658 = vmatpush.msra.mxu0 0.0
        %4659 = vmatpush.msra.mxu0 0.0
        %4660 = vmatpush.msra.mxu0 0.0
        %4661 = vmatpush.msra.mxu0 %v4612
        %4662 = vmatpush.msra.mxu0 %v4611
        %4663 = vmatpush.msra.mxu0 %v4610
        %4664 = vmatpush.msra.mxu0 %v4609
        %4665 = vmatmul.f32.gmra.mxu0 %v4647
        %v4666 = vpop.f32.mrf.mxu0
        %v4667 = vadd.f32 0.0, %v4666
        %4668 = vdwg.mxu0
        %v4670 = vsel %vm1900, %v4667, 0
        %v4673 = vsel %vm1900, %v4641, 0
        %v4676 = vsel %vm1900, %v4644, 0
        %4678 = vmatpush.xpose.msra.mxu0 0.0
        %4679 = vmatpush.xpose.msra.mxu0 0.0
        %4680 = vmatpush.xpose.msra.mxu0 0.0
        %4681 = vmatpush.xpose.msra.mxu0 0.0
        %4682 = vmatpush.xpose.msra.mxu0 0.0
        %4683 = vmatpush.xpose.msra.mxu0 0.0
        %4684 = vmatpush.xpose.msra.mxu0 0.0
        %4685 = vmatpush.xpose.msra.mxu0 0.0
        %4686 = vmatpush.xpose.msra.mxu0 0.0
        %4687 = vmatpush.xpose.msra.mxu0 0.0
        %4688 = vmatpush.xpose.msra.mxu0 0.0
        %4689 = vmatpush.xpose.msra.mxu0 0.0
        %4690 = vmatpush.xpose.msra.mxu0 0.0
        %4691 = vmatpush.xpose.msra.mxu0 0.0
        %4692 = vmatpush.xpose.msra.mxu0 %v4676
        %4693 = vmatpush.xpose.msra.mxu0 %v4673
        %4694 = vmatmul.f32.gmra.mxu0 %v4670
        %v4695 = vpop.f32.mrf.mxu0
        %v4696 = vadd.f32 0.0, %v4695
        %4697 = vdwg.mxu0
        %v4698 = vsel %vm3432, %v4696, -inf
        %v4699 = vrot.slane %v4698, 4
        %v4700 = vmax.f32 %v4698, %v4699
        %v4701 = vrot.slane %v4700, 2
        %v4702 = vmax.f32 %v4700, %v4701
        %v4703 = vrot.slane %v4702, 1
        %v4704 = vmax.f32 %v4702, %v4703
        %v4705 = vsub.f32 %v4696, %v4704
        %v4706 = vmul.f32 %v4705, 1.442695
        %v4707 = vpow.pop %v4706
        %v4708 = vsel %vm3432, %v4707, 0.0
        %v4709 = vrot.slane %v4708, 4
        %v4710 = vadd.f32 %v4708, %v4709
        %v4711 = vrot.slane %v4710, 2
        %v4712 = vadd.f32 %v4710, %v4711
        %v4713 = vrot.slane %v4712, 1
        %v4714 = vadd.f32 %v4712, %v4713
        %v4715 = vrcp.pop %v4714
        %v4716 = vmul.f32 %v4707, %v4715
        %4717 = vxpose.xlu0.b32.start [1/16] %v4716, 128
        %4718 = vxpose.xlu0.b32.cont [2/16] 0.0, 128
        %4719 = vxpose.xlu0.b32.cont [3/16] 0.0, 128
        %4720 = vxpose.xlu0.b32.cont [4/16] 0.0, 128
        %4721 = vxpose.xlu0.b32.cont [5/16] 0.0, 128
        %4722 = vxpose.xlu0.b32.cont [6/16] 0.0, 128
        %4723 = vxpose.xlu0.b32.cont [7/16] 0.0, 128
        %4724 = vxpose.xlu0.b32.cont [8/16] 0.0, 128
        %4725 = vxpose.xlu0.b32.cont [9/16] 0.0, 128
        %4726 = vxpose.xlu0.b32.cont [10/16] 0.0, 128
        %4727 = vxpose.xlu0.b32.cont [11/16] 0.0, 128
        %4728 = vxpose.xlu0.b32.cont [12/16] 0.0, 128
        %4729 = vxpose.xlu0.b32.cont [13/16] 0.0, 128
        %4730 = vxpose.xlu0.b32.cont [14/16] 0.0, 128
        %4731 = vxpose.xlu0.b32.cont [15/16] 0.0, 128
        %4732 = vxpose.xlu0.b32.end [16/16] 0.0, 128
        %v4733 = vpop.trf.xlu0
        %v4734 = vpop.trf.xlu0
        %v4735 = vpop.trf.xlu0
        %v4736 = vpop.trf.xlu0
        %v4737 = vpop.trf.xlu0
        %v4738 = vpop.trf.xlu0
        %v4739 = vpop.trf.xlu0
        %v4740 = vpop.trf.xlu0
        %v4741 = vpop.trf.xlu0
        %v4742 = vpop.trf.xlu0
        %v4743 = vpop.trf.xlu0
        %v4744 = vpop.trf.xlu0
        %v4745 = vpop.trf.xlu0
        %v4746 = vpop.trf.xlu0
        %v4747 = vpop.trf.xlu0
        %v4748 = vpop.trf.xlu0
        %4749 = vrot.lane.b32.xlu0 %v4667, 96
        %v4750 = vpop.permute.xlu0 %4749
        %vm4751 = vcmask 31744
        %v4753 = vsel %vm4751, %v4733, 0
        %v4756 = vsel %vm4751, %v4734, 0
        %vm4758 = vcmask 1043456
        %v4759 = vsel %vm4758, %v4750, 0
        %4761 = vmatpush.msra.mxu0 0.0
        %4762 = vmatpush.msra.mxu0 0.0
        %4763 = vmatpush.msra.mxu0 0.0
        %4764 = vmatpush.msra.mxu0 0.0
        %4765 = vmatpush.msra.mxu0 0.0
        %4766 = vmatpush.msra.mxu0 0.0
        %4767 = vmatpush.msra.mxu0 0.0
        %4768 = vmatpush.msra.mxu0 0.0
        %4769 = vmatpush.msra.mxu0 0.0
        %4770 = vmatpush.msra.mxu0 0.0
        %4771 = vmatpush.msra.mxu0 0.0
        %4772 = vmatpush.msra.mxu0 0.0
        %4773 = vmatpush.msra.mxu0 0.0
        %4774 = vmatpush.msra.mxu0 0.0
        %4775 = vmatpush.msra.mxu0 0.0
        %4776 = vmatpush.msra.mxu0 %v4759
        %4777 = vmatmul.f32.gmra.mxu0 %v4753
        %v4778 = vpop.f32.mrf.mxu0
        %v4779 = vadd.f32 0.0, %v4778
        %4780 = vmatmul.f32.gmra.mxu0 %v4756
        %v4781 = vpop.f32.mrf.mxu0
        %v4782 = vadd.f32 0.0, %v4781
        %4783 = vdwg.mxu0
        %4784 = vrot.lane.b32.xlu0 %v4667, 112
        %v4785 = vpop.permute.xlu0 %4784
        %4786 = vrot.lane.b32.xlu0 %v4641, 112
        %v4787 = vpop.permute.xlu0 %4786
        %4788 = vrot.lane.b32.xlu0 %v4644, 112
        %v4789 = vpop.permute.xlu0 %4788
        %v4790 = vsel %vm1900, %v4785, 0
        %v4792 = vsel %vm1900, %v4787, 0
        %v4794 = vsel %vm1900, %v4789, 0
        %4796 = vmatpush.xpose.msra.mxu0 0.0
        %4797 = vmatpush.xpose.msra.mxu0 0.0
        %4798 = vmatpush.xpose.msra.mxu0 0.0
        %4799 = vmatpush.xpose.msra.mxu0 0.0
        %4800 = vmatpush.xpose.msra.mxu0 0.0
        %4801 = vmatpush.xpose.msra.mxu0 0.0
        %4802 = vmatpush.xpose.msra.mxu0 0.0
        %4803 = vmatpush.xpose.msra.mxu0 0.0
        %4804 = vmatpush.xpose.msra.mxu0 0.0
        %4805 = vmatpush.xpose.msra.mxu0 0.0
        %4806 = vmatpush.xpose.msra.mxu0 0.0
        %4807 = vmatpush.xpose.msra.mxu0 0.0
        %4808 = vmatpush.xpose.msra.mxu0 0.0
        %4809 = vmatpush.xpose.msra.mxu0 0.0
        %4810 = vmatpush.xpose.msra.mxu0 %v4794
        %4811 = vmatpush.xpose.msra.mxu0 %v4792
        %4812 = vmatmul.f32.gmra.mxu0 %v4790
        %v4813 = vpop.f32.mrf.mxu0
        %v4814 = vadd.f32 0.0, %v4813
        %4815 = vdwg.mxu0
        %v4816 = vsel %vm3432, %v4814, -inf
        %v4817 = vrot.slane %v4816, 4
        %v4818 = vmax.f32 %v4816, %v4817
        %v4819 = vrot.slane %v4818, 2
        %v4820 = vmax.f32 %v4818, %v4819
        %v4821 = vrot.slane %v4820, 1
        %v4822 = vmax.f32 %v4820, %v4821
        %v4823 = vsub.f32 %v4814, %v4822
        %v4824 = vmul.f32 %v4823, 1.442695
        %v4825 = vpow.pop %v4824
        %v4826 = vsel %vm3432, %v4825, 0.0
        %v4827 = vrot.slane %v4826, 4
        %v4828 = vadd.f32 %v4826, %v4827
        %v4829 = vrot.slane %v4828, 2
        %v4830 = vadd.f32 %v4828, %v4829
        %v4831 = vrot.slane %v4830, 1
        %v4832 = vadd.f32 %v4830, %v4831
        %v4833 = vrcp.pop %v4832
        %v4834 = vmul.f32 %v4825, %v4833
        %4835 = vxpose.xlu0.b32.start [1/16] %v4834, 128
        %4836 = vxpose.xlu0.b32.cont [2/16] 0.0, 128
        %4837 = vxpose.xlu0.b32.cont [3/16] 0.0, 128
        %4838 = vxpose.xlu0.b32.cont [4/16] 0.0, 128
        %4839 = vxpose.xlu0.b32.cont [5/16] 0.0, 128
        %4840 = vxpose.xlu0.b32.cont [6/16] 0.0, 128
        %4841 = vxpose.xlu0.b32.cont [7/16] 0.0, 128
        %4842 = vxpose.xlu0.b32.cont [8/16] 0.0, 128
        %4843 = vxpose.xlu0.b32.cont [9/16] 0.0, 128
        %4844 = vxpose.xlu0.b32.cont [10/16] 0.0, 128
        %4845 = vxpose.xlu0.b32.cont [11/16] 0.0, 128
        %4846 = vxpose.xlu0.b32.cont [12/16] 0.0, 128
        %4847 = vxpose.xlu0.b32.cont [13/16] 0.0, 128
        %4848 = vxpose.xlu0.b32.cont [14/16] 0.0, 128
        %4849 = vxpose.xlu0.b32.cont [15/16] 0.0, 128
        %4850 = vxpose.xlu0.b32.end [16/16] 0.0, 128
        %v4851 = vpop.trf.xlu0
        %v4852 = vpop.trf.xlu0
        %v4853 = vpop.trf.xlu0
        %v4854 = vpop.trf.xlu0
        %v4855 = vpop.trf.xlu0
        %v4856 = vpop.trf.xlu0
        %v4857 = vpop.trf.xlu0
        %v4858 = vpop.trf.xlu0
        %v4859 = vpop.trf.xlu0
        %v4860 = vpop.trf.xlu0
        %v4861 = vpop.trf.xlu0
        %v4862 = vpop.trf.xlu0
        %v4863 = vpop.trf.xlu0
        %v4864 = vpop.trf.xlu0
        %v4865 = vpop.trf.xlu0
        %v4866 = vpop.trf.xlu0
        %4867 = vrot.lane.b32.xlu0 %v4667, 80
        %v4868 = vpop.permute.xlu0 %4867
        %v4870 = vsel %vm4751, %v4851, 0
        %v4873 = vsel %vm4751, %v4852, 0
        %v4875 = vsel %vm4758, %v4868, 0
        %4877 = vmatpush.msra.mxu0 0.0
        %4878 = vmatpush.msra.mxu0 0.0
        %4879 = vmatpush.msra.mxu0 0.0
        %4880 = vmatpush.msra.mxu0 0.0
        %4881 = vmatpush.msra.mxu0 0.0
        %4882 = vmatpush.msra.mxu0 0.0
        %4883 = vmatpush.msra.mxu0 0.0
        %4884 = vmatpush.msra.mxu0 0.0
        %4885 = vmatpush.msra.mxu0 0.0
        %4886 = vmatpush.msra.mxu0 0.0
        %4887 = vmatpush.msra.mxu0 0.0
        %4888 = vmatpush.msra.mxu0 0.0
        %4889 = vmatpush.msra.mxu0 0.0
        %4890 = vmatpush.msra.mxu0 0.0
        %4891 = vmatpush.msra.mxu0 0.0
        %4892 = vmatpush.msra.mxu0 %v4875
        %4893 = vmatmul.f32.gmra.mxu0 %v4870
        %v4894 = vpop.f32.mrf.mxu0
        %v4895 = vadd.f32 0.0, %v4894
        %4896 = vmatmul.f32.gmra.mxu0 %v4873
        %v4897 = vpop.f32.mrf.mxu0
        %v4898 = vadd.f32 0.0, %v4897
        %4899 = vdwg.mxu0
        %v4901 = vsel %vm1900, %v4895, 0
        %v4904 = vsel %vm1900, %v4898, 0
        %4906 = vmatpush.msra.mxu0 0.0
        %4907 = vmatpush.msra.mxu0 0.0
        %4908 = vmatpush.msra.mxu0 0.0
        %4909 = vmatpush.msra.mxu0 0.0
        %4910 = vmatpush.msra.mxu0 0.0
        %4911 = vmatpush.msra.mxu0 0.0
        %4912 = vmatpush.msra.mxu0 0.0
        %4913 = vmatpush.msra.mxu0 0.0
        %4914 = vmatpush.msra.mxu0 0.0
        %4915 = vmatpush.msra.mxu0 0.0
        %4916 = vmatpush.msra.mxu0 0.0
        %4917 = vmatpush.msra.mxu0 0.0
        %4918 = vmatpush.msra.mxu0 0.0
        %4919 = vmatpush.msra.mxu0 0.0
        %4920 = vmatpush.msra.mxu0 %v4616
        %4921 = vmatpush.msra.mxu0 %v4615
        %4922 = vmatmul.f32.gmra.mxu0 %v4901
        %v4923 = vpop.f32.mrf.mxu0
        %v4924 = vadd.f32 0.0, %v4923
        %4925 = vmatmul.f32.gmra.mxu0 %v4904
        %v4926 = vpop.f32.mrf.mxu0
        %v4927 = vadd.f32 0.0, %v4926
        %4928 = vdwg.mxu0
        %v4930 = vsel %vm1900, %v4779, 0
        %v4933 = vsel %vm1900, %v4782, 0
        %4935 = vmatpush.msra.mxu0 0.0
        %4936 = vmatpush.msra.mxu0 0.0
        %4937 = vmatpush.msra.mxu0 0.0
        %4938 = vmatpush.msra.mxu0 0.0
        %4939 = vmatpush.msra.mxu0 0.0
        %4940 = vmatpush.msra.mxu0 0.0
        %4941 = vmatpush.msra.mxu0 0.0
        %4942 = vmatpush.msra.mxu0 0.0
        %4943 = vmatpush.msra.mxu0 0.0
        %4944 = vmatpush.msra.mxu0 0.0
        %4945 = vmatpush.msra.mxu0 0.0
        %4946 = vmatpush.msra.mxu0 0.0
        %4947 = vmatpush.msra.mxu0 0.0
        %4948 = vmatpush.msra.mxu0 0.0
        %4949 = vmatpush.msra.mxu0 %v4614
        %4950 = vmatpush.msra.mxu0 %v4613
        %4951 = vmatmul.f32.gmra.mxu0 %v4930
        %v4952 = vpop.f32.mrf.mxu0
        %v4953 = vadd.f32 %v4924, %v4952
        %4954 = vmatmul.f32.gmra.mxu0 %v4933
        %v4955 = vpop.f32.mrf.mxu0
        %v4956 = vadd.f32 %v4927, %v4955
        %4957 = vdwg.mxu0
        %v4958 = vadd.f32 %v4551, %v4953
        %v4959 = vadd.f32 %v4552, %v4956
        %v4960 = vld [vmem:[%s91] sm:$0x1]
        %v4961 = vld [vmem:[%s91 + $0x1] sm:$0x1]
        %v4962 = vsel %vm1746, %v4958, 0.0
        %4963 = vadd.xlane.f32.xlu0 %v4962
        %v4964 = vpop.xlane.xlu0 %4963
        %v4965 = vsel %vm1746, %v4959, 0.0
        %4966 = vadd.xlane.f32.xlu0 %v4965
        %v4967 = vpop.xlane.xlu0 %4966
        %v4968 = vmul.f32 %v4964, %v1777
        %v4969 = vmul.f32 %v4967, %v1777
        %v4970 = vsub.f32 %v4958, %v4968
        %v4971 = vsub.f32 %v4959, %v4969
        %v4972 = vmul.f32 %v4970, %v4970
        %v4973 = vmul.f32 %v4971, %v4971
        %v4974 = vsel %vm1746, %v4972, 0.0
        %4975 = vadd.xlane.f32.xlu0 %v4974
        %v4976 = vpop.xlane.xlu0 %4975
        %v4977 = vsel %vm1746, %v4973, 0.0
        %4978 = vadd.xlane.f32.xlu0 %v4977
        %v4979 = vpop.xlane.xlu0 %4978
        %v4980 = vmul.f32 %v4976, %v1777
        %v4981 = vmul.f32 %v4979, %v1777
        %v4982 = vadd.f32 %v4980, 1e-05
        %v4983 = vadd.f32 %v4981, 1e-05
        %v4984 = vrsqrt.pop %v4982
        %v4985 = vmul.f32 %v4984, %v4982
        %v4986 = vmul.f32 %v4985, %v4984
        %v4987 = vmul.f32 0.5, %v4986
        %v4988 = vsub.f32 1.5, %v4987
        %v4989 = vmul.f32 %v4984, %v4988
        %vm4990 = vweird.f32 %v4982
        %vm4991 = vweird.f32 %v4984
        %vm4992 = vmor %vm4990, %vm4991
        %v4993 = vsel %vm4992, %v4984, %v4989
        %v4994 = vrsqrt.pop %v4983
        %v4995 = vmul.f32 %v4994, %v4983
        %v4996 = vmul.f32 %v4995, %v4994
        %v4997 = vmul.f32 0.5, %v4996
        %v4998 = vsub.f32 1.5, %v4997
        %v4999 = vmul.f32 %v4994, %v4998
        %vm5000 = vweird.f32 %v4983
        %vm5001 = vweird.f32 %v4994
        %vm5002 = vmor %vm5000, %vm5001
        %v5003 = vsel %vm5002, %v4994, %v4999
        %v5004 = vmul.f32 %v4970, %v4993
        %v5005 = vmul.f32 %v4971, %v5003
        %v5006 = vperm.slane %v4960, 0
        %v5007 = vmul.f32 %v5004, %v5006
        %v5008 = vmul.f32 %v5005, %v5006
        %v5009 = vperm.slane %v4961, 0
        %v5010 = vadd.f32 %v5007, %v5009
        %v5011 = vadd.f32 %v5008, %v5009
        %v5012 = vld [vmem:[%s93] sm:$0xff]
        %v5013 = vld [vmem:[%s93 + $0x8] sm:$0xff]
        %v5014 = vld [vmem:[%s93 + $0x10] sm:$0xff]
        %v5015 = vld [vmem:[%s93 + $0x18] sm:$0xff]
        %v5016 = vld [vmem:[#allocation14] sm:$0x1]
        %v5018 = vperm.slane %v5016, 0
        %v5021 = vsel %vm1746, %v5010, 0
        %v5024 = vsel %vm1746, %v5011, 0
        %5026 = vmatpush.msra.mxu0 0.0
        %5027 = vmatpush.msra.mxu0 0.0
        %5028 = vmatpush.msra.mxu0 0.0
        %5029 = vmatpush.msra.mxu0 0.0
        %5030 = vmatpush.msra.mxu0 0.0
        %5031 = vmatpush.msra.mxu0 0.0
        %5032 = vmatpush.msra.mxu0 0.0
        %5033 = vmatpush.msra.mxu0 0.0
        %5034 = vmatpush.msra.mxu0 0.0
        %5035 = vmatpush.msra.mxu0 0.0
        %5036 = vmatpush.msra.mxu0 0.0
        %5037 = vmatpush.msra.mxu0 0.0
        %5038 = vmatpush.msra.mxu0 %v5015
        %5039 = vmatpush.msra.mxu0 %v5014
        %5040 = vmatpush.msra.mxu0 %v5013
        %5041 = vmatpush.msra.mxu0 %v5012
        %5042 = vmatmul.f32.gmra.mxu0 %v5021
        %v5043 = vpop.f32.mrf.mxu0
        %v5044 = vadd.f32 %v5018, %v5043
        %5045 = vmatmul.f32.gmra.mxu0 %v5024
        %v5046 = vpop.f32.mrf.mxu0
        %v5047 = vadd.f32 %v5018, %v5046
        %5048 = vdwg.mxu0
        %v5049 = vmax.f32 %v5044, 0.0
        %v5050 = vmax.f32 %v5047, 0.0
        %v5051 = vld [vmem:[%s97] sm:$0xff]
        %v5052 = vld [vmem:[%s97 + $0x8] sm:$0xff]
        %v5053 = vld [vmem:[%s97 + $0x10] sm:$0xff]
        %v5054 = vld [vmem:[%s97 + $0x18] sm:$0xff]
        %v5055 = vld [vmem:[%s97 + $0x20] sm:$0xff]
        %v5056 = vld [vmem:[%s97 + $0x28] sm:$0xff]
        %v5057 = vld [vmem:[%s97 + $0x30] sm:$0xff]
        %v5058 = vld [vmem:[%s97 + $0x38] sm:$0xff]
        %v5059 = vld [vmem:[%s97 + $0x40] sm:$0xff]
        %v5060 = vld [vmem:[%s97 + $0x48] sm:$0xff]
        %v5061 = vld [vmem:[%s97 + $0x50] sm:$0xff]
        %v5062 = vld [vmem:[%s97 + $0x58] sm:$0xff]
        %v5063 = vld [vmem:[%s97 + $0x60] sm:$0xff]
        %v5064 = vld [vmem:[%s97 + $0x68] sm:$0xff]
        %v5065 = vld [vmem:[%s97 + $0x70] sm:$0xff]
        %v5066 = vld [vmem:[%s97 + $0x78] sm:$0xff]
        %v5067 = vld [vmem:[#allocation16] sm:$0x1]
        %v5069 = vperm.slane %v5067, 0
        %5071 = vmatpush.msra.mxu0 %v5066
        %5072 = vmatpush.msra.mxu0 %v5065
        %5073 = vmatpush.msra.mxu0 %v5064
        %5074 = vmatpush.msra.mxu0 %v5063
        %5075 = vmatpush.msra.mxu0 %v5062
        %5076 = vmatpush.msra.mxu0 %v5061
        %5077 = vmatpush.msra.mxu0 %v5060
        %5078 = vmatpush.msra.mxu0 %v5059
        %5079 = vmatpush.msra.mxu0 %v5058
        %5080 = vmatpush.msra.mxu0 %v5057
        %5081 = vmatpush.msra.mxu0 %v5056
        %5082 = vmatpush.msra.mxu0 %v5055
        %5083 = vmatpush.msra.mxu0 %v5054
        %5084 = vmatpush.msra.mxu0 %v5053
        %5085 = vmatpush.msra.mxu0 %v5052
        %5086 = vmatpush.msra.mxu0 %v5051
        %5087 = vmatmul.f32.gmra.mxu0 %v5049
        %v5088 = vpop.f32.mrf.mxu0
        %v5089 = vadd.f32 %v5069, %v5088
        %5090 = vmatmul.f32.gmra.mxu0 %v5050
        %v5091 = vpop.f32.mrf.mxu0
        %v5092 = vadd.f32 %v5069, %v5091
        %5093 = vdwg.mxu0
        %v5094 = vadd.f32 %v4958, %v5089
        %v5095 = vadd.f32 %v4959, %v5092
        %s5096 = scalar_lea.vmem %s77, 2
        %v5097 = vld [vmem:[%s5096] sm:$0x1]
        %v5098 = vld [vmem:[%s5096 + $0x1] sm:$0x1]
        %v5099 = vsel %vm1746, %v5094, 0.0
        %5100 = vadd.xlane.f32.xlu0 %v5099
        %v5101 = vpop.xlane.xlu0 %5100
        %v5102 = vsel %vm1746, %v5095, 0.0
        %5103 = vadd.xlane.f32.xlu0 %v5102
        %v5104 = vpop.xlane.xlu0 %5103
        %v5105 = vmul.f32 %v5101, %v1777
        %v5106 = vmul.f32 %v5104, %v1777
        %v5107 = vsub.f32 %v5094, %v5105
        %v5108 = vsub.f32 %v5095, %v5106
        %v5109 = vmul.f32 %v5107, %v5107
        %v5110 = vmul.f32 %v5108, %v5108
        %v5111 = vsel %vm1746, %v5109, 0.0
        %5112 = vadd.xlane.f32.xlu0 %v5111
        %v5113 = vpop.xlane.xlu0 %5112
        %v5114 = vsel %vm1746, %v5110, 0.0
        %5115 = vadd.xlane.f32.xlu0 %v5114
        %v5116 = vpop.xlane.xlu0 %5115
        %v5117 = vmul.f32 %v5113, %v1777
        %v5118 = vmul.f32 %v5116, %v1777
        %v5119 = vadd.f32 %v5117, 1e-05
        %v5120 = vadd.f32 %v5118, 1e-05
        %v5121 = vrsqrt.pop %v5119
        %v5122 = vmul.f32 %v5121, %v5119
        %v5123 = vmul.f32 %v5122, %v5121
        %v5124 = vmul.f32 0.5, %v5123
        %v5125 = vsub.f32 1.5, %v5124
        %v5126 = vmul.f32 %v5121, %v5125
        %vm5127 = vweird.f32 %v5119
        %vm5128 = vweird.f32 %v5121
        %vm5129 = vmor %vm5127, %vm5128
        %v5130 = vsel %vm5129, %v5121, %v5126
        %v5131 = vrsqrt.pop %v5120
        %v5132 = vmul.f32 %v5131, %v5120
        %v5133 = vmul.f32 %v5132, %v5131
        %v5134 = vmul.f32 0.5, %v5133
        %v5135 = vsub.f32 1.5, %v5134
        %v5136 = vmul.f32 %v5131, %v5135
        %vm5137 = vweird.f32 %v5120
        %vm5138 = vweird.f32 %v5131
        %vm5139 = vmor %vm5137, %vm5138
        %v5140 = vsel %vm5139, %v5131, %v5136
        %v5141 = vmul.f32 %v5107, %v5130
        %v5142 = vmul.f32 %v5108, %v5140
        %v5143 = vperm.slane %v5097, 0
        %v5144 = vmul.f32 %v5141, %v5143
        %v5145 = vmul.f32 %v5142, %v5143
        %v5146 = vperm.slane %v5098, 0
        %v5147 = vadd.f32 %v5144, %v5146
        %v5148 = vadd.f32 %v5145, %v5146
        %s5149 = scalar_lea.vmem %s79, 32
        %v5150 = vld [vmem:[%s5149] sm:$0xff]
        %v5151 = vld [vmem:[%s5149 + $0x8] sm:$0xff]
        %v5152 = vld [vmem:[%s5149 + $0x10] sm:$0xff]
        %v5153 = vld [vmem:[%s5149 + $0x18] sm:$0xff]
        %s5154 = scalar_lea.vmem %s81, 32
        %v5155 = vld [vmem:[%s5154] sm:$0xff]
        %v5156 = vld [vmem:[%s5154 + $0x8] sm:$0xff]
        %v5157 = vld [vmem:[%s5154 + $0x10] sm:$0xff]
        %v5158 = vld [vmem:[%s5154 + $0x18] sm:$0xff]
        %v5160 = vsel %vm1746, %v5147, 0
        %v5163 = vsel %vm1746, %v5148, 0
        %5165 = vmatpush.msra.mxu0 0.0
        %5166 = vmatpush.msra.mxu0 0.0
        %5167 = vmatpush.msra.mxu0 0.0
        %5168 = vmatpush.msra.mxu0 0.0
        %5169 = vmatpush.msra.mxu0 0.0
        %5170 = vmatpush.msra.mxu0 0.0
        %5171 = vmatpush.msra.mxu0 0.0
        %5172 = vmatpush.msra.mxu0 0.0
        %5173 = vmatpush.msra.mxu0 0.0
        %5174 = vmatpush.msra.mxu0 0.0
        %5175 = vmatpush.msra.mxu0 0.0
        %5176 = vmatpush.msra.mxu0 0.0
        %5177 = vmatpush.msra.mxu0 %v5153
        %5178 = vmatpush.msra.mxu0 %v5152
        %5179 = vmatpush.msra.mxu0 %v5151
        %5180 = vmatpush.msra.mxu0 %v5150
        %5181 = vmatmul.f32.gmra.mxu0 %v5160
        %v5182 = vpop.f32.mrf.mxu0
        %v5183 = vadd.f32 0.0, %v5182
        %5184 = vmatmul.f32.gmra.mxu0 %v5163
        %v5185 = vpop.f32.mrf.mxu0
        %v5186 = vadd.f32 0.0, %v5185
        %5187 = vdwg.mxu0
        %5190 = vrot.lane.b32.xlu0 %v5183, 96
        %v5191 = vpop.permute.xlu0 %5190
        %5192 = vrot.lane.b32.xlu0 %v5186, 96
        %v5193 = vpop.permute.xlu0 %5192
        %v5194 = vsel %vm1900, %v5183, 0
        %v5196 = vsel %vm1900, %v5186, 0
        %v5198 = vsel %vm1900, %v5191, 0
        %v5200 = vsel %vm1900, %v5193, 0
        %5202 = vmatpush.xpose.msra.mxu0 0.0
        %5203 = vmatpush.xpose.msra.mxu0 0.0
        %5204 = vmatpush.xpose.msra.mxu0 0.0
        %5205 = vmatpush.xpose.msra.mxu0 0.0
        %5206 = vmatpush.xpose.msra.mxu0 0.0
        %5207 = vmatpush.xpose.msra.mxu0 0.0
        %5208 = vmatpush.xpose.msra.mxu0 0.0
        %5209 = vmatpush.xpose.msra.mxu0 0.0
        %5210 = vmatpush.xpose.msra.mxu0 0.0
        %5211 = vmatpush.xpose.msra.mxu0 0.0
        %5212 = vmatpush.xpose.msra.mxu0 0.0
        %5213 = vmatpush.xpose.msra.mxu0 0.0
        %5214 = vmatpush.xpose.msra.mxu0 0.0
        %5215 = vmatpush.xpose.msra.mxu0 0.0
        %5216 = vmatpush.xpose.msra.mxu0 %v5200
        %5217 = vmatpush.xpose.msra.mxu0 %v5198
        %5218 = vmatmul.f32.gmra.mxu0 %v5194
        %v5219 = vpop.f32.mrf.mxu0
        %v5220 = vadd.f32 0.0, %v5219
        %5221 = vmatmul.f32.gmra.mxu0 %v5196
        %v5222 = vpop.f32.mrf.mxu0
        %v5223 = vadd.f32 0.0, %v5222
        %5224 = vdwg.mxu0
        %v5225 = vsel %vm4021, %v5220, -1e+30
        %v5226 = vsel %vm4022, %v5223, -1e+30
        %v5227 = vsel %vm1900, %v5225, -inf
        %5228 = vmax.xlane.f32.xlu0 %v5227
        %v5229 = vpop.xlane.xlu0 %5228
        %v5230 = vsel %vm1900, %v5226, -inf
        %5231 = vmax.xlane.f32.xlu0 %v5230
        %v5232 = vpop.xlane.xlu0 %5231
        %v5233 = vsub.f32 %v5225, %v5229
        %v5234 = vsub.f32 %v5226, %v5232
        %v5235 = vmul.f32 %v5233, 1.442695
        %v5236 = vpow.pop %v5235
        %v5237 = vmul.f32 %v5234, 1.442695
        %v5238 = vpow.pop %v5237
        %v5239 = vsel %vm1900, %v5236, 0.0
        %5240 = vadd.xlane.f32.xlu0 %v5239
        %v5241 = vpop.xlane.xlu0 %5240
        %v5242 = vsel %vm1900, %v5238, 0.0
        %5243 = vadd.xlane.f32.xlu0 %v5242
        %v5244 = vpop.xlane.xlu0 %5243
        %v5245 = vrcp.pop %v5241
        %v5246 = vrcp.pop %v5244
        %v5247 = vmul.f32 %v5236, %v5245
        %v5248 = vmul.f32 %v5238, %v5246
        %5249 = vrot.lane.b32.xlu0 %v5183, 64
        %v5250 = vpop.permute.xlu0 %5249
        %5251 = vrot.lane.b32.xlu0 %v5186, 64
        %v5252 = vpop.permute.xlu0 %5251
        %v5256 = vsel %vm1900, %v5247, 0
        %v5259 = vsel %vm1900, %v5248, 0
        %5261 = vmatpush.msra.mxu0 0.0
        %5262 = vmatpush.msra.mxu0 0.0
        %5263 = vmatpush.msra.mxu0 0.0
        %5264 = vmatpush.msra.mxu0 0.0
        %5265 = vmatpush.msra.mxu0 0.0
        %5266 = vmatpush.msra.mxu0 0.0
        %5267 = vmatpush.msra.mxu0 0.0
        %5268 = vmatpush.msra.mxu0 0.0
        %5269 = vmatpush.msra.mxu0 0.0
        %5270 = vmatpush.msra.mxu0 0.0
        %5271 = vmatpush.msra.mxu0 0.0
        %5272 = vmatpush.msra.mxu0 0.0
        %5273 = vmatpush.msra.mxu0 0.0
        %5274 = vmatpush.msra.mxu0 0.0
        %5275 = vmatpush.msra.mxu0 %v5252
        %5276 = vmatpush.msra.mxu0 %v5250
        %5277 = vmatmul.f32.gmra.mxu0 %v5256
        %v5278 = vpop.f32.mrf.mxu0
        %v5279 = vadd.f32 0.0, %v5278
        %5280 = vmatmul.f32.gmra.mxu0 %v5259
        %v5281 = vpop.f32.mrf.mxu0
        %v5282 = vadd.f32 0.0, %v5281
        %5283 = vdwg.mxu0
        %5284 = vrot.lane.b32.xlu0 %v5183, 112
        %v5285 = vpop.permute.xlu0 %5284
        %5286 = vrot.lane.b32.xlu0 %v5186, 112
        %v5287 = vpop.permute.xlu0 %5286
        %5288 = vrot.lane.b32.xlu0 %v5183, 80
        %v5289 = vpop.permute.xlu0 %5288
        %5290 = vrot.lane.b32.xlu0 %v5186, 80
        %v5291 = vpop.permute.xlu0 %5290
        %v5292 = vsel %vm1900, %v5285, 0
        %v5294 = vsel %vm1900, %v5287, 0
        %v5296 = vsel %vm1900, %v5289, 0
        %v5298 = vsel %vm1900, %v5291, 0
        %5300 = vmatpush.xpose.msra.mxu0 0.0
        %5301 = vmatpush.xpose.msra.mxu0 0.0
        %5302 = vmatpush.xpose.msra.mxu0 0.0
        %5303 = vmatpush.xpose.msra.mxu0 0.0
        %5304 = vmatpush.xpose.msra.mxu0 0.0
        %5305 = vmatpush.xpose.msra.mxu0 0.0
        %5306 = vmatpush.xpose.msra.mxu0 0.0
        %5307 = vmatpush.xpose.msra.mxu0 0.0
        %5308 = vmatpush.xpose.msra.mxu0 0.0
        %5309 = vmatpush.xpose.msra.mxu0 0.0
        %5310 = vmatpush.xpose.msra.mxu0 0.0
        %5311 = vmatpush.xpose.msra.mxu0 0.0
        %5312 = vmatpush.xpose.msra.mxu0 0.0
        %5313 = vmatpush.xpose.msra.mxu0 0.0
        %5314 = vmatpush.xpose.msra.mxu0 %v5298
        %5315 = vmatpush.xpose.msra.mxu0 %v5296
        %5316 = vmatmul.f32.gmra.mxu0 %v5292
        %v5317 = vpop.f32.mrf.mxu0
        %v5318 = vadd.f32 0.0, %v5317
        %5319 = vmatmul.f32.gmra.mxu0 %v5294
        %v5320 = vpop.f32.mrf.mxu0
        %v5321 = vadd.f32 0.0, %v5320
        %5322 = vdwg.mxu0
        %v5323 = vsel %vm4021, %v5318, -1e+30
        %v5324 = vsel %vm4022, %v5321, -1e+30
        %v5325 = vsel %vm1900, %v5323, -inf
        %5326 = vmax.xlane.f32.xlu0 %v5325
        %v5327 = vpop.xlane.xlu0 %5326
        %v5328 = vsel %vm1900, %v5324, -inf
        %5329 = vmax.xlane.f32.xlu0 %v5328
        %v5330 = vpop.xlane.xlu0 %5329
        %v5331 = vsub.f32 %v5323, %v5327
        %v5332 = vsub.f32 %v5324, %v5330
        %v5333 = vmul.f32 %v5331, 1.442695
        %v5334 = vpow.pop %v5333
        %v5335 = vmul.f32 %v5332, 1.442695
        %v5336 = vpow.pop %v5335
        %v5337 = vsel %vm1900, %v5334, 0.0
        %5338 = vadd.xlane.f32.xlu0 %v5337
        %v5339 = vpop.xlane.xlu0 %5338
        %v5340 = vsel %vm1900, %v5336, 0.0
        %5341 = vadd.xlane.f32.xlu0 %v5340
        %v5342 = vpop.xlane.xlu0 %5341
        %v5343 = vrcp.pop %v5339
        %v5344 = vrcp.pop %v5342
        %v5345 = vmul.f32 %v5334, %v5343
        %v5346 = vmul.f32 %v5336, %v5344
        %5347 = vrot.lane.b32.xlu0 %v5183, 48
        %v5348 = vpop.permute.xlu0 %5347
        %5349 = vrot.lane.b32.xlu0 %v5186, 48
        %v5350 = vpop.permute.xlu0 %5349
        %v5354 = vsel %vm1900, %v5345, 0
        %v5357 = vsel %vm1900, %v5346, 0
        %5359 = vmatpush.msra.mxu0 0.0
        %5360 = vmatpush.msra.mxu0 0.0
        %5361 = vmatpush.msra.mxu0 0.0
        %5362 = vmatpush.msra.mxu0 0.0
        %5363 = vmatpush.msra.mxu0 0.0
        %5364 = vmatpush.msra.mxu0 0.0
        %5365 = vmatpush.msra.mxu0 0.0
        %5366 = vmatpush.msra.mxu0 0.0
        %5367 = vmatpush.msra.mxu0 0.0
        %5368 = vmatpush.msra.mxu0 0.0
        %5369 = vmatpush.msra.mxu0 0.0
        %5370 = vmatpush.msra.mxu0 0.0
        %5371 = vmatpush.msra.mxu0 0.0
        %5372 = vmatpush.msra.mxu0 0.0
        %5373 = vmatpush.msra.mxu0 %v5350
        %5374 = vmatpush.msra.mxu0 %v5348
        %5375 = vmatmul.f32.gmra.mxu0 %v5354
        %v5376 = vpop.f32.mrf.mxu0
        %v5377 = vadd.f32 0.0, %v5376
        %5378 = vmatmul.f32.gmra.mxu0 %v5357
        %v5379 = vpop.f32.mrf.mxu0
        %v5380 = vadd.f32 0.0, %v5379
        %5381 = vdwg.mxu0
        %v5383 = vsel %vm1900, %v5377, 0
        %v5386 = vsel %vm1900, %v5380, 0
        %5388 = vmatpush.msra.mxu0 0.0
        %5389 = vmatpush.msra.mxu0 0.0
        %5390 = vmatpush.msra.mxu0 0.0
        %5391 = vmatpush.msra.mxu0 0.0
        %5392 = vmatpush.msra.mxu0 0.0
        %5393 = vmatpush.msra.mxu0 0.0
        %5394 = vmatpush.msra.mxu0 0.0
        %5395 = vmatpush.msra.mxu0 0.0
        %5396 = vmatpush.msra.mxu0 0.0
        %5397 = vmatpush.msra.mxu0 0.0
        %5398 = vmatpush.msra.mxu0 0.0
        %5399 = vmatpush.msra.mxu0 0.0
        %5400 = vmatpush.msra.mxu0 0.0
        %5401 = vmatpush.msra.mxu0 0.0
        %5402 = vmatpush.msra.mxu0 %v5158
        %5403 = vmatpush.msra.mxu0 %v5157
        %5404 = vmatmul.f32.gmra.mxu0 %v5383
        %v5405 = vpop.f32.mrf.mxu0
        %v5406 = vadd.f32 0.0, %v5405
        %5407 = vmatmul.f32.gmra.mxu0 %v5386
        %v5408 = vpop.f32.mrf.mxu0
        %v5409 = vadd.f32 0.0, %v5408
        %5410 = vdwg.mxu0
        %v5412 = vsel %vm1900, %v5279, 0
        %v5415 = vsel %vm1900, %v5282, 0
        %5417 = vmatpush.msra.mxu0 0.0
        %5418 = vmatpush.msra.mxu0 0.0
        %5419 = vmatpush.msra.mxu0 0.0
        %5420 = vmatpush.msra.mxu0 0.0
        %5421 = vmatpush.msra.mxu0 0.0
        %5422 = vmatpush.msra.mxu0 0.0
        %5423 = vmatpush.msra.mxu0 0.0
        %5424 = vmatpush.msra.mxu0 0.0
        %5425 = vmatpush.msra.mxu0 0.0
        %5426 = vmatpush.msra.mxu0 0.0
        %5427 = vmatpush.msra.mxu0 0.0
        %5428 = vmatpush.msra.mxu0 0.0
        %5429 = vmatpush.msra.mxu0 0.0
        %5430 = vmatpush.msra.mxu0 0.0
        %5431 = vmatpush.msra.mxu0 %v5156
        %5432 = vmatpush.msra.mxu0 %v5155
        %5433 = vmatmul.f32.gmra.mxu0 %v5412
        %v5434 = vpop.f32.mrf.mxu0
        %v5435 = vadd.f32 %v5406, %v5434
        %5436 = vmatmul.f32.gmra.mxu0 %v5415
        %v5437 = vpop.f32.mrf.mxu0
        %v5438 = vadd.f32 %v5409, %v5437
        %5439 = vdwg.mxu0
        %v5440 = vadd.f32 %v5094, %v5435
        %v5441 = vadd.f32 %v5095, %v5438
        %s5442 = scalar_lea.vmem %s83, 2
        %v5443 = vld [vmem:[%s5442] sm:$0x1]
        %v5444 = vld [vmem:[%s5442 + $0x1] sm:$0x1]
        %v5445 = vsel %vm1746, %v5440, 0.0
        %5446 = vadd.xlane.f32.xlu0 %v5445
        %v5447 = vpop.xlane.xlu0 %5446
        %v5448 = vsel %vm1746, %v5441, 0.0
        %5449 = vadd.xlane.f32.xlu0 %v5448
        %v5450 = vpop.xlane.xlu0 %5449
        %v5451 = vmul.f32 %v5447, %v1777
        %v5452 = vmul.f32 %v5450, %v1777
        %v5453 = vsub.f32 %v5440, %v5451
        %v5454 = vsub.f32 %v5441, %v5452
        %v5455 = vmul.f32 %v5453, %v5453
        %v5456 = vmul.f32 %v5454, %v5454
        %v5457 = vsel %vm1746, %v5455, 0.0
        %5458 = vadd.xlane.f32.xlu0 %v5457
        %v5459 = vpop.xlane.xlu0 %5458
        %v5460 = vsel %vm1746, %v5456, 0.0
        %5461 = vadd.xlane.f32.xlu0 %v5460
        %v5462 = vpop.xlane.xlu0 %5461
        %v5463 = vmul.f32 %v5459, %v1777
        %v5464 = vmul.f32 %v5462, %v1777
        %v5465 = vadd.f32 %v5463, 1e-05
        %v5466 = vadd.f32 %v5464, 1e-05
        %v5467 = vrsqrt.pop %v5465
        %v5468 = vmul.f32 %v5467, %v5465
        %v5469 = vmul.f32 %v5468, %v5467
        %v5470 = vmul.f32 0.5, %v5469
        %v5471 = vsub.f32 1.5, %v5470
        %v5472 = vmul.f32 %v5467, %v5471
        %vm5473 = vweird.f32 %v5465
        %vm5474 = vweird.f32 %v5467
        %vm5475 = vmor %vm5473, %vm5474
        %v5476 = vsel %vm5475, %v5467, %v5472
        %v5477 = vrsqrt.pop %v5466
        %v5478 = vmul.f32 %v5477, %v5466
        %v5479 = vmul.f32 %v5478, %v5477
        %v5480 = vmul.f32 0.5, %v5479
        %v5481 = vsub.f32 1.5, %v5480
        %v5482 = vmul.f32 %v5477, %v5481
        %vm5483 = vweird.f32 %v5466
        %vm5484 = vweird.f32 %v5477
        %vm5485 = vmor %vm5483, %vm5484
        %v5486 = vsel %vm5485, %v5477, %v5482
        %v5487 = vmul.f32 %v5453, %v5476
        %v5488 = vmul.f32 %v5454, %v5486
        %v5489 = vperm.slane %v5443, 0
        %v5490 = vmul.f32 %v5487, %v5489
        %v5491 = vmul.f32 %v5488, %v5489
        %v5492 = vperm.slane %v5444, 0
        %v5493 = vadd.f32 %v5490, %v5492
        %v5494 = vadd.f32 %v5491, %v5492
        %s5495 = scalar_lea.vmem %s85, 32
        %v5496 = vld [vmem:[%s5495] sm:$0xff]
        %v5497 = vld [vmem:[%s5495 + $0x8] sm:$0xff]
        %v5498 = vld [vmem:[%s5495 + $0x10] sm:$0xff]
        %v5499 = vld [vmem:[%s5495 + $0x18] sm:$0xff]
        %s5500 = scalar_lea.vmem %s87, 32
        %v5501 = vld [vmem:[%s5500] sm:$0xff]
        %v5502 = vld [vmem:[%s5500 + $0x8] sm:$0xff]
        %v5503 = vld [vmem:[%s5500 + $0x10] sm:$0xff]
        %v5504 = vld [vmem:[%s5500 + $0x18] sm:$0xff]
        %s5505 = scalar_lea.vmem %s89, 32
        %v5506 = vld [vmem:[%s5505] sm:$0xff]
        %v5507 = vld [vmem:[%s5505 + $0x8] sm:$0xff]
        %v5508 = vld [vmem:[%s5505 + $0x10] sm:$0xff]
        %v5509 = vld [vmem:[%s5505 + $0x18] sm:$0xff]
        %v5511 = vsel %vm1746, %v5493, 0
        %v5514 = vsel %vm1746, %v5494, 0
        %5516 = vmatpush.msra.mxu0 0.0
        %5517 = vmatpush.msra.mxu0 0.0
        %5518 = vmatpush.msra.mxu0 0.0
        %5519 = vmatpush.msra.mxu0 0.0
        %5520 = vmatpush.msra.mxu0 0.0
        %5521 = vmatpush.msra.mxu0 0.0
        %5522 = vmatpush.msra.mxu0 0.0
        %5523 = vmatpush.msra.mxu0 0.0
        %5524 = vmatpush.msra.mxu0 0.0
        %5525 = vmatpush.msra.mxu0 0.0
        %5526 = vmatpush.msra.mxu0 0.0
        %5527 = vmatpush.msra.mxu0 0.0
        %5528 = vmatpush.msra.mxu0 %v5499
        %5529 = vmatpush.msra.mxu0 %v5498
        %5530 = vmatpush.msra.mxu0 %v5497
        %5531 = vmatpush.msra.mxu0 %v5496
        %5532 = vmatmul.f32.gmra.mxu0 %v5511
        %v5533 = vpop.f32.mrf.mxu0
        %v5534 = vadd.f32 0.0, %v5533
        %5535 = vmatmul.f32.gmra.mxu0 %v5514
        %v5536 = vpop.f32.mrf.mxu0
        %v5537 = vadd.f32 0.0, %v5536
        %5538 = vdwg.mxu0
        %5539 = vmatpush.msra.mxu0 0.0
        %5540 = vmatpush.msra.mxu0 0.0
        %5541 = vmatpush.msra.mxu0 0.0
        %5542 = vmatpush.msra.mxu0 0.0
        %5543 = vmatpush.msra.mxu0 0.0
        %5544 = vmatpush.msra.mxu0 0.0
        %5545 = vmatpush.msra.mxu0 0.0
        %5546 = vmatpush.msra.mxu0 0.0
        %5547 = vmatpush.msra.mxu0 0.0
        %5548 = vmatpush.msra.mxu0 0.0
        %5549 = vmatpush.msra.mxu0 0.0
        %5550 = vmatpush.msra.mxu0 0.0
        %5551 = vmatpush.msra.mxu0 %v5504
        %5552 = vmatpush.msra.mxu0 %v5503
        %5553 = vmatpush.msra.mxu0 %v5502
        %5554 = vmatpush.msra.mxu0 %v5501
        %5555 = vmatmul.f32.gmra.mxu0 %v4647
        %v5556 = vpop.f32.mrf.mxu0
        %v5557 = vadd.f32 0.0, %v5556
        %5558 = vdwg.mxu0
        %v5560 = vsel %vm1900, %v5557, 0
        %v5563 = vsel %vm1900, %v5534, 0
        %v5566 = vsel %vm1900, %v5537, 0
        %5568 = vmatpush.xpose.msra.mxu0 0.0
        %5569 = vmatpush.xpose.msra.mxu0 0.0
        %5570 = vmatpush.xpose.msra.mxu0 0.0
        %5571 = vmatpush.xpose.msra.mxu0 0.0
        %5572 = vmatpush.xpose.msra.mxu0 0.0
        %5573 = vmatpush.xpose.msra.mxu0 0.0
        %5574 = vmatpush.xpose.msra.mxu0 0.0
        %5575 = vmatpush.xpose.msra.mxu0 0.0
        %5576 = vmatpush.xpose.msra.mxu0 0.0
        %5577 = vmatpush.xpose.msra.mxu0 0.0
        %5578 = vmatpush.xpose.msra.mxu0 0.0
        %5579 = vmatpush.xpose.msra.mxu0 0.0
        %5580 = vmatpush.xpose.msra.mxu0 0.0
        %5581 = vmatpush.xpose.msra.mxu0 0.0
        %5582 = vmatpush.xpose.msra.mxu0 %v5566
        %5583 = vmatpush.xpose.msra.mxu0 %v5563
        %5584 = vmatmul.f32.gmra.mxu0 %v5560
        %v5585 = vpop.f32.mrf.mxu0
        %v5586 = vadd.f32 0.0, %v5585
        %5587 = vdwg.mxu0
        %v5588 = vsel %vm3432, %v5586, -inf
        %v5589 = vrot.slane %v5588, 4
        %v5590 = vmax.f32 %v5588, %v5589
        %v5591 = vrot.slane %v5590, 2
        %v5592 = vmax.f32 %v5590, %v5591
        %v5593 = vrot.slane %v5592, 1
        %v5594 = vmax.f32 %v5592, %v5593
        %v5595 = vsub.f32 %v5586, %v5594
        %v5596 = vmul.f32 %v5595, 1.442695
        %v5597 = vpow.pop %v5596
        %v5598 = vsel %vm3432, %v5597, 0.0
        %v5599 = vrot.slane %v5598, 4
        %v5600 = vadd.f32 %v5598, %v5599
        %v5601 = vrot.slane %v5600, 2
        %v5602 = vadd.f32 %v5600, %v5601
        %v5603 = vrot.slane %v5602, 1
        %v5604 = vadd.f32 %v5602, %v5603
        %v5605 = vrcp.pop %v5604
        %v5606 = vmul.f32 %v5597, %v5605
        %5607 = vxpose.xlu0.b32.start [1/16] %v5606, 128
        %5608 = vxpose.xlu0.b32.cont [2/16] 0.0, 128
        %5609 = vxpose.xlu0.b32.cont [3/16] 0.0, 128
        %5610 = vxpose.xlu0.b32.cont [4/16] 0.0, 128
        %5611 = vxpose.xlu0.b32.cont [5/16] 0.0, 128
        %5612 = vxpose.xlu0.b32.cont [6/16] 0.0, 128
        %5613 = vxpose.xlu0.b32.cont [7/16] 0.0, 128
        %5614 = vxpose.xlu0.b32.cont [8/16] 0.0, 128
        %5615 = vxpose.xlu0.b32.cont [9/16] 0.0, 128
        %5616 = vxpose.xlu0.b32.cont [10/16] 0.0, 128
        %5617 = vxpose.xlu0.b32.cont [11/16] 0.0, 128
        %5618 = vxpose.xlu0.b32.cont [12/16] 0.0, 128
        %5619 = vxpose.xlu0.b32.cont [13/16] 0.0, 128
        %5620 = vxpose.xlu0.b32.cont [14/16] 0.0, 128
        %5621 = vxpose.xlu0.b32.cont [15/16] 0.0, 128
        %5622 = vxpose.xlu0.b32.end [16/16] 0.0, 128
        %v5623 = vpop.trf.xlu0
        %v5624 = vpop.trf.xlu0
        %v5625 = vpop.trf.xlu0
        %v5626 = vpop.trf.xlu0
        %v5627 = vpop.trf.xlu0
        %v5628 = vpop.trf.xlu0
        %v5629 = vpop.trf.xlu0
        %v5630 = vpop.trf.xlu0
        %v5631 = vpop.trf.xlu0
        %v5632 = vpop.trf.xlu0
        %v5633 = vpop.trf.xlu0
        %v5634 = vpop.trf.xlu0
        %v5635 = vpop.trf.xlu0
        %v5636 = vpop.trf.xlu0
        %v5637 = vpop.trf.xlu0
        %v5638 = vpop.trf.xlu0
        %5639 = vrot.lane.b32.xlu0 %v5557, 96
        %v5640 = vpop.permute.xlu0 %5639
        %v5642 = vsel %vm4751, %v5623, 0
        %v5645 = vsel %vm4751, %v5624, 0
        %v5647 = vsel %vm4758, %v5640, 0
        %5649 = vmatpush.msra.mxu0 0.0
        %5650 = vmatpush.msra.mxu0 0.0
        %5651 = vmatpush.msra.mxu0 0.0
        %5652 = vmatpush.msra.mxu0 0.0
        %5653 = vmatpush.msra.mxu0 0.0
        %5654 = vmatpush.msra.mxu0 0.0
        %5655 = vmatpush.msra.mxu0 0.0
        %5656 = vmatpush.msra.mxu0 0.0
        %5657 = vmatpush.msra.mxu0 0.0
        %5658 = vmatpush.msra.mxu0 0.0
        %5659 = vmatpush.msra.mxu0 0.0
        %5660 = vmatpush.msra.mxu0 0.0
        %5661 = vmatpush.msra.mxu0 0.0
        %5662 = vmatpush.msra.mxu0 0.0
        %5663 = vmatpush.msra.mxu0 0.0
        %5664 = vmatpush.msra.mxu0 %v5647
        %5665 = vmatmul.f32.gmra.mxu0 %v5642
        %v5666 = vpop.f32.mrf.mxu0
        %v5667 = vadd.f32 0.0, %v5666
        %5668 = vmatmul.f32.gmra.mxu0 %v5645
        %v5669 = vpop.f32.mrf.mxu0
        %v5670 = vadd.f32 0.0, %v5669
        %5671 = vdwg.mxu0
        %5672 = vrot.lane.b32.xlu0 %v5557, 112
        %v5673 = vpop.permute.xlu0 %5672
        %5674 = vrot.lane.b32.xlu0 %v5534, 112
        %v5675 = vpop.permute.xlu0 %5674
        %5676 = vrot.lane.b32.xlu0 %v5537, 112
        %v5677 = vpop.permute.xlu0 %5676
        %v5678 = vsel %vm1900, %v5673, 0
        %v5680 = vsel %vm1900, %v5675, 0
        %v5682 = vsel %vm1900, %v5677, 0
        %5684 = vmatpush.xpose.msra.mxu0 0.0
        %5685 = vmatpush.xpose.msra.mxu0 0.0
        %5686 = vmatpush.xpose.msra.mxu0 0.0
        %5687 = vmatpush.xpose.msra.mxu0 0.0
        %5688 = vmatpush.xpose.msra.mxu0 0.0
        %5689 = vmatpush.xpose.msra.mxu0 0.0
        %5690 = vmatpush.xpose.msra.mxu0 0.0
        %5691 = vmatpush.xpose.msra.mxu0 0.0
        %5692 = vmatpush.xpose.msra.mxu0 0.0
        %5693 = vmatpush.xpose.msra.mxu0 0.0
        %5694 = vmatpush.xpose.msra.mxu0 0.0
        %5695 = vmatpush.xpose.msra.mxu0 0.0
        %5696 = vmatpush.xpose.msra.mxu0 0.0
        %5697 = vmatpush.xpose.msra.mxu0 0.0
        %5698 = vmatpush.xpose.msra.mxu0 %v5682
        %5699 = vmatpush.xpose.msra.mxu0 %v5680
        %5700 = vmatmul.f32.gmra.mxu0 %v5678
        %v5701 = vpop.f32.mrf.mxu0
        %v5702 = vadd.f32 0.0, %v5701
        %5703 = vdwg.mxu0
        %v5704 = vsel %vm3432, %v5702, -inf
        %v5705 = vrot.slane %v5704, 4
        %v5706 = vmax.f32 %v5704, %v5705
        %v5707 = vrot.slane %v5706, 2
        %v5708 = vmax.f32 %v5706, %v5707
        %v5709 = vrot.slane %v5708, 1
        %v5710 = vmax.f32 %v5708, %v5709
        %v5711 = vsub.f32 %v5702, %v5710
        %v5712 = vmul.f32 %v5711, 1.442695
        %v5713 = vpow.pop %v5712
        %v5714 = vsel %vm3432, %v5713, 0.0
        %v5715 = vrot.slane %v5714, 4
        %v5716 = vadd.f32 %v5714, %v5715
        %v5717 = vrot.slane %v5716, 2
        %v5718 = vadd.f32 %v5716, %v5717
        %v5719 = vrot.slane %v5718, 1
        %v5720 = vadd.f32 %v5718, %v5719
        %v5721 = vrcp.pop %v5720
        %v5722 = vmul.f32 %v5713, %v5721
        %5723 = vxpose.xlu0.b32.start [1/16] %v5722, 128
        %5724 = vxpose.xlu0.b32.cont [2/16] 0.0, 128
        %5725 = vxpose.xlu0.b32.cont [3/16] 0.0, 128
        %5726 = vxpose.xlu0.b32.cont [4/16] 0.0, 128
        %5727 = vxpose.xlu0.b32.cont [5/16] 0.0, 128
        %5728 = vxpose.xlu0.b32.cont [6/16] 0.0, 128
        %5729 = vxpose.xlu0.b32.cont [7/16] 0.0, 128
        %5730 = vxpose.xlu0.b32.cont [8/16] 0.0, 128
        %5731 = vxpose.xlu0.b32.cont [9/16] 0.0, 128
        %5732 = vxpose.xlu0.b32.cont [10/16] 0.0, 128
        %5733 = vxpose.xlu0.b32.cont [11/16] 0.0, 128
        %5734 = vxpose.xlu0.b32.cont [12/16] 0.0, 128
        %5735 = vxpose.xlu0.b32.cont [13/16] 0.0, 128
        %5736 = vxpose.xlu0.b32.cont [14/16] 0.0, 128
        %5737 = vxpose.xlu0.b32.cont [15/16] 0.0, 128
        %5738 = vxpose.xlu0.b32.end [16/16] 0.0, 128
        %v5739 = vpop.trf.xlu0
        %v5740 = vpop.trf.xlu0
        %v5741 = vpop.trf.xlu0
        %v5742 = vpop.trf.xlu0
        %v5743 = vpop.trf.xlu0
        %v5744 = vpop.trf.xlu0
        %v5745 = vpop.trf.xlu0
        %v5746 = vpop.trf.xlu0
        %v5747 = vpop.trf.xlu0
        %v5748 = vpop.trf.xlu0
        %v5749 = vpop.trf.xlu0
        %v5750 = vpop.trf.xlu0
        %v5751 = vpop.trf.xlu0
        %v5752 = vpop.trf.xlu0
        %v5753 = vpop.trf.xlu0
        %v5754 = vpop.trf.xlu0
        %5755 = vrot.lane.b32.xlu0 %v5557, 80
        %v5756 = vpop.permute.xlu0 %5755
        %v5758 = vsel %vm4751, %v5739, 0
        %v5761 = vsel %vm4751, %v5740, 0
        %v5763 = vsel %vm4758, %v5756, 0
        %5765 = vmatpush.msra.mxu0 0.0
        %5766 = vmatpush.msra.mxu0 0.0
        %5767 = vmatpush.msra.mxu0 0.0
        %5768 = vmatpush.msra.mxu0 0.0
        %5769 = vmatpush.msra.mxu0 0.0
        %5770 = vmatpush.msra.mxu0 0.0
        %5771 = vmatpush.msra.mxu0 0.0
        %5772 = vmatpush.msra.mxu0 0.0
        %5773 = vmatpush.msra.mxu0 0.0
        %5774 = vmatpush.msra.mxu0 0.0
        %5775 = vmatpush.msra.mxu0 0.0
        %5776 = vmatpush.msra.mxu0 0.0
        %5777 = vmatpush.msra.mxu0 0.0
        %5778 = vmatpush.msra.mxu0 0.0
        %5779 = vmatpush.msra.mxu0 0.0
        %5780 = vmatpush.msra.mxu0 %v5763
        %5781 = vmatmul.f32.gmra.mxu0 %v5758
        %v5782 = vpop.f32.mrf.mxu0
        %v5783 = vadd.f32 0.0, %v5782
        %5784 = vmatmul.f32.gmra.mxu0 %v5761
        %v5785 = vpop.f32.mrf.mxu0
        %v5786 = vadd.f32 0.0, %v5785
        %5787 = vdwg.mxu0
        %v5789 = vsel %vm1900, %v5783, 0
        %v5792 = vsel %vm1900, %v5786, 0
        %5794 = vmatpush.msra.mxu0 0.0
        %5795 = vmatpush.msra.mxu0 0.0
        %5796 = vmatpush.msra.mxu0 0.0
        %5797 = vmatpush.msra.mxu0 0.0
        %5798 = vmatpush.msra.mxu0 0.0
        %5799 = vmatpush.msra.mxu0 0.0
        %5800 = vmatpush.msra.mxu0 0.0
        %5801 = vmatpush.msra.mxu0 0.0
        %5802 = vmatpush.msra.mxu0 0.0
        %5803 = vmatpush.msra.mxu0 0.0
        %5804 = vmatpush.msra.mxu0 0.0
        %5805 = vmatpush.msra.mxu0 0.0
        %5806 = vmatpush.msra.mxu0 0.0
        %5807 = vmatpush.msra.mxu0 0.0
        %5808 = vmatpush.msra.mxu0 %v5509
        %5809 = vmatpush.msra.mxu0 %v5508
        %5810 = vmatmul.f32.gmra.mxu0 %v5789
        %v5811 = vpop.f32.mrf.mxu0
        %v5812 = vadd.f32 0.0, %v5811
        %5813 = vmatmul.f32.gmra.mxu0 %v5792
        %v5814 = vpop.f32.mrf.mxu0
        %v5815 = vadd.f32 0.0, %v5814
        %5816 = vdwg.mxu0
        %v5818 = vsel %vm1900, %v5667, 0
        %v5821 = vsel %vm1900, %v5670, 0
        %5823 = vmatpush.msra.mxu0 0.0
        %5824 = vmatpush.msra.mxu0 0.0
        %5825 = vmatpush.msra.mxu0 0.0
        %5826 = vmatpush.msra.mxu0 0.0
        %5827 = vmatpush.msra.mxu0 0.0
        %5828 = vmatpush.msra.mxu0 0.0
        %5829 = vmatpush.msra.mxu0 0.0
        %5830 = vmatpush.msra.mxu0 0.0
        %5831 = vmatpush.msra.mxu0 0.0
        %5832 = vmatpush.msra.mxu0 0.0
        %5833 = vmatpush.msra.mxu0 0.0
        %5834 = vmatpush.msra.mxu0 0.0
        %5835 = vmatpush.msra.mxu0 0.0
        %5836 = vmatpush.msra.mxu0 0.0
        %5837 = vmatpush.msra.mxu0 %v5507
        %5838 = vmatpush.msra.mxu0 %v5506
        %5839 = vmatmul.f32.gmra.mxu0 %v5818
        %v5840 = vpop.f32.mrf.mxu0
        %v5841 = vadd.f32 %v5812, %v5840
        %5842 = vmatmul.f32.gmra.mxu0 %v5821
        %v5843 = vpop.f32.mrf.mxu0
        %v5844 = vadd.f32 %v5815, %v5843
        %5845 = vdwg.mxu0
        %v5846 = vadd.f32 %v5606, %v5722
        %v5847 = vadd.f32 %v5440, %v5841
        %v5848 = vadd.f32 %v5441, %v5844
        %s5849 = scalar_lea.vmem %s91, 2
        %v5850 = vld [vmem:[%s5849] sm:$0x1]
        %v5851 = vld [vmem:[%s5849 + $0x1] sm:$0x1]
        %v5852 = vsel %vm1746, %v5847, 0.0
        %5853 = vadd.xlane.f32.xlu0 %v5852
        %v5854 = vpop.xlane.xlu0 %5853
        %v5855 = vsel %vm1746, %v5848, 0.0
        %5856 = vadd.xlane.f32.xlu0 %v5855
        %v5857 = vpop.xlane.xlu0 %5856
        %v5858 = vmul.f32 %v5854, %v1777
        %v5859 = vmul.f32 %v5857, %v1777
        %v5860 = vsub.f32 %v5847, %v5858
        %v5861 = vsub.f32 %v5848, %v5859
        %v5862 = vmul.f32 %v5860, %v5860
        %v5863 = vmul.f32 %v5861, %v5861
        %v5864 = vsel %vm1746, %v5862, 0.0
        %5865 = vadd.xlane.f32.xlu0 %v5864
        %v5866 = vpop.xlane.xlu0 %5865
        %v5867 = vsel %vm1746, %v5863, 0.0
        %5868 = vadd.xlane.f32.xlu0 %v5867
        %v5869 = vpop.xlane.xlu0 %5868
        %v5870 = vmul.f32 %v5866, %v1777
        %v5871 = vmul.f32 %v5869, %v1777
        %v5872 = vadd.f32 %v5870, 1e-05
        %v5873 = vadd.f32 %v5871, 1e-05
        %v5874 = vrsqrt.pop %v5872
        %v5875 = vmul.f32 %v5874, %v5872
        %v5876 = vmul.f32 %v5875, %v5874
        %v5877 = vmul.f32 0.5, %v5876
        %v5878 = vsub.f32 1.5, %v5877
        %v5879 = vmul.f32 %v5874, %v5878
        %vm5880 = vweird.f32 %v5872
        %vm5881 = vweird.f32 %v5874
        %vm5882 = vmor %vm5880, %vm5881
        %v5883 = vsel %vm5882, %v5874, %v5879
        %v5884 = vrsqrt.pop %v5873
        %v5885 = vmul.f32 %v5884, %v5873
        %v5886 = vmul.f32 %v5885, %v5884
        %v5887 = vmul.f32 0.5, %v5886
        %v5888 = vsub.f32 1.5, %v5887
        %v5889 = vmul.f32 %v5884, %v5888
        %vm5890 = vweird.f32 %v5873
        %vm5891 = vweird.f32 %v5884
        %vm5892 = vmor %vm5890, %vm5891
        %v5893 = vsel %vm5892, %v5884, %v5889
        %v5894 = vmul.f32 %v5860, %v5883
        %v5895 = vmul.f32 %v5861, %v5893
        %v5896 = vperm.slane %v5850, 0
        %v5897 = vmul.f32 %v5894, %v5896
        %v5898 = vmul.f32 %v5895, %v5896
        %v5899 = vperm.slane %v5851, 0
        %v5900 = vadd.f32 %v5897, %v5899
        %v5901 = vadd.f32 %v5898, %v5899
        %s5902 = scalar_lea.vmem %s93, 32
        %v5903 = vld [vmem:[%s5902] sm:$0xff]
        %v5904 = vld [vmem:[%s5902 + $0x8] sm:$0xff]
        %v5905 = vld [vmem:[%s5902 + $0x10] sm:$0xff]
        %v5906 = vld [vmem:[%s5902 + $0x18] sm:$0xff]
        %s5907 = scalar_lea.vmem [#allocation14], 1
        %v5908 = vld [vmem:[%s5907] sm:$0x1]
        %v5910 = vperm.slane %v5908, 0
        %v5913 = vsel %vm1746, %v5900, 0
        %v5916 = vsel %vm1746, %v5901, 0
        %5918 = vmatpush.msra.mxu0 0.0
        %5919 = vmatpush.msra.mxu0 0.0
        %5920 = vmatpush.msra.mxu0 0.0
        %5921 = vmatpush.msra.mxu0 0.0
        %5922 = vmatpush.msra.mxu0 0.0
        %5923 = vmatpush.msra.mxu0 0.0
        %5924 = vmatpush.msra.mxu0 0.0
        %5925 = vmatpush.msra.mxu0 0.0
        %5926 = vmatpush.msra.mxu0 0.0
        %5927 = vmatpush.msra.mxu0 0.0
        %5928 = vmatpush.msra.mxu0 0.0
        %5929 = vmatpush.msra.mxu0 0.0
        %5930 = vmatpush.msra.mxu0 %v5906
        %5931 = vmatpush.msra.mxu0 %v5905
        %5932 = vmatpush.msra.mxu0 %v5904
        %5933 = vmatpush.msra.mxu0 %v5903
        %5934 = vmatmul.f32.gmra.mxu0 %v5913
        %v5935 = vpop.f32.mrf.mxu0
        %v5936 = vadd.f32 %v5910, %v5935
        %5937 = vmatmul.f32.gmra.mxu0 %v5916
        %v5938 = vpop.f32.mrf.mxu0
        %v5939 = vadd.f32 %v5910, %v5938
        %5940 = vdwg.mxu0
        %v5941 = vmax.f32 %v5936, 0.0
        %v5942 = vmax.f32 %v5939, 0.0
        %s5943 = scalar_lea.vmem %s97, 128
        %v5944 = vld [vmem:[%s5943] sm:$0xff]
        %v5945 = vld [vmem:[%s5943 + $0x8] sm:$0xff]
        %v5946 = vld [vmem:[%s5943 + $0x10] sm:$0xff]
        %v5947 = vld [vmem:[%s5943 + $0x18] sm:$0xff]
        %v5948 = vld [vmem:[%s5943 + $0x20] sm:$0xff]
        %v5949 = vld [vmem:[%s5943 + $0x28] sm:$0xff]
        %v5950 = vld [vmem:[%s5943 + $0x30] sm:$0xff]
        %v5951 = vld [vmem:[%s5943 + $0x38] sm:$0xff]
        %v5952 = vld [vmem:[%s5943 + $0x40] sm:$0xff]
        %v5953 = vld [vmem:[%s5943 + $0x48] sm:$0xff]
        %v5954 = vld [vmem:[%s5943 + $0x50] sm:$0xff]
        %v5955 = vld [vmem:[%s5943 + $0x58] sm:$0xff]
        %v5956 = vld [vmem:[%s5943 + $0x60] sm:$0xff]
        %v5957 = vld [vmem:[%s5943 + $0x68] sm:$0xff]
        %v5958 = vld [vmem:[%s5943 + $0x70] sm:$0xff]
        %v5959 = vld [vmem:[%s5943 + $0x78] sm:$0xff]
        %s5960 = scalar_lea.vmem [#allocation16], 1
        %v5961 = vld [vmem:[%s5960] sm:$0x1]
        %v5963 = vperm.slane %v5961, 0
        %5965 = vmatpush.msra.mxu0 %v5959
        %5966 = vmatpush.msra.mxu0 %v5958
        %5967 = vmatpush.msra.mxu0 %v5957
        %5968 = vmatpush.msra.mxu0 %v5956
        %5969 = vmatpush.msra.mxu0 %v5955
        %5970 = vmatpush.msra.mxu0 %v5954
        %5971 = vmatpush.msra.mxu0 %v5953
        %5972 = vmatpush.msra.mxu0 %v5952
        %5973 = vmatpush.msra.mxu0 %v5951
        %5974 = vmatpush.msra.mxu0 %v5950
        %5975 = vmatpush.msra.mxu0 %v5949
        %5976 = vmatpush.msra.mxu0 %v5948
        %5977 = vmatpush.msra.mxu0 %v5947
        %5978 = vmatpush.msra.mxu0 %v5946
        %5979 = vmatpush.msra.mxu0 %v5945
        %5980 = vmatpush.msra.mxu0 %v5944
        %5981 = vmatmul.f32.gmra.mxu0 %v5941
        %v5982 = vpop.f32.mrf.mxu0
        %v5983 = vadd.f32 %v5963, %v5982
        %5984 = vmatmul.f32.gmra.mxu0 %v5942
        %v5985 = vpop.f32.mrf.mxu0
        %v5986 = vadd.f32 %v5963, %v5985
        %5987 = vdwg.mxu0
        %v5988 = vadd.f32 %v5847, %v5983
        %v5989 = vadd.f32 %v5848, %v5986
        %v5990 = vld [vmem:[#allocation17] sm:$0x1]
        %v5991 = vld [vmem:[#allocation17 + $0x1] sm:$0x1]
        %v5992 = vsel %vm1746, %v5988, 0.0
        %5993 = vadd.xlane.f32.xlu0 %v5992
        %v5994 = vpop.xlane.xlu0 %5993
        %v5995 = vsel %vm1746, %v5989, 0.0
        %5996 = vadd.xlane.f32.xlu0 %v5995
        %v5997 = vpop.xlane.xlu0 %5996
        %v5998 = vmul.f32 %v5994, %v1777
        %v5999 = vmul.f32 %v5997, %v1777
        %v6000 = vsub.f32 %v5988, %v5998
        %v6001 = vsub.f32 %v5989, %v5999
        %v6002 = vmul.f32 %v6000, %v6000
        %v6003 = vmul.f32 %v6001, %v6001
        %v6004 = vsel %vm1746, %v6002, 0.0
        %6005 = vadd.xlane.f32.xlu0 %v6004
        %v6006 = vpop.xlane.xlu0 %6005
        %v6007 = vsel %vm1746, %v6003, 0.0
        %6008 = vadd.xlane.f32.xlu0 %v6007
        %v6009 = vpop.xlane.xlu0 %6008
        %v6010 = vmul.f32 %v6006, %v1777
        %v6011 = vmul.f32 %v6009, %v1777
        %v6012 = vadd.f32 %v6010, 1e-05
        %v6013 = vadd.f32 %v6011, 1e-05
        %v6014 = vrsqrt.pop %v6012
        %v6015 = vmul.f32 %v6014, %v6012
        %v6016 = vmul.f32 %v6015, %v6014
        %v6017 = vmul.f32 0.5, %v6016
        %v6018 = vsub.f32 1.5, %v6017
        %v6019 = vmul.f32 %v6014, %v6018
        %vm6020 = vweird.f32 %v6012
        %vm6021 = vweird.f32 %v6014
        %vm6022 = vmor %vm6020, %vm6021
        %v6023 = vsel %vm6022, %v6014, %v6019
        %v6024 = vrsqrt.pop %v6013
        %v6025 = vmul.f32 %v6024, %v6013
        %v6026 = vmul.f32 %v6025, %v6024
        %v6027 = vmul.f32 0.5, %v6026
        %v6028 = vsub.f32 1.5, %v6027
        %v6029 = vmul.f32 %v6024, %v6028
        %vm6030 = vweird.f32 %v6013
        %vm6031 = vweird.f32 %v6024
        %vm6032 = vmor %vm6030, %vm6031
        %v6033 = vsel %vm6032, %v6024, %v6029
        %v6034 = vmul.f32 %v6000, %v6023
        %v6035 = vmul.f32 %v6001, %v6033
        %v6036 = vperm.slane %v5990, 0
        %v6037 = vmul.f32 %v6034, %v6036
        %v6038 = vmul.f32 %v6035, %v6036
        %v6039 = vperm.slane %v5991, 0
        %v6040 = vadd.f32 %v6037, %v6039
        %v6041 = vadd.f32 %v6038, %v6039
        %6042 = vst.msk [vmem:[%s1703] sm:$0xff] %vm1746, %v6040
        %6043 = vst.msk [vmem:[%s1703 + $0x8] sm:$0xff] %vm1746, %v6041
        %6045 = vst.msk [vmem:[%s1703 + $0x10] sm:$0xf] %vm3349, %v4159
        %v6046 = vsel %vm3432, %v5846, 0.0
        %v6047 = vrot.slane %v6046, 4
        %v6048 = vadd.f32 %v6046, %v6047
        %v6049 = vrot.slane %v6048, 2
        %v6050 = vadd.f32 %v6048, %v6049
        %v6051 = vrot.slane %v6050, 1
        %v6052 = vadd.f32 %v6050, %v6051
        %v6053 = vrcp.pop %v6052
        %v6054 = vmul.f32 %v5846, %v6053
        %v6055 = vsub.f32 %v3131, %v6040
        %v6056 = vsub.f32 %v3132, %v6041
        %v6057 = vmul.f32 %v6055, %v6055
        %v6058 = vmul.f32 %v6056, %v6056
        %v6059 = vsel %vm1746, %v6057, 0.0
        %6060 = vadd.xlane.f32.xlu0 %v6059
        %v6061 = vpop.xlane.xlu0 %6060
        %v6062 = vsel %vm1746, %v6058, 0.0
        %6063 = vadd.xlane.f32.xlu0 %v6062
        %v6064 = vpop.xlane.xlu0 %6063
        %v6065 = vadd.f32 %v6061, %v6064
        %v6066 = vrot.slane %v6065, 4
        %v6067 = vadd.f32 %v6065, %v6066
        %v6068 = vrot.slane %v6067, 2
        %v6069 = vadd.f32 %v6067, %v6068
        %v6070 = vrot.slane %v6069, 1
        %v6071 = vadd.f32 %v6069, %v6070
        %vm6072 = vcmp.eq.s32.totalorder %v4020, %v4017
        %vm6073 = vcmp.eq.s32.totalorder %v4020, %v4018
        %v6074 = vsel %vm6072, 1, 0
        %v6075 = vsel %vm6073, 1, 0
        %v6076 = vcvt.s32.f32 %v6074
        %v6077 = vcvt.s32.f32 %v6075
        %v6078 = vadd.s32 %v4017, 16
        %v6079 = vadd.s32 %v4018, 16
        %vm6080 = vcmp.eq.s32.totalorder %v4020, %v6078
        %vm6081 = vcmp.eq.s32.totalorder %v4020, %v6079
        %v6082 = vsel %vm6080, 1, 0
        %v6083 = vsel %vm6081, 1, 0
        %v6084 = vcvt.s32.f32 %v6082
        %v6085 = vcvt.s32.f32 %v6083
        %v6087 = vsel %vm1900, %v6054, 0
        %6089 = vmatpush.msra.mxu0 0.0
        %6090 = vmatpush.msra.mxu0 0.0
        %6091 = vmatpush.msra.mxu0 0.0
        %6092 = vmatpush.msra.mxu0 0.0
        %6093 = vmatpush.msra.mxu0 0.0
        %6094 = vmatpush.msra.mxu0 0.0
        %6095 = vmatpush.msra.mxu0 0.0
        %6096 = vmatpush.msra.mxu0 0.0
        %6097 = vmatpush.msra.mxu0 0.0
        %6098 = vmatpush.msra.mxu0 0.0
        %6099 = vmatpush.msra.mxu0 0.0
        %6100 = vmatpush.msra.mxu0 0.0
        %6101 = vmatpush.msra.mxu0 0.0
        %6102 = vmatpush.msra.mxu0 0.0
        %6103 = vmatpush.msra.mxu0 %v6085
        %6104 = vmatpush.msra.mxu0 %v6084
        %6105 = vmatmul.f32.gmra.mxu0 %v6087
        %v6106 = vpop.f32.mrf.mxu0
        %v6107 = vadd.f32 0.0, %v6106
        %6108 = vdwg.mxu0
        %v6110 = vsel %vm1900, %v3816, 0
        %6112 = vmatpush.msra.mxu0 0.0
        %6113 = vmatpush.msra.mxu0 0.0
        %6114 = vmatpush.msra.mxu0 0.0
        %6115 = vmatpush.msra.mxu0 0.0
        %6116 = vmatpush.msra.mxu0 0.0
        %6117 = vmatpush.msra.mxu0 0.0
        %6118 = vmatpush.msra.mxu0 0.0
        %6119 = vmatpush.msra.mxu0 0.0
        %6120 = vmatpush.msra.mxu0 0.0
        %6121 = vmatpush.msra.mxu0 0.0
        %6122 = vmatpush.msra.mxu0 0.0
        %6123 = vmatpush.msra.mxu0 0.0
        %6124 = vmatpush.msra.mxu0 0.0
        %6125 = vmatpush.msra.mxu0 0.0
        %6126 = vmatpush.msra.mxu0 %v6077
        %6127 = vmatpush.msra.mxu0 %v6076
        %6128 = vmatmul.f32.gmra.mxu0 %v6110
        %v6129 = vpop.f32.mrf.mxu0
        %v6130 = vadd.f32 %v6107, %v6129
        %6131 = vdwg.mxu0
        %v6132 = vadd.s32 %v4017, 32
        %v6133 = vadd.s32 %v4018, 32
        %vm6134 = vcmp.eq.s32.totalorder %v4020, %v6132
        %vm6135 = vcmp.eq.s32.totalorder %v4020, %v6133
        %v6136 = vsel %vm6134, 1, 0
        %v6137 = vsel %vm6135, 1, 0
        %v6138 = vcvt.s32.f32 %v6136
        %v6139 = vcvt.s32.f32 %v6137
        %v6141 = vsel %vm1900, %v3796, 0
        %6143 = vmatpush.msra.mxu0 0.0
        %6144 = vmatpush.msra.mxu0 0.0
        %6145 = vmatpush.msra.mxu0 0.0
        %6146 = vmatpush.msra.mxu0 0.0
        %6147 = vmatpush.msra.mxu0 0.0
        %6148 = vmatpush.msra.mxu0 0.0
        %6149 = vmatpush.msra.mxu0 0.0
        %6150 = vmatpush.msra.mxu0 0.0
        %6151 = vmatpush.msra.mxu0 0.0
        %6152 = vmatpush.msra.mxu0 0.0
        %6153 = vmatpush.msra.mxu0 0.0
        %6154 = vmatpush.msra.mxu0 0.0
        %6155 = vmatpush.msra.mxu0 0.0
        %6156 = vmatpush.msra.mxu0 0.0
        %6157 = vmatpush.msra.mxu0 %v6139
        %6158 = vmatpush.msra.mxu0 %v6138
        %6159 = vmatmul.f32.gmra.mxu0 %v6141
        %v6160 = vpop.f32.mrf.mxu0
        %v6161 = vadd.f32 0.0, %v6160
        %6162 = vdwg.mxu0
        %v6163 = vadd.f32 %v6130, %v6161
        %v6164 = vadd.s32 %v4017, 48
        %v6165 = vadd.s32 %v4018, 48
        %vm6166 = vcmp.eq.s32.totalorder %v4020, %v6164
        %vm6167 = vcmp.eq.s32.totalorder %v4020, %v6165
        %v6168 = vsel %vm6166, 1, 0
        %v6169 = vsel %vm6167, 1, 0
        %v6170 = vcvt.s32.f32 %v6168
        %v6171 = vcvt.s32.f32 %v6169
        %v6173 = vsel %vm1900, %v6071, 0
        %6175 = vmatpush.msra.mxu0 0.0
        %6176 = vmatpush.msra.mxu0 0.0
        %6177 = vmatpush.msra.mxu0 0.0
        %6178 = vmatpush.msra.mxu0 0.0
        %6179 = vmatpush.msra.mxu0 0.0
        %6180 = vmatpush.msra.mxu0 0.0
        %6181 = vmatpush.msra.mxu0 0.0
        %6182 = vmatpush.msra.mxu0 0.0
        %6183 = vmatpush.msra.mxu0 0.0
        %6184 = vmatpush.msra.mxu0 0.0
        %6185 = vmatpush.msra.mxu0 0.0
        %6186 = vmatpush.msra.mxu0 0.0
        %6187 = vmatpush.msra.mxu0 0.0
        %6188 = vmatpush.msra.mxu0 0.0
        %6189 = vmatpush.msra.mxu0 %v6171
        %6190 = vmatpush.msra.mxu0 %v6170
        %6191 = vmatmul.f32.gmra.mxu0 %v6173
        %v6192 = vpop.f32.mrf.mxu0
        %v6193 = vadd.f32 0.0, %v6192
        %6194 = vdwg.mxu0
        %v6195 = vadd.f32 %v6163, %v6193
        %vm6196 = vcmask 519168
        %6197 = vst.msk [vmem:[%s1707] sm:$0xf] %vm6196, %v6195
        %p6198 = scmp.lt.s32.totalorder %s123, 1
        %s6199 = scalar_select %p6198, %s123, 1
        %s6200 = smul.addr %s6199, 3
        %s6201 = smul.addr %s6200, 8
        %s6202 = scalar_lea.vmem %s103, %s6201
        %p6203 = scmp.lt.s32.totalorder %s123, 1
        %s6204 = scalar_select %p6203, %s123, 1
        %s6205 = smul.addr %s6204, 4
        %s6206 = scalar_lea.vmem %s105, %s6205
        // Predicated region
        $region265: #{dino_slot_forward.1} parent=223 // pred_check
          %p6207 = pneg %p1217
        $region266: #{dino_slot_forward.1} parent=223 // pred_check_branch
          %6209 = sbr.rel (%p6207) target = $region268
        $region267: #{dino_slot_forward.1} parent=223 // pred_region
          _
        $region268: #{dino_slot_forward.1} parent=223 // pred_fallthru
          _
        // Predicated region
        $region269: #{dino_slot_forward.1} parent=223 // pred_check
          %p6210 = pneg %p1243
        $region270: #{dino_slot_forward.1} parent=223 // pred_check_branch
          %6212 = sbr.rel (%p6210) target = $region272
        $region271: #{dino_slot_forward.1} parent=223 // pred_region
          _
        $region272: #{dino_slot_forward.1} parent=223 // pred_fallthru
          _
      $region224: #{dino_slot_forward.1} parent=5 // pred_fallthru
        _
      %p6213 = scmp.le.s32.totalorder 2, %s118
      // Predicated region
      $region273: #{dino_slot_forward.1} parent=5 // pred_check
        %p6214 = pneg %p6213
      $region274: #{dino_slot_forward.1} parent=5 // pred_check_branch
        %6216 = sbr.rel (%p6214) target = $region276
      $region275: #{dino_slot_forward.1} parent=5 // pred_region
        %s6217 = ssub.s32 %s118, 2
        // Predicated region
        $region277: #{dino_slot_forward.1} parent=275 // pred_check
          %p6218 = pneg %p1223
        $region278: #{dino_slot_forward.1} parent=275 // pred_check_branch
          %6220 = sbr.rel (%p6218) target = $region280
        $region279: #{dino_slot_forward.1} parent=275 // pred_region
          %p6221 = scmp.lt.s32.totalorder %s124, 1
          %s6222 = scalar_select %p6221, %s124, 1
          %s6223 = smul.addr %s6222, 3
          %s6224 = smul.addr %s6223, 8
          %s6225 = scalar_lea.vmem %s103, %s6224
        $region280: #{dino_slot_forward.1} parent=275 // pred_fallthru
          _
        // Predicated region
        $region281: #{dino_slot_forward.1} parent=275 // pred_check
          %p6226 = pneg %p1249
        $region282: #{dino_slot_forward.1} parent=275 // pred_check_branch
          %6228 = sbr.rel (%p6226) target = $region284
        $region283: #{dino_slot_forward.1} parent=275 // pred_region
          %p6229 = scmp.lt.s32.totalorder %s124, 1
          %s6230 = scalar_select %p6229, %s124, 1
          %s6231 = smul.addr %s6230, 4
          %s6232 = scalar_lea.vmem %s105, %s6231
        $region284: #{dino_slot_forward.1} parent=275 // pred_fallthru
          _
      $region276: #{dino_slot_forward.1} parent=5 // pred_fallthru
        _
    $region6: #{dino_slot_forward.1} parent=1 // loop_footer
      %s122 = sadd.s32 1, %s118
    $region7: #{dino_slot_forward.1} parent=1 // loop_footer_branch
      %117 = sbr.rel target = $region3
    $region8: #{dino_slot_forward.1} parent=1 // loop_exit
      _
    %6233 = vsyncpa [#allocation4], 1
    %s6234 = scalar_lea.sflag [#allocation4], 1
    %6235 = vsyncpa %s6234, 1
    %6236 = vsyncpa [#allocation6], 1
    %6237 = vsyncpa [#allocation9], 1
    %6238 = vsyncpa [#allocation12], 1
    %6239 = vsyncpa [#allocation15], 1
    %6240 = vsyncpa [#allocation18], 1

</llo_original>
